<compile_context>
chip_gen: v5e
topology: v5e:2x2
jax: 0.10.0
libtpu: 0.0.40
codegen_flags: <defaults>
</compile_context>

<pallas_src>
import functools

import jax
import jax.numpy as jnp
import numpy as np
from jax.experimental import pallas as pl
from jax.experimental.pallas import tpu as pltpu


# ---------------------------------------------------------------------------
# Kernel (single grid-less invocation, fully unrolled recurrence)
# ---------------------------------------------------------------------------
def critic_kernel(x_ref, h0_ref, c0_ref,
                  w12_ref, b12_ref,
                  wih0_ref, b0_ref,
                  wih_ref, blstm_ref, whh_ref,
                  w3fc_ref, w3b_ref, b3_ref,
                  w4_ref, b4_ref,
                  out_ref, hT_ref, cT_ref,
                  *, seq_len, batch, num_layers, hidden_dim):
    T, B, L, H = seq_len, batch, num_layers, hidden_dim
    f32 = jnp.float32

    # ---- fused linear1/linear2 over all T*B rows: [fc | z] in one matmul ---
    fcz = jnp.maximum(
        jnp.dot(x_ref[...], w12_ref[...], preferred_element_type=f32)
        + b12_ref[...], 0.0)                                      # (T*B, 2H)

    # ---- layer-0 LSTM input projection, batched & per-gate -----------------
    # wih0_ref[g] is (2H, H) with zeros on the fc rows, so the joint slab is
    # consumed directly (no lane slicing); bias & x2 g-gate scale pre-folded.
    xp = [jnp.dot(fcz, wih0_ref[g], preferred_element_type=f32) + b0_ref[g]
          for g in range(4)]                                      # 4 x (T*B, H)

    # ---- fc-branch contribution to linear3, batched -------------------------
    fc3 = jnp.dot(fcz, w3fc_ref[...], preferred_element_type=f32)  # (T*B, H)

    # ---- recurrence: only h @ W_hh (and layer>=1 input proj) is serial -----
    h = [h0_ref[l] for l in range(L)]
    c = [c0_ref[l] for l in range(L)]
    outs = []
    for t in range(T):                    # T, L small compile-time constants
        r0 = t * B                        # B multiple of 8 -> tile-aligned rows
        x_in = None
        for l in range(L):
            if l == 0:
                pre = [xp[g][r0:r0 + B, :] for g in range(4)]      # sublane slice
            else:
                pre = [jnp.dot(x_in, wih_ref[l, g], preferred_element_type=f32)
                       + blstm_ref[l, g] for g in range(4)]
            z = [pre[g] + jnp.dot(h[l], whh_ref[l, g],
                                  preferred_element_type=f32)      # (B, H) each
                 for g in range(4)]
            # PyTorch gate order: i, f, g, o. g-gate weights were pre-scaled
            # by 2, so tanh(x) == 2*sigmoid(2x) - 1 uses a single EUP family.
            i_g = jax.nn.sigmoid(z[0])
            f_g = jax.nn.sigmoid(z[1])
            g_g = 2.0 * jax.nn.sigmoid(z[2]) - 1.0
            o_g = jax.nn.sigmoid(z[3])
            c_new = f_g * c[l] + i_g * g_g
            h_new = o_g * jnp.tanh(c_new)
            c[l] = c_new
            h[l] = h_new
            x_in = h_new
        outs.append(x_in)
    lstm_out = jnp.concatenate(outs, axis=0)                      # (T*B, H)

    # ---- batched epilogue: linear3 (lstm half) + relu + linear4 ------------
    x3 = jnp.maximum(
        fc3 + jnp.dot(lstm_out, w3b_ref[...], preferred_element_type=f32)
        + b3_ref[...], 0.0)                                       # (T*B, H)

    # linear4 (single unit): (1,H) x (T*B,H)^T -> lane-dense (1, T*B) output.
    q = jax.lax.dot_general(
        w4_ref[...], x3, dimension_numbers=(((1,), (1,)), ((), ())),
        preferred_element_type=f32) + b4_ref[0, 0]
    out_ref[...] = q

    # Single write-back of the hidden state.
    for l in range(L):
        hT_ref[l] = h[l]
        cT_ref[l] = c[l]


# ---------------------------------------------------------------------------
# One-time weight packing (off the per-forward path)
# ---------------------------------------------------------------------------
def pack_params(params, *, state_dim, action_dim, hidden_dim, num_layers):
    S, A, H, L = state_dim, action_dim, hidden_dim, num_layers
    f32 = jnp.float32

    # Fused linear1/linear2 block weight over X = [state | action | last_action].
    w1t = params["w1"].T.astype(f32)            # (S+A, H)
    w2t = params["w2"].T.astype(f32)            # (S+A, H)
    w12 = jnp.zeros((S + 2 * A, 2 * H), f32)
    w12 = w12.at[:S, :H].set(w1t[:S])           # state       -> fc branch
    w12 = w12.at[S:S + A, :H].set(w1t[S:])      # action      -> fc branch
    w12 = w12.at[:S, H:].set(w2t[:S])           # state       -> lstm branch
    w12 = w12.at[S + A:, H:].set(w2t[S:])       # last_action -> lstm branch
    b12 = jnp.concatenate([params["b1"], params["b2"]])[None, :]   # (1, 2H)

    # Per-gate LSTM blocks (PyTorch gate order i, f, g, o); g-gate pre-scaled
    # by 2 so the kernel can evaluate tanh(x) as 2*sigmoid(2x) - 1.
    def split_gates(w_t):                        # (H_in, 4H) -> (4, H_in, H)
        return jnp.stack([w_t[:, g * H:(g + 1) * H] * (2.0 if g == 2 else 1.0)
                          for g in range(4)])

    wih = jnp.stack([split_gates(params["wih"][l].T.astype(f32))
                     for l in range(L)])                           # (L,4,H,H)
    whh = jnp.stack([split_gates(params["whh"][l].T.astype(f32))
                     for l in range(L)])                           # (L,4,H,H)
    blstm = jnp.stack([
        jnp.stack([(params["b_lstm"][l][g * H:(g + 1) * H]
                    * (2.0 if g == 2 else 1.0))[None, :] for g in range(4)])
        for l in range(L)])                                        # (L,4,1,H)

    # Layer-0 input projection consumes the joint [fc | z] slab directly:
    # zero-pad the fc rows.
    wih0 = jnp.concatenate([jnp.zeros((4, H, H), f32), wih[0]], axis=1)  # (4,2H,H)
    b0 = blstm[0]                                                        # (4,1,H)

    # linear3 split: fc half also consumes the joint slab (zeros on z rows).
    w3t = params["w3"].T.astype(f32)                                # (2H, H)
    w3fc = jnp.concatenate([w3t[:H], jnp.zeros((H, H), f32)], axis=0)  # (2H, H)
    w3b = w3t[H:]                                                   # (H, H)

    return {
        "w12": w12, "b12": b12,
        "wih0": wih0, "b0": b0,
        "wih": wih, "blstm": blstm, "whh": whh,
        "w3fc": w3fc, "w3b": w3b, "b3": params["b3"][None, :],
        "w4": params["w4"], "b4": params["b4"][None, :],            # (1,H),(1,1)
    }


# ---------------------------------------------------------------------------
# Per-call wrapper
# ---------------------------------------------------------------------------
def critic_forward(state, action, last_action, hidden_in, packed,
                   *, num_layers, hidden_dim):
    """state/action/last_action: (B, T, dim); hidden_in: (h0, c0) each (L, B, H)."""
    h0, c0 = hidden_in
    B, T, S = state.shape
    A = action.shape[-1]
    L, H = num_layers, hidden_dim
    B_pad = ((B + 7) // 8) * 8            # fill vreg sublanes / tile-align slices

    # Single time-major input slab (state columns are NOT duplicated).
    s_t = jnp.transpose(state, (1, 0, 2))
    a_t = jnp.transpose(action, (1, 0, 2))
    la_t = jnp.transpose(last_action, (1, 0, 2))
    x = jnp.concatenate([s_t, a_t, la_t], axis=-1)          # (T, B, S+2A)

    pad_b = B_pad - B
    if pad_b:
        pad3 = ((0, 0), (0, pad_b), (0, 0))
        x = jnp.pad(x, pad3)
        h0p = jnp.pad(h0, pad3)
        c0p = jnp.pad(c0, pad3)
    else:
        h0p, c0p = h0, c0
    x2 = x.reshape(T * B_pad, S + 2 * A)

    kernel = functools.partial(critic_kernel, seq_len=T, batch=B_pad,
                               num_layers=L, hidden_dim=H)

    vmem = pl.BlockSpec(memory_space=pltpu.MemorySpace.VMEM)
    smem = pl.BlockSpec(memory_space=pltpu.MemorySpace.SMEM)

    q_row, h_T, c_T = pl.pallas_call(
        kernel,
        out_shape=(
            jax.ShapeDtypeStruct((1, T * B_pad), jnp.float32),   # lane-dense q
            jax.ShapeDtypeStruct((L, B_pad, H), jnp.float32),
            jax.ShapeDtypeStruct((L, B_pad, H), jnp.float32),
        ),
        in_specs=[vmem] * 14 + [smem],        # b4 (1,1) scalar lives in SMEM
        out_specs=(vmem, vmem, vmem),
    )(x2, h0p, c0p,
      packed["w12"], packed["b12"],
      packed["wih0"], packed["b0"],
      packed["wih"], packed["blstm"], packed["whh"],
      packed["w3fc"], packed["w3b"], packed["b3"],
      packed["w4"], packed["b4"])

    # Back to batch-first (B, T, 1), dropping batch padding.
    q = jnp.transpose(q_row.reshape(T, B_pad)[:, :B])[:, :, None]
    return q, (h_T[:, :B], c_T[:, :B])


# ---------------------------------------------------------------------------
# Deterministic parameter init (mirrors shapes in Critic.__init__)
# ---------------------------------------------------------------------------
def init_params(key, state_dim, action_dim, hidden_dim, num_layers):
    in_dim = state_dim + action_dim
    keys = jax.random.split(key, 4 + num_layers)

    def xavier(k, fan_out, fan_in):
        limit = float(np.sqrt(6.0 / (fan_in + fan_out)))
        return jax.random.uniform(k, (fan_out, fan_in), jnp.float32, -limit, limit)

    params = {
        "w1": xavier(keys[0], hidden_dim, in_dim), "b1": jnp.zeros((hidden_dim,), jnp.float32),
        "w2": xavier(keys[1], hidden_dim, in_dim), "b2": jnp.zeros((hidden_dim,), jnp.float32),
        "w3": xavier(keys[2], hidden_dim, 2 * hidden_dim), "b3": jnp.zeros((hidden_dim,), jnp.float32),
        "w4": xavier(keys[3], 1, hidden_dim), "b4": jnp.zeros((1,), jnp.float32),
        "wih": [], "whh": [], "b_lstm": [],
    }
    s = 1.0 / float(np.sqrt(hidden_dim))   # PyTorch LSTM default init range
    for l in range(num_layers):
        k1, k2, k3, k4 = jax.random.split(keys[4 + l], 4)
        params["wih"].append(jax.random.uniform(k1, (4 * hidden_dim, hidden_dim), jnp.float32, -s, s))
        params["whh"].append(jax.random.uniform(k2, (4 * hidden_dim, hidden_dim), jnp.float32, -s, s))
        b_ih = jax.random.uniform(k3, (4 * hidden_dim,), jnp.float32, -s, s)
        b_hh = jax.random.uniform(k4, (4 * hidden_dim,), jnp.float32, -s, s)
        params["b_lstm"].append(b_ih + b_hh)
    return params


# ---------------------------------------------------------------------------
# Pure-JAX reference (uses the raw, unpacked params)
# ---------------------------------------------------------------------------
def critic_ref(state, action, last_action, hidden_in, params, *, num_layers, hidden_dim):
    h, c = hidden_in
    s_t = jnp.transpose(state, (1, 0, 2))
    a_t = jnp.transpose(action, (1, 0, 2))
    la_t = jnp.transpose(last_action, (1, 0, 2))
    fc = jax.nn.relu(jnp.concatenate([s_t, a_t], -1) @ params["w1"].T + params["b1"])
    z = jax.nn.relu(jnp.concatenate([s_t, la_t], -1) @ params["w2"].T + params["b2"])
    T = z.shape[0]
    H = hidden_dim
    h, c = list(h), list(c)
    outs = []
    for t in range(T):
        x = z[t]
        for l in range(num_layers):
            g = x @ params["wih"][l].T + h[l] @ params["whh"][l].T + params["b_lstm"][l]
            i_g = jax.nn.sigmoid(g[:, :H]); f_g = jax.nn.sigmoid(g[:, H:2*H])
            g_g = jnp.tanh(g[:, 2*H:3*H]); o_g = jax.nn.sigmoid(g[:, 3*H:])
            c[l] = f_g * c[l] + i_g * g_g
            h[l] = o_g * jnp.tanh(c[l])
            x = h[l]
        outs.append(x)
    lstm_out = jnp.stack(outs)
    merged = jnp.concatenate([fc, lstm_out], -1)
    x = jax.nn.relu(merged @ params["w3"].T + params["b3"])
    q = x @ params["w4"].T + params["b4"]
    return jnp.transpose(q, (1, 0, 2)), (jnp.stack(h), jnp.stack(c))


# ---------------------------------------------------------------------------
if __name__ == "__main__":
    state_dim, action_dim = 6, 3
    hidden_dim, num_layers = 32, 2
    B, T = 4, 8

    key = jax.random.PRNGKey(0)
    k_p, k_s, k_a, k_la, k_h, k_c = jax.random.split(key, 6)
    params = init_params(k_p, state_dim, action_dim, hidden_dim, num_layers)

    # One-time weight packing (off the per-forward path).
    packed = pack_params(params, state_dim=state_dim, action_dim=action_dim,
                         hidden_dim=hidden_dim, num_layers=num_layers)
    jax.block_until_ready(packed)

    state = jax.random.normal(k_s, (B, T, state_dim), jnp.float32)
    action = jax.random.normal(k_a, (B, T, action_dim), jnp.float32)
    last_action = jax.random.normal(k_la, (B, T, action_dim), jnp.float32)
    h0 = jax.random.normal(k_h, (num_layers, B, hidden_dim), jnp.float32)
    c0 = jax.random.normal(k_c, (num_layers, B, hidden_dim), jnp.float32)

    q, (h_T, c_T) = critic_forward(state, action, last_action, (h0, c0), packed,
                                   num_layers=num_layers, hidden_dim=hidden_dim)
    jax.block_until_ready((q, h_T, c_T))

    q_ref, (h_ref, c_ref) = critic_ref(state, action, last_action, (h0, c0), params,
                                       num_layers=num_layers, hidden_dim=hidden_dim)
    np.testing.assert_allclose(np.asarray(q), np.asarray(q_ref), rtol=1e-4, atol=1e-4)
    np.testing.assert_allclose(np.asarray(h_T), np.asarray(h_ref), rtol=1e-4, atol=1e-4)
    np.testing.assert_allclose(np.asarray(c_T), np.asarray(c_ref), rtol=1e-4, atol=1e-4)

    print("KERNEL_OK")
</pallas_src>

<mosaic_0001>
module attributes {stable_mosaic.version = 11 : i64} {
  func.func @critic_kernel(%arg0: memref<64x12xf32, #tpu.memory_space<vmem>>, %arg1: memref<2x8x32xf32, #tpu.memory_space<vmem>>, %arg2: memref<2x8x32xf32, #tpu.memory_space<vmem>>, %arg3: memref<12x64xf32, #tpu.memory_space<vmem>>, %arg4: memref<1x64xf32, #tpu.memory_space<vmem>>, %arg5: memref<4x64x32xf32, #tpu.memory_space<vmem>>, %arg6: memref<4x1x32xf32, #tpu.memory_space<vmem>>, %arg7: memref<2x4x32x32xf32, #tpu.memory_space<vmem>>, %arg8: memref<2x4x1x32xf32, #tpu.memory_space<vmem>>, %arg9: memref<2x4x32x32xf32, #tpu.memory_space<vmem>>, %arg10: memref<64x32xf32, #tpu.memory_space<vmem>>, %arg11: memref<32x32xf32, #tpu.memory_space<vmem>>, %arg12: memref<1x32xf32, #tpu.memory_space<vmem>>, %arg13: memref<1x32xf32, #tpu.memory_space<vmem>>, %arg14: memref<1x1xf32, #tpu.memory_space<smem>>, %arg15: memref<1x64xf32, #tpu.memory_space<vmem>>, %arg16: memref<2x8x32xf32, #tpu.memory_space<vmem>>, %arg17: memref<2x8x32xf32, #tpu.memory_space<vmem>>) attributes {dimension_semantics = [], scalar_prefetch = 0 : i64, scratch_operands = 0 : i64, tpu.core_type = #tpu.core_type<tc>} {
    %c0 = arith.constant 0 : index
    %c0_0 = arith.constant 0 : index
    %0 = vector.load %arg0[%c0, %c0_0] : memref<64x12xf32, #tpu.memory_space<vmem>>, vector<64x12xf32>
    %c0_1 = arith.constant 0 : index
    %c0_2 = arith.constant 0 : index
    %1 = vector.load %arg3[%c0_1, %c0_2] : memref<12x64xf32, #tpu.memory_space<vmem>>, vector<12x64xf32>
    %cst = arith.constant dense<0.000000e+00> : vector<64x64xf32>
    %2 = tpu.matmul %0, %1, %cst {dimension_numbers = #tpu.dot_dimension_numbers<[1], [0], [0], [1], [0, 0, 1, 1], [], []>} : vector<64x12xf32>, vector<12x64xf32>, vector<64x64xf32> -> vector<64x64xf32>
    %c0_3 = arith.constant 0 : index
    %c0_4 = arith.constant 0 : index
    %3 = vector.load %arg4[%c0_3, %c0_4] : memref<1x64xf32, #tpu.memory_space<vmem>>, vector<1x64xf32>
    %4 = vector.broadcast %3 : vector<1x64xf32> to vector<64x64xf32>
    %5 = arith.addf %2, %4 : vector<64x64xf32>
    %cst_5 = arith.constant 0.000000e+00 : f32
    %6 = vector.broadcast %cst_5 : f32 to vector<64x64xf32>
    %7 = arith.maximumf %5, %6 : vector<64x64xf32>
    %c0_6 = arith.constant 0 : index
    %c0_7 = arith.constant 0 : index
    %c0_8 = arith.constant 0 : index
    %8 = vector.load %arg5[%c0_6, %c0_7, %c0_8] : memref<4x64x32xf32, #tpu.memory_space<vmem>>, vector<1x64x32xf32>
    %9 = vector.shape_cast %8 : vector<1x64x32xf32> to vector<64x32xf32>
    %cst_9 = arith.constant dense<0.000000e+00> : vector<64x32xf32>
    %10 = tpu.matmul %7, %9, %cst_9 {dimension_numbers = #tpu.dot_dimension_numbers<[1], [0], [0], [1], [0, 0, 1, 1], [], []>} : vector<64x64xf32>, vector<64x32xf32>, vector<64x32xf32> -> vector<64x32xf32>
    %c0_10 = arith.constant 0 : index
    %c0_11 = arith.constant 0 : index
    %c0_12 = arith.constant 0 : index
    %11 = vector.load %arg6[%c0_10, %c0_11, %c0_12] : memref<4x1x32xf32, #tpu.memory_space<vmem>>, vector<1x1x32xf32>
    %12 = vector.shape_cast %11 : vector<1x1x32xf32> to vector<1x32xf32>
    %13 = vector.broadcast %12 : vector<1x32xf32> to vector<64x32xf32>
    %14 = arith.addf %10, %13 : vector<64x32xf32>
    %c1 = arith.constant 1 : index
    %c0_13 = arith.constant 0 : index
    %c0_14 = arith.constant 0 : index
    %15 = vector.load %arg5[%c1, %c0_13, %c0_14] : memref<4x64x32xf32, #tpu.memory_space<vmem>>, vector<1x64x32xf32>
    %16 = vector.shape_cast %15 : vector<1x64x32xf32> to vector<64x32xf32>
    %cst_15 = arith.constant dense<0.000000e+00> : vector<64x32xf32>
    %17 = tpu.matmul %7, %16, %cst_15 {dimension_numbers = #tpu.dot_dimension_numbers<[1], [0], [0], [1], [0, 0, 1, 1], [], []>} : vector<64x64xf32>, vector<64x32xf32>, vector<64x32xf32> -> vector<64x32xf32>
    %c1_16 = arith.constant 1 : index
    %c0_17 = arith.constant 0 : index
    %c0_18 = arith.constant 0 : index
    %18 = vector.load %arg6[%c1_16, %c0_17, %c0_18] : memref<4x1x32xf32, #tpu.memory_space<vmem>>, vector<1x1x32xf32>
    %19 = vector.shape_cast %18 : vector<1x1x32xf32> to vector<1x32xf32>
    %20 = vector.broadcast %19 : vector<1x32xf32> to vector<64x32xf32>
    %21 = arith.addf %17, %20 : vector<64x32xf32>
    %c2 = arith.constant 2 : index
    %c0_19 = arith.constant 0 : index
    %c0_20 = arith.constant 0 : index
    %22 = vector.load %arg5[%c2, %c0_19, %c0_20] : memref<4x64x32xf32, #tpu.memory_space<vmem>>, vector<1x64x32xf32>
    %23 = vector.shape_cast %22 : vector<1x64x32xf32> to vector<64x32xf32>
    %cst_21 = arith.constant dense<0.000000e+00> : vector<64x32xf32>
    %24 = tpu.matmul %7, %23, %cst_21 {dimension_numbers = #tpu.dot_dimension_numbers<[1], [0], [0], [1], [0, 0, 1, 1], [], []>} : vector<64x64xf32>, vector<64x32xf32>, vector<64x32xf32> -> vector<64x32xf32>
    %c2_22 = arith.constant 2 : index
    %c0_23 = arith.constant 0 : index
    %c0_24 = arith.constant 0 : index
    %25 = vector.load %arg6[%c2_22, %c0_23, %c0_24] : memref<4x1x32xf32, #tpu.memory_space<vmem>>, vector<1x1x32xf32>
    %26 = vector.shape_cast %25 : vector<1x1x32xf32> to vector<1x32xf32>
    %27 = vector.broadcast %26 : vector<1x32xf32> to vector<64x32xf32>
    %28 = arith.addf %24, %27 : vector<64x32xf32>
    %c3 = arith.constant 3 : index
    %c0_25 = arith.constant 0 : index
    %c0_26 = arith.constant 0 : index
    %29 = vector.load %arg5[%c3, %c0_25, %c0_26] : memref<4x64x32xf32, #tpu.memory_space<vmem>>, vector<1x64x32xf32>
    %30 = vector.shape_cast %29 : vector<1x64x32xf32> to vector<64x32xf32>
    %cst_27 = arith.constant dense<0.000000e+00> : vector<64x32xf32>
    %31 = tpu.matmul %7, %30, %cst_27 {dimension_numbers = #tpu.dot_dimension_numbers<[1], [0], [0], [1], [0, 0, 1, 1], [], []>} : vector<64x64xf32>, vector<64x32xf32>, vector<64x32xf32> -> vector<64x32xf32>
    %c3_28 = arith.constant 3 : index
    %c0_29 = arith.constant 0 : index
    %c0_30 = arith.constant 0 : index
    %32 = vector.load %arg6[%c3_28, %c0_29, %c0_30] : memref<4x1x32xf32, #tpu.memory_space<vmem>>, vector<1x1x32xf32>
    %33 = vector.shape_cast %32 : vector<1x1x32xf32> to vector<1x32xf32>
    %34 = vector.broadcast %33 : vector<1x32xf32> to vector<64x32xf32>
    %35 = arith.addf %31, %34 : vector<64x32xf32>
    %c0_31 = arith.constant 0 : index
    %c0_32 = arith.constant 0 : index
    %36 = vector.load %arg10[%c0_31, %c0_32] : memref<64x32xf32, #tpu.memory_space<vmem>>, vector<64x32xf32>
    %cst_33 = arith.constant dense<0.000000e+00> : vector<64x32xf32>
    %37 = tpu.matmul %7, %36, %cst_33 {dimension_numbers = #tpu.dot_dimension_numbers<[1], [0], [0], [1], [0, 0, 1, 1], [], []>} : vector<64x64xf32>, vector<64x32xf32>, vector<64x32xf32> -> vector<64x32xf32>
    %c0_34 = arith.constant 0 : index
    %c0_35 = arith.constant 0 : index
    %c0_36 = arith.constant 0 : index
    %38 = vector.load %arg1[%c0_34, %c0_35, %c0_36] : memref<2x8x32xf32, #tpu.memory_space<vmem>>, vector<1x8x32xf32>
    %39 = vector.shape_cast %38 : vector<1x8x32xf32> to vector<8x32xf32>
    %c1_37 = arith.constant 1 : index
    %c0_38 = arith.constant 0 : index
    %c0_39 = arith.constant 0 : index
    %40 = vector.load %arg1[%c1_37, %c0_38, %c0_39] : memref<2x8x32xf32, #tpu.memory_space<vmem>>, vector<1x8x32xf32>
    %41 = vector.shape_cast %40 : vector<1x8x32xf32> to vector<8x32xf32>
    %c0_40 = arith.constant 0 : index
    %c0_41 = arith.constant 0 : index
    %c0_42 = arith.constant 0 : index
    %42 = vector.load %arg2[%c0_40, %c0_41, %c0_42] : memref<2x8x32xf32, #tpu.memory_space<vmem>>, vector<1x8x32xf32>
    %43 = vector.shape_cast %42 : vector<1x8x32xf32> to vector<8x32xf32>
    %c1_43 = arith.constant 1 : index
    %c0_44 = arith.constant 0 : index
    %c0_45 = arith.constant 0 : index
    %44 = vector.load %arg2[%c1_43, %c0_44, %c0_45] : memref<2x8x32xf32, #tpu.memory_space<vmem>>, vector<1x8x32xf32>
    %45 = vector.shape_cast %44 : vector<1x8x32xf32> to vector<8x32xf32>
    %46 = vector.extract_strided_slice %14 {offsets = [0, 0], sizes = [8, 32], strides = [1, 1]} : vector<64x32xf32> to vector<8x32xf32>
    %47 = vector.extract_strided_slice %21 {offsets = [0, 0], sizes = [8, 32], strides = [1, 1]} : vector<64x32xf32> to vector<8x32xf32>
    %48 = vector.extract_strided_slice %28 {offsets = [0, 0], sizes = [8, 32], strides = [1, 1]} : vector<64x32xf32> to vector<8x32xf32>
    %49 = vector.extract_strided_slice %35 {offsets = [0, 0], sizes = [8, 32], strides = [1, 1]} : vector<64x32xf32> to vector<8x32xf32>
    %c0_46 = arith.constant 0 : index
    %c0_47 = arith.constant 0 : index
    %c0_48 = arith.constant 0 : index
    %c0_49 = arith.constant 0 : index
    %50 = vector.load %arg9[%c0_46, %c0_47, %c0_48, %c0_49] : memref<2x4x32x32xf32, #tpu.memory_space<vmem>>, vector<1x1x32x32xf32>
    %51 = vector.shape_cast %50 : vector<1x1x32x32xf32> to vector<32x32xf32>
    %cst_50 = arith.constant dense<0.000000e+00> : vector<8x32xf32>
    %52 = tpu.matmul %39, %51, %cst_50 {dimension_numbers = #tpu.dot_dimension_numbers<[1], [0], [0], [1], [0, 0, 1, 1], [], []>} : vector<8x32xf32>, vector<32x32xf32>, vector<8x32xf32> -> vector<8x32xf32>
    %53 = arith.addf %46, %52 : vector<8x32xf32>
    %c0_51 = arith.constant 0 : index
    %c1_52 = arith.constant 1 : index
    %c0_53 = arith.constant 0 : index
    %c0_54 = arith.constant 0 : index
    %54 = vector.load %arg9[%c0_51, %c1_52, %c0_53, %c0_54] : memref<2x4x32x32xf32, #tpu.memory_space<vmem>>, vector<1x1x32x32xf32>
    %55 = vector.shape_cast %54 : vector<1x1x32x32xf32> to vector<32x32xf32>
    %cst_55 = arith.constant dense<0.000000e+00> : vector<8x32xf32>
    %56 = tpu.matmul %39, %55, %cst_55 {dimension_numbers = #tpu.dot_dimension_numbers<[1], [0], [0], [1], [0, 0, 1, 1], [], []>} : vector<8x32xf32>, vector<32x32xf32>, vector<8x32xf32> -> vector<8x32xf32>
    %57 = arith.addf %47, %56 : vector<8x32xf32>
    %c0_56 = arith.constant 0 : index
    %c2_57 = arith.constant 2 : index
    %c0_58 = arith.constant 0 : index
    %c0_59 = arith.constant 0 : index
    %58 = vector.load %arg9[%c0_56, %c2_57, %c0_58, %c0_59] : memref<2x4x32x32xf32, #tpu.memory_space<vmem>>, vector<1x1x32x32xf32>
    %59 = vector.shape_cast %58 : vector<1x1x32x32xf32> to vector<32x32xf32>
    %cst_60 = arith.constant dense<0.000000e+00> : vector<8x32xf32>
    %60 = tpu.matmul %39, %59, %cst_60 {dimension_numbers = #tpu.dot_dimension_numbers<[1], [0], [0], [1], [0, 0, 1, 1], [], []>} : vector<8x32xf32>, vector<32x32xf32>, vector<8x32xf32> -> vector<8x32xf32>
    %61 = arith.addf %48, %60 : vector<8x32xf32>
    %c0_61 = arith.constant 0 : index
    %c3_62 = arith.constant 3 : index
    %c0_63 = arith.constant 0 : index
    %c0_64 = arith.constant 0 : index
    %62 = vector.load %arg9[%c0_61, %c3_62, %c0_63, %c0_64] : memref<2x4x32x32xf32, #tpu.memory_space<vmem>>, vector<1x1x32x32xf32>
    %63 = vector.shape_cast %62 : vector<1x1x32x32xf32> to vector<32x32xf32>
    %cst_65 = arith.constant dense<0.000000e+00> : vector<8x32xf32>
    %64 = tpu.matmul %39, %63, %cst_65 {dimension_numbers = #tpu.dot_dimension_numbers<[1], [0], [0], [1], [0, 0, 1, 1], [], []>} : vector<8x32xf32>, vector<32x32xf32>, vector<8x32xf32> -> vector<8x32xf32>
    %65 = arith.addf %49, %64 : vector<8x32xf32>
    %66 = arith.negf %53 : vector<8x32xf32>
    %67 = math.exp %66 : vector<8x32xf32>
    %cst_66 = arith.constant 1.000000e+00 : f32
    %68 = vector.broadcast %cst_66 : f32 to vector<8x32xf32>
    %69 = arith.addf %68, %67 : vector<8x32xf32>
    %70 = arith.divf %68, %69 : vector<8x32xf32>
    %71 = arith.negf %57 : vector<8x32xf32>
    %72 = math.exp %71 : vector<8x32xf32>
    %cst_67 = arith.constant 1.000000e+00 : f32
    %73 = vector.broadcast %cst_67 : f32 to vector<8x32xf32>
    %74 = arith.addf %73, %72 : vector<8x32xf32>
    %75 = arith.divf %73, %74 : vector<8x32xf32>
    %76 = arith.negf %61 : vector<8x32xf32>
    %77 = math.exp %76 : vector<8x32xf32>
    %cst_68 = arith.constant 1.000000e+00 : f32
    %78 = vector.broadcast %cst_68 : f32 to vector<8x32xf32>
    %79 = arith.addf %78, %77 : vector<8x32xf32>
    %80 = arith.divf %78, %79 : vector<8x32xf32>
    %cst_69 = arith.constant 2.000000e+00 : f32
    %81 = vector.broadcast %cst_69 : f32 to vector<8x32xf32>
    %82 = arith.mulf %81, %80 : vector<8x32xf32>
    %cst_70 = arith.constant 1.000000e+00 : f32
    %83 = vector.broadcast %cst_70 : f32 to vector<8x32xf32>
    %84 = arith.subf %82, %83 : vector<8x32xf32>
    %85 = arith.negf %65 : vector<8x32xf32>
    %86 = math.exp %85 : vector<8x32xf32>
    %cst_71 = arith.constant 1.000000e+00 : f32
    %87 = vector.broadcast %cst_71 : f32 to vector<8x32xf32>
    %88 = arith.addf %87, %86 : vector<8x32xf32>
    %89 = arith.divf %87, %88 : vector<8x32xf32>
    %90 = arith.mulf %75, %43 : vector<8x32xf32>
    %91 = arith.mulf %70, %84 : vector<8x32xf32>
    %92 = arith.addf %90, %91 : vector<8x32xf32>
    %93 = math.tanh %92 : vector<8x32xf32>
    %94 = arith.mulf %89, %93 : vector<8x32xf32>
    %c1_72 = arith.constant 1 : index
    %c0_73 = arith.constant 0 : index
    %c0_74 = arith.constant 0 : index
    %c0_75 = arith.constant 0 : index
    %95 = vector.load %arg7[%c1_72, %c0_73, %c0_74, %c0_75] : memref<2x4x32x32xf32, #tpu.memory_space<vmem>>, vector<1x1x32x32xf32>
    %96 = vector.shape_cast %95 : vector<1x1x32x32xf32> to vector<32x32xf32>
    %cst_76 = arith.constant dense<0.000000e+00> : vector<8x32xf32>
    %97 = tpu.matmul %94, %96, %cst_76 {dimension_numbers = #tpu.dot_dimension_numbers<[1], [0], [0], [1], [0, 0, 1, 1], [], []>} : vector<8x32xf32>, vector<32x32xf32>, vector<8x32xf32> -> vector<8x32xf32>
    %c1_77 = arith.constant 1 : index
    %c0_78 = arith.constant 0 : index
    %c0_79 = arith.constant 0 : index
    %c0_80 = arith.constant 0 : index
    %98 = vector.load %arg8[%c1_77, %c0_78, %c0_79, %c0_80] : memref<2x4x1x32xf32, #tpu.memory_space<vmem>>, vector<1x1x1x32xf32>
    %99 = vector.shape_cast %98 : vector<1x1x1x32xf32> to vector<1x32xf32>
    %100 = vector.broadcast %99 : vector<1x32xf32> to vector<8x32xf32>
    %101 = arith.addf %97, %100 : vector<8x32xf32>
    %c1_81 = arith.constant 1 : index
    %c1_82 = arith.constant 1 : index
    %c0_83 = arith.constant 0 : index
    %c0_84 = arith.constant 0 : index
    %102 = vector.load %arg7[%c1_81, %c1_82, %c0_83, %c0_84] : memref<2x4x32x32xf32, #tpu.memory_space<vmem>>, vector<1x1x32x32xf32>
    %103 = vector.shape_cast %102 : vector<1x1x32x32xf32> to vector<32x32xf32>
    %cst_85 = arith.constant dense<0.000000e+00> : vector<8x32xf32>
    %104 = tpu.matmul %94, %103, %cst_85 {dimension_numbers = #tpu.dot_dimension_numbers<[1], [0], [0], [1], [0, 0, 1, 1], [], []>} : vector<8x32xf32>, vector<32x32xf32>, vector<8x32xf32> -> vector<8x32xf32>
    %c1_86 = arith.constant 1 : index
    %c1_87 = arith.constant 1 : index
    %c0_88 = arith.constant 0 : index
    %c0_89 = arith.constant 0 : index
    %105 = vector.load %arg8[%c1_86, %c1_87, %c0_88, %c0_89] : memref<2x4x1x32xf32, #tpu.memory_space<vmem>>, vector<1x1x1x32xf32>
    %106 = vector.shape_cast %105 : vector<1x1x1x32xf32> to vector<1x32xf32>
    %107 = vector.broadcast %106 : vector<1x32xf32> to vector<8x32xf32>
    %108 = arith.addf %104, %107 : vector<8x32xf32>
    %c1_90 = arith.constant 1 : index
    %c2_91 = arith.constant 2 : index
    %c0_92 = arith.constant 0 : index
    %c0_93 = arith.constant 0 : index
    %109 = vector.load %arg7[%c1_90, %c2_91, %c0_92, %c0_93] : memref<2x4x32x32xf32, #tpu.memory_space<vmem>>, vector<1x1x32x32xf32>
    %110 = vector.shape_cast %109 : vector<1x1x32x32xf32> to vector<32x32xf32>
    %cst_94 = arith.constant dense<0.000000e+00> : vector<8x32xf32>
    %111 = tpu.matmul %94, %110, %cst_94 {dimension_numbers = #tpu.dot_dimension_numbers<[1], [0], [0], [1], [0, 0, 1, 1], [], []>} : vector<8x32xf32>, vector<32x32xf32>, vector<8x32xf32> -> vector<8x32xf32>
    %c1_95 = arith.constant 1 : index
    %c2_96 = arith.constant 2 : index
    %c0_97 = arith.constant 0 : index
    %c0_98 = arith.constant 0 : index
    %112 = vector.load %arg8[%c1_95, %c2_96, %c0_97, %c0_98] : memref<2x4x1x32xf32, #tpu.memory_space<vmem>>, vector<1x1x1x32xf32>
    %113 = vector.shape_cast %112 : vector<1x1x1x32xf32> to vector<1x32xf32>
    %114 = vector.broadcast %113 : vector<1x32xf32> to vector<8x32xf32>
    %115 = arith.addf %111, %114 : vector<8x32xf32>
    %c1_99 = arith.constant 1 : index
    %c3_100 = arith.constant 3 : index
    %c0_101 = arith.constant 0 : index
    %c0_102 = arith.constant 0 : index
    %116 = vector.load %arg7[%c1_99, %c3_100, %c0_101, %c0_102] : memref<2x4x32x32xf32, #tpu.memory_space<vmem>>, vector<1x1x32x32xf32>
    %117 = vector.shape_cast %116 : vector<1x1x32x32xf32> to vector<32x32xf32>
    %cst_103 = arith.constant dense<0.000000e+00> : vector<8x32xf32>
    %118 = tpu.matmul %94, %117, %cst_103 {dimension_numbers = #tpu.dot_dimension_numbers<[1], [0], [0], [1], [0, 0, 1, 1], [], []>} : vector<8x32xf32>, vector<32x32xf32>, vector<8x32xf32> -> vector<8x32xf32>
    %c1_104 = arith.constant 1 : index
    %c3_105 = arith.constant 3 : index
    %c0_106 = arith.constant 0 : index
    %c0_107 = arith.constant 0 : index
    %119 = vector.load %arg8[%c1_104, %c3_105, %c0_106, %c0_107] : memref<2x4x1x32xf32, #tpu.memory_space<vmem>>, vector<1x1x1x32xf32>
    %120 = vector.shape_cast %119 : vector<1x1x1x32xf32> to vector<1x32xf32>
    %121 = vector.broadcast %120 : vector<1x32xf32> to vector<8x32xf32>
    %122 = arith.addf %118, %121 : vector<8x32xf32>
    %c1_108 = arith.constant 1 : index
    %c0_109 = arith.constant 0 : index
    %c0_110 = arith.constant 0 : index
    %c0_111 = arith.constant 0 : index
    %123 = vector.load %arg9[%c1_108, %c0_109, %c0_110, %c0_111] : memref<2x4x32x32xf32, #tpu.memory_space<vmem>>, vector<1x1x32x32xf32>
    %124 = vector.shape_cast %123 : vector<1x1x32x32xf32> to vector<32x32xf32>
    %cst_112 = arith.constant dense<0.000000e+00> : vector<8x32xf32>
    %125 = tpu.matmul %41, %124, %cst_112 {dimension_numbers = #tpu.dot_dimension_numbers<[1], [0], [0], [1], [0, 0, 1, 1], [], []>} : vector<8x32xf32>, vector<32x32xf32>, vector<8x32xf32> -> vector<8x32xf32>
    %126 = arith.addf %101, %125 : vector<8x32xf32>
    %c1_113 = arith.constant 1 : index
    %c1_114 = arith.constant 1 : index
    %c0_115 = arith.constant 0 : index
    %c0_116 = arith.constant 0 : index
    %127 = vector.load %arg9[%c1_113, %c1_114, %c0_115, %c0_116] : memref<2x4x32x32xf32, #tpu.memory_space<vmem>>, vector<1x1x32x32xf32>
    %128 = vector.shape_cast %127 : vector<1x1x32x32xf32> to vector<32x32xf32>
    %cst_117 = arith.constant dense<0.000000e+00> : vector<8x32xf32>
    %129 = tpu.matmul %41, %128, %cst_117 {dimension_numbers = #tpu.dot_dimension_numbers<[1], [0], [0], [1], [0, 0, 1, 1], [], []>} : vector<8x32xf32>, vector<32x32xf32>, vector<8x32xf32> -> vector<8x32xf32>
    %130 = arith.addf %108, %129 : vector<8x32xf32>
    %c1_118 = arith.constant 1 : index
    %c2_119 = arith.constant 2 : index
    %c0_120 = arith.constant 0 : index
    %c0_121 = arith.constant 0 : index
    %131 = vector.load %arg9[%c1_118, %c2_119, %c0_120, %c0_121] : memref<2x4x32x32xf32, #tpu.memory_space<vmem>>, vector<1x1x32x32xf32>
    %132 = vector.shape_cast %131 : vector<1x1x32x32xf32> to vector<32x32xf32>
    %cst_122 = arith.constant dense<0.000000e+00> : vector<8x32xf32>
    %133 = tpu.matmul %41, %132, %cst_122 {dimension_numbers = #tpu.dot_dimension_numbers<[1], [0], [0], [1], [0, 0, 1, 1], [], []>} : vector<8x32xf32>, vector<32x32xf32>, vector<8x32xf32> -> vector<8x32xf32>
    %134 = arith.addf %115, %133 : vector<8x32xf32>
    %c1_123 = arith.constant 1 : index
    %c3_124 = arith.constant 3 : index
    %c0_125 = arith.constant 0 : index
    %c0_126 = arith.constant 0 : index
    %135 = vector.load %arg9[%c1_123, %c3_124, %c0_125, %c0_126] : memref<2x4x32x32xf32, #tpu.memory_space<vmem>>, vector<1x1x32x32xf32>
    %136 = vector.shape_cast %135 : vector<1x1x32x32xf32> to vector<32x32xf32>
    %cst_127 = arith.constant dense<0.000000e+00> : vector<8x32xf32>
    %137 = tpu.matmul %41, %136, %cst_127 {dimension_numbers = #tpu.dot_dimension_numbers<[1], [0], [0], [1], [0, 0, 1, 1], [], []>} : vector<8x32xf32>, vector<32x32xf32>, vector<8x32xf32> -> vector<8x32xf32>
    %138 = arith.addf %122, %137 : vector<8x32xf32>
    %139 = arith.negf %126 : vector<8x32xf32>
    %140 = math.exp %139 : vector<8x32xf32>
    %cst_128 = arith.constant 1.000000e+00 : f32
    %141 = vector.broadcast %cst_128 : f32 to vector<8x32xf32>
    %142 = arith.addf %141, %140 : vector<8x32xf32>
    %143 = arith.divf %141, %142 : vector<8x32xf32>
    %144 = arith.negf %130 : vector<8x32xf32>
    %145 = math.exp %144 : vector<8x32xf32>
    %cst_129 = arith.constant 1.000000e+00 : f32
    %146 = vector.broadcast %cst_129 : f32 to vector<8x32xf32>
    %147 = arith.addf %146, %145 : vector<8x32xf32>
    %148 = arith.divf %146, %147 : vector<8x32xf32>
    %149 = arith.negf %134 : vector<8x32xf32>
    %150 = math.exp %149 : vector<8x32xf32>
    %cst_130 = arith.constant 1.000000e+00 : f32
    %151 = vector.broadcast %cst_130 : f32 to vector<8x32xf32>
    %152 = arith.addf %151, %150 : vector<8x32xf32>
    %153 = arith.divf %151, %152 : vector<8x32xf32>
    %cst_131 = arith.constant 2.000000e+00 : f32
    %154 = vector.broadcast %cst_131 : f32 to vector<8x32xf32>
    %155 = arith.mulf %154, %153 : vector<8x32xf32>
    %cst_132 = arith.constant 1.000000e+00 : f32
    %156 = vector.broadcast %cst_132 : f32 to vector<8x32xf32>
    %157 = arith.subf %155, %156 : vector<8x32xf32>
    %158 = arith.negf %138 : vector<8x32xf32>
    %159 = math.exp %158 : vector<8x32xf32>
    %cst_133 = arith.constant 1.000000e+00 : f32
    %160 = vector.broadcast %cst_133 : f32 to vector<8x32xf32>
    %161 = arith.addf %160, %159 : vector<8x32xf32>
    %162 = arith.divf %160, %161 : vector<8x32xf32>
    %163 = arith.mulf %148, %45 : vector<8x32xf32>
    %164 = arith.mulf %143, %157 : vector<8x32xf32>
    %165 = arith.addf %163, %164 : vector<8x32xf32>
    %166 = math.tanh %165 : vector<8x32xf32>
    %167 = arith.mulf %162, %166 : vector<8x32xf32>
    %168 = vector.extract_strided_slice %14 {offsets = [8, 0], sizes = [8, 32], strides = [1, 1]} : vector<64x32xf32> to vector<8x32xf32>
    %169 = vector.extract_strided_slice %21 {offsets = [8, 0], sizes = [8, 32], strides = [1, 1]} : vector<64x32xf32> to vector<8x32xf32>
    %170 = vector.extract_strided_slice %28 {offsets = [8, 0], sizes = [8, 32], strides = [1, 1]} : vector<64x32xf32> to vector<8x32xf32>
    %171 = vector.extract_strided_slice %35 {offsets = [8, 0], sizes = [8, 32], strides = [1, 1]} : vector<64x32xf32> to vector<8x32xf32>
    %c0_134 = arith.constant 0 : index
    %c0_135 = arith.constant 0 : index
    %c0_136 = arith.constant 0 : index
    %c0_137 = arith.constant 0 : index
    %172 = vector.load %arg9[%c0_134, %c0_135, %c0_136, %c0_137] : memref<2x4x32x32xf32, #tpu.memory_space<vmem>>, vector<1x1x32x32xf32>
    %173 = vector.shape_cast %172 : vector<1x1x32x32xf32> to vector<32x32xf32>
    %cst_138 = arith.constant dense<0.000000e+00> : vector<8x32xf32>
    %174 = tpu.matmul %94, %173, %cst_138 {dimension_numbers = #tpu.dot_dimension_numbers<[1], [0], [0], [1], [0, 0, 1, 1], [], []>} : vector<8x32xf32>, vector<32x32xf32>, vector<8x32xf32> -> vector<8x32xf32>
    %175 = arith.addf %168, %174 : vector<8x32xf32>
    %c0_139 = arith.constant 0 : index
    %c1_140 = arith.constant 1 : index
    %c0_141 = arith.constant 0 : index
    %c0_142 = arith.constant 0 : index
    %176 = vector.load %arg9[%c0_139, %c1_140, %c0_141, %c0_142] : memref<2x4x32x32xf32, #tpu.memory_space<vmem>>, vector<1x1x32x32xf32>
    %177 = vector.shape_cast %176 : vector<1x1x32x32xf32> to vector<32x32xf32>
    %cst_143 = arith.constant dense<0.000000e+00> : vector<8x32xf32>
    %178 = tpu.matmul %94, %177, %cst_143 {dimension_numbers = #tpu.dot_dimension_numbers<[1], [0], [0], [1], [0, 0, 1, 1], [], []>} : vector<8x32xf32>, vector<32x32xf32>, vector<8x32xf32> -> vector<8x32xf32>
    %179 = arith.addf %169, %178 : vector<8x32xf32>
    %c0_144 = arith.constant 0 : index
    %c2_145 = arith.constant 2 : index
    %c0_146 = arith.constant 0 : index
    %c0_147 = arith.constant 0 : index
    %180 = vector.load %arg9[%c0_144, %c2_145, %c0_146, %c0_147] : memref<2x4x32x32xf32, #tpu.memory_space<vmem>>, vector<1x1x32x32xf32>
    %181 = vector.shape_cast %180 : vector<1x1x32x32xf32> to vector<32x32xf32>
    %cst_148 = arith.constant dense<0.000000e+00> : vector<8x32xf32>
    %182 = tpu.matmul %94, %181, %cst_148 {dimension_numbers = #tpu.dot_dimension_numbers<[1], [0], [0], [1], [0, 0, 1, 1], [], []>} : vector<8x32xf32>, vector<32x32xf32>, vector<8x32xf32> -> vector<8x32xf32>
    %183 = arith.addf %170, %182 : vector<8x32xf32>
    %c0_149 = arith.constant 0 : index
    %c3_150 = arith.constant 3 : index
    %c0_151 = arith.constant 0 : index
    %c0_152 = arith.constant 0 : index
    %184 = vector.load %arg9[%c0_149, %c3_150, %c0_151, %c0_152] : memref<2x4x32x32xf32, #tpu.memory_space<vmem>>, vector<1x1x32x32xf32>
    %185 = vector.shape_cast %184 : vector<1x1x32x32xf32> to vector<32x32xf32>
    %cst_153 = arith.constant dense<0.000000e+00> : vector<8x32xf32>
    %186 = tpu.matmul %94, %185, %cst_153 {dimension_numbers = #tpu.dot_dimension_numbers<[1], [0], [0], [1], [0, 0, 1, 1], [], []>} : vector<8x32xf32>, vector<32x32xf32>, vector<8x32xf32> -> vector<8x32xf32>
    %187 = arith.addf %171, %186 : vector<8x32xf32>
    %188 = arith.negf %175 : vector<8x32xf32>
    %189 = math.exp %188 : vector<8x32xf32>
    %cst_154 = arith.constant 1.000000e+00 : f32
    %190 = vector.broadcast %cst_154 : f32 to vector<8x32xf32>
    %191 = arith.addf %190, %189 : vector<8x32xf32>
    %192 = arith.divf %190, %191 : vector<8x32xf32>
    %193 = arith.negf %179 : vector<8x32xf32>
    %194 = math.exp %193 : vector<8x32xf32>
    %cst_155 = arith.constant 1.000000e+00 : f32
    %195 = vector.broadcast %cst_155 : f32 to vector<8x32xf32>
    %196 = arith.addf %195, %194 : vector<8x32xf32>
    %197 = arith.divf %195, %196 : vector<8x32xf32>
    %198 = arith.negf %183 : vector<8x32xf32>
    %199 = math.exp %198 : vector<8x32xf32>
    %cst_156 = arith.constant 1.000000e+00 : f32
    %200 = vector.broadcast %cst_156 : f32 to vector<8x32xf32>
    %201 = arith.addf %200, %199 : vector<8x32xf32>
    %202 = arith.divf %200, %201 : vector<8x32xf32>
    %cst_157 = arith.constant 2.000000e+00 : f32
    %203 = vector.broadcast %cst_157 : f32 to vector<8x32xf32>
    %204 = arith.mulf %203, %202 : vector<8x32xf32>
    %cst_158 = arith.constant 1.000000e+00 : f32
    %205 = vector.broadcast %cst_158 : f32 to vector<8x32xf32>
    %206 = arith.subf %204, %205 : vector<8x32xf32>
    %207 = arith.negf %187 : vector<8x32xf32>
    %208 = math.exp %207 : vector<8x32xf32>
    %cst_159 = arith.constant 1.000000e+00 : f32
    %209 = vector.broadcast %cst_159 : f32 to vector<8x32xf32>
    %210 = arith.addf %209, %208 : vector<8x32xf32>
    %211 = arith.divf %209, %210 : vector<8x32xf32>
    %212 = arith.mulf %197, %92 : vector<8x32xf32>
    %213 = arith.mulf %192, %206 : vector<8x32xf32>
    %214 = arith.addf %212, %213 : vector<8x32xf32>
    %215 = math.tanh %214 : vector<8x32xf32>
    %216 = arith.mulf %211, %215 : vector<8x32xf32>
    %c1_160 = arith.constant 1 : index
    %c0_161 = arith.constant 0 : index
    %c0_162 = arith.constant 0 : index
    %c0_163 = arith.constant 0 : index
    %217 = vector.load %arg7[%c1_160, %c0_161, %c0_162, %c0_163] : memref<2x4x32x32xf32, #tpu.memory_space<vmem>>, vector<1x1x32x32xf32>
    %218 = vector.shape_cast %217 : vector<1x1x32x32xf32> to vector<32x32xf32>
    %cst_164 = arith.constant dense<0.000000e+00> : vector<8x32xf32>
    %219 = tpu.matmul %216, %218, %cst_164 {dimension_numbers = #tpu.dot_dimension_numbers<[1], [0], [0], [1], [0, 0, 1, 1], [], []>} : vector<8x32xf32>, vector<32x32xf32>, vector<8x32xf32> -> vector<8x32xf32>
    %c1_165 = arith.constant 1 : index
    %c0_166 = arith.constant 0 : index
    %c0_167 = arith.constant 0 : index
    %c0_168 = arith.constant 0 : index
    %220 = vector.load %arg8[%c1_165, %c0_166, %c0_167, %c0_168] : memref<2x4x1x32xf32, #tpu.memory_space<vmem>>, vector<1x1x1x32xf32>
    %221 = vector.shape_cast %220 : vector<1x1x1x32xf32> to vector<1x32xf32>
    %222 = vector.broadcast %221 : vector<1x32xf32> to vector<8x32xf32>
    %223 = arith.addf %219, %222 : vector<8x32xf32>
    %c1_169 = arith.constant 1 : index
    %c1_170 = arith.constant 1 : index
    %c0_171 = arith.constant 0 : index
    %c0_172 = arith.constant 0 : index
    %224 = vector.load %arg7[%c1_169, %c1_170, %c0_171, %c0_172] : memref<2x4x32x32xf32, #tpu.memory_space<vmem>>, vector<1x1x32x32xf32>
    %225 = vector.shape_cast %224 : vector<1x1x32x32xf32> to vector<32x32xf32>
    %cst_173 = arith.constant dense<0.000000e+00> : vector<8x32xf32>
    %226 = tpu.matmul %216, %225, %cst_173 {dimension_numbers = #tpu.dot_dimension_numbers<[1], [0], [0], [1], [0, 0, 1, 1], [], []>} : vector<8x32xf32>, vector<32x32xf32>, vector<8x32xf32> -> vector<8x32xf32>
    %c1_174 = arith.constant 1 : index
    %c1_175 = arith.constant 1 : index
    %c0_176 = arith.constant 0 : index
    %c0_177 = arith.constant 0 : index
    %227 = vector.load %arg8[%c1_174, %c1_175, %c0_176, %c0_177] : memref<2x4x1x32xf32, #tpu.memory_space<vmem>>, vector<1x1x1x32xf32>
    %228 = vector.shape_cast %227 : vector<1x1x1x32xf32> to vector<1x32xf32>
    %229 = vector.broadcast %228 : vector<1x32xf32> to vector<8x32xf32>
    %230 = arith.addf %226, %229 : vector<8x32xf32>
    %c1_178 = arith.constant 1 : index
    %c2_179 = arith.constant 2 : index
    %c0_180 = arith.constant 0 : index
    %c0_181 = arith.constant 0 : index
    %231 = vector.load %arg7[%c1_178, %c2_179, %c0_180, %c0_181] : memref<2x4x32x32xf32, #tpu.memory_space<vmem>>, vector<1x1x32x32xf32>
    %232 = vector.shape_cast %231 : vector<1x1x32x32xf32> to vector<32x32xf32>
    %cst_182 = arith.constant dense<0.000000e+00> : vector<8x32xf32>
    %233 = tpu.matmul %216, %232, %cst_182 {dimension_numbers = #tpu.dot_dimension_numbers<[1], [0], [0], [1], [0, 0, 1, 1], [], []>} : vector<8x32xf32>, vector<32x32xf32>, vector<8x32xf32> -> vector<8x32xf32>
    %c1_183 = arith.constant 1 : index
    %c2_184 = arith.constant 2 : index
    %c0_185 = arith.constant 0 : index
    %c0_186 = arith.constant 0 : index
    %234 = vector.load %arg8[%c1_183, %c2_184, %c0_185, %c0_186] : memref<2x4x1x32xf32, #tpu.memory_space<vmem>>, vector<1x1x1x32xf32>
    %235 = vector.shape_cast %234 : vector<1x1x1x32xf32> to vector<1x32xf32>
    %236 = vector.broadcast %235 : vector<1x32xf32> to vector<8x32xf32>
    %237 = arith.addf %233, %236 : vector<8x32xf32>
    %c1_187 = arith.constant 1 : index
    %c3_188 = arith.constant 3 : index
    %c0_189 = arith.constant 0 : index
    %c0_190 = arith.constant 0 : index
    %238 = vector.load %arg7[%c1_187, %c3_188, %c0_189, %c0_190] : memref<2x4x32x32xf32, #tpu.memory_space<vmem>>, vector<1x1x32x32xf32>
    %239 = vector.shape_cast %238 : vector<1x1x32x32xf32> to vector<32x32xf32>
    %cst_191 = arith.constant dense<0.000000e+00> : vector<8x32xf32>
    %240 = tpu.matmul %216, %239, %cst_191 {dimension_numbers = #tpu.dot_dimension_numbers<[1], [0], [0], [1], [0, 0, 1, 1], [], []>} : vector<8x32xf32>, vector<32x32xf32>, vector<8x32xf32> -> vector<8x32xf32>
    %c1_192 = arith.constant 1 : index
    %c3_193 = arith.constant 3 : index
    %c0_194 = arith.constant 0 : index
    %c0_195 = arith.constant 0 : index
    %241 = vector.load %arg8[%c1_192, %c3_193, %c0_194, %c0_195] : memref<2x4x1x32xf32, #tpu.memory_space<vmem>>, vector<1x1x1x32xf32>
    %242 = vector.shape_cast %241 : vector<1x1x1x32xf32> to vector<1x32xf32>
    %243 = vector.broadcast %242 : vector<1x32xf32> to vector<8x32xf32>
    %244 = arith.addf %240, %243 : vector<8x32xf32>
    %c1_196 = arith.constant 1 : index
    %c0_197 = arith.constant 0 : index
    %c0_198 = arith.constant 0 : index
    %c0_199 = arith.constant 0 : index
    %245 = vector.load %arg9[%c1_196, %c0_197, %c0_198, %c0_199] : memref<2x4x32x32xf32, #tpu.memory_space<vmem>>, vector<1x1x32x32xf32>
    %246 = vector.shape_cast %245 : vector<1x1x32x32xf32> to vector<32x32xf32>
    %cst_200 = arith.constant dense<0.000000e+00> : vector<8x32xf32>
    %247 = tpu.matmul %167, %246, %cst_200 {dimension_numbers = #tpu.dot_dimension_numbers<[1], [0], [0], [1], [0, 0, 1, 1], [], []>} : vector<8x32xf32>, vector<32x32xf32>, vector<8x32xf32> -> vector<8x32xf32>
    %248 = arith.addf %223, %247 : vector<8x32xf32>
    %c1_201 = arith.constant 1 : index
    %c1_202 = arith.constant 1 : index
    %c0_203 = arith.constant 0 : index
    %c0_204 = arith.constant 0 : index
    %249 = vector.load %arg9[%c1_201, %c1_202, %c0_203, %c0_204] : memref<2x4x32x32xf32, #tpu.memory_space<vmem>>, vector<1x1x32x32xf32>
    %250 = vector.shape_cast %249 : vector<1x1x32x32xf32> to vector<32x32xf32>
    %cst_205 = arith.constant dense<0.000000e+00> : vector<8x32xf32>
    %251 = tpu.matmul %167, %250, %cst_205 {dimension_numbers = #tpu.dot_dimension_numbers<[1], [0], [0], [1], [0, 0, 1, 1], [], []>} : vector<8x32xf32>, vector<32x32xf32>, vector<8x32xf32> -> vector<8x32xf32>
    %252 = arith.addf %230, %251 : vector<8x32xf32>
    %c1_206 = arith.constant 1 : index
    %c2_207 = arith.constant 2 : index
    %c0_208 = arith.constant 0 : index
    %c0_209 = arith.constant 0 : index
    %253 = vector.load %arg9[%c1_206, %c2_207, %c0_208, %c0_209] : memref<2x4x32x32xf32, #tpu.memory_space<vmem>>, vector<1x1x32x32xf32>
    %254 = vector.shape_cast %253 : vector<1x1x32x32xf32> to vector<32x32xf32>
    %cst_210 = arith.constant dense<0.000000e+00> : vector<8x32xf32>
    %255 = tpu.matmul %167, %254, %cst_210 {dimension_numbers = #tpu.dot_dimension_numbers<[1], [0], [0], [1], [0, 0, 1, 1], [], []>} : vector<8x32xf32>, vector<32x32xf32>, vector<8x32xf32> -> vector<8x32xf32>
    %256 = arith.addf %237, %255 : vector<8x32xf32>
    %c1_211 = arith.constant 1 : index
    %c3_212 = arith.constant 3 : index
    %c0_213 = arith.constant 0 : index
    %c0_214 = arith.constant 0 : index
    %257 = vector.load %arg9[%c1_211, %c3_212, %c0_213, %c0_214] : memref<2x4x32x32xf32, #tpu.memory_space<vmem>>, vector<1x1x32x32xf32>
    %258 = vector.shape_cast %257 : vector<1x1x32x32xf32> to vector<32x32xf32>
    %cst_215 = arith.constant dense<0.000000e+00> : vector<8x32xf32>
    %259 = tpu.matmul %167, %258, %cst_215 {dimension_numbers = #tpu.dot_dimension_numbers<[1], [0], [0], [1], [0, 0, 1, 1], [], []>} : vector<8x32xf32>, vector<32x32xf32>, vector<8x32xf32> -> vector<8x32xf32>
    %260 = arith.addf %244, %259 : vector<8x32xf32>
    %261 = arith.negf %248 : vector<8x32xf32>
    %262 = math.exp %261 : vector<8x32xf32>
    %cst_216 = arith.constant 1.000000e+00 : f32
    %263 = vector.broadcast %cst_216 : f32 to vector<8x32xf32>
    %264 = arith.addf %263, %262 : vector<8x32xf32>
    %265 = arith.divf %263, %264 : vector<8x32xf32>
    %266 = arith.negf %252 : vector<8x32xf32>
    %267 = math.exp %266 : vector<8x32xf32>
    %cst_217 = arith.constant 1.000000e+00 : f32
    %268 = vector.broadcast %cst_217 : f32 to vector<8x32xf32>
    %269 = arith.addf %268, %267 : vector<8x32xf32>
    %270 = arith.divf %268, %269 : vector<8x32xf32>
    %271 = arith.negf %256 : vector<8x32xf32>
    %272 = math.exp %271 : vector<8x32xf32>
    %cst_218 = arith.constant 1.000000e+00 : f32
    %273 = vector.broadcast %cst_218 : f32 to vector<8x32xf32>
    %274 = arith.addf %273, %272 : vector<8x32xf32>
    %275 = arith.divf %273, %274 : vector<8x32xf32>
    %cst_219 = arith.constant 2.000000e+00 : f32
    %276 = vector.broadcast %cst_219 : f32 to vector<8x32xf32>
    %277 = arith.mulf %276, %275 : vector<8x32xf32>
    %cst_220 = arith.constant 1.000000e+00 : f32
    %278 = vector.broadcast %cst_220 : f32 to vector<8x32xf32>
    %279 = arith.subf %277, %278 : vector<8x32xf32>
    %280 = arith.negf %260 : vector<8x32xf32>
    %281 = math.exp %280 : vector<8x32xf32>
    %cst_221 = arith.constant 1.000000e+00 : f32
    %282 = vector.broadcast %cst_221 : f32 to vector<8x32xf32>
    %283 = arith.addf %282, %281 : vector<8x32xf32>
    %284 = arith.divf %282, %283 : vector<8x32xf32>
    %285 = arith.mulf %270, %165 : vector<8x32xf32>
    %286 = arith.mulf %265, %279 : vector<8x32xf32>
    %287 = arith.addf %285, %286 : vector<8x32xf32>
    %288 = math.tanh %287 : vector<8x32xf32>
    %289 = arith.mulf %284, %288 : vector<8x32xf32>
    %290 = vector.extract_strided_slice %14 {offsets = [16, 0], sizes = [8, 32], strides = [1, 1]} : vector<64x32xf32> to vector<8x32xf32>
    %291 = vector.extract_strided_slice %21 {offsets = [16, 0], sizes = [8, 32], strides = [1, 1]} : vector<64x32xf32> to vector<8x32xf32>
    %292 = vector.extract_strided_slice %28 {offsets = [16, 0], sizes = [8, 32], strides = [1, 1]} : vector<64x32xf32> to vector<8x32xf32>
    %293 = vector.extract_strided_slice %35 {offsets = [16, 0], sizes = [8, 32], strides = [1, 1]} : vector<64x32xf32> to vector<8x32xf32>
    %c0_222 = arith.constant 0 : index
    %c0_223 = arith.constant 0 : index
    %c0_224 = arith.constant 0 : index
    %c0_225 = arith.constant 0 : index
    %294 = vector.load %arg9[%c0_222, %c0_223, %c0_224, %c0_225] : memref<2x4x32x32xf32, #tpu.memory_space<vmem>>, vector<1x1x32x32xf32>
    %295 = vector.shape_cast %294 : vector<1x1x32x32xf32> to vector<32x32xf32>
    %cst_226 = arith.constant dense<0.000000e+00> : vector<8x32xf32>
    %296 = tpu.matmul %216, %295, %cst_226 {dimension_numbers = #tpu.dot_dimension_numbers<[1], [0], [0], [1], [0, 0, 1, 1], [], []>} : vector<8x32xf32>, vector<32x32xf32>, vector<8x32xf32> -> vector<8x32xf32>
    %297 = arith.addf %290, %296 : vector<8x32xf32>
    %c0_227 = arith.constant 0 : index
    %c1_228 = arith.constant 1 : index
    %c0_229 = arith.constant 0 : index
    %c0_230 = arith.constant 0 : index
    %298 = vector.load %arg9[%c0_227, %c1_228, %c0_229, %c0_230] : memref<2x4x32x32xf32, #tpu.memory_space<vmem>>, vector<1x1x32x32xf32>
    %299 = vector.shape_cast %298 : vector<1x1x32x32xf32> to vector<32x32xf32>
    %cst_231 = arith.constant dense<0.000000e+00> : vector<8x32xf32>
    %300 = tpu.matmul %216, %299, %cst_231 {dimension_numbers = #tpu.dot_dimension_numbers<[1], [0], [0], [1], [0, 0, 1, 1], [], []>} : vector<8x32xf32>, vector<32x32xf32>, vector<8x32xf32> -> vector<8x32xf32>
    %301 = arith.addf %291, %300 : vector<8x32xf32>
    %c0_232 = arith.constant 0 : index
    %c2_233 = arith.constant 2 : index
    %c0_234 = arith.constant 0 : index
    %c0_235 = arith.constant 0 : index
    %302 = vector.load %arg9[%c0_232, %c2_233, %c0_234, %c0_235] : memref<2x4x32x32xf32, #tpu.memory_space<vmem>>, vector<1x1x32x32xf32>
    %303 = vector.shape_cast %302 : vector<1x1x32x32xf32> to vector<32x32xf32>
    %cst_236 = arith.constant dense<0.000000e+00> : vector<8x32xf32>
    %304 = tpu.matmul %216, %303, %cst_236 {dimension_numbers = #tpu.dot_dimension_numbers<[1], [0], [0], [1], [0, 0, 1, 1], [], []>} : vector<8x32xf32>, vector<32x32xf32>, vector<8x32xf32> -> vector<8x32xf32>
    %305 = arith.addf %292, %304 : vector<8x32xf32>
    %c0_237 = arith.constant 0 : index
    %c3_238 = arith.constant 3 : index
    %c0_239 = arith.constant 0 : index
    %c0_240 = arith.constant 0 : index
    %306 = vector.load %arg9[%c0_237, %c3_238, %c0_239, %c0_240] : memref<2x4x32x32xf32, #tpu.memory_space<vmem>>, vector<1x1x32x32xf32>
    %307 = vector.shape_cast %306 : vector<1x1x32x32xf32> to vector<32x32xf32>
    %cst_241 = arith.constant dense<0.000000e+00> : vector<8x32xf32>
    %308 = tpu.matmul %216, %307, %cst_241 {dimension_numbers = #tpu.dot_dimension_numbers<[1], [0], [0], [1], [0, 0, 1, 1], [], []>} : vector<8x32xf32>, vector<32x32xf32>, vector<8x32xf32> -> vector<8x32xf32>
    %309 = arith.addf %293, %308 : vector<8x32xf32>
    %310 = arith.negf %297 : vector<8x32xf32>
    %311 = math.exp %310 : vector<8x32xf32>
    %cst_242 = arith.constant 1.000000e+00 : f32
    %312 = vector.broadcast %cst_242 : f32 to vector<8x32xf32>
    %313 = arith.addf %312, %311 : vector<8x32xf32>
    %314 = arith.divf %312, %313 : vector<8x32xf32>
    %315 = arith.negf %301 : vector<8x32xf32>
    %316 = math.exp %315 : vector<8x32xf32>
    %cst_243 = arith.constant 1.000000e+00 : f32
    %317 = vector.broadcast %cst_243 : f32 to vector<8x32xf32>
    %318 = arith.addf %317, %316 : vector<8x32xf32>
    %319 = arith.divf %317, %318 : vector<8x32xf32>
    %320 = arith.negf %305 : vector<8x32xf32>
    %321 = math.exp %320 : vector<8x32xf32>
    %cst_244 = arith.constant 1.000000e+00 : f32
    %322 = vector.broadcast %cst_244 : f32 to vector<8x32xf32>
    %323 = arith.addf %322, %321 : vector<8x32xf32>
    %324 = arith.divf %322, %323 : vector<8x32xf32>
    %cst_245 = arith.constant 2.000000e+00 : f32
    %325 = vector.broadcast %cst_245 : f32 to vector<8x32xf32>
    %326 = arith.mulf %325, %324 : vector<8x32xf32>
    %cst_246 = arith.constant 1.000000e+00 : f32
    %327 = vector.broadcast %cst_246 : f32 to vector<8x32xf32>
    %328 = arith.subf %326, %327 : vector<8x32xf32>
    %329 = arith.negf %309 : vector<8x32xf32>
    %330 = math.exp %329 : vector<8x32xf32>
    %cst_247 = arith.constant 1.000000e+00 : f32
    %331 = vector.broadcast %cst_247 : f32 to vector<8x32xf32>
    %332 = arith.addf %331, %330 : vector<8x32xf32>
    %333 = arith.divf %331, %332 : vector<8x32xf32>
    %334 = arith.mulf %319, %214 : vector<8x32xf32>
    %335 = arith.mulf %314, %328 : vector<8x32xf32>
    %336 = arith.addf %334, %335 : vector<8x32xf32>
    %337 = math.tanh %336 : vector<8x32xf32>
    %338 = arith.mulf %333, %337 : vector<8x32xf32>
    %c1_248 = arith.constant 1 : index
    %c0_249 = arith.constant 0 : index
    %c0_250 = arith.constant 0 : index
    %c0_251 = arith.constant 0 : index
    %339 = vector.load %arg7[%c1_248, %c0_249, %c0_250, %c0_251] : memref<2x4x32x32xf32, #tpu.memory_space<vmem>>, vector<1x1x32x32xf32>
    %340 = vector.shape_cast %339 : vector<1x1x32x32xf32> to vector<32x32xf32>
    %cst_252 = arith.constant dense<0.000000e+00> : vector<8x32xf32>
    %341 = tpu.matmul %338, %340, %cst_252 {dimension_numbers = #tpu.dot_dimension_numbers<[1], [0], [0], [1], [0, 0, 1, 1], [], []>} : vector<8x32xf32>, vector<32x32xf32>, vector<8x32xf32> -> vector<8x32xf32>
    %c1_253 = arith.constant 1 : index
    %c0_254 = arith.constant 0 : index
    %c0_255 = arith.constant 0 : index
    %c0_256 = arith.constant 0 : index
    %342 = vector.load %arg8[%c1_253, %c0_254, %c0_255, %c0_256] : memref<2x4x1x32xf32, #tpu.memory_space<vmem>>, vector<1x1x1x32xf32>
    %343 = vector.shape_cast %342 : vector<1x1x1x32xf32> to vector<1x32xf32>
    %344 = vector.broadcast %343 : vector<1x32xf32> to vector<8x32xf32>
    %345 = arith.addf %341, %344 : vector<8x32xf32>
    %c1_257 = arith.constant 1 : index
    %c1_258 = arith.constant 1 : index
    %c0_259 = arith.constant 0 : index
    %c0_260 = arith.constant 0 : index
    %346 = vector.load %arg7[%c1_257, %c1_258, %c0_259, %c0_260] : memref<2x4x32x32xf32, #tpu.memory_space<vmem>>, vector<1x1x32x32xf32>
    %347 = vector.shape_cast %346 : vector<1x1x32x32xf32> to vector<32x32xf32>
    %cst_261 = arith.constant dense<0.000000e+00> : vector<8x32xf32>
    %348 = tpu.matmul %338, %347, %cst_261 {dimension_numbers = #tpu.dot_dimension_numbers<[1], [0], [0], [1], [0, 0, 1, 1], [], []>} : vector<8x32xf32>, vector<32x32xf32>, vector<8x32xf32> -> vector<8x32xf32>
    %c1_262 = arith.constant 1 : index
    %c1_263 = arith.constant 1 : index
    %c0_264 = arith.constant 0 : index
    %c0_265 = arith.constant 0 : index
    %349 = vector.load %arg8[%c1_262, %c1_263, %c0_264, %c0_265] : memref<2x4x1x32xf32, #tpu.memory_space<vmem>>, vector<1x1x1x32xf32>
    %350 = vector.shape_cast %349 : vector<1x1x1x32xf32> to vector<1x32xf32>
    %351 = vector.broadcast %350 : vector<1x32xf32> to vector<8x32xf32>
    %352 = arith.addf %348, %351 : vector<8x32xf32>
    %c1_266 = arith.constant 1 : index
    %c2_267 = arith.constant 2 : index
    %c0_268 = arith.constant 0 : index
    %c0_269 = arith.constant 0 : index
    %353 = vector.load %arg7[%c1_266, %c2_267, %c0_268, %c0_269] : memref<2x4x32x32xf32, #tpu.memory_space<vmem>>, vector<1x1x32x32xf32>
    %354 = vector.shape_cast %353 : vector<1x1x32x32xf32> to vector<32x32xf32>
    %cst_270 = arith.constant dense<0.000000e+00> : vector<8x32xf32>
    %355 = tpu.matmul %338, %354, %cst_270 {dimension_numbers = #tpu.dot_dimension_numbers<[1], [0], [0], [1], [0, 0, 1, 1], [], []>} : vector<8x32xf32>, vector<32x32xf32>, vector<8x32xf32> -> vector<8x32xf32>
    %c1_271 = arith.constant 1 : index
    %c2_272 = arith.constant 2 : index
    %c0_273 = arith.constant 0 : index
    %c0_274 = arith.constant 0 : index
    %356 = vector.load %arg8[%c1_271, %c2_272, %c0_273, %c0_274] : memref<2x4x1x32xf32, #tpu.memory_space<vmem>>, vector<1x1x1x32xf32>
    %357 = vector.shape_cast %356 : vector<1x1x1x32xf32> to vector<1x32xf32>
    %358 = vector.broadcast %357 : vector<1x32xf32> to vector<8x32xf32>
    %359 = arith.addf %355, %358 : vector<8x32xf32>
    %c1_275 = arith.constant 1 : index
    %c3_276 = arith.constant 3 : index
    %c0_277 = arith.constant 0 : index
    %c0_278 = arith.constant 0 : index
    %360 = vector.load %arg7[%c1_275, %c3_276, %c0_277, %c0_278] : memref<2x4x32x32xf32, #tpu.memory_space<vmem>>, vector<1x1x32x32xf32>
    %361 = vector.shape_cast %360 : vector<1x1x32x32xf32> to vector<32x32xf32>
    %cst_279 = arith.constant dense<0.000000e+00> : vector<8x32xf32>
    %362 = tpu.matmul %338, %361, %cst_279 {dimension_numbers = #tpu.dot_dimension_numbers<[1], [0], [0], [1], [0, 0, 1, 1], [], []>} : vector<8x32xf32>, vector<32x32xf32>, vector<8x32xf32> -> vector<8x32xf32>
    %c1_280 = arith.constant 1 : index
    %c3_281 = arith.constant 3 : index
    %c0_282 = arith.constant 0 : index
    %c0_283 = arith.constant 0 : index
    %363 = vector.load %arg8[%c1_280, %c3_281, %c0_282, %c0_283] : memref<2x4x1x32xf32, #tpu.memory_space<vmem>>, vector<1x1x1x32xf32>
    %364 = vector.shape_cast %363 : vector<1x1x1x32xf32> to vector<1x32xf32>
    %365 = vector.broadcast %364 : vector<1x32xf32> to vector<8x32xf32>
    %366 = arith.addf %362, %365 : vector<8x32xf32>
    %c1_284 = arith.constant 1 : index
    %c0_285 = arith.constant 0 : index
    %c0_286 = arith.constant 0 : index
    %c0_287 = arith.constant 0 : index
    %367 = vector.load %arg9[%c1_284, %c0_285, %c0_286, %c0_287] : memref<2x4x32x32xf32, #tpu.memory_space<vmem>>, vector<1x1x32x32xf32>
    %368 = vector.shape_cast %367 : vector<1x1x32x32xf32> to vector<32x32xf32>
    %cst_288 = arith.constant dense<0.000000e+00> : vector<8x32xf32>
    %369 = tpu.matmul %289, %368, %cst_288 {dimension_numbers = #tpu.dot_dimension_numbers<[1], [0], [0], [1], [0, 0, 1, 1], [], []>} : vector<8x32xf32>, vector<32x32xf32>, vector<8x32xf32> -> vector<8x32xf32>
    %370 = arith.addf %345, %369 : vector<8x32xf32>
    %c1_289 = arith.constant 1 : index
    %c1_290 = arith.constant 1 : index
    %c0_291 = arith.constant 0 : index
    %c0_292 = arith.constant 0 : index
    %371 = vector.load %arg9[%c1_289, %c1_290, %c0_291, %c0_292] : memref<2x4x32x32xf32, #tpu.memory_space<vmem>>, vector<1x1x32x32xf32>
    %372 = vector.shape_cast %371 : vector<1x1x32x32xf32> to vector<32x32xf32>
    %cst_293 = arith.constant dense<0.000000e+00> : vector<8x32xf32>
    %373 = tpu.matmul %289, %372, %cst_293 {dimension_numbers = #tpu.dot_dimension_numbers<[1], [0], [0], [1], [0, 0, 1, 1], [], []>} : vector<8x32xf32>, vector<32x32xf32>, vector<8x32xf32> -> vector<8x32xf32>
    %374 = arith.addf %352, %373 : vector<8x32xf32>
    %c1_294 = arith.constant 1 : index
    %c2_295 = arith.constant 2 : index
    %c0_296 = arith.constant 0 : index
    %c0_297 = arith.constant 0 : index
    %375 = vector.load %arg9[%c1_294, %c2_295, %c0_296, %c0_297] : memref<2x4x32x32xf32, #tpu.memory_space<vmem>>, vector<1x1x32x32xf32>
    %376 = vector.shape_cast %375 : vector<1x1x32x32xf32> to vector<32x32xf32>
    %cst_298 = arith.constant dense<0.000000e+00> : vector<8x32xf32>
    %377 = tpu.matmul %289, %376, %cst_298 {dimension_numbers = #tpu.dot_dimension_numbers<[1], [0], [0], [1], [0, 0, 1, 1], [], []>} : vector<8x32xf32>, vector<32x32xf32>, vector<8x32xf32> -> vector<8x32xf32>
    %378 = arith.addf %359, %377 : vector<8x32xf32>
    %c1_299 = arith.constant 1 : index
    %c3_300 = arith.constant 3 : index
    %c0_301 = arith.constant 0 : index
    %c0_302 = arith.constant 0 : index
    %379 = vector.load %arg9[%c1_299, %c3_300, %c0_301, %c0_302] : memref<2x4x32x32xf32, #tpu.memory_space<vmem>>, vector<1x1x32x32xf32>
    %380 = vector.shape_cast %379 : vector<1x1x32x32xf32> to vector<32x32xf32>
    %cst_303 = arith.constant dense<0.000000e+00> : vector<8x32xf32>
    %381 = tpu.matmul %289, %380, %cst_303 {dimension_numbers = #tpu.dot_dimension_numbers<[1], [0], [0], [1], [0, 0, 1, 1], [], []>} : vector<8x32xf32>, vector<32x32xf32>, vector<8x32xf32> -> vector<8x32xf32>
    %382 = arith.addf %366, %381 : vector<8x32xf32>
    %383 = arith.negf %370 : vector<8x32xf32>
    %384 = math.exp %383 : vector<8x32xf32>
    %cst_304 = arith.constant 1.000000e+00 : f32
    %385 = vector.broadcast %cst_304 : f32 to vector<8x32xf32>
    %386 = arith.addf %385, %384 : vector<8x32xf32>
    %387 = arith.divf %385, %386 : vector<8x32xf32>
    %388 = arith.negf %374 : vector<8x32xf32>
    %389 = math.exp %388 : vector<8x32xf32>
    %cst_305 = arith.constant 1.000000e+00 : f32
    %390 = vector.broadcast %cst_305 : f32 to vector<8x32xf32>
    %391 = arith.addf %390, %389 : vector<8x32xf32>
    %392 = arith.divf %390, %391 : vector<8x32xf32>
    %393 = arith.negf %378 : vector<8x32xf32>
    %394 = math.exp %393 : vector<8x32xf32>
    %cst_306 = arith.constant 1.000000e+00 : f32
    %395 = vector.broadcast %cst_306 : f32 to vector<8x32xf32>
    %396 = arith.addf %395, %394 : vector<8x32xf32>
    %397 = arith.divf %395, %396 : vector<8x32xf32>
    %cst_307 = arith.constant 2.000000e+00 : f32
    %398 = vector.broadcast %cst_307 : f32 to vector<8x32xf32>
    %399 = arith.mulf %398, %397 : vector<8x32xf32>
    %cst_308 = arith.constant 1.000000e+00 : f32
    %400 = vector.broadcast %cst_308 : f32 to vector<8x32xf32>
    %401 = arith.subf %399, %400 : vector<8x32xf32>
    %402 = arith.negf %382 : vector<8x32xf32>
    %403 = math.exp %402 : vector<8x32xf32>
    %cst_309 = arith.constant 1.000000e+00 : f32
    %404 = vector.broadcast %cst_309 : f32 to vector<8x32xf32>
    %405 = arith.addf %404, %403 : vector<8x32xf32>
    %406 = arith.divf %404, %405 : vector<8x32xf32>
    %407 = arith.mulf %392, %287 : vector<8x32xf32>
    %408 = arith.mulf %387, %401 : vector<8x32xf32>
    %409 = arith.addf %407, %408 : vector<8x32xf32>
    %410 = math.tanh %409 : vector<8x32xf32>
    %411 = arith.mulf %406, %410 : vector<8x32xf32>
    %412 = vector.extract_strided_slice %14 {offsets = [24, 0], sizes = [8, 32], strides = [1, 1]} : vector<64x32xf32> to vector<8x32xf32>
    %413 = vector.extract_strided_slice %21 {offsets = [24, 0], sizes = [8, 32], strides = [1, 1]} : vector<64x32xf32> to vector<8x32xf32>
    %414 = vector.extract_strided_slice %28 {offsets = [24, 0], sizes = [8, 32], strides = [1, 1]} : vector<64x32xf32> to vector<8x32xf32>
    %415 = vector.extract_strided_slice %35 {offsets = [24, 0], sizes = [8, 32], strides = [1, 1]} : vector<64x32xf32> to vector<8x32xf32>
    %c0_310 = arith.constant 0 : index
    %c0_311 = arith.constant 0 : index
    %c0_312 = arith.constant 0 : index
    %c0_313 = arith.constant 0 : index
    %416 = vector.load %arg9[%c0_310, %c0_311, %c0_312, %c0_313] : memref<2x4x32x32xf32, #tpu.memory_space<vmem>>, vector<1x1x32x32xf32>
    %417 = vector.shape_cast %416 : vector<1x1x32x32xf32> to vector<32x32xf32>
    %cst_314 = arith.constant dense<0.000000e+00> : vector<8x32xf32>
    %418 = tpu.matmul %338, %417, %cst_314 {dimension_numbers = #tpu.dot_dimension_numbers<[1], [0], [0], [1], [0, 0, 1, 1], [], []>} : vector<8x32xf32>, vector<32x32xf32>, vector<8x32xf32> -> vector<8x32xf32>
    %419 = arith.addf %412, %418 : vector<8x32xf32>
    %c0_315 = arith.constant 0 : index
    %c1_316 = arith.constant 1 : index
    %c0_317 = arith.constant 0 : index
    %c0_318 = arith.constant 0 : index
    %420 = vector.load %arg9[%c0_315, %c1_316, %c0_317, %c0_318] : memref<2x4x32x32xf32, #tpu.memory_space<vmem>>, vector<1x1x32x32xf32>
    %421 = vector.shape_cast %420 : vector<1x1x32x32xf32> to vector<32x32xf32>
    %cst_319 = arith.constant dense<0.000000e+00> : vector<8x32xf32>
    %422 = tpu.matmul %338, %421, %cst_319 {dimension_numbers = #tpu.dot_dimension_numbers<[1], [0], [0], [1], [0, 0, 1, 1], [], []>} : vector<8x32xf32>, vector<32x32xf32>, vector<8x32xf32> -> vector<8x32xf32>
    %423 = arith.addf %413, %422 : vector<8x32xf32>
    %c0_320 = arith.constant 0 : index
    %c2_321 = arith.constant 2 : index
    %c0_322 = arith.constant 0 : index
    %c0_323 = arith.constant 0 : index
    %424 = vector.load %arg9[%c0_320, %c2_321, %c0_322, %c0_323] : memref<2x4x32x32xf32, #tpu.memory_space<vmem>>, vector<1x1x32x32xf32>
    %425 = vector.shape_cast %424 : vector<1x1x32x32xf32> to vector<32x32xf32>
    %cst_324 = arith.constant dense<0.000000e+00> : vector<8x32xf32>
    %426 = tpu.matmul %338, %425, %cst_324 {dimension_numbers = #tpu.dot_dimension_numbers<[1], [0], [0], [1], [0, 0, 1, 1], [], []>} : vector<8x32xf32>, vector<32x32xf32>, vector<8x32xf32> -> vector<8x32xf32>
    %427 = arith.addf %414, %426 : vector<8x32xf32>
    %c0_325 = arith.constant 0 : index
    %c3_326 = arith.constant 3 : index
    %c0_327 = arith.constant 0 : index
    %c0_328 = arith.constant 0 : index
    %428 = vector.load %arg9[%c0_325, %c3_326, %c0_327, %c0_328] : memref<2x4x32x32xf32, #tpu.memory_space<vmem>>, vector<1x1x32x32xf32>
    %429 = vector.shape_cast %428 : vector<1x1x32x32xf32> to vector<32x32xf32>
    %cst_329 = arith.constant dense<0.000000e+00> : vector<8x32xf32>
    %430 = tpu.matmul %338, %429, %cst_329 {dimension_numbers = #tpu.dot_dimension_numbers<[1], [0], [0], [1], [0, 0, 1, 1], [], []>} : vector<8x32xf32>, vector<32x32xf32>, vector<8x32xf32> -> vector<8x32xf32>
    %431 = arith.addf %415, %430 : vector<8x32xf32>
    %432 = arith.negf %419 : vector<8x32xf32>
    %433 = math.exp %432 : vector<8x32xf32>
    %cst_330 = arith.constant 1.000000e+00 : f32
    %434 = vector.broadcast %cst_330 : f32 to vector<8x32xf32>
    %435 = arith.addf %434, %433 : vector<8x32xf32>
    %436 = arith.divf %434, %435 : vector<8x32xf32>
    %437 = arith.negf %423 : vector<8x32xf32>
    %438 = math.exp %437 : vector<8x32xf32>
    %cst_331 = arith.constant 1.000000e+00 : f32
    %439 = vector.broadcast %cst_331 : f32 to vector<8x32xf32>
    %440 = arith.addf %439, %438 : vector<8x32xf32>
    %441 = arith.divf %439, %440 : vector<8x32xf32>
    %442 = arith.negf %427 : vector<8x32xf32>
    %443 = math.exp %442 : vector<8x32xf32>
    %cst_332 = arith.constant 1.000000e+00 : f32
    %444 = vector.broadcast %cst_332 : f32 to vector<8x32xf32>
    %445 = arith.addf %444, %443 : vector<8x32xf32>
    %446 = arith.divf %444, %445 : vector<8x32xf32>
    %cst_333 = arith.constant 2.000000e+00 : f32
    %447 = vector.broadcast %cst_333 : f32 to vector<8x32xf32>
    %448 = arith.mulf %447, %446 : vector<8x32xf32>
    %cst_334 = arith.constant 1.000000e+00 : f32
    %449 = vector.broadcast %cst_334 : f32 to vector<8x32xf32>
    %450 = arith.subf %448, %449 : vector<8x32xf32>
    %451 = arith.negf %431 : vector<8x32xf32>
    %452 = math.exp %451 : vector<8x32xf32>
    %cst_335 = arith.constant 1.000000e+00 : f32
    %453 = vector.broadcast %cst_335 : f32 to vector<8x32xf32>
    %454 = arith.addf %453, %452 : vector<8x32xf32>
    %455 = arith.divf %453, %454 : vector<8x32xf32>
    %456 = arith.mulf %441, %336 : vector<8x32xf32>
    %457 = arith.mulf %436, %450 : vector<8x32xf32>
    %458 = arith.addf %456, %457 : vector<8x32xf32>
    %459 = math.tanh %458 : vector<8x32xf32>
    %460 = arith.mulf %455, %459 : vector<8x32xf32>
    %c1_336 = arith.constant 1 : index
    %c0_337 = arith.constant 0 : index
    %c0_338 = arith.constant 0 : index
    %c0_339 = arith.constant 0 : index
    %461 = vector.load %arg7[%c1_336, %c0_337, %c0_338, %c0_339] : memref<2x4x32x32xf32, #tpu.memory_space<vmem>>, vector<1x1x32x32xf32>
    %462 = vector.shape_cast %461 : vector<1x1x32x32xf32> to vector<32x32xf32>
    %cst_340 = arith.constant dense<0.000000e+00> : vector<8x32xf32>
    %463 = tpu.matmul %460, %462, %cst_340 {dimension_numbers = #tpu.dot_dimension_numbers<[1], [0], [0], [1], [0, 0, 1, 1], [], []>} : vector<8x32xf32>, vector<32x32xf32>, vector<8x32xf32> -> vector<8x32xf32>
    %c1_341 = arith.constant 1 : index
    %c0_342 = arith.constant 0 : index
    %c0_343 = arith.constant 0 : index
    %c0_344 = arith.constant 0 : index
    %464 = vector.load %arg8[%c1_341, %c0_342, %c0_343, %c0_344] : memref<2x4x1x32xf32, #tpu.memory_space<vmem>>, vector<1x1x1x32xf32>
    %465 = vector.shape_cast %464 : vector<1x1x1x32xf32> to vector<1x32xf32>
    %466 = vector.broadcast %465 : vector<1x32xf32> to vector<8x32xf32>
    %467 = arith.addf %463, %466 : vector<8x32xf32>
    %c1_345 = arith.constant 1 : index
    %c1_346 = arith.constant 1 : index
    %c0_347 = arith.constant 0 : index
    %c0_348 = arith.constant 0 : index
    %468 = vector.load %arg7[%c1_345, %c1_346, %c0_347, %c0_348] : memref<2x4x32x32xf32, #tpu.memory_space<vmem>>, vector<1x1x32x32xf32>
    %469 = vector.shape_cast %468 : vector<1x1x32x32xf32> to vector<32x32xf32>
    %cst_349 = arith.constant dense<0.000000e+00> : vector<8x32xf32>
    %470 = tpu.matmul %460, %469, %cst_349 {dimension_numbers = #tpu.dot_dimension_numbers<[1], [0], [0], [1], [0, 0, 1, 1], [], []>} : vector<8x32xf32>, vector<32x32xf32>, vector<8x32xf32> -> vector<8x32xf32>
    %c1_350 = arith.constant 1 : index
    %c1_351 = arith.constant 1 : index
    %c0_352 = arith.constant 0 : index
    %c0_353 = arith.constant 0 : index
    %471 = vector.load %arg8[%c1_350, %c1_351, %c0_352, %c0_353] : memref<2x4x1x32xf32, #tpu.memory_space<vmem>>, vector<1x1x1x32xf32>
    %472 = vector.shape_cast %471 : vector<1x1x1x32xf32> to vector<1x32xf32>
    %473 = vector.broadcast %472 : vector<1x32xf32> to vector<8x32xf32>
    %474 = arith.addf %470, %473 : vector<8x32xf32>
    %c1_354 = arith.constant 1 : index
    %c2_355 = arith.constant 2 : index
    %c0_356 = arith.constant 0 : index
    %c0_357 = arith.constant 0 : index
    %475 = vector.load %arg7[%c1_354, %c2_355, %c0_356, %c0_357] : memref<2x4x32x32xf32, #tpu.memory_space<vmem>>, vector<1x1x32x32xf32>
    %476 = vector.shape_cast %475 : vector<1x1x32x32xf32> to vector<32x32xf32>
    %cst_358 = arith.constant dense<0.000000e+00> : vector<8x32xf32>
    %477 = tpu.matmul %460, %476, %cst_358 {dimension_numbers = #tpu.dot_dimension_numbers<[1], [0], [0], [1], [0, 0, 1, 1], [], []>} : vector<8x32xf32>, vector<32x32xf32>, vector<8x32xf32> -> vector<8x32xf32>
    %c1_359 = arith.constant 1 : index
    %c2_360 = arith.constant 2 : index
    %c0_361 = arith.constant 0 : index
    %c0_362 = arith.constant 0 : index
    %478 = vector.load %arg8[%c1_359, %c2_360, %c0_361, %c0_362] : memref<2x4x1x32xf32, #tpu.memory_space<vmem>>, vector<1x1x1x32xf32>
    %479 = vector.shape_cast %478 : vector<1x1x1x32xf32> to vector<1x32xf32>
    %480 = vector.broadcast %479 : vector<1x32xf32> to vector<8x32xf32>
    %481 = arith.addf %477, %480 : vector<8x32xf32>
    %c1_363 = arith.constant 1 : index
    %c3_364 = arith.constant 3 : index
    %c0_365 = arith.constant 0 : index
    %c0_366 = arith.constant 0 : index
    %482 = vector.load %arg7[%c1_363, %c3_364, %c0_365, %c0_366] : memref<2x4x32x32xf32, #tpu.memory_space<vmem>>, vector<1x1x32x32xf32>
    %483 = vector.shape_cast %482 : vector<1x1x32x32xf32> to vector<32x32xf32>
    %cst_367 = arith.constant dense<0.000000e+00> : vector<8x32xf32>
    %484 = tpu.matmul %460, %483, %cst_367 {dimension_numbers = #tpu.dot_dimension_numbers<[1], [0], [0], [1], [0, 0, 1, 1], [], []>} : vector<8x32xf32>, vector<32x32xf32>, vector<8x32xf32> -> vector<8x32xf32>
    %c1_368 = arith.constant 1 : index
    %c3_369 = arith.constant 3 : index
    %c0_370 = arith.constant 0 : index
    %c0_371 = arith.constant 0 : index
    %485 = vector.load %arg8[%c1_368, %c3_369, %c0_370, %c0_371] : memref<2x4x1x32xf32, #tpu.memory_space<vmem>>, vector<1x1x1x32xf32>
    %486 = vector.shape_cast %485 : vector<1x1x1x32xf32> to vector<1x32xf32>
    %487 = vector.broadcast %486 : vector<1x32xf32> to vector<8x32xf32>
    %488 = arith.addf %484, %487 : vector<8x32xf32>
    %c1_372 = arith.constant 1 : index
    %c0_373 = arith.constant 0 : index
    %c0_374 = arith.constant 0 : index
    %c0_375 = arith.constant 0 : index
    %489 = vector.load %arg9[%c1_372, %c0_373, %c0_374, %c0_375] : memref<2x4x32x32xf32, #tpu.memory_space<vmem>>, vector<1x1x32x32xf32>
    %490 = vector.shape_cast %489 : vector<1x1x32x32xf32> to vector<32x32xf32>
    %cst_376 = arith.constant dense<0.000000e+00> : vector<8x32xf32>
    %491 = tpu.matmul %411, %490, %cst_376 {dimension_numbers = #tpu.dot_dimension_numbers<[1], [0], [0], [1], [0, 0, 1, 1], [], []>} : vector<8x32xf32>, vector<32x32xf32>, vector<8x32xf32> -> vector<8x32xf32>
    %492 = arith.addf %467, %491 : vector<8x32xf32>
    %c1_377 = arith.constant 1 : index
    %c1_378 = arith.constant 1 : index
    %c0_379 = arith.constant 0 : index
    %c0_380 = arith.constant 0 : index
    %493 = vector.load %arg9[%c1_377, %c1_378, %c0_379, %c0_380] : memref<2x4x32x32xf32, #tpu.memory_space<vmem>>, vector<1x1x32x32xf32>
    %494 = vector.shape_cast %493 : vector<1x1x32x32xf32> to vector<32x32xf32>
    %cst_381 = arith.constant dense<0.000000e+00> : vector<8x32xf32>
    %495 = tpu.matmul %411, %494, %cst_381 {dimension_numbers = #tpu.dot_dimension_numbers<[1], [0], [0], [1], [0, 0, 1, 1], [], []>} : vector<8x32xf32>, vector<32x32xf32>, vector<8x32xf32> -> vector<8x32xf32>
    %496 = arith.addf %474, %495 : vector<8x32xf32>
    %c1_382 = arith.constant 1 : index
    %c2_383 = arith.constant 2 : index
    %c0_384 = arith.constant 0 : index
    %c0_385 = arith.constant 0 : index
    %497 = vector.load %arg9[%c1_382, %c2_383, %c0_384, %c0_385] : memref<2x4x32x32xf32, #tpu.memory_space<vmem>>, vector<1x1x32x32xf32>
    %498 = vector.shape_cast %497 : vector<1x1x32x32xf32> to vector<32x32xf32>
    %cst_386 = arith.constant dense<0.000000e+00> : vector<8x32xf32>
    %499 = tpu.matmul %411, %498, %cst_386 {dimension_numbers = #tpu.dot_dimension_numbers<[1], [0], [0], [1], [0, 0, 1, 1], [], []>} : vector<8x32xf32>, vector<32x32xf32>, vector<8x32xf32> -> vector<8x32xf32>
    %500 = arith.addf %481, %499 : vector<8x32xf32>
    %c1_387 = arith.constant 1 : index
    %c3_388 = arith.constant 3 : index
    %c0_389 = arith.constant 0 : index
    %c0_390 = arith.constant 0 : index
    %501 = vector.load %arg9[%c1_387, %c3_388, %c0_389, %c0_390] : memref<2x4x32x32xf32, #tpu.memory_space<vmem>>, vector<1x1x32x32xf32>
    %502 = vector.shape_cast %501 : vector<1x1x32x32xf32> to vector<32x32xf32>
    %cst_391 = arith.constant dense<0.000000e+00> : vector<8x32xf32>
    %503 = tpu.matmul %411, %502, %cst_391 {dimension_numbers = #tpu.dot_dimension_numbers<[1], [0], [0], [1], [0, 0, 1, 1], [], []>} : vector<8x32xf32>, vector<32x32xf32>, vector<8x32xf32> -> vector<8x32xf32>
    %504 = arith.addf %488, %503 : vector<8x32xf32>
    %505 = arith.negf %492 : vector<8x32xf32>
    %506 = math.exp %505 : vector<8x32xf32>
    %cst_392 = arith.constant 1.000000e+00 : f32
    %507 = vector.broadcast %cst_392 : f32 to vector<8x32xf32>
    %508 = arith.addf %507, %506 : vector<8x32xf32>
    %509 = arith.divf %507, %508 : vector<8x32xf32>
    %510 = arith.negf %496 : vector<8x32xf32>
    %511 = math.exp %510 : vector<8x32xf32>
    %cst_393 = arith.constant 1.000000e+00 : f32
    %512 = vector.broadcast %cst_393 : f32 to vector<8x32xf32>
    %513 = arith.addf %512, %511 : vector<8x32xf32>
    %514 = arith.divf %512, %513 : vector<8x32xf32>
    %515 = arith.negf %500 : vector<8x32xf32>
    %516 = math.exp %515 : vector<8x32xf32>
    %cst_394 = arith.constant 1.000000e+00 : f32
    %517 = vector.broadcast %cst_394 : f32 to vector<8x32xf32>
    %518 = arith.addf %517, %516 : vector<8x32xf32>
    %519 = arith.divf %517, %518 : vector<8x32xf32>
    %cst_395 = arith.constant 2.000000e+00 : f32
    %520 = vector.broadcast %cst_395 : f32 to vector<8x32xf32>
    %521 = arith.mulf %520, %519 : vector<8x32xf32>
    %cst_396 = arith.constant 1.000000e+00 : f32
    %522 = vector.broadcast %cst_396 : f32 to vector<8x32xf32>
    %523 = arith.subf %521, %522 : vector<8x32xf32>
    %524 = arith.negf %504 : vector<8x32xf32>
    %525 = math.exp %524 : vector<8x32xf32>
    %cst_397 = arith.constant 1.000000e+00 : f32
    %526 = vector.broadcast %cst_397 : f32 to vector<8x32xf32>
    %527 = arith.addf %526, %525 : vector<8x32xf32>
    %528 = arith.divf %526, %527 : vector<8x32xf32>
    %529 = arith.mulf %514, %409 : vector<8x32xf32>
    %530 = arith.mulf %509, %523 : vector<8x32xf32>
    %531 = arith.addf %529, %530 : vector<8x32xf32>
    %532 = math.tanh %531 : vector<8x32xf32>
    %533 = arith.mulf %528, %532 : vector<8x32xf32>
    %534 = vector.extract_strided_slice %14 {offsets = [32, 0], sizes = [8, 32], strides = [1, 1]} : vector<64x32xf32> to vector<8x32xf32>
    %535 = vector.extract_strided_slice %21 {offsets = [32, 0], sizes = [8, 32], strides = [1, 1]} : vector<64x32xf32> to vector<8x32xf32>
    %536 = vector.extract_strided_slice %28 {offsets = [32, 0], sizes = [8, 32], strides = [1, 1]} : vector<64x32xf32> to vector<8x32xf32>
    %537 = vector.extract_strided_slice %35 {offsets = [32, 0], sizes = [8, 32], strides = [1, 1]} : vector<64x32xf32> to vector<8x32xf32>
    %c0_398 = arith.constant 0 : index
    %c0_399 = arith.constant 0 : index
    %c0_400 = arith.constant 0 : index
    %c0_401 = arith.constant 0 : index
    %538 = vector.load %arg9[%c0_398, %c0_399, %c0_400, %c0_401] : memref<2x4x32x32xf32, #tpu.memory_space<vmem>>, vector<1x1x32x32xf32>
    %539 = vector.shape_cast %538 : vector<1x1x32x32xf32> to vector<32x32xf32>
    %cst_402 = arith.constant dense<0.000000e+00> : vector<8x32xf32>
    %540 = tpu.matmul %460, %539, %cst_402 {dimension_numbers = #tpu.dot_dimension_numbers<[1], [0], [0], [1], [0, 0, 1, 1], [], []>} : vector<8x32xf32>, vector<32x32xf32>, vector<8x32xf32> -> vector<8x32xf32>
    %541 = arith.addf %534, %540 : vector<8x32xf32>
    %c0_403 = arith.constant 0 : index
    %c1_404 = arith.constant 1 : index
    %c0_405 = arith.constant 0 : index
    %c0_406 = arith.constant 0 : index
    %542 = vector.load %arg9[%c0_403, %c1_404, %c0_405, %c0_406] : memref<2x4x32x32xf32, #tpu.memory_space<vmem>>, vector<1x1x32x32xf32>
    %543 = vector.shape_cast %542 : vector<1x1x32x32xf32> to vector<32x32xf32>
    %cst_407 = arith.constant dense<0.000000e+00> : vector<8x32xf32>
    %544 = tpu.matmul %460, %543, %cst_407 {dimension_numbers = #tpu.dot_dimension_numbers<[1], [0], [0], [1], [0, 0, 1, 1], [], []>} : vector<8x32xf32>, vector<32x32xf32>, vector<8x32xf32> -> vector<8x32xf32>
    %545 = arith.addf %535, %544 : vector<8x32xf32>
    %c0_408 = arith.constant 0 : index
    %c2_409 = arith.constant 2 : index
    %c0_410 = arith.constant 0 : index
    %c0_411 = arith.constant 0 : index
    %546 = vector.load %arg9[%c0_408, %c2_409, %c0_410, %c0_411] : memref<2x4x32x32xf32, #tpu.memory_space<vmem>>, vector<1x1x32x32xf32>
    %547 = vector.shape_cast %546 : vector<1x1x32x32xf32> to vector<32x32xf32>
    %cst_412 = arith.constant dense<0.000000e+00> : vector<8x32xf32>
    %548 = tpu.matmul %460, %547, %cst_412 {dimension_numbers = #tpu.dot_dimension_numbers<[1], [0], [0], [1], [0, 0, 1, 1], [], []>} : vector<8x32xf32>, vector<32x32xf32>, vector<8x32xf32> -> vector<8x32xf32>
    %549 = arith.addf %536, %548 : vector<8x32xf32>
    %c0_413 = arith.constant 0 : index
    %c3_414 = arith.constant 3 : index
    %c0_415 = arith.constant 0 : index
    %c0_416 = arith.constant 0 : index
    %550 = vector.load %arg9[%c0_413, %c3_414, %c0_415, %c0_416] : memref<2x4x32x32xf32, #tpu.memory_space<vmem>>, vector<1x1x32x32xf32>
    %551 = vector.shape_cast %550 : vector<1x1x32x32xf32> to vector<32x32xf32>
    %cst_417 = arith.constant dense<0.000000e+00> : vector<8x32xf32>
    %552 = tpu.matmul %460, %551, %cst_417 {dimension_numbers = #tpu.dot_dimension_numbers<[1], [0], [0], [1], [0, 0, 1, 1], [], []>} : vector<8x32xf32>, vector<32x32xf32>, vector<8x32xf32> -> vector<8x32xf32>
    %553 = arith.addf %537, %552 : vector<8x32xf32>
    %554 = arith.negf %541 : vector<8x32xf32>
    %555 = math.exp %554 : vector<8x32xf32>
    %cst_418 = arith.constant 1.000000e+00 : f32
    %556 = vector.broadcast %cst_418 : f32 to vector<8x32xf32>
    %557 = arith.addf %556, %555 : vector<8x32xf32>
    %558 = arith.divf %556, %557 : vector<8x32xf32>
    %559 = arith.negf %545 : vector<8x32xf32>
    %560 = math.exp %559 : vector<8x32xf32>
    %cst_419 = arith.constant 1.000000e+00 : f32
    %561 = vector.broadcast %cst_419 : f32 to vector<8x32xf32>
    %562 = arith.addf %561, %560 : vector<8x32xf32>
    %563 = arith.divf %561, %562 : vector<8x32xf32>
    %564 = arith.negf %549 : vector<8x32xf32>
    %565 = math.exp %564 : vector<8x32xf32>
    %cst_420 = arith.constant 1.000000e+00 : f32
    %566 = vector.broadcast %cst_420 : f32 to vector<8x32xf32>
    %567 = arith.addf %566, %565 : vector<8x32xf32>
    %568 = arith.divf %566, %567 : vector<8x32xf32>
    %cst_421 = arith.constant 2.000000e+00 : f32
    %569 = vector.broadcast %cst_421 : f32 to vector<8x32xf32>
    %570 = arith.mulf %569, %568 : vector<8x32xf32>
    %cst_422 = arith.constant 1.000000e+00 : f32
    %571 = vector.broadcast %cst_422 : f32 to vector<8x32xf32>
    %572 = arith.subf %570, %571 : vector<8x32xf32>
    %573 = arith.negf %553 : vector<8x32xf32>
    %574 = math.exp %573 : vector<8x32xf32>
    %cst_423 = arith.constant 1.000000e+00 : f32
    %575 = vector.broadcast %cst_423 : f32 to vector<8x32xf32>
    %576 = arith.addf %575, %574 : vector<8x32xf32>
    %577 = arith.divf %575, %576 : vector<8x32xf32>
    %578 = arith.mulf %563, %458 : vector<8x32xf32>
    %579 = arith.mulf %558, %572 : vector<8x32xf32>
    %580 = arith.addf %578, %579 : vector<8x32xf32>
    %581 = math.tanh %580 : vector<8x32xf32>
    %582 = arith.mulf %577, %581 : vector<8x32xf32>
    %c1_424 = arith.constant 1 : index
    %c0_425 = arith.constant 0 : index
    %c0_426 = arith.constant 0 : index
    %c0_427 = arith.constant 0 : index
    %583 = vector.load %arg7[%c1_424, %c0_425, %c0_426, %c0_427] : memref<2x4x32x32xf32, #tpu.memory_space<vmem>>, vector<1x1x32x32xf32>
    %584 = vector.shape_cast %583 : vector<1x1x32x32xf32> to vector<32x32xf32>
    %cst_428 = arith.constant dense<0.000000e+00> : vector<8x32xf32>
    %585 = tpu.matmul %582, %584, %cst_428 {dimension_numbers = #tpu.dot_dimension_numbers<[1], [0], [0], [1], [0, 0, 1, 1], [], []>} : vector<8x32xf32>, vector<32x32xf32>, vector<8x32xf32> -> vector<8x32xf32>
    %c1_429 = arith.constant 1 : index
    %c0_430 = arith.constant 0 : index
    %c0_431 = arith.constant 0 : index
    %c0_432 = arith.constant 0 : index
    %586 = vector.load %arg8[%c1_429, %c0_430, %c0_431, %c0_432] : memref<2x4x1x32xf32, #tpu.memory_space<vmem>>, vector<1x1x1x32xf32>
    %587 = vector.shape_cast %586 : vector<1x1x1x32xf32> to vector<1x32xf32>
    %588 = vector.broadcast %587 : vector<1x32xf32> to vector<8x32xf32>
    %589 = arith.addf %585, %588 : vector<8x32xf32>
    %c1_433 = arith.constant 1 : index
    %c1_434 = arith.constant 1 : index
    %c0_435 = arith.constant 0 : index
    %c0_436 = arith.constant 0 : index
    %590 = vector.load %arg7[%c1_433, %c1_434, %c0_435, %c0_436] : memref<2x4x32x32xf32, #tpu.memory_space<vmem>>, vector<1x1x32x32xf32>
    %591 = vector.shape_cast %590 : vector<1x1x32x32xf32> to vector<32x32xf32>
    %cst_437 = arith.constant dense<0.000000e+00> : vector<8x32xf32>
    %592 = tpu.matmul %582, %591, %cst_437 {dimension_numbers = #tpu.dot_dimension_numbers<[1], [0], [0], [1], [0, 0, 1, 1], [], []>} : vector<8x32xf32>, vector<32x32xf32>, vector<8x32xf32> -> vector<8x32xf32>
    %c1_438 = arith.constant 1 : index
    %c1_439 = arith.constant 1 : index
    %c0_440 = arith.constant 0 : index
    %c0_441 = arith.constant 0 : index
    %593 = vector.load %arg8[%c1_438, %c1_439, %c0_440, %c0_441] : memref<2x4x1x32xf32, #tpu.memory_space<vmem>>, vector<1x1x1x32xf32>
    %594 = vector.shape_cast %593 : vector<1x1x1x32xf32> to vector<1x32xf32>
    %595 = vector.broadcast %594 : vector<1x32xf32> to vector<8x32xf32>
    %596 = arith.addf %592, %595 : vector<8x32xf32>
    %c1_442 = arith.constant 1 : index
    %c2_443 = arith.constant 2 : index
    %c0_444 = arith.constant 0 : index
    %c0_445 = arith.constant 0 : index
    %597 = vector.load %arg7[%c1_442, %c2_443, %c0_444, %c0_445] : memref<2x4x32x32xf32, #tpu.memory_space<vmem>>, vector<1x1x32x32xf32>
    %598 = vector.shape_cast %597 : vector<1x1x32x32xf32> to vector<32x32xf32>
    %cst_446 = arith.constant dense<0.000000e+00> : vector<8x32xf32>
    %599 = tpu.matmul %582, %598, %cst_446 {dimension_numbers = #tpu.dot_dimension_numbers<[1], [0], [0], [1], [0, 0, 1, 1], [], []>} : vector<8x32xf32>, vector<32x32xf32>, vector<8x32xf32> -> vector<8x32xf32>
    %c1_447 = arith.constant 1 : index
    %c2_448 = arith.constant 2 : index
    %c0_449 = arith.constant 0 : index
    %c0_450 = arith.constant 0 : index
    %600 = vector.load %arg8[%c1_447, %c2_448, %c0_449, %c0_450] : memref<2x4x1x32xf32, #tpu.memory_space<vmem>>, vector<1x1x1x32xf32>
    %601 = vector.shape_cast %600 : vector<1x1x1x32xf32> to vector<1x32xf32>
    %602 = vector.broadcast %601 : vector<1x32xf32> to vector<8x32xf32>
    %603 = arith.addf %599, %602 : vector<8x32xf32>
    %c1_451 = arith.constant 1 : index
    %c3_452 = arith.constant 3 : index
    %c0_453 = arith.constant 0 : index
    %c0_454 = arith.constant 0 : index
    %604 = vector.load %arg7[%c1_451, %c3_452, %c0_453, %c0_454] : memref<2x4x32x32xf32, #tpu.memory_space<vmem>>, vector<1x1x32x32xf32>
    %605 = vector.shape_cast %604 : vector<1x1x32x32xf32> to vector<32x32xf32>
    %cst_455 = arith.constant dense<0.000000e+00> : vector<8x32xf32>
    %606 = tpu.matmul %582, %605, %cst_455 {dimension_numbers = #tpu.dot_dimension_numbers<[1], [0], [0], [1], [0, 0, 1, 1], [], []>} : vector<8x32xf32>, vector<32x32xf32>, vector<8x32xf32> -> vector<8x32xf32>
    %c1_456 = arith.constant 1 : index
    %c3_457 = arith.constant 3 : index
    %c0_458 = arith.constant 0 : index
    %c0_459 = arith.constant 0 : index
    %607 = vector.load %arg8[%c1_456, %c3_457, %c0_458, %c0_459] : memref<2x4x1x32xf32, #tpu.memory_space<vmem>>, vector<1x1x1x32xf32>
    %608 = vector.shape_cast %607 : vector<1x1x1x32xf32> to vector<1x32xf32>
    %609 = vector.broadcast %608 : vector<1x32xf32> to vector<8x32xf32>
    %610 = arith.addf %606, %609 : vector<8x32xf32>
    %c1_460 = arith.constant 1 : index
    %c0_461 = arith.constant 0 : index
    %c0_462 = arith.constant 0 : index
    %c0_463 = arith.constant 0 : index
    %611 = vector.load %arg9[%c1_460, %c0_461, %c0_462, %c0_463] : memref<2x4x32x32xf32, #tpu.memory_space<vmem>>, vector<1x1x32x32xf32>
    %612 = vector.shape_cast %611 : vector<1x1x32x32xf32> to vector<32x32xf32>
    %cst_464 = arith.constant dense<0.000000e+00> : vector<8x32xf32>
    %613 = tpu.matmul %533, %612, %cst_464 {dimension_numbers = #tpu.dot_dimension_numbers<[1], [0], [0], [1], [0, 0, 1, 1], [], []>} : vector<8x32xf32>, vector<32x32xf32>, vector<8x32xf32> -> vector<8x32xf32>
    %614 = arith.addf %589, %613 : vector<8x32xf32>
    %c1_465 = arith.constant 1 : index
    %c1_466 = arith.constant 1 : index
    %c0_467 = arith.constant 0 : index
    %c0_468 = arith.constant 0 : index
    %615 = vector.load %arg9[%c1_465, %c1_466, %c0_467, %c0_468] : memref<2x4x32x32xf32, #tpu.memory_space<vmem>>, vector<1x1x32x32xf32>
    %616 = vector.shape_cast %615 : vector<1x1x32x32xf32> to vector<32x32xf32>
    %cst_469 = arith.constant dense<0.000000e+00> : vector<8x32xf32>
    %617 = tpu.matmul %533, %616, %cst_469 {dimension_numbers = #tpu.dot_dimension_numbers<[1], [0], [0], [1], [0, 0, 1, 1], [], []>} : vector<8x32xf32>, vector<32x32xf32>, vector<8x32xf32> -> vector<8x32xf32>
    %618 = arith.addf %596, %617 : vector<8x32xf32>
    %c1_470 = arith.constant 1 : index
    %c2_471 = arith.constant 2 : index
    %c0_472 = arith.constant 0 : index
    %c0_473 = arith.constant 0 : index
    %619 = vector.load %arg9[%c1_470, %c2_471, %c0_472, %c0_473] : memref<2x4x32x32xf32, #tpu.memory_space<vmem>>, vector<1x1x32x32xf32>
    %620 = vector.shape_cast %619 : vector<1x1x32x32xf32> to vector<32x32xf32>
    %cst_474 = arith.constant dense<0.000000e+00> : vector<8x32xf32>
    %621 = tpu.matmul %533, %620, %cst_474 {dimension_numbers = #tpu.dot_dimension_numbers<[1], [0], [0], [1], [0, 0, 1, 1], [], []>} : vector<8x32xf32>, vector<32x32xf32>, vector<8x32xf32> -> vector<8x32xf32>
    %622 = arith.addf %603, %621 : vector<8x32xf32>
    %c1_475 = arith.constant 1 : index
    %c3_476 = arith.constant 3 : index
    %c0_477 = arith.constant 0 : index
    %c0_478 = arith.constant 0 : index
    %623 = vector.load %arg9[%c1_475, %c3_476, %c0_477, %c0_478] : memref<2x4x32x32xf32, #tpu.memory_space<vmem>>, vector<1x1x32x32xf32>
    %624 = vector.shape_cast %623 : vector<1x1x32x32xf32> to vector<32x32xf32>
    %cst_479 = arith.constant dense<0.000000e+00> : vector<8x32xf32>
    %625 = tpu.matmul %533, %624, %cst_479 {dimension_numbers = #tpu.dot_dimension_numbers<[1], [0], [0], [1], [0, 0, 1, 1], [], []>} : vector<8x32xf32>, vector<32x32xf32>, vector<8x32xf32> -> vector<8x32xf32>
    %626 = arith.addf %610, %625 : vector<8x32xf32>
    %627 = arith.negf %614 : vector<8x32xf32>
    %628 = math.exp %627 : vector<8x32xf32>
    %cst_480 = arith.constant 1.000000e+00 : f32
    %629 = vector.broadcast %cst_480 : f32 to vector<8x32xf32>
    %630 = arith.addf %629, %628 : vector<8x32xf32>
    %631 = arith.divf %629, %630 : vector<8x32xf32>
    %632 = arith.negf %618 : vector<8x32xf32>
    %633 = math.exp %632 : vector<8x32xf32>
    %cst_481 = arith.constant 1.000000e+00 : f32
    %634 = vector.broadcast %cst_481 : f32 to vector<8x32xf32>
    %635 = arith.addf %634, %633 : vector<8x32xf32>
    %636 = arith.divf %634, %635 : vector<8x32xf32>
    %637 = arith.negf %622 : vector<8x32xf32>
    %638 = math.exp %637 : vector<8x32xf32>
    %cst_482 = arith.constant 1.000000e+00 : f32
    %639 = vector.broadcast %cst_482 : f32 to vector<8x32xf32>
    %640 = arith.addf %639, %638 : vector<8x32xf32>
    %641 = arith.divf %639, %640 : vector<8x32xf32>
    %cst_483 = arith.constant 2.000000e+00 : f32
    %642 = vector.broadcast %cst_483 : f32 to vector<8x32xf32>
    %643 = arith.mulf %642, %641 : vector<8x32xf32>
    %cst_484 = arith.constant 1.000000e+00 : f32
    %644 = vector.broadcast %cst_484 : f32 to vector<8x32xf32>
    %645 = arith.subf %643, %644 : vector<8x32xf32>
    %646 = arith.negf %626 : vector<8x32xf32>
    %647 = math.exp %646 : vector<8x32xf32>
    %cst_485 = arith.constant 1.000000e+00 : f32
    %648 = vector.broadcast %cst_485 : f32 to vector<8x32xf32>
    %649 = arith.addf %648, %647 : vector<8x32xf32>
    %650 = arith.divf %648, %649 : vector<8x32xf32>
    %651 = arith.mulf %636, %531 : vector<8x32xf32>
    %652 = arith.mulf %631, %645 : vector<8x32xf32>
    %653 = arith.addf %651, %652 : vector<8x32xf32>
    %654 = math.tanh %653 : vector<8x32xf32>
    %655 = arith.mulf %650, %654 : vector<8x32xf32>
    %656 = vector.extract_strided_slice %14 {offsets = [40, 0], sizes = [8, 32], strides = [1, 1]} : vector<64x32xf32> to vector<8x32xf32>
    %657 = vector.extract_strided_slice %21 {offsets = [40, 0], sizes = [8, 32], strides = [1, 1]} : vector<64x32xf32> to vector<8x32xf32>
    %658 = vector.extract_strided_slice %28 {offsets = [40, 0], sizes = [8, 32], strides = [1, 1]} : vector<64x32xf32> to vector<8x32xf32>
    %659 = vector.extract_strided_slice %35 {offsets = [40, 0], sizes = [8, 32], strides = [1, 1]} : vector<64x32xf32> to vector<8x32xf32>
    %c0_486 = arith.constant 0 : index
    %c0_487 = arith.constant 0 : index
    %c0_488 = arith.constant 0 : index
    %c0_489 = arith.constant 0 : index
    %660 = vector.load %arg9[%c0_486, %c0_487, %c0_488, %c0_489] : memref<2x4x32x32xf32, #tpu.memory_space<vmem>>, vector<1x1x32x32xf32>
    %661 = vector.shape_cast %660 : vector<1x1x32x32xf32> to vector<32x32xf32>
    %cst_490 = arith.constant dense<0.000000e+00> : vector<8x32xf32>
    %662 = tpu.matmul %582, %661, %cst_490 {dimension_numbers = #tpu.dot_dimension_numbers<[1], [0], [0], [1], [0, 0, 1, 1], [], []>} : vector<8x32xf32>, vector<32x32xf32>, vector<8x32xf32> -> vector<8x32xf32>
    %663 = arith.addf %656, %662 : vector<8x32xf32>
    %c0_491 = arith.constant 0 : index
    %c1_492 = arith.constant 1 : index
    %c0_493 = arith.constant 0 : index
    %c0_494 = arith.constant 0 : index
    %664 = vector.load %arg9[%c0_491, %c1_492, %c0_493, %c0_494] : memref<2x4x32x32xf32, #tpu.memory_space<vmem>>, vector<1x1x32x32xf32>
    %665 = vector.shape_cast %664 : vector<1x1x32x32xf32> to vector<32x32xf32>
    %cst_495 = arith.constant dense<0.000000e+00> : vector<8x32xf32>
    %666 = tpu.matmul %582, %665, %cst_495 {dimension_numbers = #tpu.dot_dimension_numbers<[1], [0], [0], [1], [0, 0, 1, 1], [], []>} : vector<8x32xf32>, vector<32x32xf32>, vector<8x32xf32> -> vector<8x32xf32>
    %667 = arith.addf %657, %666 : vector<8x32xf32>
    %c0_496 = arith.constant 0 : index
    %c2_497 = arith.constant 2 : index
    %c0_498 = arith.constant 0 : index
    %c0_499 = arith.constant 0 : index
    %668 = vector.load %arg9[%c0_496, %c2_497, %c0_498, %c0_499] : memref<2x4x32x32xf32, #tpu.memory_space<vmem>>, vector<1x1x32x32xf32>
    %669 = vector.shape_cast %668 : vector<1x1x32x32xf32> to vector<32x32xf32>
    %cst_500 = arith.constant dense<0.000000e+00> : vector<8x32xf32>
    %670 = tpu.matmul %582, %669, %cst_500 {dimension_numbers = #tpu.dot_dimension_numbers<[1], [0], [0], [1], [0, 0, 1, 1], [], []>} : vector<8x32xf32>, vector<32x32xf32>, vector<8x32xf32> -> vector<8x32xf32>
    %671 = arith.addf %658, %670 : vector<8x32xf32>
    %c0_501 = arith.constant 0 : index
    %c3_502 = arith.constant 3 : index
    %c0_503 = arith.constant 0 : index
    %c0_504 = arith.constant 0 : index
    %672 = vector.load %arg9[%c0_501, %c3_502, %c0_503, %c0_504] : memref<2x4x32x32xf32, #tpu.memory_space<vmem>>, vector<1x1x32x32xf32>
    %673 = vector.shape_cast %672 : vector<1x1x32x32xf32> to vector<32x32xf32>
    %cst_505 = arith.constant dense<0.000000e+00> : vector<8x32xf32>
    %674 = tpu.matmul %582, %673, %cst_505 {dimension_numbers = #tpu.dot_dimension_numbers<[1], [0], [0], [1], [0, 0, 1, 1], [], []>} : vector<8x32xf32>, vector<32x32xf32>, vector<8x32xf32> -> vector<8x32xf32>
    %675 = arith.addf %659, %674 : vector<8x32xf32>
    %676 = arith.negf %663 : vector<8x32xf32>
    %677 = math.exp %676 : vector<8x32xf32>
    %cst_506 = arith.constant 1.000000e+00 : f32
    %678 = vector.broadcast %cst_506 : f32 to vector<8x32xf32>
    %679 = arith.addf %678, %677 : vector<8x32xf32>
    %680 = arith.divf %678, %679 : vector<8x32xf32>
    %681 = arith.negf %667 : vector<8x32xf32>
    %682 = math.exp %681 : vector<8x32xf32>
    %cst_507 = arith.constant 1.000000e+00 : f32
    %683 = vector.broadcast %cst_507 : f32 to vector<8x32xf32>
    %684 = arith.addf %683, %682 : vector<8x32xf32>
    %685 = arith.divf %683, %684 : vector<8x32xf32>
    %686 = arith.negf %671 : vector<8x32xf32>
    %687 = math.exp %686 : vector<8x32xf32>
    %cst_508 = arith.constant 1.000000e+00 : f32
    %688 = vector.broadcast %cst_508 : f32 to vector<8x32xf32>
    %689 = arith.addf %688, %687 : vector<8x32xf32>
    %690 = arith.divf %688, %689 : vector<8x32xf32>
    %cst_509 = arith.constant 2.000000e+00 : f32
    %691 = vector.broadcast %cst_509 : f32 to vector<8x32xf32>
    %692 = arith.mulf %691, %690 : vector<8x32xf32>
    %cst_510 = arith.constant 1.000000e+00 : f32
    %693 = vector.broadcast %cst_510 : f32 to vector<8x32xf32>
    %694 = arith.subf %692, %693 : vector<8x32xf32>
    %695 = arith.negf %675 : vector<8x32xf32>
    %696 = math.exp %695 : vector<8x32xf32>
    %cst_511 = arith.constant 1.000000e+00 : f32
    %697 = vector.broadcast %cst_511 : f32 to vector<8x32xf32>
    %698 = arith.addf %697, %696 : vector<8x32xf32>
    %699 = arith.divf %697, %698 : vector<8x32xf32>
    %700 = arith.mulf %685, %580 : vector<8x32xf32>
    %701 = arith.mulf %680, %694 : vector<8x32xf32>
    %702 = arith.addf %700, %701 : vector<8x32xf32>
    %703 = math.tanh %702 : vector<8x32xf32>
    %704 = arith.mulf %699, %703 : vector<8x32xf32>
    %c1_512 = arith.constant 1 : index
    %c0_513 = arith.constant 0 : index
    %c0_514 = arith.constant 0 : index
    %c0_515 = arith.constant 0 : index
    %705 = vector.load %arg7[%c1_512, %c0_513, %c0_514, %c0_515] : memref<2x4x32x32xf32, #tpu.memory_space<vmem>>, vector<1x1x32x32xf32>
    %706 = vector.shape_cast %705 : vector<1x1x32x32xf32> to vector<32x32xf32>
    %cst_516 = arith.constant dense<0.000000e+00> : vector<8x32xf32>
    %707 = tpu.matmul %704, %706, %cst_516 {dimension_numbers = #tpu.dot_dimension_numbers<[1], [0], [0], [1], [0, 0, 1, 1], [], []>} : vector<8x32xf32>, vector<32x32xf32>, vector<8x32xf32> -> vector<8x32xf32>
    %c1_517 = arith.constant 1 : index
    %c0_518 = arith.constant 0 : index
    %c0_519 = arith.constant 0 : index
    %c0_520 = arith.constant 0 : index
    %708 = vector.load %arg8[%c1_517, %c0_518, %c0_519, %c0_520] : memref<2x4x1x32xf32, #tpu.memory_space<vmem>>, vector<1x1x1x32xf32>
    %709 = vector.shape_cast %708 : vector<1x1x1x32xf32> to vector<1x32xf32>
    %710 = vector.broadcast %709 : vector<1x32xf32> to vector<8x32xf32>
    %711 = arith.addf %707, %710 : vector<8x32xf32>
    %c1_521 = arith.constant 1 : index
    %c1_522 = arith.constant 1 : index
    %c0_523 = arith.constant 0 : index
    %c0_524 = arith.constant 0 : index
    %712 = vector.load %arg7[%c1_521, %c1_522, %c0_523, %c0_524] : memref<2x4x32x32xf32, #tpu.memory_space<vmem>>, vector<1x1x32x32xf32>
    %713 = vector.shape_cast %712 : vector<1x1x32x32xf32> to vector<32x32xf32>
    %cst_525 = arith.constant dense<0.000000e+00> : vector<8x32xf32>
    %714 = tpu.matmul %704, %713, %cst_525 {dimension_numbers = #tpu.dot_dimension_numbers<[1], [0], [0], [1], [0, 0, 1, 1], [], []>} : vector<8x32xf32>, vector<32x32xf32>, vector<8x32xf32> -> vector<8x32xf32>
    %c1_526 = arith.constant 1 : index
    %c1_527 = arith.constant 1 : index
    %c0_528 = arith.constant 0 : index
    %c0_529 = arith.constant 0 : index
    %715 = vector.load %arg8[%c1_526, %c1_527, %c0_528, %c0_529] : memref<2x4x1x32xf32, #tpu.memory_space<vmem>>, vector<1x1x1x32xf32>
    %716 = vector.shape_cast %715 : vector<1x1x1x32xf32> to vector<1x32xf32>
    %717 = vector.broadcast %716 : vector<1x32xf32> to vector<8x32xf32>
    %718 = arith.addf %714, %717 : vector<8x32xf32>
    %c1_530 = arith.constant 1 : index
    %c2_531 = arith.constant 2 : index
    %c0_532 = arith.constant 0 : index
    %c0_533 = arith.constant 0 : index
    %719 = vector.load %arg7[%c1_530, %c2_531, %c0_532, %c0_533] : memref<2x4x32x32xf32, #tpu.memory_space<vmem>>, vector<1x1x32x32xf32>
    %720 = vector.shape_cast %719 : vector<1x1x32x32xf32> to vector<32x32xf32>
    %cst_534 = arith.constant dense<0.000000e+00> : vector<8x32xf32>
    %721 = tpu.matmul %704, %720, %cst_534 {dimension_numbers = #tpu.dot_dimension_numbers<[1], [0], [0], [1], [0, 0, 1, 1], [], []>} : vector<8x32xf32>, vector<32x32xf32>, vector<8x32xf32> -> vector<8x32xf32>
    %c1_535 = arith.constant 1 : index
    %c2_536 = arith.constant 2 : index
    %c0_537 = arith.constant 0 : index
    %c0_538 = arith.constant 0 : index
    %722 = vector.load %arg8[%c1_535, %c2_536, %c0_537, %c0_538] : memref<2x4x1x32xf32, #tpu.memory_space<vmem>>, vector<1x1x1x32xf32>
    %723 = vector.shape_cast %722 : vector<1x1x1x32xf32> to vector<1x32xf32>
    %724 = vector.broadcast %723 : vector<1x32xf32> to vector<8x32xf32>
    %725 = arith.addf %721, %724 : vector<8x32xf32>
    %c1_539 = arith.constant 1 : index
    %c3_540 = arith.constant 3 : index
    %c0_541 = arith.constant 0 : index
    %c0_542 = arith.constant 0 : index
    %726 = vector.load %arg7[%c1_539, %c3_540, %c0_541, %c0_542] : memref<2x4x32x32xf32, #tpu.memory_space<vmem>>, vector<1x1x32x32xf32>
    %727 = vector.shape_cast %726 : vector<1x1x32x32xf32> to vector<32x32xf32>
    %cst_543 = arith.constant dense<0.000000e+00> : vector<8x32xf32>
    %728 = tpu.matmul %704, %727, %cst_543 {dimension_numbers = #tpu.dot_dimension_numbers<[1], [0], [0], [1], [0, 0, 1, 1], [], []>} : vector<8x32xf32>, vector<32x32xf32>, vector<8x32xf32> -> vector<8x32xf32>
    %c1_544 = arith.constant 1 : index
    %c3_545 = arith.constant 3 : index
    %c0_546 = arith.constant 0 : index
    %c0_547 = arith.constant 0 : index
    %729 = vector.load %arg8[%c1_544, %c3_545, %c0_546, %c0_547] : memref<2x4x1x32xf32, #tpu.memory_space<vmem>>, vector<1x1x1x32xf32>
    %730 = vector.shape_cast %729 : vector<1x1x1x32xf32> to vector<1x32xf32>
    %731 = vector.broadcast %730 : vector<1x32xf32> to vector<8x32xf32>
    %732 = arith.addf %728, %731 : vector<8x32xf32>
    %c1_548 = arith.constant 1 : index
    %c0_549 = arith.constant 0 : index
    %c0_550 = arith.constant 0 : index
    %c0_551 = arith.constant 0 : index
    %733 = vector.load %arg9[%c1_548, %c0_549, %c0_550, %c0_551] : memref<2x4x32x32xf32, #tpu.memory_space<vmem>>, vector<1x1x32x32xf32>
    %734 = vector.shape_cast %733 : vector<1x1x32x32xf32> to vector<32x32xf32>
    %cst_552 = arith.constant dense<0.000000e+00> : vector<8x32xf32>
    %735 = tpu.matmul %655, %734, %cst_552 {dimension_numbers = #tpu.dot_dimension_numbers<[1], [0], [0], [1], [0, 0, 1, 1], [], []>} : vector<8x32xf32>, vector<32x32xf32>, vector<8x32xf32> -> vector<8x32xf32>
    %736 = arith.addf %711, %735 : vector<8x32xf32>
    %c1_553 = arith.constant 1 : index
    %c1_554 = arith.constant 1 : index
    %c0_555 = arith.constant 0 : index
    %c0_556 = arith.constant 0 : index
    %737 = vector.load %arg9[%c1_553, %c1_554, %c0_555, %c0_556] : memref<2x4x32x32xf32, #tpu.memory_space<vmem>>, vector<1x1x32x32xf32>
    %738 = vector.shape_cast %737 : vector<1x1x32x32xf32> to vector<32x32xf32>
    %cst_557 = arith.constant dense<0.000000e+00> : vector<8x32xf32>
    %739 = tpu.matmul %655, %738, %cst_557 {dimension_numbers = #tpu.dot_dimension_numbers<[1], [0], [0], [1], [0, 0, 1, 1], [], []>} : vector<8x32xf32>, vector<32x32xf32>, vector<8x32xf32> -> vector<8x32xf32>
    %740 = arith.addf %718, %739 : vector<8x32xf32>
    %c1_558 = arith.constant 1 : index
    %c2_559 = arith.constant 2 : index
    %c0_560 = arith.constant 0 : index
    %c0_561 = arith.constant 0 : index
    %741 = vector.load %arg9[%c1_558, %c2_559, %c0_560, %c0_561] : memref<2x4x32x32xf32, #tpu.memory_space<vmem>>, vector<1x1x32x32xf32>
    %742 = vector.shape_cast %741 : vector<1x1x32x32xf32> to vector<32x32xf32>
    %cst_562 = arith.constant dense<0.000000e+00> : vector<8x32xf32>
    %743 = tpu.matmul %655, %742, %cst_562 {dimension_numbers = #tpu.dot_dimension_numbers<[1], [0], [0], [1], [0, 0, 1, 1], [], []>} : vector<8x32xf32>, vector<32x32xf32>, vector<8x32xf32> -> vector<8x32xf32>
    %744 = arith.addf %725, %743 : vector<8x32xf32>
    %c1_563 = arith.constant 1 : index
    %c3_564 = arith.constant 3 : index
    %c0_565 = arith.constant 0 : index
    %c0_566 = arith.constant 0 : index
    %745 = vector.load %arg9[%c1_563, %c3_564, %c0_565, %c0_566] : memref<2x4x32x32xf32, #tpu.memory_space<vmem>>, vector<1x1x32x32xf32>
    %746 = vector.shape_cast %745 : vector<1x1x32x32xf32> to vector<32x32xf32>
    %cst_567 = arith.constant dense<0.000000e+00> : vector<8x32xf32>
    %747 = tpu.matmul %655, %746, %cst_567 {dimension_numbers = #tpu.dot_dimension_numbers<[1], [0], [0], [1], [0, 0, 1, 1], [], []>} : vector<8x32xf32>, vector<32x32xf32>, vector<8x32xf32> -> vector<8x32xf32>
    %748 = arith.addf %732, %747 : vector<8x32xf32>
    %749 = arith.negf %736 : vector<8x32xf32>
    %750 = math.exp %749 : vector<8x32xf32>
    %cst_568 = arith.constant 1.000000e+00 : f32
    %751 = vector.broadcast %cst_568 : f32 to vector<8x32xf32>
    %752 = arith.addf %751, %750 : vector<8x32xf32>
    %753 = arith.divf %751, %752 : vector<8x32xf32>
    %754 = arith.negf %740 : vector<8x32xf32>
    %755 = math.exp %754 : vector<8x32xf32>
    %cst_569 = arith.constant 1.000000e+00 : f32
    %756 = vector.broadcast %cst_569 : f32 to vector<8x32xf32>
    %757 = arith.addf %756, %755 : vector<8x32xf32>
    %758 = arith.divf %756, %757 : vector<8x32xf32>
    %759 = arith.negf %744 : vector<8x32xf32>
    %760 = math.exp %759 : vector<8x32xf32>
    %cst_570 = arith.constant 1.000000e+00 : f32
    %761 = vector.broadcast %cst_570 : f32 to vector<8x32xf32>
    %762 = arith.addf %761, %760 : vector<8x32xf32>
    %763 = arith.divf %761, %762 : vector<8x32xf32>
    %cst_571 = arith.constant 2.000000e+00 : f32
    %764 = vector.broadcast %cst_571 : f32 to vector<8x32xf32>
    %765 = arith.mulf %764, %763 : vector<8x32xf32>
    %cst_572 = arith.constant 1.000000e+00 : f32
    %766 = vector.broadcast %cst_572 : f32 to vector<8x32xf32>
    %767 = arith.subf %765, %766 : vector<8x32xf32>
    %768 = arith.negf %748 : vector<8x32xf32>
    %769 = math.exp %768 : vector<8x32xf32>
    %cst_573 = arith.constant 1.000000e+00 : f32
    %770 = vector.broadcast %cst_573 : f32 to vector<8x32xf32>
    %771 = arith.addf %770, %769 : vector<8x32xf32>
    %772 = arith.divf %770, %771 : vector<8x32xf32>
    %773 = arith.mulf %758, %653 : vector<8x32xf32>
    %774 = arith.mulf %753, %767 : vector<8x32xf32>
    %775 = arith.addf %773, %774 : vector<8x32xf32>
    %776 = math.tanh %775 : vector<8x32xf32>
    %777 = arith.mulf %772, %776 : vector<8x32xf32>
    %778 = vector.extract_strided_slice %14 {offsets = [48, 0], sizes = [8, 32], strides = [1, 1]} : vector<64x32xf32> to vector<8x32xf32>
    %779 = vector.extract_strided_slice %21 {offsets = [48, 0], sizes = [8, 32], strides = [1, 1]} : vector<64x32xf32> to vector<8x32xf32>
    %780 = vector.extract_strided_slice %28 {offsets = [48, 0], sizes = [8, 32], strides = [1, 1]} : vector<64x32xf32> to vector<8x32xf32>
    %781 = vector.extract_strided_slice %35 {offsets = [48, 0], sizes = [8, 32], strides = [1, 1]} : vector<64x32xf32> to vector<8x32xf32>
    %c0_574 = arith.constant 0 : index
    %c0_575 = arith.constant 0 : index
    %c0_576 = arith.constant 0 : index
    %c0_577 = arith.constant 0 : index
    %782 = vector.load %arg9[%c0_574, %c0_575, %c0_576, %c0_577] : memref<2x4x32x32xf32, #tpu.memory_space<vmem>>, vector<1x1x32x32xf32>
    %783 = vector.shape_cast %782 : vector<1x1x32x32xf32> to vector<32x32xf32>
    %cst_578 = arith.constant dense<0.000000e+00> : vector<8x32xf32>
    %784 = tpu.matmul %704, %783, %cst_578 {dimension_numbers = #tpu.dot_dimension_numbers<[1], [0], [0], [1], [0, 0, 1, 1], [], []>} : vector<8x32xf32>, vector<32x32xf32>, vector<8x32xf32> -> vector<8x32xf32>
    %785 = arith.addf %778, %784 : vector<8x32xf32>
    %c0_579 = arith.constant 0 : index
    %c1_580 = arith.constant 1 : index
    %c0_581 = arith.constant 0 : index
    %c0_582 = arith.constant 0 : index
    %786 = vector.load %arg9[%c0_579, %c1_580, %c0_581, %c0_582] : memref<2x4x32x32xf32, #tpu.memory_space<vmem>>, vector<1x1x32x32xf32>
    %787 = vector.shape_cast %786 : vector<1x1x32x32xf32> to vector<32x32xf32>
    %cst_583 = arith.constant dense<0.000000e+00> : vector<8x32xf32>
    %788 = tpu.matmul %704, %787, %cst_583 {dimension_numbers = #tpu.dot_dimension_numbers<[1], [0], [0], [1], [0, 0, 1, 1], [], []>} : vector<8x32xf32>, vector<32x32xf32>, vector<8x32xf32> -> vector<8x32xf32>
    %789 = arith.addf %779, %788 : vector<8x32xf32>
    %c0_584 = arith.constant 0 : index
    %c2_585 = arith.constant 2 : index
    %c0_586 = arith.constant 0 : index
    %c0_587 = arith.constant 0 : index
    %790 = vector.load %arg9[%c0_584, %c2_585, %c0_586, %c0_587] : memref<2x4x32x32xf32, #tpu.memory_space<vmem>>, vector<1x1x32x32xf32>
    %791 = vector.shape_cast %790 : vector<1x1x32x32xf32> to vector<32x32xf32>
    %cst_588 = arith.constant dense<0.000000e+00> : vector<8x32xf32>
    %792 = tpu.matmul %704, %791, %cst_588 {dimension_numbers = #tpu.dot_dimension_numbers<[1], [0], [0], [1], [0, 0, 1, 1], [], []>} : vector<8x32xf32>, vector<32x32xf32>, vector<8x32xf32> -> vector<8x32xf32>
    %793 = arith.addf %780, %792 : vector<8x32xf32>
    %c0_589 = arith.constant 0 : index
    %c3_590 = arith.constant 3 : index
    %c0_591 = arith.constant 0 : index
    %c0_592 = arith.constant 0 : index
    %794 = vector.load %arg9[%c0_589, %c3_590, %c0_591, %c0_592] : memref<2x4x32x32xf32, #tpu.memory_space<vmem>>, vector<1x1x32x32xf32>
    %795 = vector.shape_cast %794 : vector<1x1x32x32xf32> to vector<32x32xf32>
    %cst_593 = arith.constant dense<0.000000e+00> : vector<8x32xf32>
    %796 = tpu.matmul %704, %795, %cst_593 {dimension_numbers = #tpu.dot_dimension_numbers<[1], [0], [0], [1], [0, 0, 1, 1], [], []>} : vector<8x32xf32>, vector<32x32xf32>, vector<8x32xf32> -> vector<8x32xf32>
    %797 = arith.addf %781, %796 : vector<8x32xf32>
    %798 = arith.negf %785 : vector<8x32xf32>
    %799 = math.exp %798 : vector<8x32xf32>
    %cst_594 = arith.constant 1.000000e+00 : f32
    %800 = vector.broadcast %cst_594 : f32 to vector<8x32xf32>
    %801 = arith.addf %800, %799 : vector<8x32xf32>
    %802 = arith.divf %800, %801 : vector<8x32xf32>
    %803 = arith.negf %789 : vector<8x32xf32>
    %804 = math.exp %803 : vector<8x32xf32>
    %cst_595 = arith.constant 1.000000e+00 : f32
    %805 = vector.broadcast %cst_595 : f32 to vector<8x32xf32>
    %806 = arith.addf %805, %804 : vector<8x32xf32>
    %807 = arith.divf %805, %806 : vector<8x32xf32>
    %808 = arith.negf %793 : vector<8x32xf32>
    %809 = math.exp %808 : vector<8x32xf32>
    %cst_596 = arith.constant 1.000000e+00 : f32
    %810 = vector.broadcast %cst_596 : f32 to vector<8x32xf32>
    %811 = arith.addf %810, %809 : vector<8x32xf32>
    %812 = arith.divf %810, %811 : vector<8x32xf32>
    %cst_597 = arith.constant 2.000000e+00 : f32
    %813 = vector.broadcast %cst_597 : f32 to vector<8x32xf32>
    %814 = arith.mulf %813, %812 : vector<8x32xf32>
    %cst_598 = arith.constant 1.000000e+00 : f32
    %815 = vector.broadcast %cst_598 : f32 to vector<8x32xf32>
    %816 = arith.subf %814, %815 : vector<8x32xf32>
    %817 = arith.negf %797 : vector<8x32xf32>
    %818 = math.exp %817 : vector<8x32xf32>
    %cst_599 = arith.constant 1.000000e+00 : f32
    %819 = vector.broadcast %cst_599 : f32 to vector<8x32xf32>
    %820 = arith.addf %819, %818 : vector<8x32xf32>
    %821 = arith.divf %819, %820 : vector<8x32xf32>
    %822 = arith.mulf %807, %702 : vector<8x32xf32>
    %823 = arith.mulf %802, %816 : vector<8x32xf32>
    %824 = arith.addf %822, %823 : vector<8x32xf32>
    %825 = math.tanh %824 : vector<8x32xf32>
    %826 = arith.mulf %821, %825 : vector<8x32xf32>
    %c1_600 = arith.constant 1 : index
    %c0_601 = arith.constant 0 : index
    %c0_602 = arith.constant 0 : index
    %c0_603 = arith.constant 0 : index
    %827 = vector.load %arg7[%c1_600, %c0_601, %c0_602, %c0_603] : memref<2x4x32x32xf32, #tpu.memory_space<vmem>>, vector<1x1x32x32xf32>
    %828 = vector.shape_cast %827 : vector<1x1x32x32xf32> to vector<32x32xf32>
    %cst_604 = arith.constant dense<0.000000e+00> : vector<8x32xf32>
    %829 = tpu.matmul %826, %828, %cst_604 {dimension_numbers = #tpu.dot_dimension_numbers<[1], [0], [0], [1], [0, 0, 1, 1], [], []>} : vector<8x32xf32>, vector<32x32xf32>, vector<8x32xf32> -> vector<8x32xf32>
    %c1_605 = arith.constant 1 : index
    %c0_606 = arith.constant 0 : index
    %c0_607 = arith.constant 0 : index
    %c0_608 = arith.constant 0 : index
    %830 = vector.load %arg8[%c1_605, %c0_606, %c0_607, %c0_608] : memref<2x4x1x32xf32, #tpu.memory_space<vmem>>, vector<1x1x1x32xf32>
    %831 = vector.shape_cast %830 : vector<1x1x1x32xf32> to vector<1x32xf32>
    %832 = vector.broadcast %831 : vector<1x32xf32> to vector<8x32xf32>
    %833 = arith.addf %829, %832 : vector<8x32xf32>
    %c1_609 = arith.constant 1 : index
    %c1_610 = arith.constant 1 : index
    %c0_611 = arith.constant 0 : index
    %c0_612 = arith.constant 0 : index
    %834 = vector.load %arg7[%c1_609, %c1_610, %c0_611, %c0_612] : memref<2x4x32x32xf32, #tpu.memory_space<vmem>>, vector<1x1x32x32xf32>
    %835 = vector.shape_cast %834 : vector<1x1x32x32xf32> to vector<32x32xf32>
    %cst_613 = arith.constant dense<0.000000e+00> : vector<8x32xf32>
    %836 = tpu.matmul %826, %835, %cst_613 {dimension_numbers = #tpu.dot_dimension_numbers<[1], [0], [0], [1], [0, 0, 1, 1], [], []>} : vector<8x32xf32>, vector<32x32xf32>, vector<8x32xf32> -> vector<8x32xf32>
    %c1_614 = arith.constant 1 : index
    %c1_615 = arith.constant 1 : index
    %c0_616 = arith.constant 0 : index
    %c0_617 = arith.constant 0 : index
    %837 = vector.load %arg8[%c1_614, %c1_615, %c0_616, %c0_617] : memref<2x4x1x32xf32, #tpu.memory_space<vmem>>, vector<1x1x1x32xf32>
    %838 = vector.shape_cast %837 : vector<1x1x1x32xf32> to vector<1x32xf32>
    %839 = vector.broadcast %838 : vector<1x32xf32> to vector<8x32xf32>
    %840 = arith.addf %836, %839 : vector<8x32xf32>
    %c1_618 = arith.constant 1 : index
    %c2_619 = arith.constant 2 : index
    %c0_620 = arith.constant 0 : index
    %c0_621 = arith.constant 0 : index
    %841 = vector.load %arg7[%c1_618, %c2_619, %c0_620, %c0_621] : memref<2x4x32x32xf32, #tpu.memory_space<vmem>>, vector<1x1x32x32xf32>
    %842 = vector.shape_cast %841 : vector<1x1x32x32xf32> to vector<32x32xf32>
    %cst_622 = arith.constant dense<0.000000e+00> : vector<8x32xf32>
    %843 = tpu.matmul %826, %842, %cst_622 {dimension_numbers = #tpu.dot_dimension_numbers<[1], [0], [0], [1], [0, 0, 1, 1], [], []>} : vector<8x32xf32>, vector<32x32xf32>, vector<8x32xf32> -> vector<8x32xf32>
    %c1_623 = arith.constant 1 : index
    %c2_624 = arith.constant 2 : index
    %c0_625 = arith.constant 0 : index
    %c0_626 = arith.constant 0 : index
    %844 = vector.load %arg8[%c1_623, %c2_624, %c0_625, %c0_626] : memref<2x4x1x32xf32, #tpu.memory_space<vmem>>, vector<1x1x1x32xf32>
    %845 = vector.shape_cast %844 : vector<1x1x1x32xf32> to vector<1x32xf32>
    %846 = vector.broadcast %845 : vector<1x32xf32> to vector<8x32xf32>
    %847 = arith.addf %843, %846 : vector<8x32xf32>
    %c1_627 = arith.constant 1 : index
    %c3_628 = arith.constant 3 : index
    %c0_629 = arith.constant 0 : index
    %c0_630 = arith.constant 0 : index
    %848 = vector.load %arg7[%c1_627, %c3_628, %c0_629, %c0_630] : memref<2x4x32x32xf32, #tpu.memory_space<vmem>>, vector<1x1x32x32xf32>
    %849 = vector.shape_cast %848 : vector<1x1x32x32xf32> to vector<32x32xf32>
    %cst_631 = arith.constant dense<0.000000e+00> : vector<8x32xf32>
    %850 = tpu.matmul %826, %849, %cst_631 {dimension_numbers = #tpu.dot_dimension_numbers<[1], [0], [0], [1], [0, 0, 1, 1], [], []>} : vector<8x32xf32>, vector<32x32xf32>, vector<8x32xf32> -> vector<8x32xf32>
    %c1_632 = arith.constant 1 : index
    %c3_633 = arith.constant 3 : index
    %c0_634 = arith.constant 0 : index
    %c0_635 = arith.constant 0 : index
    %851 = vector.load %arg8[%c1_632, %c3_633, %c0_634, %c0_635] : memref<2x4x1x32xf32, #tpu.memory_space<vmem>>, vector<1x1x1x32xf32>
    %852 = vector.shape_cast %851 : vector<1x1x1x32xf32> to vector<1x32xf32>
    %853 = vector.broadcast %852 : vector<1x32xf32> to vector<8x32xf32>
    %854 = arith.addf %850, %853 : vector<8x32xf32>
    %c1_636 = arith.constant 1 : index
    %c0_637 = arith.constant 0 : index
    %c0_638 = arith.constant 0 : index
    %c0_639 = arith.constant 0 : index
    %855 = vector.load %arg9[%c1_636, %c0_637, %c0_638, %c0_639] : memref<2x4x32x32xf32, #tpu.memory_space<vmem>>, vector<1x1x32x32xf32>
    %856 = vector.shape_cast %855 : vector<1x1x32x32xf32> to vector<32x32xf32>
    %cst_640 = arith.constant dense<0.000000e+00> : vector<8x32xf32>
    %857 = tpu.matmul %777, %856, %cst_640 {dimension_numbers = #tpu.dot_dimension_numbers<[1], [0], [0], [1], [0, 0, 1, 1], [], []>} : vector<8x32xf32>, vector<32x32xf32>, vector<8x32xf32> -> vector<8x32xf32>
    %858 = arith.addf %833, %857 : vector<8x32xf32>
    %c1_641 = arith.constant 1 : index
    %c1_642 = arith.constant 1 : index
    %c0_643 = arith.constant 0 : index
    %c0_644 = arith.constant 0 : index
    %859 = vector.load %arg9[%c1_641, %c1_642, %c0_643, %c0_644] : memref<2x4x32x32xf32, #tpu.memory_space<vmem>>, vector<1x1x32x32xf32>
    %860 = vector.shape_cast %859 : vector<1x1x32x32xf32> to vector<32x32xf32>
    %cst_645 = arith.constant dense<0.000000e+00> : vector<8x32xf32>
    %861 = tpu.matmul %777, %860, %cst_645 {dimension_numbers = #tpu.dot_dimension_numbers<[1], [0], [0], [1], [0, 0, 1, 1], [], []>} : vector<8x32xf32>, vector<32x32xf32>, vector<8x32xf32> -> vector<8x32xf32>
    %862 = arith.addf %840, %861 : vector<8x32xf32>
    %c1_646 = arith.constant 1 : index
    %c2_647 = arith.constant 2 : index
    %c0_648 = arith.constant 0 : index
    %c0_649 = arith.constant 0 : index
    %863 = vector.load %arg9[%c1_646, %c2_647, %c0_648, %c0_649] : memref<2x4x32x32xf32, #tpu.memory_space<vmem>>, vector<1x1x32x32xf32>
    %864 = vector.shape_cast %863 : vector<1x1x32x32xf32> to vector<32x32xf32>
    %cst_650 = arith.constant dense<0.000000e+00> : vector<8x32xf32>
    %865 = tpu.matmul %777, %864, %cst_650 {dimension_numbers = #tpu.dot_dimension_numbers<[1], [0], [0], [1], [0, 0, 1, 1], [], []>} : vector<8x32xf32>, vector<32x32xf32>, vector<8x32xf32> -> vector<8x32xf32>
    %866 = arith.addf %847, %865 : vector<8x32xf32>
    %c1_651 = arith.constant 1 : index
    %c3_652 = arith.constant 3 : index
    %c0_653 = arith.constant 0 : index
    %c0_654 = arith.constant 0 : index
    %867 = vector.load %arg9[%c1_651, %c3_652, %c0_653, %c0_654] : memref<2x4x32x32xf32, #tpu.memory_space<vmem>>, vector<1x1x32x32xf32>
    %868 = vector.shape_cast %867 : vector<1x1x32x32xf32> to vector<32x32xf32>
    %cst_655 = arith.constant dense<0.000000e+00> : vector<8x32xf32>
    %869 = tpu.matmul %777, %868, %cst_655 {dimension_numbers = #tpu.dot_dimension_numbers<[1], [0], [0], [1], [0, 0, 1, 1], [], []>} : vector<8x32xf32>, vector<32x32xf32>, vector<8x32xf32> -> vector<8x32xf32>
    %870 = arith.addf %854, %869 : vector<8x32xf32>
    %871 = arith.negf %858 : vector<8x32xf32>
    %872 = math.exp %871 : vector<8x32xf32>
    %cst_656 = arith.constant 1.000000e+00 : f32
    %873 = vector.broadcast %cst_656 : f32 to vector<8x32xf32>
    %874 = arith.addf %873, %872 : vector<8x32xf32>
    %875 = arith.divf %873, %874 : vector<8x32xf32>
    %876 = arith.negf %862 : vector<8x32xf32>
    %877 = math.exp %876 : vector<8x32xf32>
    %cst_657 = arith.constant 1.000000e+00 : f32
    %878 = vector.broadcast %cst_657 : f32 to vector<8x32xf32>
    %879 = arith.addf %878, %877 : vector<8x32xf32>
    %880 = arith.divf %878, %879 : vector<8x32xf32>
    %881 = arith.negf %866 : vector<8x32xf32>
    %882 = math.exp %881 : vector<8x32xf32>
    %cst_658 = arith.constant 1.000000e+00 : f32
    %883 = vector.broadcast %cst_658 : f32 to vector<8x32xf32>
    %884 = arith.addf %883, %882 : vector<8x32xf32>
    %885 = arith.divf %883, %884 : vector<8x32xf32>
    %cst_659 = arith.constant 2.000000e+00 : f32
    %886 = vector.broadcast %cst_659 : f32 to vector<8x32xf32>
    %887 = arith.mulf %886, %885 : vector<8x32xf32>
    %cst_660 = arith.constant 1.000000e+00 : f32
    %888 = vector.broadcast %cst_660 : f32 to vector<8x32xf32>
    %889 = arith.subf %887, %888 : vector<8x32xf32>
    %890 = arith.negf %870 : vector<8x32xf32>
    %891 = math.exp %890 : vector<8x32xf32>
    %cst_661 = arith.constant 1.000000e+00 : f32
    %892 = vector.broadcast %cst_661 : f32 to vector<8x32xf32>
    %893 = arith.addf %892, %891 : vector<8x32xf32>
    %894 = arith.divf %892, %893 : vector<8x32xf32>
    %895 = arith.mulf %880, %775 : vector<8x32xf32>
    %896 = arith.mulf %875, %889 : vector<8x32xf32>
    %897 = arith.addf %895, %896 : vector<8x32xf32>
    %898 = math.tanh %897 : vector<8x32xf32>
    %899 = arith.mulf %894, %898 : vector<8x32xf32>
    %900 = vector.extract_strided_slice %14 {offsets = [56, 0], sizes = [8, 32], strides = [1, 1]} : vector<64x32xf32> to vector<8x32xf32>
    %901 = vector.extract_strided_slice %21 {offsets = [56, 0], sizes = [8, 32], strides = [1, 1]} : vector<64x32xf32> to vector<8x32xf32>
    %902 = vector.extract_strided_slice %28 {offsets = [56, 0], sizes = [8, 32], strides = [1, 1]} : vector<64x32xf32> to vector<8x32xf32>
    %903 = vector.extract_strided_slice %35 {offsets = [56, 0], sizes = [8, 32], strides = [1, 1]} : vector<64x32xf32> to vector<8x32xf32>
    %c0_662 = arith.constant 0 : index
    %c0_663 = arith.constant 0 : index
    %c0_664 = arith.constant 0 : index
    %c0_665 = arith.constant 0 : index
    %904 = vector.load %arg9[%c0_662, %c0_663, %c0_664, %c0_665] : memref<2x4x32x32xf32, #tpu.memory_space<vmem>>, vector<1x1x32x32xf32>
    %905 = vector.shape_cast %904 : vector<1x1x32x32xf32> to vector<32x32xf32>
    %cst_666 = arith.constant dense<0.000000e+00> : vector<8x32xf32>
    %906 = tpu.matmul %826, %905, %cst_666 {dimension_numbers = #tpu.dot_dimension_numbers<[1], [0], [0], [1], [0, 0, 1, 1], [], []>} : vector<8x32xf32>, vector<32x32xf32>, vector<8x32xf32> -> vector<8x32xf32>
    %907 = arith.addf %900, %906 : vector<8x32xf32>
    %c0_667 = arith.constant 0 : index
    %c1_668 = arith.constant 1 : index
    %c0_669 = arith.constant 0 : index
    %c0_670 = arith.constant 0 : index
    %908 = vector.load %arg9[%c0_667, %c1_668, %c0_669, %c0_670] : memref<2x4x32x32xf32, #tpu.memory_space<vmem>>, vector<1x1x32x32xf32>
    %909 = vector.shape_cast %908 : vector<1x1x32x32xf32> to vector<32x32xf32>
    %cst_671 = arith.constant dense<0.000000e+00> : vector<8x32xf32>
    %910 = tpu.matmul %826, %909, %cst_671 {dimension_numbers = #tpu.dot_dimension_numbers<[1], [0], [0], [1], [0, 0, 1, 1], [], []>} : vector<8x32xf32>, vector<32x32xf32>, vector<8x32xf32> -> vector<8x32xf32>
    %911 = arith.addf %901, %910 : vector<8x32xf32>
    %c0_672 = arith.constant 0 : index
    %c2_673 = arith.constant 2 : index
    %c0_674 = arith.constant 0 : index
    %c0_675 = arith.constant 0 : index
    %912 = vector.load %arg9[%c0_672, %c2_673, %c0_674, %c0_675] : memref<2x4x32x32xf32, #tpu.memory_space<vmem>>, vector<1x1x32x32xf32>
    %913 = vector.shape_cast %912 : vector<1x1x32x32xf32> to vector<32x32xf32>
    %cst_676 = arith.constant dense<0.000000e+00> : vector<8x32xf32>
    %914 = tpu.matmul %826, %913, %cst_676 {dimension_numbers = #tpu.dot_dimension_numbers<[1], [0], [0], [1], [0, 0, 1, 1], [], []>} : vector<8x32xf32>, vector<32x32xf32>, vector<8x32xf32> -> vector<8x32xf32>
    %915 = arith.addf %902, %914 : vector<8x32xf32>
    %c0_677 = arith.constant 0 : index
    %c3_678 = arith.constant 3 : index
    %c0_679 = arith.constant 0 : index
    %c0_680 = arith.constant 0 : index
    %916 = vector.load %arg9[%c0_677, %c3_678, %c0_679, %c0_680] : memref<2x4x32x32xf32, #tpu.memory_space<vmem>>, vector<1x1x32x32xf32>
    %917 = vector.shape_cast %916 : vector<1x1x32x32xf32> to vector<32x32xf32>
    %cst_681 = arith.constant dense<0.000000e+00> : vector<8x32xf32>
    %918 = tpu.matmul %826, %917, %cst_681 {dimension_numbers = #tpu.dot_dimension_numbers<[1], [0], [0], [1], [0, 0, 1, 1], [], []>} : vector<8x32xf32>, vector<32x32xf32>, vector<8x32xf32> -> vector<8x32xf32>
    %919 = arith.addf %903, %918 : vector<8x32xf32>
    %920 = arith.negf %907 : vector<8x32xf32>
    %921 = math.exp %920 : vector<8x32xf32>
    %cst_682 = arith.constant 1.000000e+00 : f32
    %922 = vector.broadcast %cst_682 : f32 to vector<8x32xf32>
    %923 = arith.addf %922, %921 : vector<8x32xf32>
    %924 = arith.divf %922, %923 : vector<8x32xf32>
    %925 = arith.negf %911 : vector<8x32xf32>
    %926 = math.exp %925 : vector<8x32xf32>
    %cst_683 = arith.constant 1.000000e+00 : f32
    %927 = vector.broadcast %cst_683 : f32 to vector<8x32xf32>
    %928 = arith.addf %927, %926 : vector<8x32xf32>
    %929 = arith.divf %927, %928 : vector<8x32xf32>
    %930 = arith.negf %915 : vector<8x32xf32>
    %931 = math.exp %930 : vector<8x32xf32>
    %cst_684 = arith.constant 1.000000e+00 : f32
    %932 = vector.broadcast %cst_684 : f32 to vector<8x32xf32>
    %933 = arith.addf %932, %931 : vector<8x32xf32>
    %934 = arith.divf %932, %933 : vector<8x32xf32>
    %cst_685 = arith.constant 2.000000e+00 : f32
    %935 = vector.broadcast %cst_685 : f32 to vector<8x32xf32>
    %936 = arith.mulf %935, %934 : vector<8x32xf32>
    %cst_686 = arith.constant 1.000000e+00 : f32
    %937 = vector.broadcast %cst_686 : f32 to vector<8x32xf32>
    %938 = arith.subf %936, %937 : vector<8x32xf32>
    %939 = arith.negf %919 : vector<8x32xf32>
    %940 = math.exp %939 : vector<8x32xf32>
    %cst_687 = arith.constant 1.000000e+00 : f32
    %941 = vector.broadcast %cst_687 : f32 to vector<8x32xf32>
    %942 = arith.addf %941, %940 : vector<8x32xf32>
    %943 = arith.divf %941, %942 : vector<8x32xf32>
    %944 = arith.mulf %929, %824 : vector<8x32xf32>
    %945 = arith.mulf %924, %938 : vector<8x32xf32>
    %946 = arith.addf %944, %945 : vector<8x32xf32>
    %947 = math.tanh %946 : vector<8x32xf32>
    %948 = arith.mulf %943, %947 : vector<8x32xf32>
    %c1_688 = arith.constant 1 : index
    %c0_689 = arith.constant 0 : index
    %c0_690 = arith.constant 0 : index
    %c0_691 = arith.constant 0 : index
    %949 = vector.load %arg7[%c1_688, %c0_689, %c0_690, %c0_691] : memref<2x4x32x32xf32, #tpu.memory_space<vmem>>, vector<1x1x32x32xf32>
    %950 = vector.shape_cast %949 : vector<1x1x32x32xf32> to vector<32x32xf32>
    %cst_692 = arith.constant dense<0.000000e+00> : vector<8x32xf32>
    %951 = tpu.matmul %948, %950, %cst_692 {dimension_numbers = #tpu.dot_dimension_numbers<[1], [0], [0], [1], [0, 0, 1, 1], [], []>} : vector<8x32xf32>, vector<32x32xf32>, vector<8x32xf32> -> vector<8x32xf32>
    %c1_693 = arith.constant 1 : index
    %c0_694 = arith.constant 0 : index
    %c0_695 = arith.constant 0 : index
    %c0_696 = arith.constant 0 : index
    %952 = vector.load %arg8[%c1_693, %c0_694, %c0_695, %c0_696] : memref<2x4x1x32xf32, #tpu.memory_space<vmem>>, vector<1x1x1x32xf32>
    %953 = vector.shape_cast %952 : vector<1x1x1x32xf32> to vector<1x32xf32>
    %954 = vector.broadcast %953 : vector<1x32xf32> to vector<8x32xf32>
    %955 = arith.addf %951, %954 : vector<8x32xf32>
    %c1_697 = arith.constant 1 : index
    %c1_698 = arith.constant 1 : index
    %c0_699 = arith.constant 0 : index
    %c0_700 = arith.constant 0 : index
    %956 = vector.load %arg7[%c1_697, %c1_698, %c0_699, %c0_700] : memref<2x4x32x32xf32, #tpu.memory_space<vmem>>, vector<1x1x32x32xf32>
    %957 = vector.shape_cast %956 : vector<1x1x32x32xf32> to vector<32x32xf32>
    %cst_701 = arith.constant dense<0.000000e+00> : vector<8x32xf32>
    %958 = tpu.matmul %948, %957, %cst_701 {dimension_numbers = #tpu.dot_dimension_numbers<[1], [0], [0], [1], [0, 0, 1, 1], [], []>} : vector<8x32xf32>, vector<32x32xf32>, vector<8x32xf32> -> vector<8x32xf32>
    %c1_702 = arith.constant 1 : index
    %c1_703 = arith.constant 1 : index
    %c0_704 = arith.constant 0 : index
    %c0_705 = arith.constant 0 : index
    %959 = vector.load %arg8[%c1_702, %c1_703, %c0_704, %c0_705] : memref<2x4x1x32xf32, #tpu.memory_space<vmem>>, vector<1x1x1x32xf32>
    %960 = vector.shape_cast %959 : vector<1x1x1x32xf32> to vector<1x32xf32>
    %961 = vector.broadcast %960 : vector<1x32xf32> to vector<8x32xf32>
    %962 = arith.addf %958, %961 : vector<8x32xf32>
    %c1_706 = arith.constant 1 : index
    %c2_707 = arith.constant 2 : index
    %c0_708 = arith.constant 0 : index
    %c0_709 = arith.constant 0 : index
    %963 = vector.load %arg7[%c1_706, %c2_707, %c0_708, %c0_709] : memref<2x4x32x32xf32, #tpu.memory_space<vmem>>, vector<1x1x32x32xf32>
    %964 = vector.shape_cast %963 : vector<1x1x32x32xf32> to vector<32x32xf32>
    %cst_710 = arith.constant dense<0.000000e+00> : vector<8x32xf32>
    %965 = tpu.matmul %948, %964, %cst_710 {dimension_numbers = #tpu.dot_dimension_numbers<[1], [0], [0], [1], [0, 0, 1, 1], [], []>} : vector<8x32xf32>, vector<32x32xf32>, vector<8x32xf32> -> vector<8x32xf32>
    %c1_711 = arith.constant 1 : index
    %c2_712 = arith.constant 2 : index
    %c0_713 = arith.constant 0 : index
    %c0_714 = arith.constant 0 : index
    %966 = vector.load %arg8[%c1_711, %c2_712, %c0_713, %c0_714] : memref<2x4x1x32xf32, #tpu.memory_space<vmem>>, vector<1x1x1x32xf32>
    %967 = vector.shape_cast %966 : vector<1x1x1x32xf32> to vector<1x32xf32>
    %968 = vector.broadcast %967 : vector<1x32xf32> to vector<8x32xf32>
    %969 = arith.addf %965, %968 : vector<8x32xf32>
    %c1_715 = arith.constant 1 : index
    %c3_716 = arith.constant 3 : index
    %c0_717 = arith.constant 0 : index
    %c0_718 = arith.constant 0 : index
    %970 = vector.load %arg7[%c1_715, %c3_716, %c0_717, %c0_718] : memref<2x4x32x32xf32, #tpu.memory_space<vmem>>, vector<1x1x32x32xf32>
    %971 = vector.shape_cast %970 : vector<1x1x32x32xf32> to vector<32x32xf32>
    %cst_719 = arith.constant dense<0.000000e+00> : vector<8x32xf32>
    %972 = tpu.matmul %948, %971, %cst_719 {dimension_numbers = #tpu.dot_dimension_numbers<[1], [0], [0], [1], [0, 0, 1, 1], [], []>} : vector<8x32xf32>, vector<32x32xf32>, vector<8x32xf32> -> vector<8x32xf32>
    %c1_720 = arith.constant 1 : index
    %c3_721 = arith.constant 3 : index
    %c0_722 = arith.constant 0 : index
    %c0_723 = arith.constant 0 : index
    %973 = vector.load %arg8[%c1_720, %c3_721, %c0_722, %c0_723] : memref<2x4x1x32xf32, #tpu.memory_space<vmem>>, vector<1x1x1x32xf32>
    %974 = vector.shape_cast %973 : vector<1x1x1x32xf32> to vector<1x32xf32>
    %975 = vector.broadcast %974 : vector<1x32xf32> to vector<8x32xf32>
    %976 = arith.addf %972, %975 : vector<8x32xf32>
    %c1_724 = arith.constant 1 : index
    %c0_725 = arith.constant 0 : index
    %c0_726 = arith.constant 0 : index
    %c0_727 = arith.constant 0 : index
    %977 = vector.load %arg9[%c1_724, %c0_725, %c0_726, %c0_727] : memref<2x4x32x32xf32, #tpu.memory_space<vmem>>, vector<1x1x32x32xf32>
    %978 = vector.shape_cast %977 : vector<1x1x32x32xf32> to vector<32x32xf32>
    %cst_728 = arith.constant dense<0.000000e+00> : vector<8x32xf32>
    %979 = tpu.matmul %899, %978, %cst_728 {dimension_numbers = #tpu.dot_dimension_numbers<[1], [0], [0], [1], [0, 0, 1, 1], [], []>} : vector<8x32xf32>, vector<32x32xf32>, vector<8x32xf32> -> vector<8x32xf32>
    %980 = arith.addf %955, %979 : vector<8x32xf32>
    %c1_729 = arith.constant 1 : index
    %c1_730 = arith.constant 1 : index
    %c0_731 = arith.constant 0 : index
    %c0_732 = arith.constant 0 : index
    %981 = vector.load %arg9[%c1_729, %c1_730, %c0_731, %c0_732] : memref<2x4x32x32xf32, #tpu.memory_space<vmem>>, vector<1x1x32x32xf32>
    %982 = vector.shape_cast %981 : vector<1x1x32x32xf32> to vector<32x32xf32>
    %cst_733 = arith.constant dense<0.000000e+00> : vector<8x32xf32>
    %983 = tpu.matmul %899, %982, %cst_733 {dimension_numbers = #tpu.dot_dimension_numbers<[1], [0], [0], [1], [0, 0, 1, 1], [], []>} : vector<8x32xf32>, vector<32x32xf32>, vector<8x32xf32> -> vector<8x32xf32>
    %984 = arith.addf %962, %983 : vector<8x32xf32>
    %c1_734 = arith.constant 1 : index
    %c2_735 = arith.constant 2 : index
    %c0_736 = arith.constant 0 : index
    %c0_737 = arith.constant 0 : index
    %985 = vector.load %arg9[%c1_734, %c2_735, %c0_736, %c0_737] : memref<2x4x32x32xf32, #tpu.memory_space<vmem>>, vector<1x1x32x32xf32>
    %986 = vector.shape_cast %985 : vector<1x1x32x32xf32> to vector<32x32xf32>
    %cst_738 = arith.constant dense<0.000000e+00> : vector<8x32xf32>
    %987 = tpu.matmul %899, %986, %cst_738 {dimension_numbers = #tpu.dot_dimension_numbers<[1], [0], [0], [1], [0, 0, 1, 1], [], []>} : vector<8x32xf32>, vector<32x32xf32>, vector<8x32xf32> -> vector<8x32xf32>
    %988 = arith.addf %969, %987 : vector<8x32xf32>
    %c1_739 = arith.constant 1 : index
    %c3_740 = arith.constant 3 : index
    %c0_741 = arith.constant 0 : index
    %c0_742 = arith.constant 0 : index
    %989 = vector.load %arg9[%c1_739, %c3_740, %c0_741, %c0_742] : memref<2x4x32x32xf32, #tpu.memory_space<vmem>>, vector<1x1x32x32xf32>
    %990 = vector.shape_cast %989 : vector<1x1x32x32xf32> to vector<32x32xf32>
    %cst_743 = arith.constant dense<0.000000e+00> : vector<8x32xf32>
    %991 = tpu.matmul %899, %990, %cst_743 {dimension_numbers = #tpu.dot_dimension_numbers<[1], [0], [0], [1], [0, 0, 1, 1], [], []>} : vector<8x32xf32>, vector<32x32xf32>, vector<8x32xf32> -> vector<8x32xf32>
    %992 = arith.addf %976, %991 : vector<8x32xf32>
    %993 = arith.negf %980 : vector<8x32xf32>
    %994 = math.exp %993 : vector<8x32xf32>
    %cst_744 = arith.constant 1.000000e+00 : f32
    %995 = vector.broadcast %cst_744 : f32 to vector<8x32xf32>
    %996 = arith.addf %995, %994 : vector<8x32xf32>
    %997 = arith.divf %995, %996 : vector<8x32xf32>
    %998 = arith.negf %984 : vector<8x32xf32>
    %999 = math.exp %998 : vector<8x32xf32>
    %cst_745 = arith.constant 1.000000e+00 : f32
    %1000 = vector.broadcast %cst_745 : f32 to vector<8x32xf32>
    %1001 = arith.addf %1000, %999 : vector<8x32xf32>
    %1002 = arith.divf %1000, %1001 : vector<8x32xf32>
    %1003 = arith.negf %988 : vector<8x32xf32>
    %1004 = math.exp %1003 : vector<8x32xf32>
    %cst_746 = arith.constant 1.000000e+00 : f32
    %1005 = vector.broadcast %cst_746 : f32 to vector<8x32xf32>
    %1006 = arith.addf %1005, %1004 : vector<8x32xf32>
    %1007 = arith.divf %1005, %1006 : vector<8x32xf32>
    %cst_747 = arith.constant 2.000000e+00 : f32
    %1008 = vector.broadcast %cst_747 : f32 to vector<8x32xf32>
    %1009 = arith.mulf %1008, %1007 : vector<8x32xf32>
    %cst_748 = arith.constant 1.000000e+00 : f32
    %1010 = vector.broadcast %cst_748 : f32 to vector<8x32xf32>
    %1011 = arith.subf %1009, %1010 : vector<8x32xf32>
    %1012 = arith.negf %992 : vector<8x32xf32>
    %1013 = math.exp %1012 : vector<8x32xf32>
    %cst_749 = arith.constant 1.000000e+00 : f32
    %1014 = vector.broadcast %cst_749 : f32 to vector<8x32xf32>
    %1015 = arith.addf %1014, %1013 : vector<8x32xf32>
    %1016 = arith.divf %1014, %1015 : vector<8x32xf32>
    %1017 = arith.mulf %1002, %897 : vector<8x32xf32>
    %1018 = arith.mulf %997, %1011 : vector<8x32xf32>
    %1019 = arith.addf %1017, %1018 : vector<8x32xf32>
    %1020 = math.tanh %1019 : vector<8x32xf32>
    %1021 = arith.mulf %1016, %1020 : vector<8x32xf32>
    %1022 = tpu.concatenate %167, %289, %411, %533, %655, %777, %899, %1021 in 0 : vector<8x32xf32>, vector<8x32xf32>, vector<8x32xf32>, vector<8x32xf32>, vector<8x32xf32>, vector<8x32xf32>, vector<8x32xf32>, vector<8x32xf32> -> vector<64x32xf32>
    %c0_750 = arith.constant 0 : index
    %c0_751 = arith.constant 0 : index
    %1023 = vector.load %arg11[%c0_750, %c0_751] : memref<32x32xf32, #tpu.memory_space<vmem>>, vector<32x32xf32>
    %cst_752 = arith.constant dense<0.000000e+00> : vector<64x32xf32>
    %1024 = tpu.matmul %1022, %1023, %cst_752 {dimension_numbers = #tpu.dot_dimension_numbers<[1], [0], [0], [1], [0, 0, 1, 1], [], []>} : vector<64x32xf32>, vector<32x32xf32>, vector<64x32xf32> -> vector<64x32xf32>
    %1025 = arith.addf %37, %1024 : vector<64x32xf32>
    %c0_753 = arith.constant 0 : index
    %c0_754 = arith.constant 0 : index
    %1026 = vector.load %arg12[%c0_753, %c0_754] : memref<1x32xf32, #tpu.memory_space<vmem>>, vector<1x32xf32>
    %1027 = vector.broadcast %1026 : vector<1x32xf32> to vector<64x32xf32>
    %1028 = arith.addf %1025, %1027 : vector<64x32xf32>
    %cst_755 = arith.constant 0.000000e+00 : f32
    %1029 = vector.broadcast %cst_755 : f32 to vector<64x32xf32>
    %1030 = arith.maximumf %1028, %1029 : vector<64x32xf32>
    %c0_756 = arith.constant 0 : index
    %c0_757 = arith.constant 0 : index
    %1031 = vector.load %arg13[%c0_756, %c0_757] : memref<1x32xf32, #tpu.memory_space<vmem>>, vector<1x32xf32>
    %cst_758 = arith.constant dense<0.000000e+00> : vector<1x64xf32>
    %1032 = tpu.matmul %1031, %1030, %cst_758 {dimension_numbers = #tpu.dot_dimension_numbers<[1], [1], [0], [0], [0, 0, 1, 0], [], []>} : vector<1x32xf32>, vector<64x32xf32>, vector<1x64xf32> -> vector<1x64xf32>
    %c0_759 = arith.constant 0 : index
    %c0_760 = arith.constant 0 : index
    %1033 = memref.load %arg14[%c0_759, %c0_760] : memref<1x1xf32, #tpu.memory_space<smem>>
    %1034 = vector.broadcast %1033 : f32 to vector<1x64xf32>
    %1035 = arith.addf %1032, %1034 : vector<1x64xf32>
    %c0_761 = arith.constant 0 : index
    %c0_762 = arith.constant 0 : index
    %1036 = vector.load %arg15[%c0_761, %c0_762] : memref<1x64xf32, #tpu.memory_space<vmem>>, vector<1x64xf32>
    tpu.vector_store %arg15[%c0_761, %c0_762], %1035 {strides = array<i32>} : memref<1x64xf32, #tpu.memory_space<vmem>>, vector<1x64xf32>,
    %c0_763 = arith.constant 0 : index
    %c0_764 = arith.constant 0 : index
    %c0_765 = arith.constant 0 : index
    %1037 = vector.load %arg16[%c0_763, %c0_764, %c0_765] : memref<2x8x32xf32, #tpu.memory_space<vmem>>, vector<1x8x32xf32>
    %1038 = vector.shape_cast %1037 : vector<1x8x32xf32> to vector<8x32xf32>
    %1039 = vector.shape_cast %948 : vector<8x32xf32> to vector<1x8x32xf32>
    tpu.vector_store %arg16[%c0_763, %c0_764, %c0_765], %1039 {strides = array<i32>} : memref<2x8x32xf32, #tpu.memory_space<vmem>>, vector<1x8x32xf32>,
    %c0_766 = arith.constant 0 : index
    %c0_767 = arith.constant 0 : index
    %c0_768 = arith.constant 0 : index
    %1040 = vector.load %arg17[%c0_766, %c0_767, %c0_768] : memref<2x8x32xf32, #tpu.memory_space<vmem>>, vector<1x8x32xf32>
    %1041 = vector.shape_cast %1040 : vector<1x8x32xf32> to vector<8x32xf32>
    %1042 = vector.shape_cast %946 : vector<8x32xf32> to vector<1x8x32xf32>
    tpu.vector_store %arg17[%c0_766, %c0_767, %c0_768], %1042 {strides = array<i32>} : memref<2x8x32xf32, #tpu.memory_space<vmem>>, vector<1x8x32xf32>,
    %c1_769 = arith.constant 1 : index
    %c0_770 = arith.constant 0 : index
    %c0_771 = arith.constant 0 : index
    %1043 = vector.load %arg16[%c1_769, %c0_770, %c0_771] : memref<2x8x32xf32, #tpu.memory_space<vmem>>, vector<1x8x32xf32>
    %1044 = vector.shape_cast %1043 : vector<1x8x32xf32> to vector<8x32xf32>
    %1045 = vector.shape_cast %1021 : vector<8x32xf32> to vector<1x8x32xf32>
    tpu.vector_store %arg16[%c1_769, %c0_770, %c0_771], %1045 {strides = array<i32>} : memref<2x8x32xf32, #tpu.memory_space<vmem>>, vector<1x8x32xf32>,
    %c1_772 = arith.constant 1 : index
    %c0_773 = arith.constant 0 : index
    %c0_774 = arith.constant 0 : index
    %1046 = vector.load %arg17[%c1_772, %c0_773, %c0_774] : memref<2x8x32xf32, #tpu.memory_space<vmem>>, vector<1x8x32xf32>
    %1047 = vector.shape_cast %1046 : vector<1x8x32xf32> to vector<8x32xf32>
    %1048 = vector.shape_cast %1019 : vector<8x32xf32> to vector<1x8x32xf32>
    tpu.vector_store %arg17[%c1_772, %c0_773, %c0_774], %1048 {strides = array<i32>} : memref<2x8x32xf32, #tpu.memory_space<vmem>>, vector<1x8x32xf32>,
    return
  }
}

</mosaic_0001>

<llo_original>
// kernel: tpu_custom_call.1
$region0: #{tpu_custom_call.1}
  #allocation0 [shape = 'u32[]', space=smem, size = 0x4, offset = 0x4, fixed_abs, tag = 'smem constant byte address 0x4 - core index']
  #allocation1 [shape = 'u32[72,128]{1,0:T(1,128)}', space=vmem, size = 0x9000, scoped, tag = 'internal scratch']
  #allocation2 [shape = 'f32[1,1]{1,0:T(1,128)S(6)}', space=smem, size = 0x200, scoped, tag = 'scoped memory for tpu_custom_call.1']
  %s0 = inlined_call_operand.vmem [shape: f32[64,12], index: 0, kind: input, shape index: {}]
  %s1 = inlined_call_operand.vmem [shape: f32[2,8,32], index: 1, kind: input, shape index: {}]
  %s2 = inlined_call_operand.vmem [shape: f32[2,8,32], index: 2, kind: input, shape index: {}]
  %s3 = inlined_call_operand.vmem [shape: f32[12,64], index: 3, kind: input, shape index: {}]
  %s4 = inlined_call_operand.vmem [shape: f32[1,64], index: 4, kind: input, shape index: {}]
  %s5 = inlined_call_operand.vmem [shape: f32[4,64,32], index: 5, kind: input, shape index: {}]
  %s6 = inlined_call_operand.vmem [shape: f32[4,1,32], index: 6, kind: input, shape index: {}]
  %s7 = inlined_call_operand.vmem [shape: f32[2,4,32,32], index: 7, kind: input, shape index: {}]
  %s8 = inlined_call_operand.vmem [shape: f32[2,4,1,32], index: 8, kind: input, shape index: {}]
  %s9 = inlined_call_operand.hbm [shape: f32[2,4,32,32], index: 9, kind: input, shape index: {}]
  %s10 = inlined_call_operand.vmem [shape: f32[64,32], index: 10, kind: input, shape index: {}]
  %s11 = inlined_call_operand.vmem [shape: f32[32,32], index: 11, kind: input, shape index: {}]
  %s12 = inlined_call_operand.vmem [shape: f32[1,32], index: 12, kind: input, shape index: {}]
  %s13 = inlined_call_operand.vmem [shape: f32[1,32], index: 13, kind: input, shape index: {}]
  %s14 = inlined_call_operand.<no memory space> [shape: f32[1,1], index: 14, kind: input, shape index: {}]
  %s15 = inlined_call_operand.hbm [shape: f32[1,64], index: 15, kind: output, shape index: {0}]
  %s16 = inlined_call_operand.hbm [shape: f32[2,8,32], index: 16, kind: output, shape index: {1}]
  %s17 = inlined_call_operand.hbm [shape: f32[2,8,32], index: 17, kind: output, shape index: {2}]
  %18 = xla_tuple %s15, %s16, %s17
  %s19 = sld [smem:[#allocation0]]
  $region90: #{tpu_custom_call.1} parent=0
    _
  %s21 = ssub.s32 1, %s19
  %s22 = scalar_select 0, %s21, %s19
  %23 = sst [smem:[#allocation2]] %s14
  $region1: #{tpu_custom_call.1} parent=0
    #allocation3 [shape = 'u8[131072]{0}', space=vmem, size = 0x20000, scoped, tag = 'input window, operand 9, single buffered']
    #allocation4 [shape = 's32[1]{0}', space=sflag, size = 0x4, scoped, tag = 'scoped memory for tpu_custom_call.1']
    #allocation5 [shape = 's32[1]{0}', space=sflag, size = 0x4, scoped, tag = 'scoped memory for tpu_custom_call.1']
    #allocation6 [shape = 'u8[512]{0}', space=vmem, size = 0x400, scoped, tag = 'output window, operand 0, single buffered']
    #allocation7 [shape = 'u8[8192]{0}', space=vmem, size = 0x2000, scoped, tag = 'output window, operand 1, single buffered']
    #allocation8 [shape = 's32[1]{0}', space=sflag, size = 0x4, scoped, tag = 'scoped memory for tpu_custom_call.1']
    #allocation9 [shape = 'u8[8192]{0}', space=vmem, size = 0x2000, scoped, tag = 'output window, operand 2, single buffered']
    %24 = vsyncpa [#allocation4], 0
    %25 = vsyncpa [#allocation5], 0
    %26 = vsyncpa [#allocation8], 0
    // Predicated region
    $region2: #{tpu_custom_call.1} parent=1 // pred_check
      _
    $region3: #{tpu_custom_call.1} parent=1 // pred_check_branch
      %28 = sbr.rel (0) target = $region5
    $region4: #{tpu_custom_call.1} parent=1 // pred_region
      _
    $region5: #{tpu_custom_call.1} parent=1 // pred_fallthru
      _
    // Predicated region
    $region6: #{tpu_custom_call.1} parent=1 // pred_check
      _
    $region7: #{tpu_custom_call.1} parent=1 // pred_check_branch
      %30 = sbr.rel (0) target = $region9
    $region8: #{tpu_custom_call.1} parent=1 // pred_region
      _
    $region9: #{tpu_custom_call.1} parent=1 // pred_fallthru
      _
    // Predicated region
    $region10: #{tpu_custom_call.1} parent=1 // pred_check
      _
    $region11: #{tpu_custom_call.1} parent=1 // pred_check_branch
      %32 = sbr.rel (0) target = $region13
    $region12: #{tpu_custom_call.1} parent=1 // pred_region
      _
    $region13: #{tpu_custom_call.1} parent=1 // pred_fallthru
      _
    // Predicated region
    $region14: #{tpu_custom_call.1} parent=1 // pred_check
      _
    $region15: #{tpu_custom_call.1} parent=1 // pred_check_branch
      %34 = sbr.rel (0) target = $region17
    $region16: #{tpu_custom_call.1} parent=1 // pred_region
      _
    $region17: #{tpu_custom_call.1} parent=1 // pred_fallthru
      _
    // Predicated region
    $region18: #{tpu_custom_call.1} parent=1 // pred_check
      _
    $region19: #{tpu_custom_call.1} parent=1 // pred_check_branch
      %36 = sbr.rel (0) target = $region21
    $region20: #{tpu_custom_call.1} parent=1 // pred_region
      _
    $region21: #{tpu_custom_call.1} parent=1 // pred_fallthru
      _
    // Predicated region
    $region22: #{tpu_custom_call.1} parent=1 // pred_check
      _
    $region23: #{tpu_custom_call.1} parent=1 // pred_check_branch
      %38 = sbr.rel (0) target = $region25
    $region24: #{tpu_custom_call.1} parent=1 // pred_region
      _
    $region25: #{tpu_custom_call.1} parent=1 // pred_fallthru
      _
    // Predicated region
    $region26: #{tpu_custom_call.1} parent=1 // pred_check
      _
    $region27: #{tpu_custom_call.1} parent=1 // pred_check_branch
      %40 = sbr.rel (0) target = $region29
    $region28: #{tpu_custom_call.1} parent=1 // pred_region
      _
    $region29: #{tpu_custom_call.1} parent=1 // pred_fallthru
      _
    // Predicated region
    $region30: #{tpu_custom_call.1} parent=1 // pred_check
      _
    $region31: #{tpu_custom_call.1} parent=1 // pred_check_branch
      %42 = sbr.rel (0) target = $region33
    $region32: #{tpu_custom_call.1} parent=1 // pred_region
      _
    $region33: #{tpu_custom_call.1} parent=1 // pred_fallthru
      _
    // Predicated region
    $region34: #{tpu_custom_call.1} parent=1 // pred_check
      _
    $region35: #{tpu_custom_call.1} parent=1 // pred_check_branch
      %44 = sbr.rel (0) target = $region37
    $region36: #{tpu_custom_call.1} parent=1 // pred_region
      _
    $region37: #{tpu_custom_call.1} parent=1 // pred_fallthru
      _
    // Predicated region
    $region38: #{tpu_custom_call.1} parent=1 // pred_check
      _
    $region39: #{tpu_custom_call.1} parent=1 // pred_check_branch
      %46 = sbr.rel (0) target = $region41
    $region40: #{tpu_custom_call.1} parent=1 // pred_region
      %48 = vsyncadd [#allocation4], 0
      %s49 = sshll.u32 %s9, 4
      %s50 = int_to_ptr.hbm [resolvable:$true] %s49
      %s51 = sshll.u32 [#allocation3], 4
      %s52 = int_to_ptr.vmem [resolvable:$true] %s51
      %57 = dma.hbm_to_vmem [thread:$0]  %s50, 4096, %s52, [#allocation4], 128, 128, 8
    $region41: #{tpu_custom_call.1} parent=1 // pred_fallthru
      _
    // Predicated region
    $region42: #{tpu_custom_call.1} parent=1 // pred_check
      _
    $region43: #{tpu_custom_call.1} parent=1 // pred_check_branch
      %59 = sbr.rel (0) target = $region45
    $region44: #{tpu_custom_call.1} parent=1 // pred_region
      _
    $region45: #{tpu_custom_call.1} parent=1 // pred_fallthru
      _
    // Predicated region
    $region46: #{tpu_custom_call.1} parent=1 // pred_check
      _
    $region47: #{tpu_custom_call.1} parent=1 // pred_check_branch
      %61 = sbr.rel (0) target = $region49
    $region48: #{tpu_custom_call.1} parent=1 // pred_region
      _
    $region49: #{tpu_custom_call.1} parent=1 // pred_fallthru
      _
    // Predicated region
    $region50: #{tpu_custom_call.1} parent=1 // pred_check
      _
    $region51: #{tpu_custom_call.1} parent=1 // pred_check_branch
      %63 = sbr.rel (0) target = $region53
    $region52: #{tpu_custom_call.1} parent=1 // pred_region
      _
    $region53: #{tpu_custom_call.1} parent=1 // pred_fallthru
      _
    // Predicated region
    $region54: #{tpu_custom_call.1} parent=1 // pred_check
      _
    $region55: #{tpu_custom_call.1} parent=1 // pred_check_branch
      %65 = sbr.rel (0) target = $region57
    $region56: #{tpu_custom_call.1} parent=1 // pred_region
      _
    $region57: #{tpu_custom_call.1} parent=1 // pred_fallthru
      _
    // Predicated region
    $region58: #{tpu_custom_call.1} parent=1 // pred_check
      _
    $region59: #{tpu_custom_call.1} parent=1 // pred_check_branch
      %67 = sbr.rel (0) target = $region61
    $region60: #{tpu_custom_call.1} parent=1 // pred_region
      _
    $region61: #{tpu_custom_call.1} parent=1 // pred_fallthru
      _
    // Predicated region
    $region62: #{tpu_custom_call.1} parent=1 // pred_check
      _
    $region63: #{tpu_custom_call.1} parent=1 // pred_check_branch
      %69 = sbr.rel (0) target = $region65
    $region64: #{tpu_custom_call.1} parent=1 // pred_region
      %71 = dma.done [#allocation4], 4096
    $region65: #{tpu_custom_call.1} parent=1 // pred_fallthru
      _
    %v72 = vld [vmem:[%s0] sm:$0xff]
    %v73 = vld [vmem:[%s0 + $0x8] sm:$0xff]
    %v74 = vld [vmem:[%s0 + $0x10] sm:$0xff]
    %v75 = vld [vmem:[%s0 + $0x18] sm:$0xff]
    %v76 = vld [vmem:[%s0 + $0x20] sm:$0xff]
    %v77 = vld [vmem:[%s0 + $0x28] sm:$0xff]
    %v78 = vld [vmem:[%s0 + $0x30] sm:$0xff]
    %v79 = vld [vmem:[%s0 + $0x38] sm:$0xff]
    %v80 = vld [vmem:[%s3] sm:$0xff]
    %v81 = vld [vmem:[%s3 + $0x8] sm:$0xf]
    %v82 = vld [vmem:[%s4] sm:$0x1]
    %v84 = vperm.slane %v82, 0
    %vm86 = vcmask 97280
    %v88 = vsel %vm86, %v72, 0
    %v91 = vsel %vm86, %v73, 0
    %v94 = vsel %vm86, %v74, 0
    %v97 = vsel %vm86, %v75, 0
    %v100 = vsel %vm86, %v76, 0
    %v103 = vsel %vm86, %v77, 0
    %v106 = vsel %vm86, %v78, 0
    %v109 = vsel %vm86, %v79, 0
    %vm111 = vcmask 1043456
    %v113 = vsel %vm111, %v81, 0
    %115 = vmatpush.msra.mxu0 0.0
    %116 = vmatpush.msra.mxu0 0.0
    %117 = vmatpush.msra.mxu0 0.0
    %118 = vmatpush.msra.mxu0 0.0
    %119 = vmatpush.msra.mxu0 0.0
    %120 = vmatpush.msra.mxu0 0.0
    %121 = vmatpush.msra.mxu0 0.0
    %122 = vmatpush.msra.mxu0 0.0
    %123 = vmatpush.msra.mxu0 0.0
    %124 = vmatpush.msra.mxu0 0.0
    %125 = vmatpush.msra.mxu0 0.0
    %126 = vmatpush.msra.mxu0 0.0
    %127 = vmatpush.msra.mxu0 0.0
    %128 = vmatpush.msra.mxu0 0.0
    %129 = vmatpush.msra.mxu0 %v113
    %130 = vmatpush.msra.mxu0 %v80
    %131 = vmatmul.f32.gmra.mxu0 %v88
    %v132 = vpop.f32.mrf.mxu0
    %v133 = vadd.f32 %v84, %v132
    %134 = vmatmul.f32.gmra.mxu0 %v91
    %v135 = vpop.f32.mrf.mxu0
    %v136 = vadd.f32 %v84, %v135
    %137 = vmatmul.f32.gmra.mxu0 %v94
    %v138 = vpop.f32.mrf.mxu0
    %v139 = vadd.f32 %v84, %v138
    %140 = vmatmul.f32.gmra.mxu0 %v97
    %v141 = vpop.f32.mrf.mxu0
    %v142 = vadd.f32 %v84, %v141
    %143 = vmatmul.f32.gmra.mxu0 %v100
    %v144 = vpop.f32.mrf.mxu0
    %v145 = vadd.f32 %v84, %v144
    %146 = vmatmul.f32.gmra.mxu0 %v103
    %v147 = vpop.f32.mrf.mxu0
    %v148 = vadd.f32 %v84, %v147
    %149 = vmatmul.f32.gmra.mxu0 %v106
    %v150 = vpop.f32.mrf.mxu0
    %v151 = vadd.f32 %v84, %v150
    %152 = vmatmul.f32.gmra.mxu0 %v109
    %v153 = vpop.f32.mrf.mxu0
    %v154 = vadd.f32 %v84, %v153
    %155 = vdwg.mxu0
    %v156 = vmax.f32 %v133, 0.0
    %v157 = vmax.f32 %v136, 0.0
    %v158 = vmax.f32 %v139, 0.0
    %v159 = vmax.f32 %v142, 0.0
    %v160 = vmax.f32 %v145, 0.0
    %v161 = vmax.f32 %v148, 0.0
    %v162 = vmax.f32 %v151, 0.0
    %v163 = vmax.f32 %v154, 0.0
    %v164 = vld [vmem:[%s5] sm:$0xff]
    %v165 = vld [vmem:[%s5 + $0x8] sm:$0xff]
    %v166 = vld [vmem:[%s5 + $0x10] sm:$0xff]
    %v167 = vld [vmem:[%s5 + $0x18] sm:$0xff]
    %v168 = vld [vmem:[%s5 + $0x20] sm:$0xff]
    %v169 = vld [vmem:[%s5 + $0x28] sm:$0xff]
    %v170 = vld [vmem:[%s5 + $0x30] sm:$0xff]
    %v171 = vld [vmem:[%s5 + $0x38] sm:$0xff]
    %v172 = vld [vmem:[%s6] sm:$0x1]
    %v174 = vperm.slane %v172, 0
    %vm176 = vcmask 523264
    %v178 = vsel %vm176, %v156, 0
    %v181 = vsel %vm176, %v157, 0
    %v184 = vsel %vm176, %v158, 0
    %v187 = vsel %vm176, %v159, 0
    %v190 = vsel %vm176, %v160, 0
    %v193 = vsel %vm176, %v161, 0
    %v196 = vsel %vm176, %v162, 0
    %v199 = vsel %vm176, %v163, 0
    %201 = vmatpush.msra.mxu0 0.0
    %202 = vmatpush.msra.mxu0 0.0
    %203 = vmatpush.msra.mxu0 0.0
    %204 = vmatpush.msra.mxu0 0.0
    %205 = vmatpush.msra.mxu0 0.0
    %206 = vmatpush.msra.mxu0 0.0
    %207 = vmatpush.msra.mxu0 0.0
    %208 = vmatpush.msra.mxu0 0.0
    %209 = vmatpush.msra.mxu0 %v171
    %210 = vmatpush.msra.mxu0 %v170
    %211 = vmatpush.msra.mxu0 %v169
    %212 = vmatpush.msra.mxu0 %v168
    %213 = vmatpush.msra.mxu0 %v167
    %214 = vmatpush.msra.mxu0 %v166
    %215 = vmatpush.msra.mxu0 %v165
    %216 = vmatpush.msra.mxu0 %v164
    %217 = vmatmul.f32.gmra.mxu0 %v178
    %v218 = vpop.f32.mrf.mxu0
    %v219 = vadd.f32 %v174, %v218
    %220 = vmatmul.f32.gmra.mxu0 %v181
    %v221 = vpop.f32.mrf.mxu0
    %v222 = vadd.f32 %v174, %v221
    %223 = vmatmul.f32.gmra.mxu0 %v184
    %v224 = vpop.f32.mrf.mxu0
    %v225 = vadd.f32 %v174, %v224
    %226 = vmatmul.f32.gmra.mxu0 %v187
    %v227 = vpop.f32.mrf.mxu0
    %v228 = vadd.f32 %v174, %v227
    %229 = vmatmul.f32.gmra.mxu0 %v190
    %v230 = vpop.f32.mrf.mxu0
    %v231 = vadd.f32 %v174, %v230
    %232 = vmatmul.f32.gmra.mxu0 %v193
    %v233 = vpop.f32.mrf.mxu0
    %v234 = vadd.f32 %v174, %v233
    %235 = vmatmul.f32.gmra.mxu0 %v196
    %v236 = vpop.f32.mrf.mxu0
    %v237 = vadd.f32 %v174, %v236
    %238 = vmatmul.f32.gmra.mxu0 %v199
    %v239 = vpop.f32.mrf.mxu0
    %v240 = vadd.f32 %v174, %v239
    %241 = vdwg.mxu0
    %s242 = scalar_lea.vmem %s5, 64
    %v243 = vld [vmem:[%s242] sm:$0xff]
    %v244 = vld [vmem:[%s242 + $0x8] sm:$0xff]
    %v245 = vld [vmem:[%s242 + $0x10] sm:$0xff]
    %v246 = vld [vmem:[%s242 + $0x18] sm:$0xff]
    %v247 = vld [vmem:[%s242 + $0x20] sm:$0xff]
    %v248 = vld [vmem:[%s242 + $0x28] sm:$0xff]
    %v249 = vld [vmem:[%s242 + $0x30] sm:$0xff]
    %v250 = vld [vmem:[%s242 + $0x38] sm:$0xff]
    %s251 = scalar_lea.vmem %s6, 1
    %v252 = vld [vmem:[%s251] sm:$0x1]
    %v254 = vperm.slane %v252, 0
    %256 = vmatpush.msra.mxu0 0.0
    %257 = vmatpush.msra.mxu0 0.0
    %258 = vmatpush.msra.mxu0 0.0
    %259 = vmatpush.msra.mxu0 0.0
    %260 = vmatpush.msra.mxu0 0.0
    %261 = vmatpush.msra.mxu0 0.0
    %262 = vmatpush.msra.mxu0 0.0
    %263 = vmatpush.msra.mxu0 0.0
    %264 = vmatpush.msra.mxu0 %v250
    %265 = vmatpush.msra.mxu0 %v249
    %266 = vmatpush.msra.mxu0 %v248
    %267 = vmatpush.msra.mxu0 %v247
    %268 = vmatpush.msra.mxu0 %v246
    %269 = vmatpush.msra.mxu0 %v245
    %270 = vmatpush.msra.mxu0 %v244
    %271 = vmatpush.msra.mxu0 %v243
    %272 = vmatmul.f32.gmra.mxu0 %v178
    %v273 = vpop.f32.mrf.mxu0
    %v274 = vadd.f32 %v254, %v273
    %275 = vmatmul.f32.gmra.mxu0 %v181
    %v276 = vpop.f32.mrf.mxu0
    %v277 = vadd.f32 %v254, %v276
    %278 = vmatmul.f32.gmra.mxu0 %v184
    %v279 = vpop.f32.mrf.mxu0
    %v280 = vadd.f32 %v254, %v279
    %281 = vmatmul.f32.gmra.mxu0 %v187
    %v282 = vpop.f32.mrf.mxu0
    %v283 = vadd.f32 %v254, %v282
    %284 = vmatmul.f32.gmra.mxu0 %v190
    %v285 = vpop.f32.mrf.mxu0
    %v286 = vadd.f32 %v254, %v285
    %287 = vmatmul.f32.gmra.mxu0 %v193
    %v288 = vpop.f32.mrf.mxu0
    %v289 = vadd.f32 %v254, %v288
    %290 = vmatmul.f32.gmra.mxu0 %v196
    %v291 = vpop.f32.mrf.mxu0
    %v292 = vadd.f32 %v254, %v291
    %293 = vmatmul.f32.gmra.mxu0 %v199
    %v294 = vpop.f32.mrf.mxu0
    %v295 = vadd.f32 %v254, %v294
    %296 = vdwg.mxu0
    %s297 = scalar_lea.vmem %s5, 128
    %v298 = vld [vmem:[%s297] sm:$0xff]
    %v299 = vld [vmem:[%s297 + $0x8] sm:$0xff]
    %v300 = vld [vmem:[%s297 + $0x10] sm:$0xff]
    %v301 = vld [vmem:[%s297 + $0x18] sm:$0xff]
    %v302 = vld [vmem:[%s297 + $0x20] sm:$0xff]
    %v303 = vld [vmem:[%s297 + $0x28] sm:$0xff]
    %v304 = vld [vmem:[%s297 + $0x30] sm:$0xff]
    %v305 = vld [vmem:[%s297 + $0x38] sm:$0xff]
    %s306 = scalar_lea.vmem %s6, 2
    %v307 = vld [vmem:[%s306] sm:$0x1]
    %v309 = vperm.slane %v307, 0
    %311 = vmatpush.msra.mxu0 0.0
    %312 = vmatpush.msra.mxu0 0.0
    %313 = vmatpush.msra.mxu0 0.0
    %314 = vmatpush.msra.mxu0 0.0
    %315 = vmatpush.msra.mxu0 0.0
    %316 = vmatpush.msra.mxu0 0.0
    %317 = vmatpush.msra.mxu0 0.0
    %318 = vmatpush.msra.mxu0 0.0
    %319 = vmatpush.msra.mxu0 %v305
    %320 = vmatpush.msra.mxu0 %v304
    %321 = vmatpush.msra.mxu0 %v303
    %322 = vmatpush.msra.mxu0 %v302
    %323 = vmatpush.msra.mxu0 %v301
    %324 = vmatpush.msra.mxu0 %v300
    %325 = vmatpush.msra.mxu0 %v299
    %326 = vmatpush.msra.mxu0 %v298
    %327 = vmatmul.f32.gmra.mxu0 %v178
    %v328 = vpop.f32.mrf.mxu0
    %v329 = vadd.f32 %v309, %v328
    %330 = vmatmul.f32.gmra.mxu0 %v181
    %v331 = vpop.f32.mrf.mxu0
    %v332 = vadd.f32 %v309, %v331
    %333 = vmatmul.f32.gmra.mxu0 %v184
    %v334 = vpop.f32.mrf.mxu0
    %v335 = vadd.f32 %v309, %v334
    %336 = vmatmul.f32.gmra.mxu0 %v187
    %v337 = vpop.f32.mrf.mxu0
    %v338 = vadd.f32 %v309, %v337
    %339 = vmatmul.f32.gmra.mxu0 %v190
    %v340 = vpop.f32.mrf.mxu0
    %v341 = vadd.f32 %v309, %v340
    %342 = vmatmul.f32.gmra.mxu0 %v193
    %v343 = vpop.f32.mrf.mxu0
    %v344 = vadd.f32 %v309, %v343
    %345 = vmatmul.f32.gmra.mxu0 %v196
    %v346 = vpop.f32.mrf.mxu0
    %v347 = vadd.f32 %v309, %v346
    %348 = vmatmul.f32.gmra.mxu0 %v199
    %v349 = vpop.f32.mrf.mxu0
    %v350 = vadd.f32 %v309, %v349
    %351 = vdwg.mxu0
    %s352 = scalar_lea.vmem %s5, 192
    %v353 = vld [vmem:[%s352] sm:$0xff]
    %v354 = vld [vmem:[%s352 + $0x8] sm:$0xff]
    %v355 = vld [vmem:[%s352 + $0x10] sm:$0xff]
    %v356 = vld [vmem:[%s352 + $0x18] sm:$0xff]
    %v357 = vld [vmem:[%s352 + $0x20] sm:$0xff]
    %v358 = vld [vmem:[%s352 + $0x28] sm:$0xff]
    %v359 = vld [vmem:[%s352 + $0x30] sm:$0xff]
    %v360 = vld [vmem:[%s352 + $0x38] sm:$0xff]
    %s361 = scalar_lea.vmem %s6, 3
    %v362 = vld [vmem:[%s361] sm:$0x1]
    %v364 = vperm.slane %v362, 0
    %366 = vmatpush.msra.mxu0 0.0
    %367 = vmatpush.msra.mxu0 0.0
    %368 = vmatpush.msra.mxu0 0.0
    %369 = vmatpush.msra.mxu0 0.0
    %370 = vmatpush.msra.mxu0 0.0
    %371 = vmatpush.msra.mxu0 0.0
    %372 = vmatpush.msra.mxu0 0.0
    %373 = vmatpush.msra.mxu0 0.0
    %374 = vmatpush.msra.mxu0 %v360
    %375 = vmatpush.msra.mxu0 %v359
    %376 = vmatpush.msra.mxu0 %v358
    %377 = vmatpush.msra.mxu0 %v357
    %378 = vmatpush.msra.mxu0 %v356
    %379 = vmatpush.msra.mxu0 %v355
    %380 = vmatpush.msra.mxu0 %v354
    %381 = vmatpush.msra.mxu0 %v353
    %382 = vmatmul.f32.gmra.mxu0 %v178
    %v383 = vpop.f32.mrf.mxu0
    %v384 = vadd.f32 %v364, %v383
    %385 = vmatmul.f32.gmra.mxu0 %v181
    %v386 = vpop.f32.mrf.mxu0
    %v387 = vadd.f32 %v364, %v386
    %388 = vmatmul.f32.gmra.mxu0 %v184
    %v389 = vpop.f32.mrf.mxu0
    %v390 = vadd.f32 %v364, %v389
    %391 = vmatmul.f32.gmra.mxu0 %v187
    %v392 = vpop.f32.mrf.mxu0
    %v393 = vadd.f32 %v364, %v392
    %394 = vmatmul.f32.gmra.mxu0 %v190
    %v395 = vpop.f32.mrf.mxu0
    %v396 = vadd.f32 %v364, %v395
    %397 = vmatmul.f32.gmra.mxu0 %v193
    %v398 = vpop.f32.mrf.mxu0
    %v399 = vadd.f32 %v364, %v398
    %400 = vmatmul.f32.gmra.mxu0 %v196
    %v401 = vpop.f32.mrf.mxu0
    %v402 = vadd.f32 %v364, %v401
    %403 = vmatmul.f32.gmra.mxu0 %v199
    %v404 = vpop.f32.mrf.mxu0
    %v405 = vadd.f32 %v364, %v404
    %406 = vdwg.mxu0
    %v407 = vld [vmem:[%s10] sm:$0xff]
    %v408 = vld [vmem:[%s10 + $0x8] sm:$0xff]
    %v409 = vld [vmem:[%s10 + $0x10] sm:$0xff]
    %v410 = vld [vmem:[%s10 + $0x18] sm:$0xff]
    %v411 = vld [vmem:[%s10 + $0x20] sm:$0xff]
    %v412 = vld [vmem:[%s10 + $0x28] sm:$0xff]
    %v413 = vld [vmem:[%s10 + $0x30] sm:$0xff]
    %v414 = vld [vmem:[%s10 + $0x38] sm:$0xff]
    %v415 = vld [vmem:[%s1] sm:$0xff]
    %s416 = scalar_lea.vmem %s1, 8
    %v417 = vld [vmem:[%s416] sm:$0xff]
    %v418 = vld [vmem:[%s2] sm:$0xff]
    %s419 = scalar_lea.vmem %s2, 8
    %v420 = vld [vmem:[%s419] sm:$0xff]
    %v421 = vld [vmem:[#allocation3] sm:$0xff]
    %v422 = vld [vmem:[#allocation3 + $0x8] sm:$0xff]
    %v423 = vld [vmem:[#allocation3 + $0x10] sm:$0xff]
    %v424 = vld [vmem:[#allocation3 + $0x18] sm:$0xff]
    %vm425 = vcmask 261120
    %v427 = vsel %vm425, %v415, 0
    %429 = vmatpush.msra.mxu0 0.0
    %430 = vmatpush.msra.mxu0 0.0
    %431 = vmatpush.msra.mxu0 0.0
    %432 = vmatpush.msra.mxu0 0.0
    %433 = vmatpush.msra.mxu0 0.0
    %434 = vmatpush.msra.mxu0 0.0
    %435 = vmatpush.msra.mxu0 0.0
    %436 = vmatpush.msra.mxu0 0.0
    %437 = vmatpush.msra.mxu0 0.0
    %438 = vmatpush.msra.mxu0 0.0
    %439 = vmatpush.msra.mxu0 0.0
    %440 = vmatpush.msra.mxu0 0.0
    %441 = vmatpush.msra.mxu0 %v424
    %442 = vmatpush.msra.mxu0 %v423
    %443 = vmatpush.msra.mxu0 %v422
    %444 = vmatpush.msra.mxu0 %v421
    %445 = vmatmul.f32.gmra.mxu0 %v427
    %v446 = vpop.f32.mrf.mxu0
    %v447 = vadd.f32 0.0, %v446
    %448 = vdwg.mxu0
    %v449 = vadd.f32 %v219, %v447
    %s450 = scalar_lea.vmem [#allocation3], 32
    %v451 = vld [vmem:[%s450] sm:$0xff]
    %v452 = vld [vmem:[%s450 + $0x8] sm:$0xff]
    %v453 = vld [vmem:[%s450 + $0x10] sm:$0xff]
    %v454 = vld [vmem:[%s450 + $0x18] sm:$0xff]
    %455 = vmatpush.msra.mxu0 0.0
    %456 = vmatpush.msra.mxu0 0.0
    %457 = vmatpush.msra.mxu0 0.0
    %458 = vmatpush.msra.mxu0 0.0
    %459 = vmatpush.msra.mxu0 0.0
    %460 = vmatpush.msra.mxu0 0.0
    %461 = vmatpush.msra.mxu0 0.0
    %462 = vmatpush.msra.mxu0 0.0
    %463 = vmatpush.msra.mxu0 0.0
    %464 = vmatpush.msra.mxu0 0.0
    %465 = vmatpush.msra.mxu0 0.0
    %466 = vmatpush.msra.mxu0 0.0
    %467 = vmatpush.msra.mxu0 %v454
    %468 = vmatpush.msra.mxu0 %v453
    %469 = vmatpush.msra.mxu0 %v452
    %470 = vmatpush.msra.mxu0 %v451
    %471 = vmatmul.f32.gmra.mxu0 %v427
    %v472 = vpop.f32.mrf.mxu0
    %v473 = vadd.f32 0.0, %v472
    %474 = vdwg.mxu0
    %v475 = vadd.f32 %v274, %v473
    %s476 = scalar_lea.vmem [#allocation3], 64
    %v477 = vld [vmem:[%s476] sm:$0xff]
    %v478 = vld [vmem:[%s476 + $0x8] sm:$0xff]
    %v479 = vld [vmem:[%s476 + $0x10] sm:$0xff]
    %v480 = vld [vmem:[%s476 + $0x18] sm:$0xff]
    %481 = vmatpush.msra.mxu0 0.0
    %482 = vmatpush.msra.mxu0 0.0
    %483 = vmatpush.msra.mxu0 0.0
    %484 = vmatpush.msra.mxu0 0.0
    %485 = vmatpush.msra.mxu0 0.0
    %486 = vmatpush.msra.mxu0 0.0
    %487 = vmatpush.msra.mxu0 0.0
    %488 = vmatpush.msra.mxu0 0.0
    %489 = vmatpush.msra.mxu0 0.0
    %490 = vmatpush.msra.mxu0 0.0
    %491 = vmatpush.msra.mxu0 0.0
    %492 = vmatpush.msra.mxu0 0.0
    %493 = vmatpush.msra.mxu0 %v480
    %494 = vmatpush.msra.mxu0 %v479
    %495 = vmatpush.msra.mxu0 %v478
    %496 = vmatpush.msra.mxu0 %v477
    %497 = vmatmul.f32.gmra.mxu0 %v427
    %v498 = vpop.f32.mrf.mxu0
    %v499 = vadd.f32 0.0, %v498
    %500 = vdwg.mxu0
    %v501 = vadd.f32 %v329, %v499
    %s502 = scalar_lea.vmem [#allocation3], 96
    %v503 = vld [vmem:[%s502] sm:$0xff]
    %v504 = vld [vmem:[%s502 + $0x8] sm:$0xff]
    %v505 = vld [vmem:[%s502 + $0x10] sm:$0xff]
    %v506 = vld [vmem:[%s502 + $0x18] sm:$0xff]
    %507 = vmatpush.msra.mxu0 0.0
    %508 = vmatpush.msra.mxu0 0.0
    %509 = vmatpush.msra.mxu0 0.0
    %510 = vmatpush.msra.mxu0 0.0
    %511 = vmatpush.msra.mxu0 0.0
    %512 = vmatpush.msra.mxu0 0.0
    %513 = vmatpush.msra.mxu0 0.0
    %514 = vmatpush.msra.mxu0 0.0
    %515 = vmatpush.msra.mxu0 0.0
    %516 = vmatpush.msra.mxu0 0.0
    %517 = vmatpush.msra.mxu0 0.0
    %518 = vmatpush.msra.mxu0 0.0
    %519 = vmatpush.msra.mxu0 %v506
    %520 = vmatpush.msra.mxu0 %v505
    %521 = vmatpush.msra.mxu0 %v504
    %522 = vmatpush.msra.mxu0 %v503
    %523 = vmatmul.f32.gmra.mxu0 %v427
    %v524 = vpop.f32.mrf.mxu0
    %v525 = vadd.f32 0.0, %v524
    %526 = vdwg.mxu0
    %v527 = vadd.f32 %v384, %v525
    %v528 = vxor.u32 %v449, 2147483648
    %v529 = vmul.f32 %v528, 1.442695
    %v530 = vpow.pop %v529
    %v531 = vadd.f32 %v530, 1.0
    %v532 = vrcp.pop %v531
    %v533 = vmul.f32 %v531, %v532
    %v534 = vsub.f32 1.0, %v533
    %v535 = vmul.f32 %v532, %v534
    %v536 = vadd.f32 %v532, %v535
    %vm537 = vweird.f32 %v531
    %vm538 = vweird.f32 %v532
    %vm539 = vmor %vm537, %vm538
    %v540 = vsel %vm539, %v532, %v536
    %v541 = vand.u32 2147483647, %v531
    %vm542 = vcmp.eq.f32.partialorder %v541, 8.507059e+37
    %v543 = vand.u32 %v531, 2147483648
    %v544 = vor.u32 1.1754944e-38, %v543
    %v545 = vsel %vm542, %v544, %v540
    %v546 = vmul.f32 1.0, %v545
    %v547 = vxor.u32 %v475, 2147483648
    %v548 = vmul.f32 %v547, 1.442695
    %v549 = vpow.pop %v548
    %v550 = vadd.f32 %v549, 1.0
    %v551 = vrcp.pop %v550
    %v552 = vmul.f32 %v550, %v551
    %v553 = vsub.f32 1.0, %v552
    %v554 = vmul.f32 %v551, %v553
    %v555 = vadd.f32 %v551, %v554
    %vm556 = vweird.f32 %v550
    %vm557 = vweird.f32 %v551
    %vm558 = vmor %vm556, %vm557
    %v559 = vsel %vm558, %v551, %v555
    %v560 = vand.u32 2147483647, %v550
    %vm561 = vcmp.eq.f32.partialorder %v560, 8.507059e+37
    %v562 = vand.u32 %v550, 2147483648
    %v563 = vor.u32 1.1754944e-38, %v562
    %v564 = vsel %vm561, %v563, %v559
    %v565 = vmul.f32 1.0, %v564
    %v566 = vxor.u32 %v501, 2147483648
    %v567 = vmul.f32 %v566, 1.442695
    %v568 = vpow.pop %v567
    %v569 = vadd.f32 %v568, 1.0
    %v570 = vrcp.pop %v569
    %v571 = vmul.f32 %v569, %v570
    %v572 = vsub.f32 1.0, %v571
    %v573 = vmul.f32 %v570, %v572
    %v574 = vadd.f32 %v570, %v573
    %vm575 = vweird.f32 %v569
    %vm576 = vweird.f32 %v570
    %vm577 = vmor %vm575, %vm576
    %v578 = vsel %vm577, %v570, %v574
    %v579 = vand.u32 2147483647, %v569
    %vm580 = vcmp.eq.f32.partialorder %v579, 8.507059e+37
    %v581 = vand.u32 %v569, 2147483648
    %v582 = vor.u32 1.1754944e-38, %v581
    %v583 = vsel %vm580, %v582, %v578
    %v584 = vmul.f32 1.0, %v583
    %v585 = vmul.f32 %v584, 2.0
    %v586 = vsub.f32 %v585, 1.0
    %v587 = vxor.u32 %v527, 2147483648
    %v588 = vmul.f32 %v587, 1.442695
    %v589 = vpow.pop %v588
    %v590 = vadd.f32 %v589, 1.0
    %v591 = vrcp.pop %v590
    %v592 = vmul.f32 %v590, %v591
    %v593 = vsub.f32 1.0, %v592
    %v594 = vmul.f32 %v591, %v593
    %v595 = vadd.f32 %v591, %v594
    %vm596 = vweird.f32 %v590
    %vm597 = vweird.f32 %v591
    %vm598 = vmor %vm596, %vm597
    %v599 = vsel %vm598, %v591, %v595
    %v600 = vand.u32 2147483647, %v590
    %vm601 = vcmp.eq.f32.partialorder %v600, 8.507059e+37
    %v602 = vand.u32 %v590, 2147483648
    %v603 = vor.u32 1.1754944e-38, %v602
    %v604 = vsel %vm601, %v603, %v599
    %v605 = vmul.f32 1.0, %v604
    %v606 = vmul.f32 %v565, %v418
    %v607 = vmul.f32 %v546, %v586
    %v608 = vadd.f32 %v606, %v607
    %v609 = vtanh.pop %v608
    %v610 = vmul.f32 %v605, %v609
    %s611 = scalar_lea.vmem %s7, 128
    %v612 = vld [vmem:[%s611] sm:$0xff]
    %v613 = vld [vmem:[%s611 + $0x8] sm:$0xff]
    %v614 = vld [vmem:[%s611 + $0x10] sm:$0xff]
    %v615 = vld [vmem:[%s611 + $0x18] sm:$0xff]
    %s616 = scalar_lea.vmem %s8, 4
    %v617 = vld [vmem:[%s616] sm:$0x1]
    %v619 = vperm.slane %v617, 0
    %v622 = vsel %vm425, %v610, 0
    %624 = vmatpush.msra.mxu0 0.0
    %625 = vmatpush.msra.mxu0 0.0
    %626 = vmatpush.msra.mxu0 0.0
    %627 = vmatpush.msra.mxu0 0.0
    %628 = vmatpush.msra.mxu0 0.0
    %629 = vmatpush.msra.mxu0 0.0
    %630 = vmatpush.msra.mxu0 0.0
    %631 = vmatpush.msra.mxu0 0.0
    %632 = vmatpush.msra.mxu0 0.0
    %633 = vmatpush.msra.mxu0 0.0
    %634 = vmatpush.msra.mxu0 0.0
    %635 = vmatpush.msra.mxu0 0.0
    %636 = vmatpush.msra.mxu0 %v615
    %637 = vmatpush.msra.mxu0 %v614
    %638 = vmatpush.msra.mxu0 %v613
    %639 = vmatpush.msra.mxu0 %v612
    %640 = vmatmul.f32.gmra.mxu0 %v622
    %v641 = vpop.f32.mrf.mxu0
    %v642 = vadd.f32 %v619, %v641
    %643 = vdwg.mxu0
    %s644 = scalar_lea.vmem %s7, 160
    %v645 = vld [vmem:[%s644] sm:$0xff]
    %v646 = vld [vmem:[%s644 + $0x8] sm:$0xff]
    %v647 = vld [vmem:[%s644 + $0x10] sm:$0xff]
    %v648 = vld [vmem:[%s644 + $0x18] sm:$0xff]
    %s649 = scalar_lea.vmem %s8, 5
    %v650 = vld [vmem:[%s649] sm:$0x1]
    %v652 = vperm.slane %v650, 0
    %654 = vmatpush.msra.mxu0 0.0
    %655 = vmatpush.msra.mxu0 0.0
    %656 = vmatpush.msra.mxu0 0.0
    %657 = vmatpush.msra.mxu0 0.0
    %658 = vmatpush.msra.mxu0 0.0
    %659 = vmatpush.msra.mxu0 0.0
    %660 = vmatpush.msra.mxu0 0.0
    %661 = vmatpush.msra.mxu0 0.0
    %662 = vmatpush.msra.mxu0 0.0
    %663 = vmatpush.msra.mxu0 0.0
    %664 = vmatpush.msra.mxu0 0.0
    %665 = vmatpush.msra.mxu0 0.0
    %666 = vmatpush.msra.mxu0 %v648
    %667 = vmatpush.msra.mxu0 %v647
    %668 = vmatpush.msra.mxu0 %v646
    %669 = vmatpush.msra.mxu0 %v645
    %670 = vmatmul.f32.gmra.mxu0 %v622
    %v671 = vpop.f32.mrf.mxu0
    %v672 = vadd.f32 %v652, %v671
    %673 = vdwg.mxu0
    %s674 = scalar_lea.vmem %s7, 192
    %v675 = vld [vmem:[%s674] sm:$0xff]
    %v676 = vld [vmem:[%s674 + $0x8] sm:$0xff]
    %v677 = vld [vmem:[%s674 + $0x10] sm:$0xff]
    %v678 = vld [vmem:[%s674 + $0x18] sm:$0xff]
    %s679 = scalar_lea.vmem %s8, 6
    %v680 = vld [vmem:[%s679] sm:$0x1]
    %v682 = vperm.slane %v680, 0
    %684 = vmatpush.msra.mxu0 0.0
    %685 = vmatpush.msra.mxu0 0.0
    %686 = vmatpush.msra.mxu0 0.0
    %687 = vmatpush.msra.mxu0 0.0
    %688 = vmatpush.msra.mxu0 0.0
    %689 = vmatpush.msra.mxu0 0.0
    %690 = vmatpush.msra.mxu0 0.0
    %691 = vmatpush.msra.mxu0 0.0
    %692 = vmatpush.msra.mxu0 0.0
    %693 = vmatpush.msra.mxu0 0.0
    %694 = vmatpush.msra.mxu0 0.0
    %695 = vmatpush.msra.mxu0 0.0
    %696 = vmatpush.msra.mxu0 %v678
    %697 = vmatpush.msra.mxu0 %v677
    %698 = vmatpush.msra.mxu0 %v676
    %699 = vmatpush.msra.mxu0 %v675
    %700 = vmatmul.f32.gmra.mxu0 %v622
    %v701 = vpop.f32.mrf.mxu0
    %v702 = vadd.f32 %v682, %v701
    %703 = vdwg.mxu0
    %s704 = scalar_lea.vmem %s7, 224
    %v705 = vld [vmem:[%s704] sm:$0xff]
    %v706 = vld [vmem:[%s704 + $0x8] sm:$0xff]
    %v707 = vld [vmem:[%s704 + $0x10] sm:$0xff]
    %v708 = vld [vmem:[%s704 + $0x18] sm:$0xff]
    %s709 = scalar_lea.vmem %s8, 7
    %v710 = vld [vmem:[%s709] sm:$0x1]
    %v712 = vperm.slane %v710, 0
    %714 = vmatpush.msra.mxu0 0.0
    %715 = vmatpush.msra.mxu0 0.0
    %716 = vmatpush.msra.mxu0 0.0
    %717 = vmatpush.msra.mxu0 0.0
    %718 = vmatpush.msra.mxu0 0.0
    %719 = vmatpush.msra.mxu0 0.0
    %720 = vmatpush.msra.mxu0 0.0
    %721 = vmatpush.msra.mxu0 0.0
    %722 = vmatpush.msra.mxu0 0.0
    %723 = vmatpush.msra.mxu0 0.0
    %724 = vmatpush.msra.mxu0 0.0
    %725 = vmatpush.msra.mxu0 0.0
    %726 = vmatpush.msra.mxu0 %v708
    %727 = vmatpush.msra.mxu0 %v707
    %728 = vmatpush.msra.mxu0 %v706
    %729 = vmatpush.msra.mxu0 %v705
    %730 = vmatmul.f32.gmra.mxu0 %v622
    %v731 = vpop.f32.mrf.mxu0
    %v732 = vadd.f32 %v712, %v731
    %733 = vdwg.mxu0
    %s734 = scalar_lea.vmem [#allocation3], 128
    %v735 = vld [vmem:[%s734] sm:$0xff]
    %v736 = vld [vmem:[%s734 + $0x8] sm:$0xff]
    %v737 = vld [vmem:[%s734 + $0x10] sm:$0xff]
    %v738 = vld [vmem:[%s734 + $0x18] sm:$0xff]
    %v740 = vsel %vm425, %v417, 0
    %742 = vmatpush.msra.mxu0 0.0
    %743 = vmatpush.msra.mxu0 0.0
    %744 = vmatpush.msra.mxu0 0.0
    %745 = vmatpush.msra.mxu0 0.0
    %746 = vmatpush.msra.mxu0 0.0
    %747 = vmatpush.msra.mxu0 0.0
    %748 = vmatpush.msra.mxu0 0.0
    %749 = vmatpush.msra.mxu0 0.0
    %750 = vmatpush.msra.mxu0 0.0
    %751 = vmatpush.msra.mxu0 0.0
    %752 = vmatpush.msra.mxu0 0.0
    %753 = vmatpush.msra.mxu0 0.0
    %754 = vmatpush.msra.mxu0 %v738
    %755 = vmatpush.msra.mxu0 %v737
    %756 = vmatpush.msra.mxu0 %v736
    %757 = vmatpush.msra.mxu0 %v735
    %758 = vmatmul.f32.gmra.mxu0 %v740
    %v759 = vpop.f32.mrf.mxu0
    %v760 = vadd.f32 0.0, %v759
    %761 = vdwg.mxu0
    %v762 = vadd.f32 %v642, %v760
    %s763 = scalar_lea.vmem [#allocation3], 160
    %v764 = vld [vmem:[%s763] sm:$0xff]
    %v765 = vld [vmem:[%s763 + $0x8] sm:$0xff]
    %v766 = vld [vmem:[%s763 + $0x10] sm:$0xff]
    %v767 = vld [vmem:[%s763 + $0x18] sm:$0xff]
    %768 = vmatpush.msra.mxu0 0.0
    %769 = vmatpush.msra.mxu0 0.0
    %770 = vmatpush.msra.mxu0 0.0
    %771 = vmatpush.msra.mxu0 0.0
    %772 = vmatpush.msra.mxu0 0.0
    %773 = vmatpush.msra.mxu0 0.0
    %774 = vmatpush.msra.mxu0 0.0
    %775 = vmatpush.msra.mxu0 0.0
    %776 = vmatpush.msra.mxu0 0.0
    %777 = vmatpush.msra.mxu0 0.0
    %778 = vmatpush.msra.mxu0 0.0
    %779 = vmatpush.msra.mxu0 0.0
    %780 = vmatpush.msra.mxu0 %v767
    %781 = vmatpush.msra.mxu0 %v766
    %782 = vmatpush.msra.mxu0 %v765
    %783 = vmatpush.msra.mxu0 %v764
    %784 = vmatmul.f32.gmra.mxu0 %v740
    %v785 = vpop.f32.mrf.mxu0
    %v786 = vadd.f32 0.0, %v785
    %787 = vdwg.mxu0
    %v788 = vadd.f32 %v672, %v786
    %s789 = scalar_lea.vmem [#allocation3], 192
    %v790 = vld [vmem:[%s789] sm:$0xff]
    %v791 = vld [vmem:[%s789 + $0x8] sm:$0xff]
    %v792 = vld [vmem:[%s789 + $0x10] sm:$0xff]
    %v793 = vld [vmem:[%s789 + $0x18] sm:$0xff]
    %794 = vmatpush.msra.mxu0 0.0
    %795 = vmatpush.msra.mxu0 0.0
    %796 = vmatpush.msra.mxu0 0.0
    %797 = vmatpush.msra.mxu0 0.0
    %798 = vmatpush.msra.mxu0 0.0
    %799 = vmatpush.msra.mxu0 0.0
    %800 = vmatpush.msra.mxu0 0.0
    %801 = vmatpush.msra.mxu0 0.0
    %802 = vmatpush.msra.mxu0 0.0
    %803 = vmatpush.msra.mxu0 0.0
    %804 = vmatpush.msra.mxu0 0.0
    %805 = vmatpush.msra.mxu0 0.0
    %806 = vmatpush.msra.mxu0 %v793
    %807 = vmatpush.msra.mxu0 %v792
    %808 = vmatpush.msra.mxu0 %v791
    %809 = vmatpush.msra.mxu0 %v790
    %810 = vmatmul.f32.gmra.mxu0 %v740
    %v811 = vpop.f32.mrf.mxu0
    %v812 = vadd.f32 0.0, %v811
    %813 = vdwg.mxu0
    %v814 = vadd.f32 %v702, %v812
    %s815 = scalar_lea.vmem [#allocation3], 224
    %v816 = vld [vmem:[%s815] sm:$0xff]
    %v817 = vld [vmem:[%s815 + $0x8] sm:$0xff]
    %v818 = vld [vmem:[%s815 + $0x10] sm:$0xff]
    %v819 = vld [vmem:[%s815 + $0x18] sm:$0xff]
    %820 = vmatpush.msra.mxu0 0.0
    %821 = vmatpush.msra.mxu0 0.0
    %822 = vmatpush.msra.mxu0 0.0
    %823 = vmatpush.msra.mxu0 0.0
    %824 = vmatpush.msra.mxu0 0.0
    %825 = vmatpush.msra.mxu0 0.0
    %826 = vmatpush.msra.mxu0 0.0
    %827 = vmatpush.msra.mxu0 0.0
    %828 = vmatpush.msra.mxu0 0.0
    %829 = vmatpush.msra.mxu0 0.0
    %830 = vmatpush.msra.mxu0 0.0
    %831 = vmatpush.msra.mxu0 0.0
    %832 = vmatpush.msra.mxu0 %v819
    %833 = vmatpush.msra.mxu0 %v818
    %834 = vmatpush.msra.mxu0 %v817
    %835 = vmatpush.msra.mxu0 %v816
    %836 = vmatmul.f32.gmra.mxu0 %v740
    %v837 = vpop.f32.mrf.mxu0
    %v838 = vadd.f32 0.0, %v837
    %839 = vdwg.mxu0
    %v840 = vadd.f32 %v732, %v838
    %v841 = vxor.u32 %v762, 2147483648
    %v842 = vmul.f32 %v841, 1.442695
    %v843 = vpow.pop %v842
    %v844 = vadd.f32 %v843, 1.0
    %v845 = vrcp.pop %v844
    %v846 = vmul.f32 %v844, %v845
    %v847 = vsub.f32 1.0, %v846
    %v848 = vmul.f32 %v845, %v847
    %v849 = vadd.f32 %v845, %v848
    %vm850 = vweird.f32 %v844
    %vm851 = vweird.f32 %v845
    %vm852 = vmor %vm850, %vm851
    %v853 = vsel %vm852, %v845, %v849
    %v854 = vand.u32 2147483647, %v844
    %vm855 = vcmp.eq.f32.partialorder %v854, 8.507059e+37
    %v856 = vand.u32 %v844, 2147483648
    %v857 = vor.u32 1.1754944e-38, %v856
    %v858 = vsel %vm855, %v857, %v853
    %v859 = vmul.f32 1.0, %v858
    %v860 = vxor.u32 %v788, 2147483648
    %v861 = vmul.f32 %v860, 1.442695
    %v862 = vpow.pop %v861
    %v863 = vadd.f32 %v862, 1.0
    %v864 = vrcp.pop %v863
    %v865 = vmul.f32 %v863, %v864
    %v866 = vsub.f32 1.0, %v865
    %v867 = vmul.f32 %v864, %v866
    %v868 = vadd.f32 %v864, %v867
    %vm869 = vweird.f32 %v863
    %vm870 = vweird.f32 %v864
    %vm871 = vmor %vm869, %vm870
    %v872 = vsel %vm871, %v864, %v868
    %v873 = vand.u32 2147483647, %v863
    %vm874 = vcmp.eq.f32.partialorder %v873, 8.507059e+37
    %v875 = vand.u32 %v863, 2147483648
    %v876 = vor.u32 1.1754944e-38, %v875
    %v877 = vsel %vm874, %v876, %v872
    %v878 = vmul.f32 1.0, %v877
    %v879 = vxor.u32 %v814, 2147483648
    %v880 = vmul.f32 %v879, 1.442695
    %v881 = vpow.pop %v880
    %v882 = vadd.f32 %v881, 1.0
    %v883 = vrcp.pop %v882
    %v884 = vmul.f32 %v882, %v883
    %v885 = vsub.f32 1.0, %v884
    %v886 = vmul.f32 %v883, %v885
    %v887 = vadd.f32 %v883, %v886
    %vm888 = vweird.f32 %v882
    %vm889 = vweird.f32 %v883
    %vm890 = vmor %vm888, %vm889
    %v891 = vsel %vm890, %v883, %v887
    %v892 = vand.u32 2147483647, %v882
    %vm893 = vcmp.eq.f32.partialorder %v892, 8.507059e+37
    %v894 = vand.u32 %v882, 2147483648
    %v895 = vor.u32 1.1754944e-38, %v894
    %v896 = vsel %vm893, %v895, %v891
    %v897 = vmul.f32 1.0, %v896
    %v898 = vmul.f32 %v897, 2.0
    %v899 = vsub.f32 %v898, 1.0
    %v900 = vxor.u32 %v840, 2147483648
    %v901 = vmul.f32 %v900, 1.442695
    %v902 = vpow.pop %v901
    %v903 = vadd.f32 %v902, 1.0
    %v904 = vrcp.pop %v903
    %v905 = vmul.f32 %v903, %v904
    %v906 = vsub.f32 1.0, %v905
    %v907 = vmul.f32 %v904, %v906
    %v908 = vadd.f32 %v904, %v907
    %vm909 = vweird.f32 %v903
    %vm910 = vweird.f32 %v904
    %vm911 = vmor %vm909, %vm910
    %v912 = vsel %vm911, %v904, %v908
    %v913 = vand.u32 2147483647, %v903
    %vm914 = vcmp.eq.f32.partialorder %v913, 8.507059e+37
    %v915 = vand.u32 %v903, 2147483648
    %v916 = vor.u32 1.1754944e-38, %v915
    %v917 = vsel %vm914, %v916, %v912
    %v918 = vmul.f32 1.0, %v917
    %v919 = vmul.f32 %v878, %v420
    %v920 = vmul.f32 %v859, %v899
    %v921 = vadd.f32 %v919, %v920
    %v922 = vtanh.pop %v921
    %v923 = vmul.f32 %v918, %v922
    %924 = vmatpush.msra.mxu0 0.0
    %925 = vmatpush.msra.mxu0 0.0
    %926 = vmatpush.msra.mxu0 0.0
    %927 = vmatpush.msra.mxu0 0.0
    %928 = vmatpush.msra.mxu0 0.0
    %929 = vmatpush.msra.mxu0 0.0
    %930 = vmatpush.msra.mxu0 0.0
    %931 = vmatpush.msra.mxu0 0.0
    %932 = vmatpush.msra.mxu0 0.0
    %933 = vmatpush.msra.mxu0 0.0
    %934 = vmatpush.msra.mxu0 0.0
    %935 = vmatpush.msra.mxu0 0.0
    %936 = vmatpush.msra.mxu0 %v424
    %937 = vmatpush.msra.mxu0 %v423
    %938 = vmatpush.msra.mxu0 %v422
    %939 = vmatpush.msra.mxu0 %v421
    %940 = vmatmul.f32.gmra.mxu0 %v622
    %v941 = vpop.f32.mrf.mxu0
    %v942 = vadd.f32 0.0, %v941
    %943 = vdwg.mxu0
    %v944 = vadd.f32 %v222, %v942
    %945 = vmatpush.msra.mxu0 0.0
    %946 = vmatpush.msra.mxu0 0.0
    %947 = vmatpush.msra.mxu0 0.0
    %948 = vmatpush.msra.mxu0 0.0
    %949 = vmatpush.msra.mxu0 0.0
    %950 = vmatpush.msra.mxu0 0.0
    %951 = vmatpush.msra.mxu0 0.0
    %952 = vmatpush.msra.mxu0 0.0
    %953 = vmatpush.msra.mxu0 0.0
    %954 = vmatpush.msra.mxu0 0.0
    %955 = vmatpush.msra.mxu0 0.0
    %956 = vmatpush.msra.mxu0 0.0
    %957 = vmatpush.msra.mxu0 %v454
    %958 = vmatpush.msra.mxu0 %v453
    %959 = vmatpush.msra.mxu0 %v452
    %960 = vmatpush.msra.mxu0 %v451
    %961 = vmatmul.f32.gmra.mxu0 %v622
    %v962 = vpop.f32.mrf.mxu0
    %v963 = vadd.f32 0.0, %v962
    %964 = vdwg.mxu0
    %v965 = vadd.f32 %v277, %v963
    %966 = vmatpush.msra.mxu0 0.0
    %967 = vmatpush.msra.mxu0 0.0
    %968 = vmatpush.msra.mxu0 0.0
    %969 = vmatpush.msra.mxu0 0.0
    %970 = vmatpush.msra.mxu0 0.0
    %971 = vmatpush.msra.mxu0 0.0
    %972 = vmatpush.msra.mxu0 0.0
    %973 = vmatpush.msra.mxu0 0.0
    %974 = vmatpush.msra.mxu0 0.0
    %975 = vmatpush.msra.mxu0 0.0
    %976 = vmatpush.msra.mxu0 0.0
    %977 = vmatpush.msra.mxu0 0.0
    %978 = vmatpush.msra.mxu0 %v480
    %979 = vmatpush.msra.mxu0 %v479
    %980 = vmatpush.msra.mxu0 %v478
    %981 = vmatpush.msra.mxu0 %v477
    %982 = vmatmul.f32.gmra.mxu0 %v622
    %v983 = vpop.f32.mrf.mxu0
    %v984 = vadd.f32 0.0, %v983
    %985 = vdwg.mxu0
    %v986 = vadd.f32 %v332, %v984
    %987 = vmatpush.msra.mxu0 0.0
    %988 = vmatpush.msra.mxu0 0.0
    %989 = vmatpush.msra.mxu0 0.0
    %990 = vmatpush.msra.mxu0 0.0
    %991 = vmatpush.msra.mxu0 0.0
    %992 = vmatpush.msra.mxu0 0.0
    %993 = vmatpush.msra.mxu0 0.0
    %994 = vmatpush.msra.mxu0 0.0
    %995 = vmatpush.msra.mxu0 0.0
    %996 = vmatpush.msra.mxu0 0.0
    %997 = vmatpush.msra.mxu0 0.0
    %998 = vmatpush.msra.mxu0 0.0
    %999 = vmatpush.msra.mxu0 %v506
    %1000 = vmatpush.msra.mxu0 %v505
    %1001 = vmatpush.msra.mxu0 %v504
    %1002 = vmatpush.msra.mxu0 %v503
    %1003 = vmatmul.f32.gmra.mxu0 %v622
    %v1004 = vpop.f32.mrf.mxu0
    %v1005 = vadd.f32 0.0, %v1004
    %1006 = vdwg.mxu0
    %v1007 = vadd.f32 %v387, %v1005
    %v1008 = vxor.u32 %v944, 2147483648
    %v1009 = vmul.f32 %v1008, 1.442695
    %v1010 = vpow.pop %v1009
    %v1011 = vadd.f32 %v1010, 1.0
    %v1012 = vrcp.pop %v1011
    %v1013 = vmul.f32 %v1011, %v1012
    %v1014 = vsub.f32 1.0, %v1013
    %v1015 = vmul.f32 %v1012, %v1014
    %v1016 = vadd.f32 %v1012, %v1015
    %vm1017 = vweird.f32 %v1011
    %vm1018 = vweird.f32 %v1012
    %vm1019 = vmor %vm1017, %vm1018
    %v1020 = vsel %vm1019, %v1012, %v1016
    %v1021 = vand.u32 2147483647, %v1011
    %vm1022 = vcmp.eq.f32.partialorder %v1021, 8.507059e+37
    %v1023 = vand.u32 %v1011, 2147483648
    %v1024 = vor.u32 1.1754944e-38, %v1023
    %v1025 = vsel %vm1022, %v1024, %v1020
    %v1026 = vmul.f32 1.0, %v1025
    %v1027 = vxor.u32 %v965, 2147483648
    %v1028 = vmul.f32 %v1027, 1.442695
    %v1029 = vpow.pop %v1028
    %v1030 = vadd.f32 %v1029, 1.0
    %v1031 = vrcp.pop %v1030
    %v1032 = vmul.f32 %v1030, %v1031
    %v1033 = vsub.f32 1.0, %v1032
    %v1034 = vmul.f32 %v1031, %v1033
    %v1035 = vadd.f32 %v1031, %v1034
    %vm1036 = vweird.f32 %v1030
    %vm1037 = vweird.f32 %v1031
    %vm1038 = vmor %vm1036, %vm1037
    %v1039 = vsel %vm1038, %v1031, %v1035
    %v1040 = vand.u32 2147483647, %v1030
    %vm1041 = vcmp.eq.f32.partialorder %v1040, 8.507059e+37
    %v1042 = vand.u32 %v1030, 2147483648
    %v1043 = vor.u32 1.1754944e-38, %v1042
    %v1044 = vsel %vm1041, %v1043, %v1039
    %v1045 = vmul.f32 1.0, %v1044
    %v1046 = vxor.u32 %v986, 2147483648
    %v1047 = vmul.f32 %v1046, 1.442695
    %v1048 = vpow.pop %v1047
    %v1049 = vadd.f32 %v1048, 1.0
    %v1050 = vrcp.pop %v1049
    %v1051 = vmul.f32 %v1049, %v1050
    %v1052 = vsub.f32 1.0, %v1051
    %v1053 = vmul.f32 %v1050, %v1052
    %v1054 = vadd.f32 %v1050, %v1053
    %vm1055 = vweird.f32 %v1049
    %vm1056 = vweird.f32 %v1050
    %vm1057 = vmor %vm1055, %vm1056
    %v1058 = vsel %vm1057, %v1050, %v1054
    %v1059 = vand.u32 2147483647, %v1049
    %vm1060 = vcmp.eq.f32.partialorder %v1059, 8.507059e+37
    %v1061 = vand.u32 %v1049, 2147483648
    %v1062 = vor.u32 1.1754944e-38, %v1061
    %v1063 = vsel %vm1060, %v1062, %v1058
    %v1064 = vmul.f32 1.0, %v1063
    %v1065 = vmul.f32 %v1064, 2.0
    %v1066 = vsub.f32 %v1065, 1.0
    %v1067 = vxor.u32 %v1007, 2147483648
    %v1068 = vmul.f32 %v1067, 1.442695
    %v1069 = vpow.pop %v1068
    %v1070 = vadd.f32 %v1069, 1.0
    %v1071 = vrcp.pop %v1070
    %v1072 = vmul.f32 %v1070, %v1071
    %v1073 = vsub.f32 1.0, %v1072
    %v1074 = vmul.f32 %v1071, %v1073
    %v1075 = vadd.f32 %v1071, %v1074
    %vm1076 = vweird.f32 %v1070
    %vm1077 = vweird.f32 %v1071
    %vm1078 = vmor %vm1076, %vm1077
    %v1079 = vsel %vm1078, %v1071, %v1075
    %v1080 = vand.u32 2147483647, %v1070
    %vm1081 = vcmp.eq.f32.partialorder %v1080, 8.507059e+37
    %v1082 = vand.u32 %v1070, 2147483648
    %v1083 = vor.u32 1.1754944e-38, %v1082
    %v1084 = vsel %vm1081, %v1083, %v1079
    %v1085 = vmul.f32 1.0, %v1084
    %v1086 = vmul.f32 %v1045, %v608
    %v1087 = vmul.f32 %v1026, %v1066
    %v1088 = vadd.f32 %v1086, %v1087
    %v1089 = vtanh.pop %v1088
    %v1090 = vmul.f32 %v1085, %v1089
    %v1092 = vsel %vm425, %v1090, 0
    %1094 = vmatpush.msra.mxu0 0.0
    %1095 = vmatpush.msra.mxu0 0.0
    %1096 = vmatpush.msra.mxu0 0.0
    %1097 = vmatpush.msra.mxu0 0.0
    %1098 = vmatpush.msra.mxu0 0.0
    %1099 = vmatpush.msra.mxu0 0.0
    %1100 = vmatpush.msra.mxu0 0.0
    %1101 = vmatpush.msra.mxu0 0.0
    %1102 = vmatpush.msra.mxu0 0.0
    %1103 = vmatpush.msra.mxu0 0.0
    %1104 = vmatpush.msra.mxu0 0.0
    %1105 = vmatpush.msra.mxu0 0.0
    %1106 = vmatpush.msra.mxu0 %v615
    %1107 = vmatpush.msra.mxu0 %v614
    %1108 = vmatpush.msra.mxu0 %v613
    %1109 = vmatpush.msra.mxu0 %v612
    %1110 = vmatmul.f32.gmra.mxu0 %v1092
    %v1111 = vpop.f32.mrf.mxu0
    %v1112 = vadd.f32 %v619, %v1111
    %1113 = vdwg.mxu0
    %1114 = vmatpush.msra.mxu0 0.0
    %1115 = vmatpush.msra.mxu0 0.0
    %1116 = vmatpush.msra.mxu0 0.0
    %1117 = vmatpush.msra.mxu0 0.0
    %1118 = vmatpush.msra.mxu0 0.0
    %1119 = vmatpush.msra.mxu0 0.0
    %1120 = vmatpush.msra.mxu0 0.0
    %1121 = vmatpush.msra.mxu0 0.0
    %1122 = vmatpush.msra.mxu0 0.0
    %1123 = vmatpush.msra.mxu0 0.0
    %1124 = vmatpush.msra.mxu0 0.0
    %1125 = vmatpush.msra.mxu0 0.0
    %1126 = vmatpush.msra.mxu0 %v648
    %1127 = vmatpush.msra.mxu0 %v647
    %1128 = vmatpush.msra.mxu0 %v646
    %1129 = vmatpush.msra.mxu0 %v645
    %1130 = vmatmul.f32.gmra.mxu0 %v1092
    %v1131 = vpop.f32.mrf.mxu0
    %v1132 = vadd.f32 %v652, %v1131
    %1133 = vdwg.mxu0
    %1134 = vmatpush.msra.mxu0 0.0
    %1135 = vmatpush.msra.mxu0 0.0
    %1136 = vmatpush.msra.mxu0 0.0
    %1137 = vmatpush.msra.mxu0 0.0
    %1138 = vmatpush.msra.mxu0 0.0
    %1139 = vmatpush.msra.mxu0 0.0
    %1140 = vmatpush.msra.mxu0 0.0
    %1141 = vmatpush.msra.mxu0 0.0
    %1142 = vmatpush.msra.mxu0 0.0
    %1143 = vmatpush.msra.mxu0 0.0
    %1144 = vmatpush.msra.mxu0 0.0
    %1145 = vmatpush.msra.mxu0 0.0
    %1146 = vmatpush.msra.mxu0 %v678
    %1147 = vmatpush.msra.mxu0 %v677
    %1148 = vmatpush.msra.mxu0 %v676
    %1149 = vmatpush.msra.mxu0 %v675
    %1150 = vmatmul.f32.gmra.mxu0 %v1092
    %v1151 = vpop.f32.mrf.mxu0
    %v1152 = vadd.f32 %v682, %v1151
    %1153 = vdwg.mxu0
    %1154 = vmatpush.msra.mxu0 0.0
    %1155 = vmatpush.msra.mxu0 0.0
    %1156 = vmatpush.msra.mxu0 0.0
    %1157 = vmatpush.msra.mxu0 0.0
    %1158 = vmatpush.msra.mxu0 0.0
    %1159 = vmatpush.msra.mxu0 0.0
    %1160 = vmatpush.msra.mxu0 0.0
    %1161 = vmatpush.msra.mxu0 0.0
    %1162 = vmatpush.msra.mxu0 0.0
    %1163 = vmatpush.msra.mxu0 0.0
    %1164 = vmatpush.msra.mxu0 0.0
    %1165 = vmatpush.msra.mxu0 0.0
    %1166 = vmatpush.msra.mxu0 %v708
    %1167 = vmatpush.msra.mxu0 %v707
    %1168 = vmatpush.msra.mxu0 %v706
    %1169 = vmatpush.msra.mxu0 %v705
    %1170 = vmatmul.f32.gmra.mxu0 %v1092
    %v1171 = vpop.f32.mrf.mxu0
    %v1172 = vadd.f32 %v712, %v1171
    %1173 = vdwg.mxu0
    %v1175 = vsel %vm425, %v923, 0
    %1177 = vmatpush.msra.mxu0 0.0
    %1178 = vmatpush.msra.mxu0 0.0
    %1179 = vmatpush.msra.mxu0 0.0
    %1180 = vmatpush.msra.mxu0 0.0
    %1181 = vmatpush.msra.mxu0 0.0
    %1182 = vmatpush.msra.mxu0 0.0
    %1183 = vmatpush.msra.mxu0 0.0
    %1184 = vmatpush.msra.mxu0 0.0
    %1185 = vmatpush.msra.mxu0 0.0
    %1186 = vmatpush.msra.mxu0 0.0
    %1187 = vmatpush.msra.mxu0 0.0
    %1188 = vmatpush.msra.mxu0 0.0
    %1189 = vmatpush.msra.mxu0 %v738
    %1190 = vmatpush.msra.mxu0 %v737
    %1191 = vmatpush.msra.mxu0 %v736
    %1192 = vmatpush.msra.mxu0 %v735
    %1193 = vmatmul.f32.gmra.mxu0 %v1175
    %v1194 = vpop.f32.mrf.mxu0
    %v1195 = vadd.f32 0.0, %v1194
    %1196 = vdwg.mxu0
    %v1197 = vadd.f32 %v1112, %v1195
    %1198 = vmatpush.msra.mxu0 0.0
    %1199 = vmatpush.msra.mxu0 0.0
    %1200 = vmatpush.msra.mxu0 0.0
    %1201 = vmatpush.msra.mxu0 0.0
    %1202 = vmatpush.msra.mxu0 0.0
    %1203 = vmatpush.msra.mxu0 0.0
    %1204 = vmatpush.msra.mxu0 0.0
    %1205 = vmatpush.msra.mxu0 0.0
    %1206 = vmatpush.msra.mxu0 0.0
    %1207 = vmatpush.msra.mxu0 0.0
    %1208 = vmatpush.msra.mxu0 0.0
    %1209 = vmatpush.msra.mxu0 0.0
    %1210 = vmatpush.msra.mxu0 %v767
    %1211 = vmatpush.msra.mxu0 %v766
    %1212 = vmatpush.msra.mxu0 %v765
    %1213 = vmatpush.msra.mxu0 %v764
    %1214 = vmatmul.f32.gmra.mxu0 %v1175
    %v1215 = vpop.f32.mrf.mxu0
    %v1216 = vadd.f32 0.0, %v1215
    %1217 = vdwg.mxu0
    %v1218 = vadd.f32 %v1132, %v1216
    %1219 = vmatpush.msra.mxu0 0.0
    %1220 = vmatpush.msra.mxu0 0.0
    %1221 = vmatpush.msra.mxu0 0.0
    %1222 = vmatpush.msra.mxu0 0.0
    %1223 = vmatpush.msra.mxu0 0.0
    %1224 = vmatpush.msra.mxu0 0.0
    %1225 = vmatpush.msra.mxu0 0.0
    %1226 = vmatpush.msra.mxu0 0.0
    %1227 = vmatpush.msra.mxu0 0.0
    %1228 = vmatpush.msra.mxu0 0.0
    %1229 = vmatpush.msra.mxu0 0.0
    %1230 = vmatpush.msra.mxu0 0.0
    %1231 = vmatpush.msra.mxu0 %v793
    %1232 = vmatpush.msra.mxu0 %v792
    %1233 = vmatpush.msra.mxu0 %v791
    %1234 = vmatpush.msra.mxu0 %v790
    %1235 = vmatmul.f32.gmra.mxu0 %v1175
    %v1236 = vpop.f32.mrf.mxu0
    %v1237 = vadd.f32 0.0, %v1236
    %1238 = vdwg.mxu0
    %v1239 = vadd.f32 %v1152, %v1237
    %1240 = vmatpush.msra.mxu0 0.0
    %1241 = vmatpush.msra.mxu0 0.0
    %1242 = vmatpush.msra.mxu0 0.0
    %1243 = vmatpush.msra.mxu0 0.0
    %1244 = vmatpush.msra.mxu0 0.0
    %1245 = vmatpush.msra.mxu0 0.0
    %1246 = vmatpush.msra.mxu0 0.0
    %1247 = vmatpush.msra.mxu0 0.0
    %1248 = vmatpush.msra.mxu0 0.0
    %1249 = vmatpush.msra.mxu0 0.0
    %1250 = vmatpush.msra.mxu0 0.0
    %1251 = vmatpush.msra.mxu0 0.0
    %1252 = vmatpush.msra.mxu0 %v819
    %1253 = vmatpush.msra.mxu0 %v818
    %1254 = vmatpush.msra.mxu0 %v817
    %1255 = vmatpush.msra.mxu0 %v816
    %1256 = vmatmul.f32.gmra.mxu0 %v1175
    %v1257 = vpop.f32.mrf.mxu0
    %v1258 = vadd.f32 0.0, %v1257
    %1259 = vdwg.mxu0
    %v1260 = vadd.f32 %v1172, %v1258
    %v1261 = vxor.u32 %v1197, 2147483648
    %v1262 = vmul.f32 %v1261, 1.442695
    %v1263 = vpow.pop %v1262
    %v1264 = vadd.f32 %v1263, 1.0
    %v1265 = vrcp.pop %v1264
    %v1266 = vmul.f32 %v1264, %v1265
    %v1267 = vsub.f32 1.0, %v1266
    %v1268 = vmul.f32 %v1265, %v1267
    %v1269 = vadd.f32 %v1265, %v1268
    %vm1270 = vweird.f32 %v1264
    %vm1271 = vweird.f32 %v1265
    %vm1272 = vmor %vm1270, %vm1271
    %v1273 = vsel %vm1272, %v1265, %v1269
    %v1274 = vand.u32 2147483647, %v1264
    %vm1275 = vcmp.eq.f32.partialorder %v1274, 8.507059e+37
    %v1276 = vand.u32 %v1264, 2147483648
    %v1277 = vor.u32 1.1754944e-38, %v1276
    %v1278 = vsel %vm1275, %v1277, %v1273
    %v1279 = vmul.f32 1.0, %v1278
    %v1280 = vxor.u32 %v1218, 2147483648
    %v1281 = vmul.f32 %v1280, 1.442695
    %v1282 = vpow.pop %v1281
    %v1283 = vadd.f32 %v1282, 1.0
    %v1284 = vrcp.pop %v1283
    %v1285 = vmul.f32 %v1283, %v1284
    %v1286 = vsub.f32 1.0, %v1285
    %v1287 = vmul.f32 %v1284, %v1286
    %v1288 = vadd.f32 %v1284, %v1287
    %vm1289 = vweird.f32 %v1283
    %vm1290 = vweird.f32 %v1284
    %vm1291 = vmor %vm1289, %vm1290
    %v1292 = vsel %vm1291, %v1284, %v1288
    %v1293 = vand.u32 2147483647, %v1283
    %vm1294 = vcmp.eq.f32.partialorder %v1293, 8.507059e+37
    %v1295 = vand.u32 %v1283, 2147483648
    %v1296 = vor.u32 1.1754944e-38, %v1295
    %v1297 = vsel %vm1294, %v1296, %v1292
    %v1298 = vmul.f32 1.0, %v1297
    %v1299 = vxor.u32 %v1239, 2147483648
    %v1300 = vmul.f32 %v1299, 1.442695
    %v1301 = vpow.pop %v1300
    %v1302 = vadd.f32 %v1301, 1.0
    %v1303 = vrcp.pop %v1302
    %v1304 = vmul.f32 %v1302, %v1303
    %v1305 = vsub.f32 1.0, %v1304
    %v1306 = vmul.f32 %v1303, %v1305
    %v1307 = vadd.f32 %v1303, %v1306
    %vm1308 = vweird.f32 %v1302
    %vm1309 = vweird.f32 %v1303
    %vm1310 = vmor %vm1308, %vm1309
    %v1311 = vsel %vm1310, %v1303, %v1307
    %v1312 = vand.u32 2147483647, %v1302
    %vm1313 = vcmp.eq.f32.partialorder %v1312, 8.507059e+37
    %v1314 = vand.u32 %v1302, 2147483648
    %v1315 = vor.u32 1.1754944e-38, %v1314
    %v1316 = vsel %vm1313, %v1315, %v1311
    %v1317 = vmul.f32 1.0, %v1316
    %v1318 = vmul.f32 %v1317, 2.0
    %v1319 = vsub.f32 %v1318, 1.0
    %v1320 = vxor.u32 %v1260, 2147483648
    %v1321 = vmul.f32 %v1320, 1.442695
    %v1322 = vpow.pop %v1321
    %v1323 = vadd.f32 %v1322, 1.0
    %v1324 = vrcp.pop %v1323
    %v1325 = vmul.f32 %v1323, %v1324
    %v1326 = vsub.f32 1.0, %v1325
    %v1327 = vmul.f32 %v1324, %v1326
    %v1328 = vadd.f32 %v1324, %v1327
    %vm1329 = vweird.f32 %v1323
    %vm1330 = vweird.f32 %v1324
    %vm1331 = vmor %vm1329, %vm1330
    %v1332 = vsel %vm1331, %v1324, %v1328
    %v1333 = vand.u32 2147483647, %v1323
    %vm1334 = vcmp.eq.f32.partialorder %v1333, 8.507059e+37
    %v1335 = vand.u32 %v1323, 2147483648
    %v1336 = vor.u32 1.1754944e-38, %v1335
    %v1337 = vsel %vm1334, %v1336, %v1332
    %v1338 = vmul.f32 1.0, %v1337
    %v1339 = vmul.f32 %v1298, %v921
    %v1340 = vmul.f32 %v1279, %v1319
    %v1341 = vadd.f32 %v1339, %v1340
    %v1342 = vtanh.pop %v1341
    %v1343 = vmul.f32 %v1338, %v1342
    %1344 = vmatpush.msra.mxu0 0.0
    %1345 = vmatpush.msra.mxu0 0.0
    %1346 = vmatpush.msra.mxu0 0.0
    %1347 = vmatpush.msra.mxu0 0.0
    %1348 = vmatpush.msra.mxu0 0.0
    %1349 = vmatpush.msra.mxu0 0.0
    %1350 = vmatpush.msra.mxu0 0.0
    %1351 = vmatpush.msra.mxu0 0.0
    %1352 = vmatpush.msra.mxu0 0.0
    %1353 = vmatpush.msra.mxu0 0.0
    %1354 = vmatpush.msra.mxu0 0.0
    %1355 = vmatpush.msra.mxu0 0.0
    %1356 = vmatpush.msra.mxu0 %v424
    %1357 = vmatpush.msra.mxu0 %v423
    %1358 = vmatpush.msra.mxu0 %v422
    %1359 = vmatpush.msra.mxu0 %v421
    %1360 = vmatmul.f32.gmra.mxu0 %v1092
    %v1361 = vpop.f32.mrf.mxu0
    %v1362 = vadd.f32 0.0, %v1361
    %1363 = vdwg.mxu0
    %v1364 = vadd.f32 %v225, %v1362
    %1365 = vmatpush.msra.mxu0 0.0
    %1366 = vmatpush.msra.mxu0 0.0
    %1367 = vmatpush.msra.mxu0 0.0
    %1368 = vmatpush.msra.mxu0 0.0
    %1369 = vmatpush.msra.mxu0 0.0
    %1370 = vmatpush.msra.mxu0 0.0
    %1371 = vmatpush.msra.mxu0 0.0
    %1372 = vmatpush.msra.mxu0 0.0
    %1373 = vmatpush.msra.mxu0 0.0
    %1374 = vmatpush.msra.mxu0 0.0
    %1375 = vmatpush.msra.mxu0 0.0
    %1376 = vmatpush.msra.mxu0 0.0
    %1377 = vmatpush.msra.mxu0 %v454
    %1378 = vmatpush.msra.mxu0 %v453
    %1379 = vmatpush.msra.mxu0 %v452
    %1380 = vmatpush.msra.mxu0 %v451
    %1381 = vmatmul.f32.gmra.mxu0 %v1092
    %v1382 = vpop.f32.mrf.mxu0
    %v1383 = vadd.f32 0.0, %v1382
    %1384 = vdwg.mxu0
    %v1385 = vadd.f32 %v280, %v1383
    %1386 = vmatpush.msra.mxu0 0.0
    %1387 = vmatpush.msra.mxu0 0.0
    %1388 = vmatpush.msra.mxu0 0.0
    %1389 = vmatpush.msra.mxu0 0.0
    %1390 = vmatpush.msra.mxu0 0.0
    %1391 = vmatpush.msra.mxu0 0.0
    %1392 = vmatpush.msra.mxu0 0.0
    %1393 = vmatpush.msra.mxu0 0.0
    %1394 = vmatpush.msra.mxu0 0.0
    %1395 = vmatpush.msra.mxu0 0.0
    %1396 = vmatpush.msra.mxu0 0.0
    %1397 = vmatpush.msra.mxu0 0.0
    %1398 = vmatpush.msra.mxu0 %v480
    %1399 = vmatpush.msra.mxu0 %v479
    %1400 = vmatpush.msra.mxu0 %v478
    %1401 = vmatpush.msra.mxu0 %v477
    %1402 = vmatmul.f32.gmra.mxu0 %v1092
    %v1403 = vpop.f32.mrf.mxu0
    %v1404 = vadd.f32 0.0, %v1403
    %1405 = vdwg.mxu0
    %v1406 = vadd.f32 %v335, %v1404
    %1407 = vmatpush.msra.mxu0 0.0
    %1408 = vmatpush.msra.mxu0 0.0
    %1409 = vmatpush.msra.mxu0 0.0
    %1410 = vmatpush.msra.mxu0 0.0
    %1411 = vmatpush.msra.mxu0 0.0
    %1412 = vmatpush.msra.mxu0 0.0
    %1413 = vmatpush.msra.mxu0 0.0
    %1414 = vmatpush.msra.mxu0 0.0
    %1415 = vmatpush.msra.mxu0 0.0
    %1416 = vmatpush.msra.mxu0 0.0
    %1417 = vmatpush.msra.mxu0 0.0
    %1418 = vmatpush.msra.mxu0 0.0
    %1419 = vmatpush.msra.mxu0 %v506
    %1420 = vmatpush.msra.mxu0 %v505
    %1421 = vmatpush.msra.mxu0 %v504
    %1422 = vmatpush.msra.mxu0 %v503
    %1423 = vmatmul.f32.gmra.mxu0 %v1092
    %v1424 = vpop.f32.mrf.mxu0
    %v1425 = vadd.f32 0.0, %v1424
    %1426 = vdwg.mxu0
    %v1427 = vadd.f32 %v390, %v1425
    %v1428 = vxor.u32 %v1364, 2147483648
    %v1429 = vmul.f32 %v1428, 1.442695
    %v1430 = vpow.pop %v1429
    %v1431 = vadd.f32 %v1430, 1.0
    %v1432 = vrcp.pop %v1431
    %v1433 = vmul.f32 %v1431, %v1432
    %v1434 = vsub.f32 1.0, %v1433
    %v1435 = vmul.f32 %v1432, %v1434
    %v1436 = vadd.f32 %v1432, %v1435
    %vm1437 = vweird.f32 %v1431
    %vm1438 = vweird.f32 %v1432
    %vm1439 = vmor %vm1437, %vm1438
    %v1440 = vsel %vm1439, %v1432, %v1436
    %v1441 = vand.u32 2147483647, %v1431
    %vm1442 = vcmp.eq.f32.partialorder %v1441, 8.507059e+37
    %v1443 = vand.u32 %v1431, 2147483648
    %v1444 = vor.u32 1.1754944e-38, %v1443
    %v1445 = vsel %vm1442, %v1444, %v1440
    %v1446 = vmul.f32 1.0, %v1445
    %v1447 = vxor.u32 %v1385, 2147483648
    %v1448 = vmul.f32 %v1447, 1.442695
    %v1449 = vpow.pop %v1448
    %v1450 = vadd.f32 %v1449, 1.0
    %v1451 = vrcp.pop %v1450
    %v1452 = vmul.f32 %v1450, %v1451
    %v1453 = vsub.f32 1.0, %v1452
    %v1454 = vmul.f32 %v1451, %v1453
    %v1455 = vadd.f32 %v1451, %v1454
    %vm1456 = vweird.f32 %v1450
    %vm1457 = vweird.f32 %v1451
    %vm1458 = vmor %vm1456, %vm1457
    %v1459 = vsel %vm1458, %v1451, %v1455
    %v1460 = vand.u32 2147483647, %v1450
    %vm1461 = vcmp.eq.f32.partialorder %v1460, 8.507059e+37
    %v1462 = vand.u32 %v1450, 2147483648
    %v1463 = vor.u32 1.1754944e-38, %v1462
    %v1464 = vsel %vm1461, %v1463, %v1459
    %v1465 = vmul.f32 1.0, %v1464
    %v1466 = vxor.u32 %v1406, 2147483648
    %v1467 = vmul.f32 %v1466, 1.442695
    %v1468 = vpow.pop %v1467
    %v1469 = vadd.f32 %v1468, 1.0
    %v1470 = vrcp.pop %v1469
    %v1471 = vmul.f32 %v1469, %v1470
    %v1472 = vsub.f32 1.0, %v1471
    %v1473 = vmul.f32 %v1470, %v1472
    %v1474 = vadd.f32 %v1470, %v1473
    %vm1475 = vweird.f32 %v1469
    %vm1476 = vweird.f32 %v1470
    %vm1477 = vmor %vm1475, %vm1476
    %v1478 = vsel %vm1477, %v1470, %v1474
    %v1479 = vand.u32 2147483647, %v1469
    %vm1480 = vcmp.eq.f32.partialorder %v1479, 8.507059e+37
    %v1481 = vand.u32 %v1469, 2147483648
    %v1482 = vor.u32 1.1754944e-38, %v1481
    %v1483 = vsel %vm1480, %v1482, %v1478
    %v1484 = vmul.f32 1.0, %v1483
    %v1485 = vmul.f32 %v1484, 2.0
    %v1486 = vsub.f32 %v1485, 1.0
    %v1487 = vxor.u32 %v1427, 2147483648
    %v1488 = vmul.f32 %v1487, 1.442695
    %v1489 = vpow.pop %v1488
    %v1490 = vadd.f32 %v1489, 1.0
    %v1491 = vrcp.pop %v1490
    %v1492 = vmul.f32 %v1490, %v1491
    %v1493 = vsub.f32 1.0, %v1492
    %v1494 = vmul.f32 %v1491, %v1493
    %v1495 = vadd.f32 %v1491, %v1494
    %vm1496 = vweird.f32 %v1490
    %vm1497 = vweird.f32 %v1491
    %vm1498 = vmor %vm1496, %vm1497
    %v1499 = vsel %vm1498, %v1491, %v1495
    %v1500 = vand.u32 2147483647, %v1490
    %vm1501 = vcmp.eq.f32.partialorder %v1500, 8.507059e+37
    %v1502 = vand.u32 %v1490, 2147483648
    %v1503 = vor.u32 1.1754944e-38, %v1502
    %v1504 = vsel %vm1501, %v1503, %v1499
    %v1505 = vmul.f32 1.0, %v1504
    %v1506 = vmul.f32 %v1465, %v1088
    %v1507 = vmul.f32 %v1446, %v1486
    %v1508 = vadd.f32 %v1506, %v1507
    %v1509 = vtanh.pop %v1508
    %v1510 = vmul.f32 %v1505, %v1509
    %v1512 = vsel %vm425, %v1510, 0
    %1514 = vmatpush.msra.mxu0 0.0
    %1515 = vmatpush.msra.mxu0 0.0
    %1516 = vmatpush.msra.mxu0 0.0
    %1517 = vmatpush.msra.mxu0 0.0
    %1518 = vmatpush.msra.mxu0 0.0
    %1519 = vmatpush.msra.mxu0 0.0
    %1520 = vmatpush.msra.mxu0 0.0
    %1521 = vmatpush.msra.mxu0 0.0
    %1522 = vmatpush.msra.mxu0 0.0
    %1523 = vmatpush.msra.mxu0 0.0
    %1524 = vmatpush.msra.mxu0 0.0
    %1525 = vmatpush.msra.mxu0 0.0
    %1526 = vmatpush.msra.mxu0 %v615
    %1527 = vmatpush.msra.mxu0 %v614
    %1528 = vmatpush.msra.mxu0 %v613
    %1529 = vmatpush.msra.mxu0 %v612
    %1530 = vmatmul.f32.gmra.mxu0 %v1512
    %v1531 = vpop.f32.mrf.mxu0
    %v1532 = vadd.f32 %v619, %v1531
    %1533 = vdwg.mxu0
    %1534 = vmatpush.msra.mxu0 0.0
    %1535 = vmatpush.msra.mxu0 0.0
    %1536 = vmatpush.msra.mxu0 0.0
    %1537 = vmatpush.msra.mxu0 0.0
    %1538 = vmatpush.msra.mxu0 0.0
    %1539 = vmatpush.msra.mxu0 0.0
    %1540 = vmatpush.msra.mxu0 0.0
    %1541 = vmatpush.msra.mxu0 0.0
    %1542 = vmatpush.msra.mxu0 0.0
    %1543 = vmatpush.msra.mxu0 0.0
    %1544 = vmatpush.msra.mxu0 0.0
    %1545 = vmatpush.msra.mxu0 0.0
    %1546 = vmatpush.msra.mxu0 %v648
    %1547 = vmatpush.msra.mxu0 %v647
    %1548 = vmatpush.msra.mxu0 %v646
    %1549 = vmatpush.msra.mxu0 %v645
    %1550 = vmatmul.f32.gmra.mxu0 %v1512
    %v1551 = vpop.f32.mrf.mxu0
    %v1552 = vadd.f32 %v652, %v1551
    %1553 = vdwg.mxu0
    %1554 = vmatpush.msra.mxu0 0.0
    %1555 = vmatpush.msra.mxu0 0.0
    %1556 = vmatpush.msra.mxu0 0.0
    %1557 = vmatpush.msra.mxu0 0.0
    %1558 = vmatpush.msra.mxu0 0.0
    %1559 = vmatpush.msra.mxu0 0.0
    %1560 = vmatpush.msra.mxu0 0.0
    %1561 = vmatpush.msra.mxu0 0.0
    %1562 = vmatpush.msra.mxu0 0.0
    %1563 = vmatpush.msra.mxu0 0.0
    %1564 = vmatpush.msra.mxu0 0.0
    %1565 = vmatpush.msra.mxu0 0.0
    %1566 = vmatpush.msra.mxu0 %v678
    %1567 = vmatpush.msra.mxu0 %v677
    %1568 = vmatpush.msra.mxu0 %v676
    %1569 = vmatpush.msra.mxu0 %v675
    %1570 = vmatmul.f32.gmra.mxu0 %v1512
    %v1571 = vpop.f32.mrf.mxu0
    %v1572 = vadd.f32 %v682, %v1571
    %1573 = vdwg.mxu0
    %1574 = vmatpush.msra.mxu0 0.0
    %1575 = vmatpush.msra.mxu0 0.0
    %1576 = vmatpush.msra.mxu0 0.0
    %1577 = vmatpush.msra.mxu0 0.0
    %1578 = vmatpush.msra.mxu0 0.0
    %1579 = vmatpush.msra.mxu0 0.0
    %1580 = vmatpush.msra.mxu0 0.0
    %1581 = vmatpush.msra.mxu0 0.0
    %1582 = vmatpush.msra.mxu0 0.0
    %1583 = vmatpush.msra.mxu0 0.0
    %1584 = vmatpush.msra.mxu0 0.0
    %1585 = vmatpush.msra.mxu0 0.0
    %1586 = vmatpush.msra.mxu0 %v708
    %1587 = vmatpush.msra.mxu0 %v707
    %1588 = vmatpush.msra.mxu0 %v706
    %1589 = vmatpush.msra.mxu0 %v705
    %1590 = vmatmul.f32.gmra.mxu0 %v1512
    %v1591 = vpop.f32.mrf.mxu0
    %v1592 = vadd.f32 %v712, %v1591
    %1593 = vdwg.mxu0
    %v1595 = vsel %vm425, %v1343, 0
    %1597 = vmatpush.msra.mxu0 0.0
    %1598 = vmatpush.msra.mxu0 0.0
    %1599 = vmatpush.msra.mxu0 0.0
    %1600 = vmatpush.msra.mxu0 0.0
    %1601 = vmatpush.msra.mxu0 0.0
    %1602 = vmatpush.msra.mxu0 0.0
    %1603 = vmatpush.msra.mxu0 0.0
    %1604 = vmatpush.msra.mxu0 0.0
    %1605 = vmatpush.msra.mxu0 0.0
    %1606 = vmatpush.msra.mxu0 0.0
    %1607 = vmatpush.msra.mxu0 0.0
    %1608 = vmatpush.msra.mxu0 0.0
    %1609 = vmatpush.msra.mxu0 %v738
    %1610 = vmatpush.msra.mxu0 %v737
    %1611 = vmatpush.msra.mxu0 %v736
    %1612 = vmatpush.msra.mxu0 %v735
    %1613 = vmatmul.f32.gmra.mxu0 %v1595
    %v1614 = vpop.f32.mrf.mxu0
    %v1615 = vadd.f32 0.0, %v1614
    %1616 = vdwg.mxu0
    %v1617 = vadd.f32 %v1532, %v1615
    %1618 = vmatpush.msra.mxu0 0.0
    %1619 = vmatpush.msra.mxu0 0.0
    %1620 = vmatpush.msra.mxu0 0.0
    %1621 = vmatpush.msra.mxu0 0.0
    %1622 = vmatpush.msra.mxu0 0.0
    %1623 = vmatpush.msra.mxu0 0.0
    %1624 = vmatpush.msra.mxu0 0.0
    %1625 = vmatpush.msra.mxu0 0.0
    %1626 = vmatpush.msra.mxu0 0.0
    %1627 = vmatpush.msra.mxu0 0.0
    %1628 = vmatpush.msra.mxu0 0.0
    %1629 = vmatpush.msra.mxu0 0.0
    %1630 = vmatpush.msra.mxu0 %v767
    %1631 = vmatpush.msra.mxu0 %v766
    %1632 = vmatpush.msra.mxu0 %v765
    %1633 = vmatpush.msra.mxu0 %v764
    %1634 = vmatmul.f32.gmra.mxu0 %v1595
    %v1635 = vpop.f32.mrf.mxu0
    %v1636 = vadd.f32 0.0, %v1635
    %1637 = vdwg.mxu0
    %v1638 = vadd.f32 %v1552, %v1636
    %1639 = vmatpush.msra.mxu0 0.0
    %1640 = vmatpush.msra.mxu0 0.0
    %1641 = vmatpush.msra.mxu0 0.0
    %1642 = vmatpush.msra.mxu0 0.0
    %1643 = vmatpush.msra.mxu0 0.0
    %1644 = vmatpush.msra.mxu0 0.0
    %1645 = vmatpush.msra.mxu0 0.0
    %1646 = vmatpush.msra.mxu0 0.0
    %1647 = vmatpush.msra.mxu0 0.0
    %1648 = vmatpush.msra.mxu0 0.0
    %1649 = vmatpush.msra.mxu0 0.0
    %1650 = vmatpush.msra.mxu0 0.0
    %1651 = vmatpush.msra.mxu0 %v793
    %1652 = vmatpush.msra.mxu0 %v792
    %1653 = vmatpush.msra.mxu0 %v791
    %1654 = vmatpush.msra.mxu0 %v790
    %1655 = vmatmul.f32.gmra.mxu0 %v1595
    %v1656 = vpop.f32.mrf.mxu0
    %v1657 = vadd.f32 0.0, %v1656
    %1658 = vdwg.mxu0
    %v1659 = vadd.f32 %v1572, %v1657
    %1660 = vmatpush.msra.mxu0 0.0
    %1661 = vmatpush.msra.mxu0 0.0
    %1662 = vmatpush.msra.mxu0 0.0
    %1663 = vmatpush.msra.mxu0 0.0
    %1664 = vmatpush.msra.mxu0 0.0
    %1665 = vmatpush.msra.mxu0 0.0
    %1666 = vmatpush.msra.mxu0 0.0
    %1667 = vmatpush.msra.mxu0 0.0
    %1668 = vmatpush.msra.mxu0 0.0
    %1669 = vmatpush.msra.mxu0 0.0
    %1670 = vmatpush.msra.mxu0 0.0
    %1671 = vmatpush.msra.mxu0 0.0
    %1672 = vmatpush.msra.mxu0 %v819
    %1673 = vmatpush.msra.mxu0 %v818
    %1674 = vmatpush.msra.mxu0 %v817
    %1675 = vmatpush.msra.mxu0 %v816
    %1676 = vmatmul.f32.gmra.mxu0 %v1595
    %v1677 = vpop.f32.mrf.mxu0
    %v1678 = vadd.f32 0.0, %v1677
    %1679 = vdwg.mxu0
    %v1680 = vadd.f32 %v1592, %v1678
    %v1681 = vxor.u32 %v1617, 2147483648
    %v1682 = vmul.f32 %v1681, 1.442695
    %v1683 = vpow.pop %v1682
    %v1684 = vadd.f32 %v1683, 1.0
    %v1685 = vrcp.pop %v1684
    %v1686 = vmul.f32 %v1684, %v1685
    %v1687 = vsub.f32 1.0, %v1686
    %v1688 = vmul.f32 %v1685, %v1687
    %v1689 = vadd.f32 %v1685, %v1688
    %vm1690 = vweird.f32 %v1684
    %vm1691 = vweird.f32 %v1685
    %vm1692 = vmor %vm1690, %vm1691
    %v1693 = vsel %vm1692, %v1685, %v1689
    %v1694 = vand.u32 2147483647, %v1684
    %vm1695 = vcmp.eq.f32.partialorder %v1694, 8.507059e+37
    %v1696 = vand.u32 %v1684, 2147483648
    %v1697 = vor.u32 1.1754944e-38, %v1696
    %v1698 = vsel %vm1695, %v1697, %v1693
    %v1699 = vmul.f32 1.0, %v1698
    %v1700 = vxor.u32 %v1638, 2147483648
    %v1701 = vmul.f32 %v1700, 1.442695
    %v1702 = vpow.pop %v1701
    %v1703 = vadd.f32 %v1702, 1.0
    %v1704 = vrcp.pop %v1703
    %v1705 = vmul.f32 %v1703, %v1704
    %v1706 = vsub.f32 1.0, %v1705
    %v1707 = vmul.f32 %v1704, %v1706
    %v1708 = vadd.f32 %v1704, %v1707
    %vm1709 = vweird.f32 %v1703
    %vm1710 = vweird.f32 %v1704
    %vm1711 = vmor %vm1709, %vm1710
    %v1712 = vsel %vm1711, %v1704, %v1708
    %v1713 = vand.u32 2147483647, %v1703
    %vm1714 = vcmp.eq.f32.partialorder %v1713, 8.507059e+37
    %v1715 = vand.u32 %v1703, 2147483648
    %v1716 = vor.u32 1.1754944e-38, %v1715
    %v1717 = vsel %vm1714, %v1716, %v1712
    %v1718 = vmul.f32 1.0, %v1717
    %v1719 = vxor.u32 %v1659, 2147483648
    %v1720 = vmul.f32 %v1719, 1.442695
    %v1721 = vpow.pop %v1720
    %v1722 = vadd.f32 %v1721, 1.0
    %v1723 = vrcp.pop %v1722
    %v1724 = vmul.f32 %v1722, %v1723
    %v1725 = vsub.f32 1.0, %v1724
    %v1726 = vmul.f32 %v1723, %v1725
    %v1727 = vadd.f32 %v1723, %v1726
    %vm1728 = vweird.f32 %v1722
    %vm1729 = vweird.f32 %v1723
    %vm1730 = vmor %vm1728, %vm1729
    %v1731 = vsel %vm1730, %v1723, %v1727
    %v1732 = vand.u32 2147483647, %v1722
    %vm1733 = vcmp.eq.f32.partialorder %v1732, 8.507059e+37
    %v1734 = vand.u32 %v1722, 2147483648
    %v1735 = vor.u32 1.1754944e-38, %v1734
    %v1736 = vsel %vm1733, %v1735, %v1731
    %v1737 = vmul.f32 1.0, %v1736
    %v1738 = vmul.f32 %v1737, 2.0
    %v1739 = vsub.f32 %v1738, 1.0
    %v1740 = vxor.u32 %v1680, 2147483648
    %v1741 = vmul.f32 %v1740, 1.442695
    %v1742 = vpow.pop %v1741
    %v1743 = vadd.f32 %v1742, 1.0
    %v1744 = vrcp.pop %v1743
    %v1745 = vmul.f32 %v1743, %v1744
    %v1746 = vsub.f32 1.0, %v1745
    %v1747 = vmul.f32 %v1744, %v1746
    %v1748 = vadd.f32 %v1744, %v1747
    %vm1749 = vweird.f32 %v1743
    %vm1750 = vweird.f32 %v1744
    %vm1751 = vmor %vm1749, %vm1750
    %v1752 = vsel %vm1751, %v1744, %v1748
    %v1753 = vand.u32 2147483647, %v1743
    %vm1754 = vcmp.eq.f32.partialorder %v1753, 8.507059e+37
    %v1755 = vand.u32 %v1743, 2147483648
    %v1756 = vor.u32 1.1754944e-38, %v1755
    %v1757 = vsel %vm1754, %v1756, %v1752
    %v1758 = vmul.f32 1.0, %v1757
    %v1759 = vmul.f32 %v1718, %v1341
    %v1760 = vmul.f32 %v1699, %v1739
    %v1761 = vadd.f32 %v1759, %v1760
    %v1762 = vtanh.pop %v1761
    %v1763 = vmul.f32 %v1758, %v1762
    %1764 = vmatpush.msra.mxu0 0.0
    %1765 = vmatpush.msra.mxu0 0.0
    %1766 = vmatpush.msra.mxu0 0.0
    %1767 = vmatpush.msra.mxu0 0.0
    %1768 = vmatpush.msra.mxu0 0.0
    %1769 = vmatpush.msra.mxu0 0.0
    %1770 = vmatpush.msra.mxu0 0.0
    %1771 = vmatpush.msra.mxu0 0.0
    %1772 = vmatpush.msra.mxu0 0.0
    %1773 = vmatpush.msra.mxu0 0.0
    %1774 = vmatpush.msra.mxu0 0.0
    %1775 = vmatpush.msra.mxu0 0.0
    %1776 = vmatpush.msra.mxu0 %v424
    %1777 = vmatpush.msra.mxu0 %v423
    %1778 = vmatpush.msra.mxu0 %v422
    %1779 = vmatpush.msra.mxu0 %v421
    %1780 = vmatmul.f32.gmra.mxu0 %v1512
    %v1781 = vpop.f32.mrf.mxu0
    %v1782 = vadd.f32 0.0, %v1781
    %1783 = vdwg.mxu0
    %v1784 = vadd.f32 %v228, %v1782
    %1785 = vmatpush.msra.mxu0 0.0
    %1786 = vmatpush.msra.mxu0 0.0
    %1787 = vmatpush.msra.mxu0 0.0
    %1788 = vmatpush.msra.mxu0 0.0
    %1789 = vmatpush.msra.mxu0 0.0
    %1790 = vmatpush.msra.mxu0 0.0
    %1791 = vmatpush.msra.mxu0 0.0
    %1792 = vmatpush.msra.mxu0 0.0
    %1793 = vmatpush.msra.mxu0 0.0
    %1794 = vmatpush.msra.mxu0 0.0
    %1795 = vmatpush.msra.mxu0 0.0
    %1796 = vmatpush.msra.mxu0 0.0
    %1797 = vmatpush.msra.mxu0 %v454
    %1798 = vmatpush.msra.mxu0 %v453
    %1799 = vmatpush.msra.mxu0 %v452
    %1800 = vmatpush.msra.mxu0 %v451
    %1801 = vmatmul.f32.gmra.mxu0 %v1512
    %v1802 = vpop.f32.mrf.mxu0
    %v1803 = vadd.f32 0.0, %v1802
    %1804 = vdwg.mxu0
    %v1805 = vadd.f32 %v283, %v1803
    %1806 = vmatpush.msra.mxu0 0.0
    %1807 = vmatpush.msra.mxu0 0.0
    %1808 = vmatpush.msra.mxu0 0.0
    %1809 = vmatpush.msra.mxu0 0.0
    %1810 = vmatpush.msra.mxu0 0.0
    %1811 = vmatpush.msra.mxu0 0.0
    %1812 = vmatpush.msra.mxu0 0.0
    %1813 = vmatpush.msra.mxu0 0.0
    %1814 = vmatpush.msra.mxu0 0.0
    %1815 = vmatpush.msra.mxu0 0.0
    %1816 = vmatpush.msra.mxu0 0.0
    %1817 = vmatpush.msra.mxu0 0.0
    %1818 = vmatpush.msra.mxu0 %v480
    %1819 = vmatpush.msra.mxu0 %v479
    %1820 = vmatpush.msra.mxu0 %v478
    %1821 = vmatpush.msra.mxu0 %v477
    %1822 = vmatmul.f32.gmra.mxu0 %v1512
    %v1823 = vpop.f32.mrf.mxu0
    %v1824 = vadd.f32 0.0, %v1823
    %1825 = vdwg.mxu0
    %v1826 = vadd.f32 %v338, %v1824
    %1827 = vmatpush.msra.mxu0 0.0
    %1828 = vmatpush.msra.mxu0 0.0
    %1829 = vmatpush.msra.mxu0 0.0
    %1830 = vmatpush.msra.mxu0 0.0
    %1831 = vmatpush.msra.mxu0 0.0
    %1832 = vmatpush.msra.mxu0 0.0
    %1833 = vmatpush.msra.mxu0 0.0
    %1834 = vmatpush.msra.mxu0 0.0
    %1835 = vmatpush.msra.mxu0 0.0
    %1836 = vmatpush.msra.mxu0 0.0
    %1837 = vmatpush.msra.mxu0 0.0
    %1838 = vmatpush.msra.mxu0 0.0
    %1839 = vmatpush.msra.mxu0 %v506
    %1840 = vmatpush.msra.mxu0 %v505
    %1841 = vmatpush.msra.mxu0 %v504
    %1842 = vmatpush.msra.mxu0 %v503
    %1843 = vmatmul.f32.gmra.mxu0 %v1512
    %v1844 = vpop.f32.mrf.mxu0
    %v1845 = vadd.f32 0.0, %v1844
    %1846 = vdwg.mxu0
    %v1847 = vadd.f32 %v393, %v1845
    %v1848 = vxor.u32 %v1784, 2147483648
    %v1849 = vmul.f32 %v1848, 1.442695
    %v1850 = vpow.pop %v1849
    %v1851 = vadd.f32 %v1850, 1.0
    %v1852 = vrcp.pop %v1851
    %v1853 = vmul.f32 %v1851, %v1852
    %v1854 = vsub.f32 1.0, %v1853
    %v1855 = vmul.f32 %v1852, %v1854
    %v1856 = vadd.f32 %v1852, %v1855
    %vm1857 = vweird.f32 %v1851
    %vm1858 = vweird.f32 %v1852
    %vm1859 = vmor %vm1857, %vm1858
    %v1860 = vsel %vm1859, %v1852, %v1856
    %v1861 = vand.u32 2147483647, %v1851
    %vm1862 = vcmp.eq.f32.partialorder %v1861, 8.507059e+37
    %v1863 = vand.u32 %v1851, 2147483648
    %v1864 = vor.u32 1.1754944e-38, %v1863
    %v1865 = vsel %vm1862, %v1864, %v1860
    %v1866 = vmul.f32 1.0, %v1865
    %v1867 = vxor.u32 %v1805, 2147483648
    %v1868 = vmul.f32 %v1867, 1.442695
    %v1869 = vpow.pop %v1868
    %v1870 = vadd.f32 %v1869, 1.0
    %v1871 = vrcp.pop %v1870
    %v1872 = vmul.f32 %v1870, %v1871
    %v1873 = vsub.f32 1.0, %v1872
    %v1874 = vmul.f32 %v1871, %v1873
    %v1875 = vadd.f32 %v1871, %v1874
    %vm1876 = vweird.f32 %v1870
    %vm1877 = vweird.f32 %v1871
    %vm1878 = vmor %vm1876, %vm1877
    %v1879 = vsel %vm1878, %v1871, %v1875
    %v1880 = vand.u32 2147483647, %v1870
    %vm1881 = vcmp.eq.f32.partialorder %v1880, 8.507059e+37
    %v1882 = vand.u32 %v1870, 2147483648
    %v1883 = vor.u32 1.1754944e-38, %v1882
    %v1884 = vsel %vm1881, %v1883, %v1879
    %v1885 = vmul.f32 1.0, %v1884
    %v1886 = vxor.u32 %v1826, 2147483648
    %v1887 = vmul.f32 %v1886, 1.442695
    %v1888 = vpow.pop %v1887
    %v1889 = vadd.f32 %v1888, 1.0
    %v1890 = vrcp.pop %v1889
    %v1891 = vmul.f32 %v1889, %v1890
    %v1892 = vsub.f32 1.0, %v1891
    %v1893 = vmul.f32 %v1890, %v1892
    %v1894 = vadd.f32 %v1890, %v1893
    %vm1895 = vweird.f32 %v1889
    %vm1896 = vweird.f32 %v1890
    %vm1897 = vmor %vm1895, %vm1896
    %v1898 = vsel %vm1897, %v1890, %v1894
    %v1899 = vand.u32 2147483647, %v1889
    %vm1900 = vcmp.eq.f32.partialorder %v1899, 8.507059e+37
    %v1901 = vand.u32 %v1889, 2147483648
    %v1902 = vor.u32 1.1754944e-38, %v1901
    %v1903 = vsel %vm1900, %v1902, %v1898
    %v1904 = vmul.f32 1.0, %v1903
    %v1905 = vmul.f32 %v1904, 2.0
    %v1906 = vsub.f32 %v1905, 1.0
    %v1907 = vxor.u32 %v1847, 2147483648
    %v1908 = vmul.f32 %v1907, 1.442695
    %v1909 = vpow.pop %v1908
    %v1910 = vadd.f32 %v1909, 1.0
    %v1911 = vrcp.pop %v1910
    %v1912 = vmul.f32 %v1910, %v1911
    %v1913 = vsub.f32 1.0, %v1912
    %v1914 = vmul.f32 %v1911, %v1913
    %v1915 = vadd.f32 %v1911, %v1914
    %vm1916 = vweird.f32 %v1910
    %vm1917 = vweird.f32 %v1911
    %vm1918 = vmor %vm1916, %vm1917
    %v1919 = vsel %vm1918, %v1911, %v1915
    %v1920 = vand.u32 2147483647, %v1910
    %vm1921 = vcmp.eq.f32.partialorder %v1920, 8.507059e+37
    %v1922 = vand.u32 %v1910, 2147483648
    %v1923 = vor.u32 1.1754944e-38, %v1922
    %v1924 = vsel %vm1921, %v1923, %v1919
    %v1925 = vmul.f32 1.0, %v1924
    %v1926 = vmul.f32 %v1885, %v1508
    %v1927 = vmul.f32 %v1866, %v1906
    %v1928 = vadd.f32 %v1926, %v1927
    %v1929 = vtanh.pop %v1928
    %v1930 = vmul.f32 %v1925, %v1929
    %v1932 = vsel %vm425, %v1930, 0
    %1934 = vmatpush.msra.mxu0 0.0
    %1935 = vmatpush.msra.mxu0 0.0
    %1936 = vmatpush.msra.mxu0 0.0
    %1937 = vmatpush.msra.mxu0 0.0
    %1938 = vmatpush.msra.mxu0 0.0
    %1939 = vmatpush.msra.mxu0 0.0
    %1940 = vmatpush.msra.mxu0 0.0
    %1941 = vmatpush.msra.mxu0 0.0
    %1942 = vmatpush.msra.mxu0 0.0
    %1943 = vmatpush.msra.mxu0 0.0
    %1944 = vmatpush.msra.mxu0 0.0
    %1945 = vmatpush.msra.mxu0 0.0
    %1946 = vmatpush.msra.mxu0 %v615
    %1947 = vmatpush.msra.mxu0 %v614
    %1948 = vmatpush.msra.mxu0 %v613
    %1949 = vmatpush.msra.mxu0 %v612
    %1950 = vmatmul.f32.gmra.mxu0 %v1932
    %v1951 = vpop.f32.mrf.mxu0
    %v1952 = vadd.f32 %v619, %v1951
    %1953 = vdwg.mxu0
    %1954 = vmatpush.msra.mxu0 0.0
    %1955 = vmatpush.msra.mxu0 0.0
    %1956 = vmatpush.msra.mxu0 0.0
    %1957 = vmatpush.msra.mxu0 0.0
    %1958 = vmatpush.msra.mxu0 0.0
    %1959 = vmatpush.msra.mxu0 0.0
    %1960 = vmatpush.msra.mxu0 0.0
    %1961 = vmatpush.msra.mxu0 0.0
    %1962 = vmatpush.msra.mxu0 0.0
    %1963 = vmatpush.msra.mxu0 0.0
    %1964 = vmatpush.msra.mxu0 0.0
    %1965 = vmatpush.msra.mxu0 0.0
    %1966 = vmatpush.msra.mxu0 %v648
    %1967 = vmatpush.msra.mxu0 %v647
    %1968 = vmatpush.msra.mxu0 %v646
    %1969 = vmatpush.msra.mxu0 %v645
    %1970 = vmatmul.f32.gmra.mxu0 %v1932
    %v1971 = vpop.f32.mrf.mxu0
    %v1972 = vadd.f32 %v652, %v1971
    %1973 = vdwg.mxu0
    %1974 = vmatpush.msra.mxu0 0.0
    %1975 = vmatpush.msra.mxu0 0.0
    %1976 = vmatpush.msra.mxu0 0.0
    %1977 = vmatpush.msra.mxu0 0.0
    %1978 = vmatpush.msra.mxu0 0.0
    %1979 = vmatpush.msra.mxu0 0.0
    %1980 = vmatpush.msra.mxu0 0.0
    %1981 = vmatpush.msra.mxu0 0.0
    %1982 = vmatpush.msra.mxu0 0.0
    %1983 = vmatpush.msra.mxu0 0.0
    %1984 = vmatpush.msra.mxu0 0.0
    %1985 = vmatpush.msra.mxu0 0.0
    %1986 = vmatpush.msra.mxu0 %v678
    %1987 = vmatpush.msra.mxu0 %v677
    %1988 = vmatpush.msra.mxu0 %v676
    %1989 = vmatpush.msra.mxu0 %v675
    %1990 = vmatmul.f32.gmra.mxu0 %v1932
    %v1991 = vpop.f32.mrf.mxu0
    %v1992 = vadd.f32 %v682, %v1991
    %1993 = vdwg.mxu0
    %1994 = vmatpush.msra.mxu0 0.0
    %1995 = vmatpush.msra.mxu0 0.0
    %1996 = vmatpush.msra.mxu0 0.0
    %1997 = vmatpush.msra.mxu0 0.0
    %1998 = vmatpush.msra.mxu0 0.0
    %1999 = vmatpush.msra.mxu0 0.0
    %2000 = vmatpush.msra.mxu0 0.0
    %2001 = vmatpush.msra.mxu0 0.0
    %2002 = vmatpush.msra.mxu0 0.0
    %2003 = vmatpush.msra.mxu0 0.0
    %2004 = vmatpush.msra.mxu0 0.0
    %2005 = vmatpush.msra.mxu0 0.0
    %2006 = vmatpush.msra.mxu0 %v708
    %2007 = vmatpush.msra.mxu0 %v707
    %2008 = vmatpush.msra.mxu0 %v706
    %2009 = vmatpush.msra.mxu0 %v705
    %2010 = vmatmul.f32.gmra.mxu0 %v1932
    %v2011 = vpop.f32.mrf.mxu0
    %v2012 = vadd.f32 %v712, %v2011
    %2013 = vdwg.mxu0
    %v2015 = vsel %vm425, %v1763, 0
    %2017 = vmatpush.msra.mxu0 0.0
    %2018 = vmatpush.msra.mxu0 0.0
    %2019 = vmatpush.msra.mxu0 0.0
    %2020 = vmatpush.msra.mxu0 0.0
    %2021 = vmatpush.msra.mxu0 0.0
    %2022 = vmatpush.msra.mxu0 0.0
    %2023 = vmatpush.msra.mxu0 0.0
    %2024 = vmatpush.msra.mxu0 0.0
    %2025 = vmatpush.msra.mxu0 0.0
    %2026 = vmatpush.msra.mxu0 0.0
    %2027 = vmatpush.msra.mxu0 0.0
    %2028 = vmatpush.msra.mxu0 0.0
    %2029 = vmatpush.msra.mxu0 %v738
    %2030 = vmatpush.msra.mxu0 %v737
    %2031 = vmatpush.msra.mxu0 %v736
    %2032 = vmatpush.msra.mxu0 %v735
    %2033 = vmatmul.f32.gmra.mxu0 %v2015
    %v2034 = vpop.f32.mrf.mxu0
    %v2035 = vadd.f32 0.0, %v2034
    %2036 = vdwg.mxu0
    %v2037 = vadd.f32 %v1952, %v2035
    %2038 = vmatpush.msra.mxu0 0.0
    %2039 = vmatpush.msra.mxu0 0.0
    %2040 = vmatpush.msra.mxu0 0.0
    %2041 = vmatpush.msra.mxu0 0.0
    %2042 = vmatpush.msra.mxu0 0.0
    %2043 = vmatpush.msra.mxu0 0.0
    %2044 = vmatpush.msra.mxu0 0.0
    %2045 = vmatpush.msra.mxu0 0.0
    %2046 = vmatpush.msra.mxu0 0.0
    %2047 = vmatpush.msra.mxu0 0.0
    %2048 = vmatpush.msra.mxu0 0.0
    %2049 = vmatpush.msra.mxu0 0.0
    %2050 = vmatpush.msra.mxu0 %v767
    %2051 = vmatpush.msra.mxu0 %v766
    %2052 = vmatpush.msra.mxu0 %v765
    %2053 = vmatpush.msra.mxu0 %v764
    %2054 = vmatmul.f32.gmra.mxu0 %v2015
    %v2055 = vpop.f32.mrf.mxu0
    %v2056 = vadd.f32 0.0, %v2055
    %2057 = vdwg.mxu0
    %v2058 = vadd.f32 %v1972, %v2056
    %2059 = vmatpush.msra.mxu0 0.0
    %2060 = vmatpush.msra.mxu0 0.0
    %2061 = vmatpush.msra.mxu0 0.0
    %2062 = vmatpush.msra.mxu0 0.0
    %2063 = vmatpush.msra.mxu0 0.0
    %2064 = vmatpush.msra.mxu0 0.0
    %2065 = vmatpush.msra.mxu0 0.0
    %2066 = vmatpush.msra.mxu0 0.0
    %2067 = vmatpush.msra.mxu0 0.0
    %2068 = vmatpush.msra.mxu0 0.0
    %2069 = vmatpush.msra.mxu0 0.0
    %2070 = vmatpush.msra.mxu0 0.0
    %2071 = vmatpush.msra.mxu0 %v793
    %2072 = vmatpush.msra.mxu0 %v792
    %2073 = vmatpush.msra.mxu0 %v791
    %2074 = vmatpush.msra.mxu0 %v790
    %2075 = vmatmul.f32.gmra.mxu0 %v2015
    %v2076 = vpop.f32.mrf.mxu0
    %v2077 = vadd.f32 0.0, %v2076
    %2078 = vdwg.mxu0
    %v2079 = vadd.f32 %v1992, %v2077
    %2080 = vmatpush.msra.mxu0 0.0
    %2081 = vmatpush.msra.mxu0 0.0
    %2082 = vmatpush.msra.mxu0 0.0
    %2083 = vmatpush.msra.mxu0 0.0
    %2084 = vmatpush.msra.mxu0 0.0
    %2085 = vmatpush.msra.mxu0 0.0
    %2086 = vmatpush.msra.mxu0 0.0
    %2087 = vmatpush.msra.mxu0 0.0
    %2088 = vmatpush.msra.mxu0 0.0
    %2089 = vmatpush.msra.mxu0 0.0
    %2090 = vmatpush.msra.mxu0 0.0
    %2091 = vmatpush.msra.mxu0 0.0
    %2092 = vmatpush.msra.mxu0 %v819
    %2093 = vmatpush.msra.mxu0 %v818
    %2094 = vmatpush.msra.mxu0 %v817
    %2095 = vmatpush.msra.mxu0 %v816
    %2096 = vmatmul.f32.gmra.mxu0 %v2015
    %v2097 = vpop.f32.mrf.mxu0
    %v2098 = vadd.f32 0.0, %v2097
    %2099 = vdwg.mxu0
    %v2100 = vadd.f32 %v2012, %v2098
    %v2101 = vxor.u32 %v2037, 2147483648
    %v2102 = vmul.f32 %v2101, 1.442695
    %v2103 = vpow.pop %v2102
    %v2104 = vadd.f32 %v2103, 1.0
    %v2105 = vrcp.pop %v2104
    %v2106 = vmul.f32 %v2104, %v2105
    %v2107 = vsub.f32 1.0, %v2106
    %v2108 = vmul.f32 %v2105, %v2107
    %v2109 = vadd.f32 %v2105, %v2108
    %vm2110 = vweird.f32 %v2104
    %vm2111 = vweird.f32 %v2105
    %vm2112 = vmor %vm2110, %vm2111
    %v2113 = vsel %vm2112, %v2105, %v2109
    %v2114 = vand.u32 2147483647, %v2104
    %vm2115 = vcmp.eq.f32.partialorder %v2114, 8.507059e+37
    %v2116 = vand.u32 %v2104, 2147483648
    %v2117 = vor.u32 1.1754944e-38, %v2116
    %v2118 = vsel %vm2115, %v2117, %v2113
    %v2119 = vmul.f32 1.0, %v2118
    %v2120 = vxor.u32 %v2058, 2147483648
    %v2121 = vmul.f32 %v2120, 1.442695
    %v2122 = vpow.pop %v2121
    %v2123 = vadd.f32 %v2122, 1.0
    %v2124 = vrcp.pop %v2123
    %v2125 = vmul.f32 %v2123, %v2124
    %v2126 = vsub.f32 1.0, %v2125
    %v2127 = vmul.f32 %v2124, %v2126
    %v2128 = vadd.f32 %v2124, %v2127
    %vm2129 = vweird.f32 %v2123
    %vm2130 = vweird.f32 %v2124
    %vm2131 = vmor %vm2129, %vm2130
    %v2132 = vsel %vm2131, %v2124, %v2128
    %v2133 = vand.u32 2147483647, %v2123
    %vm2134 = vcmp.eq.f32.partialorder %v2133, 8.507059e+37
    %v2135 = vand.u32 %v2123, 2147483648
    %v2136 = vor.u32 1.1754944e-38, %v2135
    %v2137 = vsel %vm2134, %v2136, %v2132
    %v2138 = vmul.f32 1.0, %v2137
    %v2139 = vxor.u32 %v2079, 2147483648
    %v2140 = vmul.f32 %v2139, 1.442695
    %v2141 = vpow.pop %v2140
    %v2142 = vadd.f32 %v2141, 1.0
    %v2143 = vrcp.pop %v2142
    %v2144 = vmul.f32 %v2142, %v2143
    %v2145 = vsub.f32 1.0, %v2144
    %v2146 = vmul.f32 %v2143, %v2145
    %v2147 = vadd.f32 %v2143, %v2146
    %vm2148 = vweird.f32 %v2142
    %vm2149 = vweird.f32 %v2143
    %vm2150 = vmor %vm2148, %vm2149
    %v2151 = vsel %vm2150, %v2143, %v2147
    %v2152 = vand.u32 2147483647, %v2142
    %vm2153 = vcmp.eq.f32.partialorder %v2152, 8.507059e+37
    %v2154 = vand.u32 %v2142, 2147483648
    %v2155 = vor.u32 1.1754944e-38, %v2154
    %v2156 = vsel %vm2153, %v2155, %v2151
    %v2157 = vmul.f32 1.0, %v2156
    %v2158 = vmul.f32 %v2157, 2.0
    %v2159 = vsub.f32 %v2158, 1.0
    %v2160 = vxor.u32 %v2100, 2147483648
    %v2161 = vmul.f32 %v2160, 1.442695
    %v2162 = vpow.pop %v2161
    %v2163 = vadd.f32 %v2162, 1.0
    %v2164 = vrcp.pop %v2163
    %v2165 = vmul.f32 %v2163, %v2164
    %v2166 = vsub.f32 1.0, %v2165
    %v2167 = vmul.f32 %v2164, %v2166
    %v2168 = vadd.f32 %v2164, %v2167
    %vm2169 = vweird.f32 %v2163
    %vm2170 = vweird.f32 %v2164
    %vm2171 = vmor %vm2169, %vm2170
    %v2172 = vsel %vm2171, %v2164, %v2168
    %v2173 = vand.u32 2147483647, %v2163
    %vm2174 = vcmp.eq.f32.partialorder %v2173, 8.507059e+37
    %v2175 = vand.u32 %v2163, 2147483648
    %v2176 = vor.u32 1.1754944e-38, %v2175
    %v2177 = vsel %vm2174, %v2176, %v2172
    %v2178 = vmul.f32 1.0, %v2177
    %v2179 = vmul.f32 %v2138, %v1761
    %v2180 = vmul.f32 %v2119, %v2159
    %v2181 = vadd.f32 %v2179, %v2180
    %v2182 = vtanh.pop %v2181
    %v2183 = vmul.f32 %v2178, %v2182
    %2184 = vmatpush.msra.mxu0 0.0
    %2185 = vmatpush.msra.mxu0 0.0
    %2186 = vmatpush.msra.mxu0 0.0
    %2187 = vmatpush.msra.mxu0 0.0
    %2188 = vmatpush.msra.mxu0 0.0
    %2189 = vmatpush.msra.mxu0 0.0
    %2190 = vmatpush.msra.mxu0 0.0
    %2191 = vmatpush.msra.mxu0 0.0
    %2192 = vmatpush.msra.mxu0 0.0
    %2193 = vmatpush.msra.mxu0 0.0
    %2194 = vmatpush.msra.mxu0 0.0
    %2195 = vmatpush.msra.mxu0 0.0
    %2196 = vmatpush.msra.mxu0 %v424
    %2197 = vmatpush.msra.mxu0 %v423
    %2198 = vmatpush.msra.mxu0 %v422
    %2199 = vmatpush.msra.mxu0 %v421
    %2200 = vmatmul.f32.gmra.mxu0 %v1932
    %v2201 = vpop.f32.mrf.mxu0
    %v2202 = vadd.f32 0.0, %v2201
    %2203 = vdwg.mxu0
    %v2204 = vadd.f32 %v231, %v2202
    %2205 = vmatpush.msra.mxu0 0.0
    %2206 = vmatpush.msra.mxu0 0.0
    %2207 = vmatpush.msra.mxu0 0.0
    %2208 = vmatpush.msra.mxu0 0.0
    %2209 = vmatpush.msra.mxu0 0.0
    %2210 = vmatpush.msra.mxu0 0.0
    %2211 = vmatpush.msra.mxu0 0.0
    %2212 = vmatpush.msra.mxu0 0.0
    %2213 = vmatpush.msra.mxu0 0.0
    %2214 = vmatpush.msra.mxu0 0.0
    %2215 = vmatpush.msra.mxu0 0.0
    %2216 = vmatpush.msra.mxu0 0.0
    %2217 = vmatpush.msra.mxu0 %v454
    %2218 = vmatpush.msra.mxu0 %v453
    %2219 = vmatpush.msra.mxu0 %v452
    %2220 = vmatpush.msra.mxu0 %v451
    %2221 = vmatmul.f32.gmra.mxu0 %v1932
    %v2222 = vpop.f32.mrf.mxu0
    %v2223 = vadd.f32 0.0, %v2222
    %2224 = vdwg.mxu0
    %v2225 = vadd.f32 %v286, %v2223
    %2226 = vmatpush.msra.mxu0 0.0
    %2227 = vmatpush.msra.mxu0 0.0
    %2228 = vmatpush.msra.mxu0 0.0
    %2229 = vmatpush.msra.mxu0 0.0
    %2230 = vmatpush.msra.mxu0 0.0
    %2231 = vmatpush.msra.mxu0 0.0
    %2232 = vmatpush.msra.mxu0 0.0
    %2233 = vmatpush.msra.mxu0 0.0
    %2234 = vmatpush.msra.mxu0 0.0
    %2235 = vmatpush.msra.mxu0 0.0
    %2236 = vmatpush.msra.mxu0 0.0
    %2237 = vmatpush.msra.mxu0 0.0
    %2238 = vmatpush.msra.mxu0 %v480
    %2239 = vmatpush.msra.mxu0 %v479
    %2240 = vmatpush.msra.mxu0 %v478
    %2241 = vmatpush.msra.mxu0 %v477
    %2242 = vmatmul.f32.gmra.mxu0 %v1932
    %v2243 = vpop.f32.mrf.mxu0
    %v2244 = vadd.f32 0.0, %v2243
    %2245 = vdwg.mxu0
    %v2246 = vadd.f32 %v341, %v2244
    %2247 = vmatpush.msra.mxu0 0.0
    %2248 = vmatpush.msra.mxu0 0.0
    %2249 = vmatpush.msra.mxu0 0.0
    %2250 = vmatpush.msra.mxu0 0.0
    %2251 = vmatpush.msra.mxu0 0.0
    %2252 = vmatpush.msra.mxu0 0.0
    %2253 = vmatpush.msra.mxu0 0.0
    %2254 = vmatpush.msra.mxu0 0.0
    %2255 = vmatpush.msra.mxu0 0.0
    %2256 = vmatpush.msra.mxu0 0.0
    %2257 = vmatpush.msra.mxu0 0.0
    %2258 = vmatpush.msra.mxu0 0.0
    %2259 = vmatpush.msra.mxu0 %v506
    %2260 = vmatpush.msra.mxu0 %v505
    %2261 = vmatpush.msra.mxu0 %v504
    %2262 = vmatpush.msra.mxu0 %v503
    %2263 = vmatmul.f32.gmra.mxu0 %v1932
    %v2264 = vpop.f32.mrf.mxu0
    %v2265 = vadd.f32 0.0, %v2264
    %2266 = vdwg.mxu0
    %v2267 = vadd.f32 %v396, %v2265
    %v2268 = vxor.u32 %v2204, 2147483648
    %v2269 = vmul.f32 %v2268, 1.442695
    %v2270 = vpow.pop %v2269
    %v2271 = vadd.f32 %v2270, 1.0
    %v2272 = vrcp.pop %v2271
    %v2273 = vmul.f32 %v2271, %v2272
    %v2274 = vsub.f32 1.0, %v2273
    %v2275 = vmul.f32 %v2272, %v2274
    %v2276 = vadd.f32 %v2272, %v2275
    %vm2277 = vweird.f32 %v2271
    %vm2278 = vweird.f32 %v2272
    %vm2279 = vmor %vm2277, %vm2278
    %v2280 = vsel %vm2279, %v2272, %v2276
    %v2281 = vand.u32 2147483647, %v2271
    %vm2282 = vcmp.eq.f32.partialorder %v2281, 8.507059e+37
    %v2283 = vand.u32 %v2271, 2147483648
    %v2284 = vor.u32 1.1754944e-38, %v2283
    %v2285 = vsel %vm2282, %v2284, %v2280
    %v2286 = vmul.f32 1.0, %v2285
    %v2287 = vxor.u32 %v2225, 2147483648
    %v2288 = vmul.f32 %v2287, 1.442695
    %v2289 = vpow.pop %v2288
    %v2290 = vadd.f32 %v2289, 1.0
    %v2291 = vrcp.pop %v2290
    %v2292 = vmul.f32 %v2290, %v2291
    %v2293 = vsub.f32 1.0, %v2292
    %v2294 = vmul.f32 %v2291, %v2293
    %v2295 = vadd.f32 %v2291, %v2294
    %vm2296 = vweird.f32 %v2290
    %vm2297 = vweird.f32 %v2291
    %vm2298 = vmor %vm2296, %vm2297
    %v2299 = vsel %vm2298, %v2291, %v2295
    %v2300 = vand.u32 2147483647, %v2290
    %vm2301 = vcmp.eq.f32.partialorder %v2300, 8.507059e+37
    %v2302 = vand.u32 %v2290, 2147483648
    %v2303 = vor.u32 1.1754944e-38, %v2302
    %v2304 = vsel %vm2301, %v2303, %v2299
    %v2305 = vmul.f32 1.0, %v2304
    %v2306 = vxor.u32 %v2246, 2147483648
    %v2307 = vmul.f32 %v2306, 1.442695
    %v2308 = vpow.pop %v2307
    %v2309 = vadd.f32 %v2308, 1.0
    %v2310 = vrcp.pop %v2309
    %v2311 = vmul.f32 %v2309, %v2310
    %v2312 = vsub.f32 1.0, %v2311
    %v2313 = vmul.f32 %v2310, %v2312
    %v2314 = vadd.f32 %v2310, %v2313
    %vm2315 = vweird.f32 %v2309
    %vm2316 = vweird.f32 %v2310
    %vm2317 = vmor %vm2315, %vm2316
    %v2318 = vsel %vm2317, %v2310, %v2314
    %v2319 = vand.u32 2147483647, %v2309
    %vm2320 = vcmp.eq.f32.partialorder %v2319, 8.507059e+37
    %v2321 = vand.u32 %v2309, 2147483648
    %v2322 = vor.u32 1.1754944e-38, %v2321
    %v2323 = vsel %vm2320, %v2322, %v2318
    %v2324 = vmul.f32 1.0, %v2323
    %v2325 = vmul.f32 %v2324, 2.0
    %v2326 = vsub.f32 %v2325, 1.0
    %v2327 = vxor.u32 %v2267, 2147483648
    %v2328 = vmul.f32 %v2327, 1.442695
    %v2329 = vpow.pop %v2328
    %v2330 = vadd.f32 %v2329, 1.0
    %v2331 = vrcp.pop %v2330
    %v2332 = vmul.f32 %v2330, %v2331
    %v2333 = vsub.f32 1.0, %v2332
    %v2334 = vmul.f32 %v2331, %v2333
    %v2335 = vadd.f32 %v2331, %v2334
    %vm2336 = vweird.f32 %v2330
    %vm2337 = vweird.f32 %v2331
    %vm2338 = vmor %vm2336, %vm2337
    %v2339 = vsel %vm2338, %v2331, %v2335
    %v2340 = vand.u32 2147483647, %v2330
    %vm2341 = vcmp.eq.f32.partialorder %v2340, 8.507059e+37
    %v2342 = vand.u32 %v2330, 2147483648
    %v2343 = vor.u32 1.1754944e-38, %v2342
    %v2344 = vsel %vm2341, %v2343, %v2339
    %v2345 = vmul.f32 1.0, %v2344
    %v2346 = vmul.f32 %v2305, %v1928
    %v2347 = vmul.f32 %v2286, %v2326
    %v2348 = vadd.f32 %v2346, %v2347
    %v2349 = vtanh.pop %v2348
    %v2350 = vmul.f32 %v2345, %v2349
    %v2352 = vsel %vm425, %v2350, 0
    %2354 = vmatpush.msra.mxu0 0.0
    %2355 = vmatpush.msra.mxu0 0.0
    %2356 = vmatpush.msra.mxu0 0.0
    %2357 = vmatpush.msra.mxu0 0.0
    %2358 = vmatpush.msra.mxu0 0.0
    %2359 = vmatpush.msra.mxu0 0.0
    %2360 = vmatpush.msra.mxu0 0.0
    %2361 = vmatpush.msra.mxu0 0.0
    %2362 = vmatpush.msra.mxu0 0.0
    %2363 = vmatpush.msra.mxu0 0.0
    %2364 = vmatpush.msra.mxu0 0.0
    %2365 = vmatpush.msra.mxu0 0.0
    %2366 = vmatpush.msra.mxu0 %v615
    %2367 = vmatpush.msra.mxu0 %v614
    %2368 = vmatpush.msra.mxu0 %v613
    %2369 = vmatpush.msra.mxu0 %v612
    %2370 = vmatmul.f32.gmra.mxu0 %v2352
    %v2371 = vpop.f32.mrf.mxu0
    %v2372 = vadd.f32 %v619, %v2371
    %2373 = vdwg.mxu0
    %2374 = vmatpush.msra.mxu0 0.0
    %2375 = vmatpush.msra.mxu0 0.0
    %2376 = vmatpush.msra.mxu0 0.0
    %2377 = vmatpush.msra.mxu0 0.0
    %2378 = vmatpush.msra.mxu0 0.0
    %2379 = vmatpush.msra.mxu0 0.0
    %2380 = vmatpush.msra.mxu0 0.0
    %2381 = vmatpush.msra.mxu0 0.0
    %2382 = vmatpush.msra.mxu0 0.0
    %2383 = vmatpush.msra.mxu0 0.0
    %2384 = vmatpush.msra.mxu0 0.0
    %2385 = vmatpush.msra.mxu0 0.0
    %2386 = vmatpush.msra.mxu0 %v648
    %2387 = vmatpush.msra.mxu0 %v647
    %2388 = vmatpush.msra.mxu0 %v646
    %2389 = vmatpush.msra.mxu0 %v645
    %2390 = vmatmul.f32.gmra.mxu0 %v2352
    %v2391 = vpop.f32.mrf.mxu0
    %v2392 = vadd.f32 %v652, %v2391
    %2393 = vdwg.mxu0
    %2394 = vmatpush.msra.mxu0 0.0
    %2395 = vmatpush.msra.mxu0 0.0
    %2396 = vmatpush.msra.mxu0 0.0
    %2397 = vmatpush.msra.mxu0 0.0
    %2398 = vmatpush.msra.mxu0 0.0
    %2399 = vmatpush.msra.mxu0 0.0
    %2400 = vmatpush.msra.mxu0 0.0
    %2401 = vmatpush.msra.mxu0 0.0
    %2402 = vmatpush.msra.mxu0 0.0
    %2403 = vmatpush.msra.mxu0 0.0
    %2404 = vmatpush.msra.mxu0 0.0
    %2405 = vmatpush.msra.mxu0 0.0
    %2406 = vmatpush.msra.mxu0 %v678
    %2407 = vmatpush.msra.mxu0 %v677
    %2408 = vmatpush.msra.mxu0 %v676
    %2409 = vmatpush.msra.mxu0 %v675
    %2410 = vmatmul.f32.gmra.mxu0 %v2352
    %v2411 = vpop.f32.mrf.mxu0
    %v2412 = vadd.f32 %v682, %v2411
    %2413 = vdwg.mxu0
    %2414 = vmatpush.msra.mxu0 0.0
    %2415 = vmatpush.msra.mxu0 0.0
    %2416 = vmatpush.msra.mxu0 0.0
    %2417 = vmatpush.msra.mxu0 0.0
    %2418 = vmatpush.msra.mxu0 0.0
    %2419 = vmatpush.msra.mxu0 0.0
    %2420 = vmatpush.msra.mxu0 0.0
    %2421 = vmatpush.msra.mxu0 0.0
    %2422 = vmatpush.msra.mxu0 0.0
    %2423 = vmatpush.msra.mxu0 0.0
    %2424 = vmatpush.msra.mxu0 0.0
    %2425 = vmatpush.msra.mxu0 0.0
    %2426 = vmatpush.msra.mxu0 %v708
    %2427 = vmatpush.msra.mxu0 %v707
    %2428 = vmatpush.msra.mxu0 %v706
    %2429 = vmatpush.msra.mxu0 %v705
    %2430 = vmatmul.f32.gmra.mxu0 %v2352
    %v2431 = vpop.f32.mrf.mxu0
    %v2432 = vadd.f32 %v712, %v2431
    %2433 = vdwg.mxu0
    %v2435 = vsel %vm425, %v2183, 0
    %2437 = vmatpush.msra.mxu0 0.0
    %2438 = vmatpush.msra.mxu0 0.0
    %2439 = vmatpush.msra.mxu0 0.0
    %2440 = vmatpush.msra.mxu0 0.0
    %2441 = vmatpush.msra.mxu0 0.0
    %2442 = vmatpush.msra.mxu0 0.0
    %2443 = vmatpush.msra.mxu0 0.0
    %2444 = vmatpush.msra.mxu0 0.0
    %2445 = vmatpush.msra.mxu0 0.0
    %2446 = vmatpush.msra.mxu0 0.0
    %2447 = vmatpush.msra.mxu0 0.0
    %2448 = vmatpush.msra.mxu0 0.0
    %2449 = vmatpush.msra.mxu0 %v738
    %2450 = vmatpush.msra.mxu0 %v737
    %2451 = vmatpush.msra.mxu0 %v736
    %2452 = vmatpush.msra.mxu0 %v735
    %2453 = vmatmul.f32.gmra.mxu0 %v2435
    %v2454 = vpop.f32.mrf.mxu0
    %v2455 = vadd.f32 0.0, %v2454
    %2456 = vdwg.mxu0
    %v2457 = vadd.f32 %v2372, %v2455
    %2458 = vmatpush.msra.mxu0 0.0
    %2459 = vmatpush.msra.mxu0 0.0
    %2460 = vmatpush.msra.mxu0 0.0
    %2461 = vmatpush.msra.mxu0 0.0
    %2462 = vmatpush.msra.mxu0 0.0
    %2463 = vmatpush.msra.mxu0 0.0
    %2464 = vmatpush.msra.mxu0 0.0
    %2465 = vmatpush.msra.mxu0 0.0
    %2466 = vmatpush.msra.mxu0 0.0
    %2467 = vmatpush.msra.mxu0 0.0
    %2468 = vmatpush.msra.mxu0 0.0
    %2469 = vmatpush.msra.mxu0 0.0
    %2470 = vmatpush.msra.mxu0 %v767
    %2471 = vmatpush.msra.mxu0 %v766
    %2472 = vmatpush.msra.mxu0 %v765
    %2473 = vmatpush.msra.mxu0 %v764
    %2474 = vmatmul.f32.gmra.mxu0 %v2435
    %v2475 = vpop.f32.mrf.mxu0
    %v2476 = vadd.f32 0.0, %v2475
    %2477 = vdwg.mxu0
    %v2478 = vadd.f32 %v2392, %v2476
    %2479 = vmatpush.msra.mxu0 0.0
    %2480 = vmatpush.msra.mxu0 0.0
    %2481 = vmatpush.msra.mxu0 0.0
    %2482 = vmatpush.msra.mxu0 0.0
    %2483 = vmatpush.msra.mxu0 0.0
    %2484 = vmatpush.msra.mxu0 0.0
    %2485 = vmatpush.msra.mxu0 0.0
    %2486 = vmatpush.msra.mxu0 0.0
    %2487 = vmatpush.msra.mxu0 0.0
    %2488 = vmatpush.msra.mxu0 0.0
    %2489 = vmatpush.msra.mxu0 0.0
    %2490 = vmatpush.msra.mxu0 0.0
    %2491 = vmatpush.msra.mxu0 %v793
    %2492 = vmatpush.msra.mxu0 %v792
    %2493 = vmatpush.msra.mxu0 %v791
    %2494 = vmatpush.msra.mxu0 %v790
    %2495 = vmatmul.f32.gmra.mxu0 %v2435
    %v2496 = vpop.f32.mrf.mxu0
    %v2497 = vadd.f32 0.0, %v2496
    %2498 = vdwg.mxu0
    %v2499 = vadd.f32 %v2412, %v2497
    %2500 = vmatpush.msra.mxu0 0.0
    %2501 = vmatpush.msra.mxu0 0.0
    %2502 = vmatpush.msra.mxu0 0.0
    %2503 = vmatpush.msra.mxu0 0.0
    %2504 = vmatpush.msra.mxu0 0.0
    %2505 = vmatpush.msra.mxu0 0.0
    %2506 = vmatpush.msra.mxu0 0.0
    %2507 = vmatpush.msra.mxu0 0.0
    %2508 = vmatpush.msra.mxu0 0.0
    %2509 = vmatpush.msra.mxu0 0.0
    %2510 = vmatpush.msra.mxu0 0.0
    %2511 = vmatpush.msra.mxu0 0.0
    %2512 = vmatpush.msra.mxu0 %v819
    %2513 = vmatpush.msra.mxu0 %v818
    %2514 = vmatpush.msra.mxu0 %v817
    %2515 = vmatpush.msra.mxu0 %v816
    %2516 = vmatmul.f32.gmra.mxu0 %v2435
    %v2517 = vpop.f32.mrf.mxu0
    %v2518 = vadd.f32 0.0, %v2517
    %2519 = vdwg.mxu0
    %v2520 = vadd.f32 %v2432, %v2518
    %v2521 = vxor.u32 %v2457, 2147483648
    %v2522 = vmul.f32 %v2521, 1.442695
    %v2523 = vpow.pop %v2522
    %v2524 = vadd.f32 %v2523, 1.0
    %v2525 = vrcp.pop %v2524
    %v2526 = vmul.f32 %v2524, %v2525
    %v2527 = vsub.f32 1.0, %v2526
    %v2528 = vmul.f32 %v2525, %v2527
    %v2529 = vadd.f32 %v2525, %v2528
    %vm2530 = vweird.f32 %v2524
    %vm2531 = vweird.f32 %v2525
    %vm2532 = vmor %vm2530, %vm2531
    %v2533 = vsel %vm2532, %v2525, %v2529
    %v2534 = vand.u32 2147483647, %v2524
    %vm2535 = vcmp.eq.f32.partialorder %v2534, 8.507059e+37
    %v2536 = vand.u32 %v2524, 2147483648
    %v2537 = vor.u32 1.1754944e-38, %v2536
    %v2538 = vsel %vm2535, %v2537, %v2533
    %v2539 = vmul.f32 1.0, %v2538
    %v2540 = vxor.u32 %v2478, 2147483648
    %v2541 = vmul.f32 %v2540, 1.442695
    %v2542 = vpow.pop %v2541
    %v2543 = vadd.f32 %v2542, 1.0
    %v2544 = vrcp.pop %v2543
    %v2545 = vmul.f32 %v2543, %v2544
    %v2546 = vsub.f32 1.0, %v2545
    %v2547 = vmul.f32 %v2544, %v2546
    %v2548 = vadd.f32 %v2544, %v2547
    %vm2549 = vweird.f32 %v2543
    %vm2550 = vweird.f32 %v2544
    %vm2551 = vmor %vm2549, %vm2550
    %v2552 = vsel %vm2551, %v2544, %v2548
    %v2553 = vand.u32 2147483647, %v2543
    %vm2554 = vcmp.eq.f32.partialorder %v2553, 8.507059e+37
    %v2555 = vand.u32 %v2543, 2147483648
    %v2556 = vor.u32 1.1754944e-38, %v2555
    %v2557 = vsel %vm2554, %v2556, %v2552
    %v2558 = vmul.f32 1.0, %v2557
    %v2559 = vxor.u32 %v2499, 2147483648
    %v2560 = vmul.f32 %v2559, 1.442695
    %v2561 = vpow.pop %v2560
    %v2562 = vadd.f32 %v2561, 1.0
    %v2563 = vrcp.pop %v2562
    %v2564 = vmul.f32 %v2562, %v2563
    %v2565 = vsub.f32 1.0, %v2564
    %v2566 = vmul.f32 %v2563, %v2565
    %v2567 = vadd.f32 %v2563, %v2566
    %vm2568 = vweird.f32 %v2562
    %vm2569 = vweird.f32 %v2563
    %vm2570 = vmor %vm2568, %vm2569
    %v2571 = vsel %vm2570, %v2563, %v2567
    %v2572 = vand.u32 2147483647, %v2562
    %vm2573 = vcmp.eq.f32.partialorder %v2572, 8.507059e+37
    %v2574 = vand.u32 %v2562, 2147483648
    %v2575 = vor.u32 1.1754944e-38, %v2574
    %v2576 = vsel %vm2573, %v2575, %v2571
    %v2577 = vmul.f32 1.0, %v2576
    %v2578 = vmul.f32 %v2577, 2.0
    %v2579 = vsub.f32 %v2578, 1.0
    %v2580 = vxor.u32 %v2520, 2147483648
    %v2581 = vmul.f32 %v2580, 1.442695
    %v2582 = vpow.pop %v2581
    %v2583 = vadd.f32 %v2582, 1.0
    %v2584 = vrcp.pop %v2583
    %v2585 = vmul.f32 %v2583, %v2584
    %v2586 = vsub.f32 1.0, %v2585
    %v2587 = vmul.f32 %v2584, %v2586
    %v2588 = vadd.f32 %v2584, %v2587
    %vm2589 = vweird.f32 %v2583
    %vm2590 = vweird.f32 %v2584
    %vm2591 = vmor %vm2589, %vm2590
    %v2592 = vsel %vm2591, %v2584, %v2588
    %v2593 = vand.u32 2147483647, %v2583
    %vm2594 = vcmp.eq.f32.partialorder %v2593, 8.507059e+37
    %v2595 = vand.u32 %v2583, 2147483648
    %v2596 = vor.u32 1.1754944e-38, %v2595
    %v2597 = vsel %vm2594, %v2596, %v2592
    %v2598 = vmul.f32 1.0, %v2597
    %v2599 = vmul.f32 %v2558, %v2181
    %v2600 = vmul.f32 %v2539, %v2579
    %v2601 = vadd.f32 %v2599, %v2600
    %v2602 = vtanh.pop %v2601
    %v2603 = vmul.f32 %v2598, %v2602
    %2604 = vmatpush.msra.mxu0 0.0
    %2605 = vmatpush.msra.mxu0 0.0
    %2606 = vmatpush.msra.mxu0 0.0
    %2607 = vmatpush.msra.mxu0 0.0
    %2608 = vmatpush.msra.mxu0 0.0
    %2609 = vmatpush.msra.mxu0 0.0
    %2610 = vmatpush.msra.mxu0 0.0
    %2611 = vmatpush.msra.mxu0 0.0
    %2612 = vmatpush.msra.mxu0 0.0
    %2613 = vmatpush.msra.mxu0 0.0
    %2614 = vmatpush.msra.mxu0 0.0
    %2615 = vmatpush.msra.mxu0 0.0
    %2616 = vmatpush.msra.mxu0 %v424
    %2617 = vmatpush.msra.mxu0 %v423
    %2618 = vmatpush.msra.mxu0 %v422
    %2619 = vmatpush.msra.mxu0 %v421
    %2620 = vmatmul.f32.gmra.mxu0 %v2352
    %v2621 = vpop.f32.mrf.mxu0
    %v2622 = vadd.f32 0.0, %v2621
    %2623 = vdwg.mxu0
    %v2624 = vadd.f32 %v234, %v2622
    %2625 = vmatpush.msra.mxu0 0.0
    %2626 = vmatpush.msra.mxu0 0.0
    %2627 = vmatpush.msra.mxu0 0.0
    %2628 = vmatpush.msra.mxu0 0.0
    %2629 = vmatpush.msra.mxu0 0.0
    %2630 = vmatpush.msra.mxu0 0.0
    %2631 = vmatpush.msra.mxu0 0.0
    %2632 = vmatpush.msra.mxu0 0.0
    %2633 = vmatpush.msra.mxu0 0.0
    %2634 = vmatpush.msra.mxu0 0.0
    %2635 = vmatpush.msra.mxu0 0.0
    %2636 = vmatpush.msra.mxu0 0.0
    %2637 = vmatpush.msra.mxu0 %v454
    %2638 = vmatpush.msra.mxu0 %v453
    %2639 = vmatpush.msra.mxu0 %v452
    %2640 = vmatpush.msra.mxu0 %v451
    %2641 = vmatmul.f32.gmra.mxu0 %v2352
    %v2642 = vpop.f32.mrf.mxu0
    %v2643 = vadd.f32 0.0, %v2642
    %2644 = vdwg.mxu0
    %v2645 = vadd.f32 %v289, %v2643
    %2646 = vmatpush.msra.mxu0 0.0
    %2647 = vmatpush.msra.mxu0 0.0
    %2648 = vmatpush.msra.mxu0 0.0
    %2649 = vmatpush.msra.mxu0 0.0
    %2650 = vmatpush.msra.mxu0 0.0
    %2651 = vmatpush.msra.mxu0 0.0
    %2652 = vmatpush.msra.mxu0 0.0
    %2653 = vmatpush.msra.mxu0 0.0
    %2654 = vmatpush.msra.mxu0 0.0
    %2655 = vmatpush.msra.mxu0 0.0
    %2656 = vmatpush.msra.mxu0 0.0
    %2657 = vmatpush.msra.mxu0 0.0
    %2658 = vmatpush.msra.mxu0 %v480
    %2659 = vmatpush.msra.mxu0 %v479
    %2660 = vmatpush.msra.mxu0 %v478
    %2661 = vmatpush.msra.mxu0 %v477
    %2662 = vmatmul.f32.gmra.mxu0 %v2352
    %v2663 = vpop.f32.mrf.mxu0
    %v2664 = vadd.f32 0.0, %v2663
    %2665 = vdwg.mxu0
    %v2666 = vadd.f32 %v344, %v2664
    %2667 = vmatpush.msra.mxu0 0.0
    %2668 = vmatpush.msra.mxu0 0.0
    %2669 = vmatpush.msra.mxu0 0.0
    %2670 = vmatpush.msra.mxu0 0.0
    %2671 = vmatpush.msra.mxu0 0.0
    %2672 = vmatpush.msra.mxu0 0.0
    %2673 = vmatpush.msra.mxu0 0.0
    %2674 = vmatpush.msra.mxu0 0.0
    %2675 = vmatpush.msra.mxu0 0.0
    %2676 = vmatpush.msra.mxu0 0.0
    %2677 = vmatpush.msra.mxu0 0.0
    %2678 = vmatpush.msra.mxu0 0.0
    %2679 = vmatpush.msra.mxu0 %v506
    %2680 = vmatpush.msra.mxu0 %v505
    %2681 = vmatpush.msra.mxu0 %v504
    %2682 = vmatpush.msra.mxu0 %v503
    %2683 = vmatmul.f32.gmra.mxu0 %v2352
    %v2684 = vpop.f32.mrf.mxu0
    %v2685 = vadd.f32 0.0, %v2684
    %2686 = vdwg.mxu0
    %v2687 = vadd.f32 %v399, %v2685
    %v2688 = vxor.u32 %v2624, 2147483648
    %v2689 = vmul.f32 %v2688, 1.442695
    %v2690 = vpow.pop %v2689
    %v2691 = vadd.f32 %v2690, 1.0
    %v2692 = vrcp.pop %v2691
    %v2693 = vmul.f32 %v2691, %v2692
    %v2694 = vsub.f32 1.0, %v2693
    %v2695 = vmul.f32 %v2692, %v2694
    %v2696 = vadd.f32 %v2692, %v2695
    %vm2697 = vweird.f32 %v2691
    %vm2698 = vweird.f32 %v2692
    %vm2699 = vmor %vm2697, %vm2698
    %v2700 = vsel %vm2699, %v2692, %v2696
    %v2701 = vand.u32 2147483647, %v2691
    %vm2702 = vcmp.eq.f32.partialorder %v2701, 8.507059e+37
    %v2703 = vand.u32 %v2691, 2147483648
    %v2704 = vor.u32 1.1754944e-38, %v2703
    %v2705 = vsel %vm2702, %v2704, %v2700
    %v2706 = vmul.f32 1.0, %v2705
    %v2707 = vxor.u32 %v2645, 2147483648
    %v2708 = vmul.f32 %v2707, 1.442695
    %v2709 = vpow.pop %v2708
    %v2710 = vadd.f32 %v2709, 1.0
    %v2711 = vrcp.pop %v2710
    %v2712 = vmul.f32 %v2710, %v2711
    %v2713 = vsub.f32 1.0, %v2712
    %v2714 = vmul.f32 %v2711, %v2713
    %v2715 = vadd.f32 %v2711, %v2714
    %vm2716 = vweird.f32 %v2710
    %vm2717 = vweird.f32 %v2711
    %vm2718 = vmor %vm2716, %vm2717
    %v2719 = vsel %vm2718, %v2711, %v2715
    %v2720 = vand.u32 2147483647, %v2710
    %vm2721 = vcmp.eq.f32.partialorder %v2720, 8.507059e+37
    %v2722 = vand.u32 %v2710, 2147483648
    %v2723 = vor.u32 1.1754944e-38, %v2722
    %v2724 = vsel %vm2721, %v2723, %v2719
    %v2725 = vmul.f32 1.0, %v2724
    %v2726 = vxor.u32 %v2666, 2147483648
    %v2727 = vmul.f32 %v2726, 1.442695
    %v2728 = vpow.pop %v2727
    %v2729 = vadd.f32 %v2728, 1.0
    %v2730 = vrcp.pop %v2729
    %v2731 = vmul.f32 %v2729, %v2730
    %v2732 = vsub.f32 1.0, %v2731
    %v2733 = vmul.f32 %v2730, %v2732
    %v2734 = vadd.f32 %v2730, %v2733
    %vm2735 = vweird.f32 %v2729
    %vm2736 = vweird.f32 %v2730
    %vm2737 = vmor %vm2735, %vm2736
    %v2738 = vsel %vm2737, %v2730, %v2734
    %v2739 = vand.u32 2147483647, %v2729
    %vm2740 = vcmp.eq.f32.partialorder %v2739, 8.507059e+37
    %v2741 = vand.u32 %v2729, 2147483648
    %v2742 = vor.u32 1.1754944e-38, %v2741
    %v2743 = vsel %vm2740, %v2742, %v2738
    %v2744 = vmul.f32 1.0, %v2743
    %v2745 = vmul.f32 %v2744, 2.0
    %v2746 = vsub.f32 %v2745, 1.0
    %v2747 = vxor.u32 %v2687, 2147483648
    %v2748 = vmul.f32 %v2747, 1.442695
    %v2749 = vpow.pop %v2748
    %v2750 = vadd.f32 %v2749, 1.0
    %v2751 = vrcp.pop %v2750
    %v2752 = vmul.f32 %v2750, %v2751
    %v2753 = vsub.f32 1.0, %v2752
    %v2754 = vmul.f32 %v2751, %v2753
    %v2755 = vadd.f32 %v2751, %v2754
    %vm2756 = vweird.f32 %v2750
    %vm2757 = vweird.f32 %v2751
    %vm2758 = vmor %vm2756, %vm2757
    %v2759 = vsel %vm2758, %v2751, %v2755
    %v2760 = vand.u32 2147483647, %v2750
    %vm2761 = vcmp.eq.f32.partialorder %v2760, 8.507059e+37
    %v2762 = vand.u32 %v2750, 2147483648
    %v2763 = vor.u32 1.1754944e-38, %v2762
    %v2764 = vsel %vm2761, %v2763, %v2759
    %v2765 = vmul.f32 1.0, %v2764
    %v2766 = vmul.f32 %v2725, %v2348
    %v2767 = vmul.f32 %v2706, %v2746
    %v2768 = vadd.f32 %v2766, %v2767
    %v2769 = vtanh.pop %v2768
    %v2770 = vmul.f32 %v2765, %v2769
    %v2772 = vsel %vm425, %v2770, 0
    %2774 = vmatpush.msra.mxu0 0.0
    %2775 = vmatpush.msra.mxu0 0.0
    %2776 = vmatpush.msra.mxu0 0.0
    %2777 = vmatpush.msra.mxu0 0.0
    %2778 = vmatpush.msra.mxu0 0.0
    %2779 = vmatpush.msra.mxu0 0.0
    %2780 = vmatpush.msra.mxu0 0.0
    %2781 = vmatpush.msra.mxu0 0.0
    %2782 = vmatpush.msra.mxu0 0.0
    %2783 = vmatpush.msra.mxu0 0.0
    %2784 = vmatpush.msra.mxu0 0.0
    %2785 = vmatpush.msra.mxu0 0.0
    %2786 = vmatpush.msra.mxu0 %v615
    %2787 = vmatpush.msra.mxu0 %v614
    %2788 = vmatpush.msra.mxu0 %v613
    %2789 = vmatpush.msra.mxu0 %v612
    %2790 = vmatmul.f32.gmra.mxu0 %v2772
    %v2791 = vpop.f32.mrf.mxu0
    %v2792 = vadd.f32 %v619, %v2791
    %2793 = vdwg.mxu0
    %2794 = vmatpush.msra.mxu0 0.0
    %2795 = vmatpush.msra.mxu0 0.0
    %2796 = vmatpush.msra.mxu0 0.0
    %2797 = vmatpush.msra.mxu0 0.0
    %2798 = vmatpush.msra.mxu0 0.0
    %2799 = vmatpush.msra.mxu0 0.0
    %2800 = vmatpush.msra.mxu0 0.0
    %2801 = vmatpush.msra.mxu0 0.0
    %2802 = vmatpush.msra.mxu0 0.0
    %2803 = vmatpush.msra.mxu0 0.0
    %2804 = vmatpush.msra.mxu0 0.0
    %2805 = vmatpush.msra.mxu0 0.0
    %2806 = vmatpush.msra.mxu0 %v648
    %2807 = vmatpush.msra.mxu0 %v647
    %2808 = vmatpush.msra.mxu0 %v646
    %2809 = vmatpush.msra.mxu0 %v645
    %2810 = vmatmul.f32.gmra.mxu0 %v2772
    %v2811 = vpop.f32.mrf.mxu0
    %v2812 = vadd.f32 %v652, %v2811
    %2813 = vdwg.mxu0
    %2814 = vmatpush.msra.mxu0 0.0
    %2815 = vmatpush.msra.mxu0 0.0
    %2816 = vmatpush.msra.mxu0 0.0
    %2817 = vmatpush.msra.mxu0 0.0
    %2818 = vmatpush.msra.mxu0 0.0
    %2819 = vmatpush.msra.mxu0 0.0
    %2820 = vmatpush.msra.mxu0 0.0
    %2821 = vmatpush.msra.mxu0 0.0
    %2822 = vmatpush.msra.mxu0 0.0
    %2823 = vmatpush.msra.mxu0 0.0
    %2824 = vmatpush.msra.mxu0 0.0
    %2825 = vmatpush.msra.mxu0 0.0
    %2826 = vmatpush.msra.mxu0 %v678
    %2827 = vmatpush.msra.mxu0 %v677
    %2828 = vmatpush.msra.mxu0 %v676
    %2829 = vmatpush.msra.mxu0 %v675
    %2830 = vmatmul.f32.gmra.mxu0 %v2772
    %v2831 = vpop.f32.mrf.mxu0
    %v2832 = vadd.f32 %v682, %v2831
    %2833 = vdwg.mxu0
    %2834 = vmatpush.msra.mxu0 0.0
    %2835 = vmatpush.msra.mxu0 0.0
    %2836 = vmatpush.msra.mxu0 0.0
    %2837 = vmatpush.msra.mxu0 0.0
    %2838 = vmatpush.msra.mxu0 0.0
    %2839 = vmatpush.msra.mxu0 0.0
    %2840 = vmatpush.msra.mxu0 0.0
    %2841 = vmatpush.msra.mxu0 0.0
    %2842 = vmatpush.msra.mxu0 0.0
    %2843 = vmatpush.msra.mxu0 0.0
    %2844 = vmatpush.msra.mxu0 0.0
    %2845 = vmatpush.msra.mxu0 0.0
    %2846 = vmatpush.msra.mxu0 %v708
    %2847 = vmatpush.msra.mxu0 %v707
    %2848 = vmatpush.msra.mxu0 %v706
    %2849 = vmatpush.msra.mxu0 %v705
    %2850 = vmatmul.f32.gmra.mxu0 %v2772
    %v2851 = vpop.f32.mrf.mxu0
    %v2852 = vadd.f32 %v712, %v2851
    %2853 = vdwg.mxu0
    %v2855 = vsel %vm425, %v2603, 0
    %2857 = vmatpush.msra.mxu0 0.0
    %2858 = vmatpush.msra.mxu0 0.0
    %2859 = vmatpush.msra.mxu0 0.0
    %2860 = vmatpush.msra.mxu0 0.0
    %2861 = vmatpush.msra.mxu0 0.0
    %2862 = vmatpush.msra.mxu0 0.0
    %2863 = vmatpush.msra.mxu0 0.0
    %2864 = vmatpush.msra.mxu0 0.0
    %2865 = vmatpush.msra.mxu0 0.0
    %2866 = vmatpush.msra.mxu0 0.0
    %2867 = vmatpush.msra.mxu0 0.0
    %2868 = vmatpush.msra.mxu0 0.0
    %2869 = vmatpush.msra.mxu0 %v738
    %2870 = vmatpush.msra.mxu0 %v737
    %2871 = vmatpush.msra.mxu0 %v736
    %2872 = vmatpush.msra.mxu0 %v735
    %2873 = vmatmul.f32.gmra.mxu0 %v2855
    %v2874 = vpop.f32.mrf.mxu0
    %v2875 = vadd.f32 0.0, %v2874
    %2876 = vdwg.mxu0
    %v2877 = vadd.f32 %v2792, %v2875
    %2878 = vmatpush.msra.mxu0 0.0
    %2879 = vmatpush.msra.mxu0 0.0
    %2880 = vmatpush.msra.mxu0 0.0
    %2881 = vmatpush.msra.mxu0 0.0
    %2882 = vmatpush.msra.mxu0 0.0
    %2883 = vmatpush.msra.mxu0 0.0
    %2884 = vmatpush.msra.mxu0 0.0
    %2885 = vmatpush.msra.mxu0 0.0
    %2886 = vmatpush.msra.mxu0 0.0
    %2887 = vmatpush.msra.mxu0 0.0
    %2888 = vmatpush.msra.mxu0 0.0
    %2889 = vmatpush.msra.mxu0 0.0
    %2890 = vmatpush.msra.mxu0 %v767
    %2891 = vmatpush.msra.mxu0 %v766
    %2892 = vmatpush.msra.mxu0 %v765
    %2893 = vmatpush.msra.mxu0 %v764
    %2894 = vmatmul.f32.gmra.mxu0 %v2855
    %v2895 = vpop.f32.mrf.mxu0
    %v2896 = vadd.f32 0.0, %v2895
    %2897 = vdwg.mxu0
    %v2898 = vadd.f32 %v2812, %v2896
    %2899 = vmatpush.msra.mxu0 0.0
    %2900 = vmatpush.msra.mxu0 0.0
    %2901 = vmatpush.msra.mxu0 0.0
    %2902 = vmatpush.msra.mxu0 0.0
    %2903 = vmatpush.msra.mxu0 0.0
    %2904 = vmatpush.msra.mxu0 0.0
    %2905 = vmatpush.msra.mxu0 0.0
    %2906 = vmatpush.msra.mxu0 0.0
    %2907 = vmatpush.msra.mxu0 0.0
    %2908 = vmatpush.msra.mxu0 0.0
    %2909 = vmatpush.msra.mxu0 0.0
    %2910 = vmatpush.msra.mxu0 0.0
    %2911 = vmatpush.msra.mxu0 %v793
    %2912 = vmatpush.msra.mxu0 %v792
    %2913 = vmatpush.msra.mxu0 %v791
    %2914 = vmatpush.msra.mxu0 %v790
    %2915 = vmatmul.f32.gmra.mxu0 %v2855
    %v2916 = vpop.f32.mrf.mxu0
    %v2917 = vadd.f32 0.0, %v2916
    %2918 = vdwg.mxu0
    %v2919 = vadd.f32 %v2832, %v2917
    %2920 = vmatpush.msra.mxu0 0.0
    %2921 = vmatpush.msra.mxu0 0.0
    %2922 = vmatpush.msra.mxu0 0.0
    %2923 = vmatpush.msra.mxu0 0.0
    %2924 = vmatpush.msra.mxu0 0.0
    %2925 = vmatpush.msra.mxu0 0.0
    %2926 = vmatpush.msra.mxu0 0.0
    %2927 = vmatpush.msra.mxu0 0.0
    %2928 = vmatpush.msra.mxu0 0.0
    %2929 = vmatpush.msra.mxu0 0.0
    %2930 = vmatpush.msra.mxu0 0.0
    %2931 = vmatpush.msra.mxu0 0.0
    %2932 = vmatpush.msra.mxu0 %v819
    %2933 = vmatpush.msra.mxu0 %v818
    %2934 = vmatpush.msra.mxu0 %v817
    %2935 = vmatpush.msra.mxu0 %v816
    %2936 = vmatmul.f32.gmra.mxu0 %v2855
    %v2937 = vpop.f32.mrf.mxu0
    %v2938 = vadd.f32 0.0, %v2937
    %2939 = vdwg.mxu0
    %v2940 = vadd.f32 %v2852, %v2938
    %v2941 = vxor.u32 %v2877, 2147483648
    %v2942 = vmul.f32 %v2941, 1.442695
    %v2943 = vpow.pop %v2942
    %v2944 = vadd.f32 %v2943, 1.0
    %v2945 = vrcp.pop %v2944
    %v2946 = vmul.f32 %v2944, %v2945
    %v2947 = vsub.f32 1.0, %v2946
    %v2948 = vmul.f32 %v2945, %v2947
    %v2949 = vadd.f32 %v2945, %v2948
    %vm2950 = vweird.f32 %v2944
    %vm2951 = vweird.f32 %v2945
    %vm2952 = vmor %vm2950, %vm2951
    %v2953 = vsel %vm2952, %v2945, %v2949
    %v2954 = vand.u32 2147483647, %v2944
    %vm2955 = vcmp.eq.f32.partialorder %v2954, 8.507059e+37
    %v2956 = vand.u32 %v2944, 2147483648
    %v2957 = vor.u32 1.1754944e-38, %v2956
    %v2958 = vsel %vm2955, %v2957, %v2953
    %v2959 = vmul.f32 1.0, %v2958
    %v2960 = vxor.u32 %v2898, 2147483648
    %v2961 = vmul.f32 %v2960, 1.442695
    %v2962 = vpow.pop %v2961
    %v2963 = vadd.f32 %v2962, 1.0
    %v2964 = vrcp.pop %v2963
    %v2965 = vmul.f32 %v2963, %v2964
    %v2966 = vsub.f32 1.0, %v2965
    %v2967 = vmul.f32 %v2964, %v2966
    %v2968 = vadd.f32 %v2964, %v2967
    %vm2969 = vweird.f32 %v2963
    %vm2970 = vweird.f32 %v2964
    %vm2971 = vmor %vm2969, %vm2970
    %v2972 = vsel %vm2971, %v2964, %v2968
    %v2973 = vand.u32 2147483647, %v2963
    %vm2974 = vcmp.eq.f32.partialorder %v2973, 8.507059e+37
    %v2975 = vand.u32 %v2963, 2147483648
    %v2976 = vor.u32 1.1754944e-38, %v2975
    %v2977 = vsel %vm2974, %v2976, %v2972
    %v2978 = vmul.f32 1.0, %v2977
    %v2979 = vxor.u32 %v2919, 2147483648
    %v2980 = vmul.f32 %v2979, 1.442695
    %v2981 = vpow.pop %v2980
    %v2982 = vadd.f32 %v2981, 1.0
    %v2983 = vrcp.pop %v2982
    %v2984 = vmul.f32 %v2982, %v2983
    %v2985 = vsub.f32 1.0, %v2984
    %v2986 = vmul.f32 %v2983, %v2985
    %v2987 = vadd.f32 %v2983, %v2986
    %vm2988 = vweird.f32 %v2982
    %vm2989 = vweird.f32 %v2983
    %vm2990 = vmor %vm2988, %vm2989
    %v2991 = vsel %vm2990, %v2983, %v2987
    %v2992 = vand.u32 2147483647, %v2982
    %vm2993 = vcmp.eq.f32.partialorder %v2992, 8.507059e+37
    %v2994 = vand.u32 %v2982, 2147483648
    %v2995 = vor.u32 1.1754944e-38, %v2994
    %v2996 = vsel %vm2993, %v2995, %v2991
    %v2997 = vmul.f32 1.0, %v2996
    %v2998 = vmul.f32 %v2997, 2.0
    %v2999 = vsub.f32 %v2998, 1.0
    %v3000 = vxor.u32 %v2940, 2147483648
    %v3001 = vmul.f32 %v3000, 1.442695
    %v3002 = vpow.pop %v3001
    %v3003 = vadd.f32 %v3002, 1.0
    %v3004 = vrcp.pop %v3003
    %v3005 = vmul.f32 %v3003, %v3004
    %v3006 = vsub.f32 1.0, %v3005
    %v3007 = vmul.f32 %v3004, %v3006
    %v3008 = vadd.f32 %v3004, %v3007
    %vm3009 = vweird.f32 %v3003
    %vm3010 = vweird.f32 %v3004
    %vm3011 = vmor %vm3009, %vm3010
    %v3012 = vsel %vm3011, %v3004, %v3008
    %v3013 = vand.u32 2147483647, %v3003
    %vm3014 = vcmp.eq.f32.partialorder %v3013, 8.507059e+37
    %v3015 = vand.u32 %v3003, 2147483648
    %v3016 = vor.u32 1.1754944e-38, %v3015
    %v3017 = vsel %vm3014, %v3016, %v3012
    %v3018 = vmul.f32 1.0, %v3017
    %v3019 = vmul.f32 %v2978, %v2601
    %v3020 = vmul.f32 %v2959, %v2999
    %v3021 = vadd.f32 %v3019, %v3020
    %v3022 = vtanh.pop %v3021
    %v3023 = vmul.f32 %v3018, %v3022
    %3024 = vmatpush.msra.mxu0 0.0
    %3025 = vmatpush.msra.mxu0 0.0
    %3026 = vmatpush.msra.mxu0 0.0
    %3027 = vmatpush.msra.mxu0 0.0
    %3028 = vmatpush.msra.mxu0 0.0
    %3029 = vmatpush.msra.mxu0 0.0
    %3030 = vmatpush.msra.mxu0 0.0
    %3031 = vmatpush.msra.mxu0 0.0
    %3032 = vmatpush.msra.mxu0 0.0
    %3033 = vmatpush.msra.mxu0 0.0
    %3034 = vmatpush.msra.mxu0 0.0
    %3035 = vmatpush.msra.mxu0 0.0
    %3036 = vmatpush.msra.mxu0 %v424
    %3037 = vmatpush.msra.mxu0 %v423
    %3038 = vmatpush.msra.mxu0 %v422
    %3039 = vmatpush.msra.mxu0 %v421
    %3040 = vmatmul.f32.gmra.mxu0 %v2772
    %v3041 = vpop.f32.mrf.mxu0
    %v3042 = vadd.f32 0.0, %v3041
    %3043 = vdwg.mxu0
    %v3044 = vadd.f32 %v237, %v3042
    %3045 = vmatpush.msra.mxu0 0.0
    %3046 = vmatpush.msra.mxu0 0.0
    %3047 = vmatpush.msra.mxu0 0.0
    %3048 = vmatpush.msra.mxu0 0.0
    %3049 = vmatpush.msra.mxu0 0.0
    %3050 = vmatpush.msra.mxu0 0.0
    %3051 = vmatpush.msra.mxu0 0.0
    %3052 = vmatpush.msra.mxu0 0.0
    %3053 = vmatpush.msra.mxu0 0.0
    %3054 = vmatpush.msra.mxu0 0.0
    %3055 = vmatpush.msra.mxu0 0.0
    %3056 = vmatpush.msra.mxu0 0.0
    %3057 = vmatpush.msra.mxu0 %v454
    %3058 = vmatpush.msra.mxu0 %v453
    %3059 = vmatpush.msra.mxu0 %v452
    %3060 = vmatpush.msra.mxu0 %v451
    %3061 = vmatmul.f32.gmra.mxu0 %v2772
    %v3062 = vpop.f32.mrf.mxu0
    %v3063 = vadd.f32 0.0, %v3062
    %3064 = vdwg.mxu0
    %v3065 = vadd.f32 %v292, %v3063
    %3066 = vmatpush.msra.mxu0 0.0
    %3067 = vmatpush.msra.mxu0 0.0
    %3068 = vmatpush.msra.mxu0 0.0
    %3069 = vmatpush.msra.mxu0 0.0
    %3070 = vmatpush.msra.mxu0 0.0
    %3071 = vmatpush.msra.mxu0 0.0
    %3072 = vmatpush.msra.mxu0 0.0
    %3073 = vmatpush.msra.mxu0 0.0
    %3074 = vmatpush.msra.mxu0 0.0
    %3075 = vmatpush.msra.mxu0 0.0
    %3076 = vmatpush.msra.mxu0 0.0
    %3077 = vmatpush.msra.mxu0 0.0
    %3078 = vmatpush.msra.mxu0 %v480
    %3079 = vmatpush.msra.mxu0 %v479
    %3080 = vmatpush.msra.mxu0 %v478
    %3081 = vmatpush.msra.mxu0 %v477
    %3082 = vmatmul.f32.gmra.mxu0 %v2772
    %v3083 = vpop.f32.mrf.mxu0
    %v3084 = vadd.f32 0.0, %v3083
    %3085 = vdwg.mxu0
    %v3086 = vadd.f32 %v347, %v3084
    %3087 = vmatpush.msra.mxu0 0.0
    %3088 = vmatpush.msra.mxu0 0.0
    %3089 = vmatpush.msra.mxu0 0.0
    %3090 = vmatpush.msra.mxu0 0.0
    %3091 = vmatpush.msra.mxu0 0.0
    %3092 = vmatpush.msra.mxu0 0.0
    %3093 = vmatpush.msra.mxu0 0.0
    %3094 = vmatpush.msra.mxu0 0.0
    %3095 = vmatpush.msra.mxu0 0.0
    %3096 = vmatpush.msra.mxu0 0.0
    %3097 = vmatpush.msra.mxu0 0.0
    %3098 = vmatpush.msra.mxu0 0.0
    %3099 = vmatpush.msra.mxu0 %v506
    %3100 = vmatpush.msra.mxu0 %v505
    %3101 = vmatpush.msra.mxu0 %v504
    %3102 = vmatpush.msra.mxu0 %v503
    %3103 = vmatmul.f32.gmra.mxu0 %v2772
    %v3104 = vpop.f32.mrf.mxu0
    %v3105 = vadd.f32 0.0, %v3104
    %3106 = vdwg.mxu0
    %v3107 = vadd.f32 %v402, %v3105
    %v3108 = vxor.u32 %v3044, 2147483648
    %v3109 = vmul.f32 %v3108, 1.442695
    %v3110 = vpow.pop %v3109
    %v3111 = vadd.f32 %v3110, 1.0
    %v3112 = vrcp.pop %v3111
    %v3113 = vmul.f32 %v3111, %v3112
    %v3114 = vsub.f32 1.0, %v3113
    %v3115 = vmul.f32 %v3112, %v3114
    %v3116 = vadd.f32 %v3112, %v3115
    %vm3117 = vweird.f32 %v3111
    %vm3118 = vweird.f32 %v3112
    %vm3119 = vmor %vm3117, %vm3118
    %v3120 = vsel %vm3119, %v3112, %v3116
    %v3121 = vand.u32 2147483647, %v3111
    %vm3122 = vcmp.eq.f32.partialorder %v3121, 8.507059e+37
    %v3123 = vand.u32 %v3111, 2147483648
    %v3124 = vor.u32 1.1754944e-38, %v3123
    %v3125 = vsel %vm3122, %v3124, %v3120
    %v3126 = vmul.f32 1.0, %v3125
    %v3127 = vxor.u32 %v3065, 2147483648
    %v3128 = vmul.f32 %v3127, 1.442695
    %v3129 = vpow.pop %v3128
    %v3130 = vadd.f32 %v3129, 1.0
    %v3131 = vrcp.pop %v3130
    %v3132 = vmul.f32 %v3130, %v3131
    %v3133 = vsub.f32 1.0, %v3132
    %v3134 = vmul.f32 %v3131, %v3133
    %v3135 = vadd.f32 %v3131, %v3134
    %vm3136 = vweird.f32 %v3130
    %vm3137 = vweird.f32 %v3131
    %vm3138 = vmor %vm3136, %vm3137
    %v3139 = vsel %vm3138, %v3131, %v3135
    %v3140 = vand.u32 2147483647, %v3130
    %vm3141 = vcmp.eq.f32.partialorder %v3140, 8.507059e+37
    %v3142 = vand.u32 %v3130, 2147483648
    %v3143 = vor.u32 1.1754944e-38, %v3142
    %v3144 = vsel %vm3141, %v3143, %v3139
    %v3145 = vmul.f32 1.0, %v3144
    %v3146 = vxor.u32 %v3086, 2147483648
    %v3147 = vmul.f32 %v3146, 1.442695
    %v3148 = vpow.pop %v3147
    %v3149 = vadd.f32 %v3148, 1.0
    %v3150 = vrcp.pop %v3149
    %v3151 = vmul.f32 %v3149, %v3150
    %v3152 = vsub.f32 1.0, %v3151
    %v3153 = vmul.f32 %v3150, %v3152
    %v3154 = vadd.f32 %v3150, %v3153
    %vm3155 = vweird.f32 %v3149
    %vm3156 = vweird.f32 %v3150
    %vm3157 = vmor %vm3155, %vm3156
    %v3158 = vsel %vm3157, %v3150, %v3154
    %v3159 = vand.u32 2147483647, %v3149
    %vm3160 = vcmp.eq.f32.partialorder %v3159, 8.507059e+37
    %v3161 = vand.u32 %v3149, 2147483648
    %v3162 = vor.u32 1.1754944e-38, %v3161
    %v3163 = vsel %vm3160, %v3162, %v3158
    %v3164 = vmul.f32 1.0, %v3163
    %v3165 = vmul.f32 %v3164, 2.0
    %v3166 = vsub.f32 %v3165, 1.0
    %v3167 = vxor.u32 %v3107, 2147483648
    %v3168 = vmul.f32 %v3167, 1.442695
    %v3169 = vpow.pop %v3168
    %v3170 = vadd.f32 %v3169, 1.0
    %v3171 = vrcp.pop %v3170
    %v3172 = vmul.f32 %v3170, %v3171
    %v3173 = vsub.f32 1.0, %v3172
    %v3174 = vmul.f32 %v3171, %v3173
    %v3175 = vadd.f32 %v3171, %v3174
    %vm3176 = vweird.f32 %v3170
    %vm3177 = vweird.f32 %v3171
    %vm3178 = vmor %vm3176, %vm3177
    %v3179 = vsel %vm3178, %v3171, %v3175
    %v3180 = vand.u32 2147483647, %v3170
    %vm3181 = vcmp.eq.f32.partialorder %v3180, 8.507059e+37
    %v3182 = vand.u32 %v3170, 2147483648
    %v3183 = vor.u32 1.1754944e-38, %v3182
    %v3184 = vsel %vm3181, %v3183, %v3179
    %v3185 = vmul.f32 1.0, %v3184
    %v3186 = vmul.f32 %v3145, %v2768
    %v3187 = vmul.f32 %v3126, %v3166
    %v3188 = vadd.f32 %v3186, %v3187
    %v3189 = vtanh.pop %v3188
    %v3190 = vmul.f32 %v3185, %v3189
    %v3192 = vsel %vm425, %v3190, 0
    %3194 = vmatpush.msra.mxu0 0.0
    %3195 = vmatpush.msra.mxu0 0.0
    %3196 = vmatpush.msra.mxu0 0.0
    %3197 = vmatpush.msra.mxu0 0.0
    %3198 = vmatpush.msra.mxu0 0.0
    %3199 = vmatpush.msra.mxu0 0.0
    %3200 = vmatpush.msra.mxu0 0.0
    %3201 = vmatpush.msra.mxu0 0.0
    %3202 = vmatpush.msra.mxu0 0.0
    %3203 = vmatpush.msra.mxu0 0.0
    %3204 = vmatpush.msra.mxu0 0.0
    %3205 = vmatpush.msra.mxu0 0.0
    %3206 = vmatpush.msra.mxu0 %v615
    %3207 = vmatpush.msra.mxu0 %v614
    %3208 = vmatpush.msra.mxu0 %v613
    %3209 = vmatpush.msra.mxu0 %v612
    %3210 = vmatmul.f32.gmra.mxu0 %v3192
    %v3211 = vpop.f32.mrf.mxu0
    %v3212 = vadd.f32 %v619, %v3211
    %3213 = vdwg.mxu0
    %3214 = vmatpush.msra.mxu0 0.0
    %3215 = vmatpush.msra.mxu0 0.0
    %3216 = vmatpush.msra.mxu0 0.0
    %3217 = vmatpush.msra.mxu0 0.0
    %3218 = vmatpush.msra.mxu0 0.0
    %3219 = vmatpush.msra.mxu0 0.0
    %3220 = vmatpush.msra.mxu0 0.0
    %3221 = vmatpush.msra.mxu0 0.0
    %3222 = vmatpush.msra.mxu0 0.0
    %3223 = vmatpush.msra.mxu0 0.0
    %3224 = vmatpush.msra.mxu0 0.0
    %3225 = vmatpush.msra.mxu0 0.0
    %3226 = vmatpush.msra.mxu0 %v648
    %3227 = vmatpush.msra.mxu0 %v647
    %3228 = vmatpush.msra.mxu0 %v646
    %3229 = vmatpush.msra.mxu0 %v645
    %3230 = vmatmul.f32.gmra.mxu0 %v3192
    %v3231 = vpop.f32.mrf.mxu0
    %v3232 = vadd.f32 %v652, %v3231
    %3233 = vdwg.mxu0
    %3234 = vmatpush.msra.mxu0 0.0
    %3235 = vmatpush.msra.mxu0 0.0
    %3236 = vmatpush.msra.mxu0 0.0
    %3237 = vmatpush.msra.mxu0 0.0
    %3238 = vmatpush.msra.mxu0 0.0
    %3239 = vmatpush.msra.mxu0 0.0
    %3240 = vmatpush.msra.mxu0 0.0
    %3241 = vmatpush.msra.mxu0 0.0
    %3242 = vmatpush.msra.mxu0 0.0
    %3243 = vmatpush.msra.mxu0 0.0
    %3244 = vmatpush.msra.mxu0 0.0
    %3245 = vmatpush.msra.mxu0 0.0
    %3246 = vmatpush.msra.mxu0 %v678
    %3247 = vmatpush.msra.mxu0 %v677
    %3248 = vmatpush.msra.mxu0 %v676
    %3249 = vmatpush.msra.mxu0 %v675
    %3250 = vmatmul.f32.gmra.mxu0 %v3192
    %v3251 = vpop.f32.mrf.mxu0
    %v3252 = vadd.f32 %v682, %v3251
    %3253 = vdwg.mxu0
    %3254 = vmatpush.msra.mxu0 0.0
    %3255 = vmatpush.msra.mxu0 0.0
    %3256 = vmatpush.msra.mxu0 0.0
    %3257 = vmatpush.msra.mxu0 0.0
    %3258 = vmatpush.msra.mxu0 0.0
    %3259 = vmatpush.msra.mxu0 0.0
    %3260 = vmatpush.msra.mxu0 0.0
    %3261 = vmatpush.msra.mxu0 0.0
    %3262 = vmatpush.msra.mxu0 0.0
    %3263 = vmatpush.msra.mxu0 0.0
    %3264 = vmatpush.msra.mxu0 0.0
    %3265 = vmatpush.msra.mxu0 0.0
    %3266 = vmatpush.msra.mxu0 %v708
    %3267 = vmatpush.msra.mxu0 %v707
    %3268 = vmatpush.msra.mxu0 %v706
    %3269 = vmatpush.msra.mxu0 %v705
    %3270 = vmatmul.f32.gmra.mxu0 %v3192
    %v3271 = vpop.f32.mrf.mxu0
    %v3272 = vadd.f32 %v712, %v3271
    %3273 = vdwg.mxu0
    %v3275 = vsel %vm425, %v3023, 0
    %3277 = vmatpush.msra.mxu0 0.0
    %3278 = vmatpush.msra.mxu0 0.0
    %3279 = vmatpush.msra.mxu0 0.0
    %3280 = vmatpush.msra.mxu0 0.0
    %3281 = vmatpush.msra.mxu0 0.0
    %3282 = vmatpush.msra.mxu0 0.0
    %3283 = vmatpush.msra.mxu0 0.0
    %3284 = vmatpush.msra.mxu0 0.0
    %3285 = vmatpush.msra.mxu0 0.0
    %3286 = vmatpush.msra.mxu0 0.0
    %3287 = vmatpush.msra.mxu0 0.0
    %3288 = vmatpush.msra.mxu0 0.0
    %3289 = vmatpush.msra.mxu0 %v738
    %3290 = vmatpush.msra.mxu0 %v737
    %3291 = vmatpush.msra.mxu0 %v736
    %3292 = vmatpush.msra.mxu0 %v735
    %3293 = vmatmul.f32.gmra.mxu0 %v3275
    %v3294 = vpop.f32.mrf.mxu0
    %v3295 = vadd.f32 0.0, %v3294
    %3296 = vdwg.mxu0
    %v3297 = vadd.f32 %v3212, %v3295
    %3298 = vmatpush.msra.mxu0 0.0
    %3299 = vmatpush.msra.mxu0 0.0
    %3300 = vmatpush.msra.mxu0 0.0
    %3301 = vmatpush.msra.mxu0 0.0
    %3302 = vmatpush.msra.mxu0 0.0
    %3303 = vmatpush.msra.mxu0 0.0
    %3304 = vmatpush.msra.mxu0 0.0
    %3305 = vmatpush.msra.mxu0 0.0
    %3306 = vmatpush.msra.mxu0 0.0
    %3307 = vmatpush.msra.mxu0 0.0
    %3308 = vmatpush.msra.mxu0 0.0
    %3309 = vmatpush.msra.mxu0 0.0
    %3310 = vmatpush.msra.mxu0 %v767
    %3311 = vmatpush.msra.mxu0 %v766
    %3312 = vmatpush.msra.mxu0 %v765
    %3313 = vmatpush.msra.mxu0 %v764
    %3314 = vmatmul.f32.gmra.mxu0 %v3275
    %v3315 = vpop.f32.mrf.mxu0
    %v3316 = vadd.f32 0.0, %v3315
    %3317 = vdwg.mxu0
    %v3318 = vadd.f32 %v3232, %v3316
    %3319 = vmatpush.msra.mxu0 0.0
    %3320 = vmatpush.msra.mxu0 0.0
    %3321 = vmatpush.msra.mxu0 0.0
    %3322 = vmatpush.msra.mxu0 0.0
    %3323 = vmatpush.msra.mxu0 0.0
    %3324 = vmatpush.msra.mxu0 0.0
    %3325 = vmatpush.msra.mxu0 0.0
    %3326 = vmatpush.msra.mxu0 0.0
    %3327 = vmatpush.msra.mxu0 0.0
    %3328 = vmatpush.msra.mxu0 0.0
    %3329 = vmatpush.msra.mxu0 0.0
    %3330 = vmatpush.msra.mxu0 0.0
    %3331 = vmatpush.msra.mxu0 %v793
    %3332 = vmatpush.msra.mxu0 %v792
    %3333 = vmatpush.msra.mxu0 %v791
    %3334 = vmatpush.msra.mxu0 %v790
    %3335 = vmatmul.f32.gmra.mxu0 %v3275
    %v3336 = vpop.f32.mrf.mxu0
    %v3337 = vadd.f32 0.0, %v3336
    %3338 = vdwg.mxu0
    %v3339 = vadd.f32 %v3252, %v3337
    %3340 = vmatpush.msra.mxu0 0.0
    %3341 = vmatpush.msra.mxu0 0.0
    %3342 = vmatpush.msra.mxu0 0.0
    %3343 = vmatpush.msra.mxu0 0.0
    %3344 = vmatpush.msra.mxu0 0.0
    %3345 = vmatpush.msra.mxu0 0.0
    %3346 = vmatpush.msra.mxu0 0.0
    %3347 = vmatpush.msra.mxu0 0.0
    %3348 = vmatpush.msra.mxu0 0.0
    %3349 = vmatpush.msra.mxu0 0.0
    %3350 = vmatpush.msra.mxu0 0.0
    %3351 = vmatpush.msra.mxu0 0.0
    %3352 = vmatpush.msra.mxu0 %v819
    %3353 = vmatpush.msra.mxu0 %v818
    %3354 = vmatpush.msra.mxu0 %v817
    %3355 = vmatpush.msra.mxu0 %v816
    %3356 = vmatmul.f32.gmra.mxu0 %v3275
    %v3357 = vpop.f32.mrf.mxu0
    %v3358 = vadd.f32 0.0, %v3357
    %3359 = vdwg.mxu0
    %v3360 = vadd.f32 %v3272, %v3358
    %v3361 = vxor.u32 %v3297, 2147483648
    %v3362 = vmul.f32 %v3361, 1.442695
    %v3363 = vpow.pop %v3362
    %v3364 = vadd.f32 %v3363, 1.0
    %v3365 = vrcp.pop %v3364
    %v3366 = vmul.f32 %v3364, %v3365
    %v3367 = vsub.f32 1.0, %v3366
    %v3368 = vmul.f32 %v3365, %v3367
    %v3369 = vadd.f32 %v3365, %v3368
    %vm3370 = vweird.f32 %v3364
    %vm3371 = vweird.f32 %v3365
    %vm3372 = vmor %vm3370, %vm3371
    %v3373 = vsel %vm3372, %v3365, %v3369
    %v3374 = vand.u32 2147483647, %v3364
    %vm3375 = vcmp.eq.f32.partialorder %v3374, 8.507059e+37
    %v3376 = vand.u32 %v3364, 2147483648
    %v3377 = vor.u32 1.1754944e-38, %v3376
    %v3378 = vsel %vm3375, %v3377, %v3373
    %v3379 = vmul.f32 1.0, %v3378
    %v3380 = vxor.u32 %v3318, 2147483648
    %v3381 = vmul.f32 %v3380, 1.442695
    %v3382 = vpow.pop %v3381
    %v3383 = vadd.f32 %v3382, 1.0
    %v3384 = vrcp.pop %v3383
    %v3385 = vmul.f32 %v3383, %v3384
    %v3386 = vsub.f32 1.0, %v3385
    %v3387 = vmul.f32 %v3384, %v3386
    %v3388 = vadd.f32 %v3384, %v3387
    %vm3389 = vweird.f32 %v3383
    %vm3390 = vweird.f32 %v3384
    %vm3391 = vmor %vm3389, %vm3390
    %v3392 = vsel %vm3391, %v3384, %v3388
    %v3393 = vand.u32 2147483647, %v3383
    %vm3394 = vcmp.eq.f32.partialorder %v3393, 8.507059e+37
    %v3395 = vand.u32 %v3383, 2147483648
    %v3396 = vor.u32 1.1754944e-38, %v3395
    %v3397 = vsel %vm3394, %v3396, %v3392
    %v3398 = vmul.f32 1.0, %v3397
    %v3399 = vxor.u32 %v3339, 2147483648
    %v3400 = vmul.f32 %v3399, 1.442695
    %v3401 = vpow.pop %v3400
    %v3402 = vadd.f32 %v3401, 1.0
    %v3403 = vrcp.pop %v3402
    %v3404 = vmul.f32 %v3402, %v3403
    %v3405 = vsub.f32 1.0, %v3404
    %v3406 = vmul.f32 %v3403, %v3405
    %v3407 = vadd.f32 %v3403, %v3406
    %vm3408 = vweird.f32 %v3402
    %vm3409 = vweird.f32 %v3403
    %vm3410 = vmor %vm3408, %vm3409
    %v3411 = vsel %vm3410, %v3403, %v3407
    %v3412 = vand.u32 2147483647, %v3402
    %vm3413 = vcmp.eq.f32.partialorder %v3412, 8.507059e+37
    %v3414 = vand.u32 %v3402, 2147483648
    %v3415 = vor.u32 1.1754944e-38, %v3414
    %v3416 = vsel %vm3413, %v3415, %v3411
    %v3417 = vmul.f32 1.0, %v3416
    %v3418 = vmul.f32 %v3417, 2.0
    %v3419 = vsub.f32 %v3418, 1.0
    %v3420 = vxor.u32 %v3360, 2147483648
    %v3421 = vmul.f32 %v3420, 1.442695
    %v3422 = vpow.pop %v3421
    %v3423 = vadd.f32 %v3422, 1.0
    %v3424 = vrcp.pop %v3423
    %v3425 = vmul.f32 %v3423, %v3424
    %v3426 = vsub.f32 1.0, %v3425
    %v3427 = vmul.f32 %v3424, %v3426
    %v3428 = vadd.f32 %v3424, %v3427
    %vm3429 = vweird.f32 %v3423
    %vm3430 = vweird.f32 %v3424
    %vm3431 = vmor %vm3429, %vm3430
    %v3432 = vsel %vm3431, %v3424, %v3428
    %v3433 = vand.u32 2147483647, %v3423
    %vm3434 = vcmp.eq.f32.partialorder %v3433, 8.507059e+37
    %v3435 = vand.u32 %v3423, 2147483648
    %v3436 = vor.u32 1.1754944e-38, %v3435
    %v3437 = vsel %vm3434, %v3436, %v3432
    %v3438 = vmul.f32 1.0, %v3437
    %v3439 = vmul.f32 %v3398, %v3021
    %v3440 = vmul.f32 %v3379, %v3419
    %v3441 = vadd.f32 %v3439, %v3440
    %v3442 = vtanh.pop %v3441
    %v3443 = vmul.f32 %v3438, %v3442
    %3444 = vmatpush.msra.mxu0 0.0
    %3445 = vmatpush.msra.mxu0 0.0
    %3446 = vmatpush.msra.mxu0 0.0
    %3447 = vmatpush.msra.mxu0 0.0
    %3448 = vmatpush.msra.mxu0 0.0
    %3449 = vmatpush.msra.mxu0 0.0
    %3450 = vmatpush.msra.mxu0 0.0
    %3451 = vmatpush.msra.mxu0 0.0
    %3452 = vmatpush.msra.mxu0 0.0
    %3453 = vmatpush.msra.mxu0 0.0
    %3454 = vmatpush.msra.mxu0 0.0
    %3455 = vmatpush.msra.mxu0 0.0
    %3456 = vmatpush.msra.mxu0 %v424
    %3457 = vmatpush.msra.mxu0 %v423
    %3458 = vmatpush.msra.mxu0 %v422
    %3459 = vmatpush.msra.mxu0 %v421
    %3460 = vmatmul.f32.gmra.mxu0 %v3192
    %v3461 = vpop.f32.mrf.mxu0
    %v3462 = vadd.f32 0.0, %v3461
    %3463 = vdwg.mxu0
    %v3464 = vadd.f32 %v240, %v3462
    %3465 = vmatpush.msra.mxu0 0.0
    %3466 = vmatpush.msra.mxu0 0.0
    %3467 = vmatpush.msra.mxu0 0.0
    %3468 = vmatpush.msra.mxu0 0.0
    %3469 = vmatpush.msra.mxu0 0.0
    %3470 = vmatpush.msra.mxu0 0.0
    %3471 = vmatpush.msra.mxu0 0.0
    %3472 = vmatpush.msra.mxu0 0.0
    %3473 = vmatpush.msra.mxu0 0.0
    %3474 = vmatpush.msra.mxu0 0.0
    %3475 = vmatpush.msra.mxu0 0.0
    %3476 = vmatpush.msra.mxu0 0.0
    %3477 = vmatpush.msra.mxu0 %v454
    %3478 = vmatpush.msra.mxu0 %v453
    %3479 = vmatpush.msra.mxu0 %v452
    %3480 = vmatpush.msra.mxu0 %v451
    %3481 = vmatmul.f32.gmra.mxu0 %v3192
    %v3482 = vpop.f32.mrf.mxu0
    %v3483 = vadd.f32 0.0, %v3482
    %3484 = vdwg.mxu0
    %v3485 = vadd.f32 %v295, %v3483
    %3486 = vmatpush.msra.mxu0 0.0
    %3487 = vmatpush.msra.mxu0 0.0
    %3488 = vmatpush.msra.mxu0 0.0
    %3489 = vmatpush.msra.mxu0 0.0
    %3490 = vmatpush.msra.mxu0 0.0
    %3491 = vmatpush.msra.mxu0 0.0
    %3492 = vmatpush.msra.mxu0 0.0
    %3493 = vmatpush.msra.mxu0 0.0
    %3494 = vmatpush.msra.mxu0 0.0
    %3495 = vmatpush.msra.mxu0 0.0
    %3496 = vmatpush.msra.mxu0 0.0
    %3497 = vmatpush.msra.mxu0 0.0
    %3498 = vmatpush.msra.mxu0 %v480
    %3499 = vmatpush.msra.mxu0 %v479
    %3500 = vmatpush.msra.mxu0 %v478
    %3501 = vmatpush.msra.mxu0 %v477
    %3502 = vmatmul.f32.gmra.mxu0 %v3192
    %v3503 = vpop.f32.mrf.mxu0
    %v3504 = vadd.f32 0.0, %v3503
    %3505 = vdwg.mxu0
    %v3506 = vadd.f32 %v350, %v3504
    %3507 = vmatpush.msra.mxu0 0.0
    %3508 = vmatpush.msra.mxu0 0.0
    %3509 = vmatpush.msra.mxu0 0.0
    %3510 = vmatpush.msra.mxu0 0.0
    %3511 = vmatpush.msra.mxu0 0.0
    %3512 = vmatpush.msra.mxu0 0.0
    %3513 = vmatpush.msra.mxu0 0.0
    %3514 = vmatpush.msra.mxu0 0.0
    %3515 = vmatpush.msra.mxu0 0.0
    %3516 = vmatpush.msra.mxu0 0.0
    %3517 = vmatpush.msra.mxu0 0.0
    %3518 = vmatpush.msra.mxu0 0.0
    %3519 = vmatpush.msra.mxu0 %v506
    %3520 = vmatpush.msra.mxu0 %v505
    %3521 = vmatpush.msra.mxu0 %v504
    %3522 = vmatpush.msra.mxu0 %v503
    %3523 = vmatmul.f32.gmra.mxu0 %v3192
    %v3524 = vpop.f32.mrf.mxu0
    %v3525 = vadd.f32 0.0, %v3524
    %3526 = vdwg.mxu0
    %v3527 = vadd.f32 %v405, %v3525
    %v3528 = vxor.u32 %v3464, 2147483648
    %v3529 = vmul.f32 %v3528, 1.442695
    %v3530 = vpow.pop %v3529
    %v3531 = vadd.f32 %v3530, 1.0
    %v3532 = vrcp.pop %v3531
    %v3533 = vmul.f32 %v3531, %v3532
    %v3534 = vsub.f32 1.0, %v3533
    %v3535 = vmul.f32 %v3532, %v3534
    %v3536 = vadd.f32 %v3532, %v3535
    %vm3537 = vweird.f32 %v3531
    %vm3538 = vweird.f32 %v3532
    %vm3539 = vmor %vm3537, %vm3538
    %v3540 = vsel %vm3539, %v3532, %v3536
    %v3541 = vand.u32 2147483647, %v3531
    %vm3542 = vcmp.eq.f32.partialorder %v3541, 8.507059e+37
    %v3543 = vand.u32 %v3531, 2147483648
    %v3544 = vor.u32 1.1754944e-38, %v3543
    %v3545 = vsel %vm3542, %v3544, %v3540
    %v3546 = vmul.f32 1.0, %v3545
    %v3547 = vxor.u32 %v3485, 2147483648
    %v3548 = vmul.f32 %v3547, 1.442695
    %v3549 = vpow.pop %v3548
    %v3550 = vadd.f32 %v3549, 1.0
    %v3551 = vrcp.pop %v3550
    %v3552 = vmul.f32 %v3550, %v3551
    %v3553 = vsub.f32 1.0, %v3552
    %v3554 = vmul.f32 %v3551, %v3553
    %v3555 = vadd.f32 %v3551, %v3554
    %vm3556 = vweird.f32 %v3550
    %vm3557 = vweird.f32 %v3551
    %vm3558 = vmor %vm3556, %vm3557
    %v3559 = vsel %vm3558, %v3551, %v3555
    %v3560 = vand.u32 2147483647, %v3550
    %vm3561 = vcmp.eq.f32.partialorder %v3560, 8.507059e+37
    %v3562 = vand.u32 %v3550, 2147483648
    %v3563 = vor.u32 1.1754944e-38, %v3562
    %v3564 = vsel %vm3561, %v3563, %v3559
    %v3565 = vmul.f32 1.0, %v3564
    %v3566 = vxor.u32 %v3506, 2147483648
    %v3567 = vmul.f32 %v3566, 1.442695
    %v3568 = vpow.pop %v3567
    %v3569 = vadd.f32 %v3568, 1.0
    %v3570 = vrcp.pop %v3569
    %v3571 = vmul.f32 %v3569, %v3570
    %v3572 = vsub.f32 1.0, %v3571
    %v3573 = vmul.f32 %v3570, %v3572
    %v3574 = vadd.f32 %v3570, %v3573
    %vm3575 = vweird.f32 %v3569
    %vm3576 = vweird.f32 %v3570
    %vm3577 = vmor %vm3575, %vm3576
    %v3578 = vsel %vm3577, %v3570, %v3574
    %v3579 = vand.u32 2147483647, %v3569
    %vm3580 = vcmp.eq.f32.partialorder %v3579, 8.507059e+37
    %v3581 = vand.u32 %v3569, 2147483648
    %v3582 = vor.u32 1.1754944e-38, %v3581
    %v3583 = vsel %vm3580, %v3582, %v3578
    %v3584 = vmul.f32 1.0, %v3583
    %v3585 = vmul.f32 %v3584, 2.0
    %v3586 = vsub.f32 %v3585, 1.0
    %v3587 = vxor.u32 %v3527, 2147483648
    %v3588 = vmul.f32 %v3587, 1.442695
    %v3589 = vpow.pop %v3588
    %v3590 = vadd.f32 %v3589, 1.0
    %v3591 = vrcp.pop %v3590
    %v3592 = vmul.f32 %v3590, %v3591
    %v3593 = vsub.f32 1.0, %v3592
    %v3594 = vmul.f32 %v3591, %v3593
    %v3595 = vadd.f32 %v3591, %v3594
    %vm3596 = vweird.f32 %v3590
    %vm3597 = vweird.f32 %v3591
    %vm3598 = vmor %vm3596, %vm3597
    %v3599 = vsel %vm3598, %v3591, %v3595
    %v3600 = vand.u32 2147483647, %v3590
    %vm3601 = vcmp.eq.f32.partialorder %v3600, 8.507059e+37
    %v3602 = vand.u32 %v3590, 2147483648
    %v3603 = vor.u32 1.1754944e-38, %v3602
    %v3604 = vsel %vm3601, %v3603, %v3599
    %v3605 = vmul.f32 1.0, %v3604
    %v3606 = vmul.f32 %v3565, %v3188
    %v3607 = vmul.f32 %v3546, %v3586
    %v3608 = vadd.f32 %v3606, %v3607
    %v3609 = vtanh.pop %v3608
    %v3610 = vmul.f32 %v3605, %v3609
    %v3612 = vsel %vm425, %v3610, 0
    %3614 = vmatpush.msra.mxu0 0.0
    %3615 = vmatpush.msra.mxu0 0.0
    %3616 = vmatpush.msra.mxu0 0.0
    %3617 = vmatpush.msra.mxu0 0.0
    %3618 = vmatpush.msra.mxu0 0.0
    %3619 = vmatpush.msra.mxu0 0.0
    %3620 = vmatpush.msra.mxu0 0.0
    %3621 = vmatpush.msra.mxu0 0.0
    %3622 = vmatpush.msra.mxu0 0.0
    %3623 = vmatpush.msra.mxu0 0.0
    %3624 = vmatpush.msra.mxu0 0.0
    %3625 = vmatpush.msra.mxu0 0.0
    %3626 = vmatpush.msra.mxu0 %v615
    %3627 = vmatpush.msra.mxu0 %v614
    %3628 = vmatpush.msra.mxu0 %v613
    %3629 = vmatpush.msra.mxu0 %v612
    %3630 = vmatmul.f32.gmra.mxu0 %v3612
    %v3631 = vpop.f32.mrf.mxu0
    %v3632 = vadd.f32 %v619, %v3631
    %3633 = vdwg.mxu0
    %3634 = vmatpush.msra.mxu0 0.0
    %3635 = vmatpush.msra.mxu0 0.0
    %3636 = vmatpush.msra.mxu0 0.0
    %3637 = vmatpush.msra.mxu0 0.0
    %3638 = vmatpush.msra.mxu0 0.0
    %3639 = vmatpush.msra.mxu0 0.0
    %3640 = vmatpush.msra.mxu0 0.0
    %3641 = vmatpush.msra.mxu0 0.0
    %3642 = vmatpush.msra.mxu0 0.0
    %3643 = vmatpush.msra.mxu0 0.0
    %3644 = vmatpush.msra.mxu0 0.0
    %3645 = vmatpush.msra.mxu0 0.0
    %3646 = vmatpush.msra.mxu0 %v648
    %3647 = vmatpush.msra.mxu0 %v647
    %3648 = vmatpush.msra.mxu0 %v646
    %3649 = vmatpush.msra.mxu0 %v645
    %3650 = vmatmul.f32.gmra.mxu0 %v3612
    %v3651 = vpop.f32.mrf.mxu0
    %v3652 = vadd.f32 %v652, %v3651
    %3653 = vdwg.mxu0
    %3654 = vmatpush.msra.mxu0 0.0
    %3655 = vmatpush.msra.mxu0 0.0
    %3656 = vmatpush.msra.mxu0 0.0
    %3657 = vmatpush.msra.mxu0 0.0
    %3658 = vmatpush.msra.mxu0 0.0
    %3659 = vmatpush.msra.mxu0 0.0
    %3660 = vmatpush.msra.mxu0 0.0
    %3661 = vmatpush.msra.mxu0 0.0
    %3662 = vmatpush.msra.mxu0 0.0
    %3663 = vmatpush.msra.mxu0 0.0
    %3664 = vmatpush.msra.mxu0 0.0
    %3665 = vmatpush.msra.mxu0 0.0
    %3666 = vmatpush.msra.mxu0 %v678
    %3667 = vmatpush.msra.mxu0 %v677
    %3668 = vmatpush.msra.mxu0 %v676
    %3669 = vmatpush.msra.mxu0 %v675
    %3670 = vmatmul.f32.gmra.mxu0 %v3612
    %v3671 = vpop.f32.mrf.mxu0
    %v3672 = vadd.f32 %v682, %v3671
    %3673 = vdwg.mxu0
    %3674 = vmatpush.msra.mxu0 0.0
    %3675 = vmatpush.msra.mxu0 0.0
    %3676 = vmatpush.msra.mxu0 0.0
    %3677 = vmatpush.msra.mxu0 0.0
    %3678 = vmatpush.msra.mxu0 0.0
    %3679 = vmatpush.msra.mxu0 0.0
    %3680 = vmatpush.msra.mxu0 0.0
    %3681 = vmatpush.msra.mxu0 0.0
    %3682 = vmatpush.msra.mxu0 0.0
    %3683 = vmatpush.msra.mxu0 0.0
    %3684 = vmatpush.msra.mxu0 0.0
    %3685 = vmatpush.msra.mxu0 0.0
    %3686 = vmatpush.msra.mxu0 %v708
    %3687 = vmatpush.msra.mxu0 %v707
    %3688 = vmatpush.msra.mxu0 %v706
    %3689 = vmatpush.msra.mxu0 %v705
    %3690 = vmatmul.f32.gmra.mxu0 %v3612
    %v3691 = vpop.f32.mrf.mxu0
    %v3692 = vadd.f32 %v712, %v3691
    %3693 = vdwg.mxu0
    %v3695 = vsel %vm425, %v3443, 0
    %3697 = vmatpush.msra.mxu0 0.0
    %3698 = vmatpush.msra.mxu0 0.0
    %3699 = vmatpush.msra.mxu0 0.0
    %3700 = vmatpush.msra.mxu0 0.0
    %3701 = vmatpush.msra.mxu0 0.0
    %3702 = vmatpush.msra.mxu0 0.0
    %3703 = vmatpush.msra.mxu0 0.0
    %3704 = vmatpush.msra.mxu0 0.0
    %3705 = vmatpush.msra.mxu0 0.0
    %3706 = vmatpush.msra.mxu0 0.0
    %3707 = vmatpush.msra.mxu0 0.0
    %3708 = vmatpush.msra.mxu0 0.0
    %3709 = vmatpush.msra.mxu0 %v738
    %3710 = vmatpush.msra.mxu0 %v737
    %3711 = vmatpush.msra.mxu0 %v736
    %3712 = vmatpush.msra.mxu0 %v735
    %3713 = vmatmul.f32.gmra.mxu0 %v3695
    %v3714 = vpop.f32.mrf.mxu0
    %v3715 = vadd.f32 0.0, %v3714
    %3716 = vdwg.mxu0
    %v3717 = vadd.f32 %v3632, %v3715
    %3718 = vmatpush.msra.mxu0 0.0
    %3719 = vmatpush.msra.mxu0 0.0
    %3720 = vmatpush.msra.mxu0 0.0
    %3721 = vmatpush.msra.mxu0 0.0
    %3722 = vmatpush.msra.mxu0 0.0
    %3723 = vmatpush.msra.mxu0 0.0
    %3724 = vmatpush.msra.mxu0 0.0
    %3725 = vmatpush.msra.mxu0 0.0
    %3726 = vmatpush.msra.mxu0 0.0
    %3727 = vmatpush.msra.mxu0 0.0
    %3728 = vmatpush.msra.mxu0 0.0
    %3729 = vmatpush.msra.mxu0 0.0
    %3730 = vmatpush.msra.mxu0 %v767
    %3731 = vmatpush.msra.mxu0 %v766
    %3732 = vmatpush.msra.mxu0 %v765
    %3733 = vmatpush.msra.mxu0 %v764
    %3734 = vmatmul.f32.gmra.mxu0 %v3695
    %v3735 = vpop.f32.mrf.mxu0
    %v3736 = vadd.f32 0.0, %v3735
    %3737 = vdwg.mxu0
    %v3738 = vadd.f32 %v3652, %v3736
    %3739 = vmatpush.msra.mxu0 0.0
    %3740 = vmatpush.msra.mxu0 0.0
    %3741 = vmatpush.msra.mxu0 0.0
    %3742 = vmatpush.msra.mxu0 0.0
    %3743 = vmatpush.msra.mxu0 0.0
    %3744 = vmatpush.msra.mxu0 0.0
    %3745 = vmatpush.msra.mxu0 0.0
    %3746 = vmatpush.msra.mxu0 0.0
    %3747 = vmatpush.msra.mxu0 0.0
    %3748 = vmatpush.msra.mxu0 0.0
    %3749 = vmatpush.msra.mxu0 0.0
    %3750 = vmatpush.msra.mxu0 0.0
    %3751 = vmatpush.msra.mxu0 %v793
    %3752 = vmatpush.msra.mxu0 %v792
    %3753 = vmatpush.msra.mxu0 %v791
    %3754 = vmatpush.msra.mxu0 %v790
    %3755 = vmatmul.f32.gmra.mxu0 %v3695
    %v3756 = vpop.f32.mrf.mxu0
    %v3757 = vadd.f32 0.0, %v3756
    %3758 = vdwg.mxu0
    %v3759 = vadd.f32 %v3672, %v3757
    %3760 = vmatpush.msra.mxu0 0.0
    %3761 = vmatpush.msra.mxu0 0.0
    %3762 = vmatpush.msra.mxu0 0.0
    %3763 = vmatpush.msra.mxu0 0.0
    %3764 = vmatpush.msra.mxu0 0.0
    %3765 = vmatpush.msra.mxu0 0.0
    %3766 = vmatpush.msra.mxu0 0.0
    %3767 = vmatpush.msra.mxu0 0.0
    %3768 = vmatpush.msra.mxu0 0.0
    %3769 = vmatpush.msra.mxu0 0.0
    %3770 = vmatpush.msra.mxu0 0.0
    %3771 = vmatpush.msra.mxu0 0.0
    %3772 = vmatpush.msra.mxu0 %v819
    %3773 = vmatpush.msra.mxu0 %v818
    %3774 = vmatpush.msra.mxu0 %v817
    %3775 = vmatpush.msra.mxu0 %v816
    %3776 = vmatmul.f32.gmra.mxu0 %v3695
    %v3777 = vpop.f32.mrf.mxu0
    %v3778 = vadd.f32 0.0, %v3777
    %3779 = vdwg.mxu0
    %v3780 = vadd.f32 %v3692, %v3778
    %v3781 = vxor.u32 %v3717, 2147483648
    %v3782 = vmul.f32 %v3781, 1.442695
    %v3783 = vpow.pop %v3782
    %v3784 = vadd.f32 %v3783, 1.0
    %v3785 = vrcp.pop %v3784
    %v3786 = vmul.f32 %v3784, %v3785
    %v3787 = vsub.f32 1.0, %v3786
    %v3788 = vmul.f32 %v3785, %v3787
    %v3789 = vadd.f32 %v3785, %v3788
    %vm3790 = vweird.f32 %v3784
    %vm3791 = vweird.f32 %v3785
    %vm3792 = vmor %vm3790, %vm3791
    %v3793 = vsel %vm3792, %v3785, %v3789
    %v3794 = vand.u32 2147483647, %v3784
    %vm3795 = vcmp.eq.f32.partialorder %v3794, 8.507059e+37
    %v3796 = vand.u32 %v3784, 2147483648
    %v3797 = vor.u32 1.1754944e-38, %v3796
    %v3798 = vsel %vm3795, %v3797, %v3793
    %v3799 = vmul.f32 1.0, %v3798
    %v3800 = vxor.u32 %v3738, 2147483648
    %v3801 = vmul.f32 %v3800, 1.442695
    %v3802 = vpow.pop %v3801
    %v3803 = vadd.f32 %v3802, 1.0
    %v3804 = vrcp.pop %v3803
    %v3805 = vmul.f32 %v3803, %v3804
    %v3806 = vsub.f32 1.0, %v3805
    %v3807 = vmul.f32 %v3804, %v3806
    %v3808 = vadd.f32 %v3804, %v3807
    %vm3809 = vweird.f32 %v3803
    %vm3810 = vweird.f32 %v3804
    %vm3811 = vmor %vm3809, %vm3810
    %v3812 = vsel %vm3811, %v3804, %v3808
    %v3813 = vand.u32 2147483647, %v3803
    %vm3814 = vcmp.eq.f32.partialorder %v3813, 8.507059e+37
    %v3815 = vand.u32 %v3803, 2147483648
    %v3816 = vor.u32 1.1754944e-38, %v3815
    %v3817 = vsel %vm3814, %v3816, %v3812
    %v3818 = vmul.f32 1.0, %v3817
    %v3819 = vxor.u32 %v3759, 2147483648
    %v3820 = vmul.f32 %v3819, 1.442695
    %v3821 = vpow.pop %v3820
    %v3822 = vadd.f32 %v3821, 1.0
    %v3823 = vrcp.pop %v3822
    %v3824 = vmul.f32 %v3822, %v3823
    %v3825 = vsub.f32 1.0, %v3824
    %v3826 = vmul.f32 %v3823, %v3825
    %v3827 = vadd.f32 %v3823, %v3826
    %vm3828 = vweird.f32 %v3822
    %vm3829 = vweird.f32 %v3823
    %vm3830 = vmor %vm3828, %vm3829
    %v3831 = vsel %vm3830, %v3823, %v3827
    %v3832 = vand.u32 2147483647, %v3822
    %vm3833 = vcmp.eq.f32.partialorder %v3832, 8.507059e+37
    %v3834 = vand.u32 %v3822, 2147483648
    %v3835 = vor.u32 1.1754944e-38, %v3834
    %v3836 = vsel %vm3833, %v3835, %v3831
    %v3837 = vmul.f32 1.0, %v3836
    %v3838 = vmul.f32 %v3837, 2.0
    %v3839 = vsub.f32 %v3838, 1.0
    %v3840 = vxor.u32 %v3780, 2147483648
    %v3841 = vmul.f32 %v3840, 1.442695
    %v3842 = vpow.pop %v3841
    %v3843 = vadd.f32 %v3842, 1.0
    %v3844 = vrcp.pop %v3843
    %v3845 = vmul.f32 %v3843, %v3844
    %v3846 = vsub.f32 1.0, %v3845
    %v3847 = vmul.f32 %v3844, %v3846
    %v3848 = vadd.f32 %v3844, %v3847
    %vm3849 = vweird.f32 %v3843
    %vm3850 = vweird.f32 %v3844
    %vm3851 = vmor %vm3849, %vm3850
    %v3852 = vsel %vm3851, %v3844, %v3848
    %v3853 = vand.u32 2147483647, %v3843
    %vm3854 = vcmp.eq.f32.partialorder %v3853, 8.507059e+37
    %v3855 = vand.u32 %v3843, 2147483648
    %v3856 = vor.u32 1.1754944e-38, %v3855
    %v3857 = vsel %vm3854, %v3856, %v3852
    %v3858 = vmul.f32 1.0, %v3857
    %v3859 = vmul.f32 %v3818, %v3441
    %v3860 = vmul.f32 %v3799, %v3839
    %v3861 = vadd.f32 %v3859, %v3860
    %v3862 = vtanh.pop %v3861
    %v3863 = vmul.f32 %v3858, %v3862
    %v3864 = vld [vmem:[%s11] sm:$0xff]
    %v3865 = vld [vmem:[%s11 + $0x8] sm:$0xff]
    %v3866 = vld [vmem:[%s11 + $0x10] sm:$0xff]
    %v3867 = vld [vmem:[%s11 + $0x18] sm:$0xff]
    %v3869 = vsel %vm425, %v3863, 0
    %3871 = vmatpush.msra.mxu0 0.0
    %3872 = vmatpush.msra.mxu0 0.0
    %3873 = vmatpush.msra.mxu0 0.0
    %3874 = vmatpush.msra.mxu0 0.0
    %3875 = vmatpush.msra.mxu0 0.0
    %3876 = vmatpush.msra.mxu0 0.0
    %3877 = vmatpush.msra.mxu0 0.0
    %3878 = vmatpush.msra.mxu0 0.0
    %3879 = vmatpush.msra.mxu0 0.0
    %3880 = vmatpush.msra.mxu0 0.0
    %3881 = vmatpush.msra.mxu0 0.0
    %3882 = vmatpush.msra.mxu0 0.0
    %3883 = vmatpush.msra.mxu0 %v3867
    %3884 = vmatpush.msra.mxu0 %v3866
    %3885 = vmatpush.msra.mxu0 %v3865
    %3886 = vmatpush.msra.mxu0 %v3864
    %3887 = vmatmul.f32.gmra.mxu0 %v1175
    %v3888 = vpop.f32.mrf.mxu0
    %v3889 = vadd.f32 0.0, %v3888
    %3890 = vmatmul.f32.gmra.mxu0 %v1595
    %v3891 = vpop.f32.mrf.mxu0
    %v3892 = vadd.f32 0.0, %v3891
    %3893 = vmatmul.f32.gmra.mxu0 %v2015
    %v3894 = vpop.f32.mrf.mxu0
    %v3895 = vadd.f32 0.0, %v3894
    %3896 = vmatmul.f32.gmra.mxu0 %v2435
    %v3897 = vpop.f32.mrf.mxu0
    %v3898 = vadd.f32 0.0, %v3897
    %3899 = vmatmul.f32.gmra.mxu0 %v2855
    %v3900 = vpop.f32.mrf.mxu0
    %v3901 = vadd.f32 0.0, %v3900
    %3902 = vmatmul.f32.gmra.mxu0 %v3275
    %v3903 = vpop.f32.mrf.mxu0
    %v3904 = vadd.f32 0.0, %v3903
    %3905 = vmatmul.f32.gmra.mxu0 %v3695
    %v3906 = vpop.f32.mrf.mxu0
    %v3907 = vadd.f32 0.0, %v3906
    %3908 = vmatmul.f32.gmra.mxu0 %v3869
    %v3909 = vpop.f32.mrf.mxu0
    %v3910 = vadd.f32 0.0, %v3909
    %3911 = vdwg.mxu0
    %3912 = vmatpush.msra.mxu0 0.0
    %3913 = vmatpush.msra.mxu0 0.0
    %3914 = vmatpush.msra.mxu0 0.0
    %3915 = vmatpush.msra.mxu0 0.0
    %3916 = vmatpush.msra.mxu0 0.0
    %3917 = vmatpush.msra.mxu0 0.0
    %3918 = vmatpush.msra.mxu0 0.0
    %3919 = vmatpush.msra.mxu0 0.0
    %3920 = vmatpush.msra.mxu0 %v414
    %3921 = vmatpush.msra.mxu0 %v413
    %3922 = vmatpush.msra.mxu0 %v412
    %3923 = vmatpush.msra.mxu0 %v411
    %3924 = vmatpush.msra.mxu0 %v410
    %3925 = vmatpush.msra.mxu0 %v409
    %3926 = vmatpush.msra.mxu0 %v408
    %3927 = vmatpush.msra.mxu0 %v407
    %3928 = vmatmul.f32.gmra.mxu0 %v178
    %v3929 = vpop.f32.mrf.mxu0
    %v3930 = vadd.f32 %v3889, %v3929
    %3931 = vmatmul.f32.gmra.mxu0 %v181
    %v3932 = vpop.f32.mrf.mxu0
    %v3933 = vadd.f32 %v3892, %v3932
    %3934 = vmatmul.f32.gmra.mxu0 %v184
    %v3935 = vpop.f32.mrf.mxu0
    %v3936 = vadd.f32 %v3895, %v3935
    %3937 = vmatmul.f32.gmra.mxu0 %v187
    %v3938 = vpop.f32.mrf.mxu0
    %v3939 = vadd.f32 %v3898, %v3938
    %3940 = vmatmul.f32.gmra.mxu0 %v190
    %v3941 = vpop.f32.mrf.mxu0
    %v3942 = vadd.f32 %v3901, %v3941
    %3943 = vmatmul.f32.gmra.mxu0 %v193
    %v3944 = vpop.f32.mrf.mxu0
    %v3945 = vadd.f32 %v3904, %v3944
    %3946 = vmatmul.f32.gmra.mxu0 %v196
    %v3947 = vpop.f32.mrf.mxu0
    %v3948 = vadd.f32 %v3907, %v3947
    %3949 = vmatmul.f32.gmra.mxu0 %v199
    %v3950 = vpop.f32.mrf.mxu0
    %v3951 = vadd.f32 %v3910, %v3950
    %3952 = vdwg.mxu0
    %v3953 = vld [vmem:[%s12] sm:$0x1]
    %v3955 = vperm.slane %v3953, 0
    %v3957 = vadd.f32 %v3930, %v3955
    %v3958 = vadd.f32 %v3933, %v3955
    %v3959 = vadd.f32 %v3936, %v3955
    %v3960 = vadd.f32 %v3939, %v3955
    %v3961 = vadd.f32 %v3942, %v3955
    %v3962 = vadd.f32 %v3945, %v3955
    %v3963 = vadd.f32 %v3948, %v3955
    %v3964 = vadd.f32 %v3951, %v3955
    %v3965 = vmax.f32 %v3957, 0.0
    %v3966 = vmax.f32 %v3958, 0.0
    %v3967 = vmax.f32 %v3959, 0.0
    %v3968 = vmax.f32 %v3960, 0.0
    %v3969 = vmax.f32 %v3961, 0.0
    %v3970 = vmax.f32 %v3962, 0.0
    %v3971 = vmax.f32 %v3963, 0.0
    %v3972 = vmax.f32 %v3964, 0.0
    %v3973 = vld [vmem:[%s13] sm:$0x1]
    %s3974 = sld [smem:[#allocation2]]
    %v3975 = vstv %s3974
    %v3977 = vsel %vm425, %v3973, 0
    %v3980 = vsel %vm425, %v3965, 0
    %v3983 = vsel %vm425, %v3966, 0
    %v3986 = vsel %vm425, %v3967, 0
    %v3989 = vsel %vm425, %v3968, 0
    %v3992 = vsel %vm425, %v3969, 0
    %v3995 = vsel %vm425, %v3970, 0
    %v3998 = vsel %vm425, %v3971, 0
    %v4001 = vsel %vm425, %v3972, 0
    %4003 = vmatpush.xpose.msra.mxu0 0.0
    %4004 = vmatpush.xpose.msra.mxu0 0.0
    %4005 = vmatpush.xpose.msra.mxu0 0.0
    %4006 = vmatpush.xpose.msra.mxu0 0.0
    %4007 = vmatpush.xpose.msra.mxu0 0.0
    %4008 = vmatpush.xpose.msra.mxu0 0.0
    %4009 = vmatpush.xpose.msra.mxu0 0.0
    %4010 = vmatpush.xpose.msra.mxu0 0.0
    %4011 = vmatpush.xpose.msra.mxu0 %v4001
    %4012 = vmatpush.xpose.msra.mxu0 %v3998
    %4013 = vmatpush.xpose.msra.mxu0 %v3995
    %4014 = vmatpush.xpose.msra.mxu0 %v3992
    %4015 = vmatpush.xpose.msra.mxu0 %v3989
    %4016 = vmatpush.xpose.msra.mxu0 %v3986
    %4017 = vmatpush.xpose.msra.mxu0 %v3983
    %4018 = vmatpush.xpose.msra.mxu0 %v3980
    %4019 = vmatmul.f32.gmra.mxu0 %v3977
    %v4020 = vpop.f32.mrf.mxu0
    %v4021 = vadd.f32 %v3975, %v4020
    %4022 = vdwg.mxu0
    %vm4023 = vcmask 516096
    %4024 = vst.msk [vmem:[#allocation6] sm:$0x1] %vm4023, %v4021
    %4025 = vst.msk [vmem:[#allocation7] sm:$0xff] %vm425, %v3610
    %4026 = vst.msk [vmem:[#allocation9] sm:$0xff] %vm425, %v3608
    %s4027 = scalar_lea.vmem [#allocation7], 8
    %4028 = vst.msk [vmem:[%s4027] sm:$0xff] %vm425, %v3863
    %s4029 = scalar_lea.vmem [#allocation9], 8
    %4030 = vst.msk [vmem:[%s4029] sm:$0xff] %vm425, %v3861
    // Predicated region
    $region66: #{tpu_custom_call.1} parent=1 // pred_check
      _
    $region67: #{tpu_custom_call.1} parent=1 // pred_check_branch
      %4032 = sbr.rel (0) target = $region69
    $region68: #{tpu_custom_call.1} parent=1 // pred_region
      %4034 = vsyncadd [#allocation5], 0
      %s4036 = sshll.u32 [#allocation6], 4
      %s4037 = int_to_ptr.vmem [resolvable:$true] %s4036
      %s4038 = sshll.u32 %s15, 4
      %s4039 = int_to_ptr.hbm [resolvable:$true] %s4038
      %4041 = dma.vmem_to_hbm [thread:$0]  %s4037, 16, %s4039, [#allocation5]
    $region69: #{tpu_custom_call.1} parent=1 // pred_fallthru
      _
    // Predicated region
    $region70: #{tpu_custom_call.1} parent=1 // pred_check
      _
    $region71: #{tpu_custom_call.1} parent=1 // pred_check_branch
      %4043 = sbr.rel (0) target = $region73
    $region72: #{tpu_custom_call.1} parent=1 // pred_region
      %4045 = vsyncadd [#allocation8], 0
      %s4046 = sshll.u32 [#allocation7], 4
      %s4047 = int_to_ptr.vmem [resolvable:$true] %s4046
      %s4048 = sshll.u32 %s16, 4
      %s4049 = int_to_ptr.hbm [resolvable:$true] %s4048
      %4054 = dma.vmem_to_hbm [thread:$0]  %s4047, 256, %s4049, [#allocation8], 128, 128, 8
    $region73: #{tpu_custom_call.1} parent=1 // pred_fallthru
      _
    // Predicated region
    $region74: #{tpu_custom_call.1} parent=1 // pred_check
      _
    $region75: #{tpu_custom_call.1} parent=1 // pred_check_branch
      %4056 = sbr.rel (0) target = $region77
    $region76: #{tpu_custom_call.1} parent=1 // pred_region
      %4058 = vsyncadd [#allocation8], 0
      %s4059 = sshll.u32 [#allocation9], 4
      %s4060 = int_to_ptr.vmem [resolvable:$true] %s4059
      %s4061 = sshll.u32 %s17, 4
      %s4062 = int_to_ptr.hbm [resolvable:$true] %s4061
      %4067 = dma.vmem_to_hbm [thread:$0]  %s4060, 256, %s4062, [#allocation8], 128, 128, 8
    $region77: #{tpu_custom_call.1} parent=1 // pred_fallthru
      _
    // Predicated region
    $region78: #{tpu_custom_call.1} parent=1 // pred_check
      _
    $region79: #{tpu_custom_call.1} parent=1 // pred_check_branch
      %4069 = sbr.rel (0) target = $region81
    $region80: #{tpu_custom_call.1} parent=1 // pred_region
      %4071 = dma.done [#allocation5], 16
    $region81: #{tpu_custom_call.1} parent=1 // pred_fallthru
      _
    // Predicated region
    $region82: #{tpu_custom_call.1} parent=1 // pred_check
      _
    $region83: #{tpu_custom_call.1} parent=1 // pred_check_branch
      %4073 = sbr.rel (0) target = $region85
    $region84: #{tpu_custom_call.1} parent=1 // pred_region
      %4075 = dma.done [#allocation8], 256
    $region85: #{tpu_custom_call.1} parent=1 // pred_fallthru
      _
    // Predicated region
    $region86: #{tpu_custom_call.1} parent=1 // pred_check
      _
    $region87: #{tpu_custom_call.1} parent=1 // pred_check_branch
      %4077 = sbr.rel (0) target = $region89
    $region88: #{tpu_custom_call.1} parent=1 // pred_region
      %4079 = dma.done [#allocation8], 256
    $region89: #{tpu_custom_call.1} parent=1 // pred_fallthru
      _
    %4080 = vsyncpa [#allocation4], 1
    %4081 = vsyncpa [#allocation5], 1
    %4082 = vsyncpa [#allocation8], 1

</llo_original>
